<compile_context>
chip_gen: v7x
topology: tpu7x:2x2x1
jax: 0.10.0
libtpu: 0.0.40
codegen_flags: <defaults>
</compile_context>

<pallas_src>
import functools

import jax
import jax.numpy as jnp
from jax.experimental import pallas as pl
from jax.experimental.pallas import tpu as pltpu

# ---------------------------------------------------------------------------
# Configuration (small shapes consistent with DeepHar defaults)
# ---------------------------------------------------------------------------
T = 16            # num_frames
NJ = 16           # num_joints
NA = 10           # num_actions
NF = 8            # visual feature channels produced by the pose estimator
H = W = 32        # input image size (small stand-in for 256x256 MPII crops)
PATCH = 4         # stem downsampling patch  -> feature / heatmap maps of 8x8
HF, WF = H // PATCH, W // PATCH
HWF = HF * WF
PATCH_A = 4       # action-model patch on the (T=16, NJ=16) cube -> 4x4 action maps
GA = (T // PATCH_A) * (NJ // PATCH_A)   # 16 spatial positions in each action heatmap
HIDDEN = 32
NUM_PRED_BLOCKS = 4                      # intermediate action predictions per model
KIN = NF * PATCH_A * PATCH_A             # 128: shared (padded) action-model input width


# ---------------------------------------------------------------------------
# Kernel 1: fused pose-estimator tail + heatmap/feature pooling
# ---------------------------------------------------------------------------
def _pose_tail_kernel(cols_ref, sw_ref, sb_ref, hw_ref, hb_ref, xs_ref, ys_ref,
                      poses_ref, cube_ref):
    # TODO(synk): Stem / ReceptionBlock internals of Mpii_4 are not provided; a single
    # strided conv stem + 1x1 heatmap head stands in for the 4 reception blocks.
    feat = jnp.dot(cols_ref[...], sw_ref[...],
                   preferred_element_type=jnp.float32) + sb_ref[...]        # (T*HWF, NF)
    feat = jnp.maximum(feat, 0.0)
    hm = jnp.dot(feat, hw_ref[...],
                 preferred_element_type=jnp.float32) + hb_ref[...]          # (T*HWF, NJ)

    hm3 = hm.reshape(T, HWF, NJ)
    ft3 = feat.reshape(T, HWF, NF)

    # y[t, j, f] = sum_{h,w} heatmaps[t,j,h,w] * features[t,f,h,w], emitted directly
    # in the (NF, T, NJ) layout the visual action model consumes (no XLA transpose).
    cube_ref[...] = jnp.einsum("thf,thj->ftj", ft3, hm3,
                               preferred_element_type=jnp.float32)

    # Soft-argmax pose readout (spatial softmax expectation) per (frame, joint).
    hm_tjh = jnp.transpose(hm3, (0, 2, 1))                                  # (T, NJ, HWF)
    m = jnp.max(hm_tjh, axis=2, keepdims=True)
    e = jnp.exp(hm_tjh - m)
    p = e / jnp.sum(e, axis=2, keepdims=True)
    xs = xs_ref[...].reshape(1, 1, HWF)
    ys = ys_ref[...].reshape(1, 1, HWF)
    poses_ref[0] = jnp.sum(p * xs, axis=2)                                  # x   (T, NJ)
    poses_ref[1] = jnp.sum(p * ys, axis=2)                                  # y
    # TODO(synk): visibility = sigmoid(max logit) is a convention choice for the
    # unreleased reception-block head.
    poses_ref[2] = jax.nn.sigmoid(jnp.max(hm_tjh, axis=2))                  # vis (T, NJ)


def pose_estimator_and_pool(params, x):
    """x (T,3,H,W) -> poses_ftj (3,T,NJ), action_cube (NF,T,NJ) in one pallas_call."""
    t = x.shape[0]
    assert t == T
    cols = im2col_batched(x, PATCH)                                         # (T*HWF, 3*P*P)
    kin = cols.shape[1]

    ys_grid, xs_grid = jnp.meshgrid(jnp.arange(HF), jnp.arange(WF), indexing="ij")
    xs = (xs_grid.astype(jnp.float32) / max(WF - 1, 1)).reshape(1, HWF)
    ys = (ys_grid.astype(jnp.float32) / max(HF - 1, 1)).reshape(1, HWF)

    return pl.pallas_call(
        _pose_tail_kernel,
        out_shape=(jax.ShapeDtypeStruct((3, T, NJ), jnp.float32),
                   jax.ShapeDtypeStruct((NF, T, NJ), jnp.float32)),
        grid=(1,),
        in_specs=[pl.BlockSpec((T * HWF, kin), lambda i: (0, 0)),
                  pl.BlockSpec(params["stem_w"].shape, lambda i: (0, 0)),
                  pl.BlockSpec(params["stem_b"].shape, lambda i: (0, 0)),
                  pl.BlockSpec(params["hm_w"].shape, lambda i: (0, 0)),
                  pl.BlockSpec(params["hm_b"].shape, lambda i: (0, 0)),
                  pl.BlockSpec((1, HWF), lambda i: (0, 0)),
                  pl.BlockSpec((1, HWF), lambda i: (0, 0))],
        out_specs=(pl.BlockSpec((3, T, NJ), lambda i: (0, 0, 0)),
                   pl.BlockSpec((NF, T, NJ), lambda i: (0, 0, 0))),
    )(cols, params["stem_w"], params["stem_b"], params["hm_w"], params["hm_b"], xs, ys)


# ---------------------------------------------------------------------------
# Kernel 2: both action models fully fused (grid=(2,) -> one model per grid step)
# ---------------------------------------------------------------------------
def _action_models_kernel(cols_ref, win_ref, bin_ref, wt_ref, bt_ref,
                          wp_ref, bp_ref, wr_ref, br_ref, preds_ref):
    # TODO(synk): PoseModel / VisualModel definitions not provided; implemented as a
    # deephar-style trunk (patch conv + 1x1 conv blocks with prediction re-injection).
    h = jnp.dot(cols_ref[0], win_ref[0], preferred_element_type=jnp.float32) + bin_ref[0]
    h = jnp.maximum(h, 0.0)                                                 # (GA, HIDDEN)
    for b in range(NUM_PRED_BLOCKS):                                        # unrolled
        h = jnp.maximum(
            jnp.dot(h, wt_ref[0, b], preferred_element_type=jnp.float32) + bt_ref[0, b],
            0.0)
        p = jnp.dot(h, wp_ref[0, b], preferred_element_type=jnp.float32) + bp_ref[0, b]
        h = h + jnp.dot(p, wr_ref[0, b], preferred_element_type=jnp.float32) + br_ref[0, b]
        preds_ref[0, b] = p                                                 # (GA, NA)


def action_models(params, cols_all):
    """cols_all (2, GA, KIN) -> intermediate predictions (2, NUM_PRED_BLOCKS, GA, NA)."""
    blk3 = lambda m: (m, 0, 0)
    blk4 = lambda m: (m, 0, 0, 0)
    return pl.pallas_call(
        _action_models_kernel,
        out_shape=jax.ShapeDtypeStruct((2, NUM_PRED_BLOCKS, GA, NA), jnp.float32),
        grid=(2,),
        in_specs=[pl.BlockSpec((1, GA, KIN), blk3),
                  pl.BlockSpec((1, KIN, HIDDEN), blk3),
                  pl.BlockSpec((1, 1, HIDDEN), blk3),
                  pl.BlockSpec((1, NUM_PRED_BLOCKS, HIDDEN, HIDDEN), blk4),
                  pl.BlockSpec((1, NUM_PRED_BLOCKS, 1, HIDDEN), blk4),
                  pl.BlockSpec((1, NUM_PRED_BLOCKS, HIDDEN, NA), blk4),
                  pl.BlockSpec((1, NUM_PRED_BLOCKS, 1, NA), blk4),
                  pl.BlockSpec((1, NUM_PRED_BLOCKS, NA, HIDDEN), blk4),
                  pl.BlockSpec((1, NUM_PRED_BLOCKS, 1, HIDDEN), blk4)],
        out_specs=pl.BlockSpec((1, NUM_PRED_BLOCKS, GA, NA), blk4),
        compiler_params=pltpu.CompilerParams(dimension_semantics=("parallel",)),
    )(cols_all, params["w_in"], params["b_in"], params["wt"], params["bt"],
      params["wp"], params["bp"], params["wr"], params["br"])


# ---------------------------------------------------------------------------
# Kernel 3: fused MaxMinPooling + Softmax2d (x9) + HeatmapWeighting + final output
# ---------------------------------------------------------------------------
def _final_stage_kernel(preds_ref, hww_ref, hwb_ref, out_ref):
    preds = preds_ref[...]                                                  # (2, NB, GA, NA)
    # TODO(synk): MaxMinPooling source not provided; deephar convention = max + min.
    pooled = jnp.max(preds, axis=2) + jnp.min(preds, axis=2)                # (2, NB, NA)
    m = jnp.max(pooled, axis=2, keepdims=True)
    e = jnp.exp(pooled - m)
    sm = e / jnp.sum(e, axis=2, keepdims=True)                              # Softmax2d
    out_ref[0:NUM_PRED_BLOCKS, :] = sm[0]                                   # pose branch
    out_ref[NUM_PRED_BLOCKS:2 * NUM_PRED_BLOCKS, :] = sm[1]                 # visual branch

    # TODO(synk): HeatmapWeighting source not provided; implemented as a 1x1 conv over
    # the NA action channels (spatial shape preserved), shared across both branches.
    w = hww_ref[...]
    b = hwb_ref[...]
    fp = jnp.dot(preds[0, NUM_PRED_BLOCKS - 1], w, preferred_element_type=jnp.float32) + b
    fv = jnp.dot(preds[1, NUM_PRED_BLOCKS - 1], w, preferred_element_type=jnp.float32) + b
    fsum = fp + fv                                                          # (GA, NA)
    pooled_f = (jnp.max(fsum, axis=0, keepdims=True)
                + jnp.min(fsum, axis=0, keepdims=True))                     # (1, NA)
    mf = jnp.max(pooled_f, axis=1, keepdims=True)
    ef = jnp.exp(pooled_f - mf)
    out_ref[2 * NUM_PRED_BLOCKS:2 * NUM_PRED_BLOCKS + 1, :] = (
        ef / jnp.sum(ef, axis=1, keepdims=True))


def final_stage(preds, hw_w, hw_b):
    rows = 2 * NUM_PRED_BLOCKS + 1
    return pl.pallas_call(
        _final_stage_kernel,
        out_shape=jax.ShapeDtypeStruct((rows, NA), jnp.float32),
        grid=(1,),
        in_specs=[pl.BlockSpec((2, NUM_PRED_BLOCKS, GA, NA), lambda i: (0, 0, 0, 0)),
                  pl.BlockSpec((NA, NA), lambda i: (0, 0)),
                  pl.BlockSpec((1, NA), lambda i: (0, 0))],
        out_specs=pl.BlockSpec((rows, NA), lambda i: (0, 0)),
    )(preds, hw_w, hw_b)


# ---------------------------------------------------------------------------
# Plain-JAX glue (layout only)
# ---------------------------------------------------------------------------
def im2col(x, patch):
    # x: (C, H, W) -> (grid_h * grid_w, C * patch * patch)
    c, h, w = x.shape
    gh, gw = h // patch, w // patch
    x = x.reshape(c, gh, patch, gw, patch)
    x = jnp.transpose(x, (1, 3, 0, 2, 4))
    return x.reshape(gh * gw, c * patch * patch)


def im2col_batched(x, patch):
    # x: (T, C, H, W) -> (T * grid_h * grid_w, C * patch * patch)
    t, c, h, w = x.shape
    gh, gw = h // patch, w // patch
    x = x.reshape(t, c, gh, patch, gw, patch)
    x = jnp.transpose(x, (0, 2, 4, 1, 3, 5))
    return x.reshape(t * gh * gw, c * patch * patch)


# ---------------------------------------------------------------------------
# DeepHar forward (use_timedistributed=False, alternate_time=False, gt_pose=None)
# ---------------------------------------------------------------------------
def deephar_forward(params, x):
    t = x.shape[0]

    # --- extract_pose_for_frames + heatmap/feature pooling (1 pallas_call) ---
    poses_ftj, action_cube = pose_estimator_and_pool(params["pose_est"], x)

    poses = jnp.transpose(poses_ftj, (1, 2, 0))                             # (T, NJ, 3)
    # TODO(synk): the 4 reception-block pose outputs are replicated from the single head.
    train_poses = jnp.broadcast_to(poses[:, None, :, :], (t, 4, NJ, 3))     # (T, 4, NJ, 3)
    pose_cube = poses_ftj[0:2]                                              # (2, T, NJ)
    assert poses.shape[1] == NJ

    # --- both action models, one pallas_call, grid=(2,) "parallel" ---
    pose_cols = im2col(pose_cube, PATCH_A)                                  # (GA, 2*16)
    vis_cols = im2col(action_cube, PATCH_A)                                 # (GA, KIN)
    pose_cols = jnp.pad(pose_cols, ((0, 0), (0, KIN - pose_cols.shape[1])))
    cols_all = jnp.stack([pose_cols, vis_cols], axis=0)                     # (2, GA, KIN)
    preds = action_models(params["action"], cols_all)                       # (2, NB, GA, NA)

    # --- all MaxMin+Softmax heads + HeatmapWeighting + final output (1 pallas_call) ---
    out9 = final_stage(preds, params["hw"]["w"], params["hw"]["b"])         # (9, NA)
    pose_action_predictions = out9[0:NUM_PRED_BLOCKS].T                     # (NA, 4)
    vis_action_predictions = out9[NUM_PRED_BLOCKS:2 * NUM_PRED_BLOCKS].T    # (NA, 4)
    final_output = out9[2 * NUM_PRED_BLOCKS:].T                             # (NA, 1)

    return (train_poses, poses, pose_action_predictions,
            vis_action_predictions, final_output)


# ---------------------------------------------------------------------------
# Deterministic parameter init
# ---------------------------------------------------------------------------
def init_params(key):
    keys = iter(jax.random.split(key, 32))

    def nrm(shape, scale=0.1):
        return scale * jax.random.normal(next(keys), shape, dtype=jnp.float32)

    def zeros(shape):
        return jnp.zeros(shape, jnp.float32)

    def padded_w_in(cin):
        # Pose model has 2 input channels, visual model NF; zero-pad to shared KIN width
        # so one kernel (and lane-dense 128-wide matmul input) serves both models.
        w = nrm((cin * PATCH_A * PATCH_A, HIDDEN))
        return jnp.pad(w, ((0, KIN - cin * PATCH_A * PATCH_A), (0, 0)))

    action = dict(
        w_in=jnp.stack([padded_w_in(2), padded_w_in(NF)], axis=0),          # (2, KIN, HIDDEN)
        b_in=zeros((2, 1, HIDDEN)),
        wt=nrm((2, NUM_PRED_BLOCKS, HIDDEN, HIDDEN)),
        bt=zeros((2, NUM_PRED_BLOCKS, 1, HIDDEN)),
        wp=nrm((2, NUM_PRED_BLOCKS, HIDDEN, NA)),
        bp=zeros((2, NUM_PRED_BLOCKS, 1, NA)),
        wr=nrm((2, NUM_PRED_BLOCKS, NA, HIDDEN)),
        br=zeros((2, NUM_PRED_BLOCKS, 1, HIDDEN)),
    )

    return dict(
        pose_est=dict(stem_w=nrm((3 * PATCH * PATCH, NF)), stem_b=zeros((1, NF)),
                      hm_w=nrm((NF, NJ), scale=1.0), hm_b=zeros((1, NJ))),
        action=action,
        hw=dict(w=nrm((NA, NA)), b=zeros((1, NA))),
    )


# ---------------------------------------------------------------------------
if __name__ == "__main__":
    key = jax.random.PRNGKey(0)
    pkey, xkey = jax.random.split(key)
    params = init_params(pkey)

    # Input: T frames of 3-channel images (NCHW per frame, frames stacked on dim 0).
    x = jax.random.normal(xkey, (T, 3, H, W), dtype=jnp.float32)

    fwd = jax.jit(functools.partial(deephar_forward, params))
    out = fwd(x)
    out = jax.block_until_ready(out)

    train_poses, poses, pose_preds, vis_preds, final_output = out
    assert train_poses.shape == (T, 4, NJ, 3)
    assert poses.shape == (T, NJ, 3)
    assert pose_preds.shape == (NA, NUM_PRED_BLOCKS)
    assert vis_preds.shape == (NA, NUM_PRED_BLOCKS)
    assert final_output.shape == (NA, 1)
    assert all(bool(jnp.all(jnp.isfinite(o))) for o in out)
    # Softmax outputs should each sum to 1 over the action axis.
    assert bool(jnp.allclose(jnp.sum(final_output), 1.0, atol=1e-4))

    print("KERNEL_OK")
</pallas_src>

<mosaic_0001>
module attributes {stable_mosaic.version = 11 : i64} {
  func.func @_pose_tail_kernel(%arg0: i32, %arg1: memref<1024x48xf32, #tpu.memory_space<vmem>>, %arg2: memref<48x8xf32, #tpu.memory_space<vmem>>, %arg3: memref<1x8xf32, #tpu.memory_space<vmem>>, %arg4: memref<8x16xf32, #tpu.memory_space<vmem>>, %arg5: memref<1x16xf32, #tpu.memory_space<vmem>>, %arg6: memref<1x64xf32, #tpu.memory_space<vmem>>, %arg7: memref<1x64xf32, #tpu.memory_space<vmem>>, %arg8: memref<3x16x16xf32, #tpu.memory_space<vmem>>, %arg9: memref<8x16x16xf32, #tpu.memory_space<vmem>>) attributes {dimension_semantics = [#tpu.dimension_semantics<arbitrary>], iteration_bounds = array<i64: 1>, scalar_prefetch = 0 : i64, scratch_operands = 0 : i64, tpu.core_type = #tpu.core_type<tc>, window_params = [{pipeline_mode = #tpu.pipeline_mode<synchronous>, transform_indices = @transform_0, window_bounds = array<i64: 1024, 48>}, {pipeline_mode = #tpu.pipeline_mode<synchronous>, transform_indices = @transform_1, window_bounds = array<i64: 48, 8>}, {pipeline_mode = #tpu.pipeline_mode<synchronous>, transform_indices = @transform_2, window_bounds = array<i64: 1, 8>}, {pipeline_mode = #tpu.pipeline_mode<synchronous>, transform_indices = @transform_3, window_bounds = array<i64: 8, 16>}, {pipeline_mode = #tpu.pipeline_mode<synchronous>, transform_indices = @transform_4, window_bounds = array<i64: 1, 16>}, {pipeline_mode = #tpu.pipeline_mode<synchronous>, transform_indices = @transform_5, window_bounds = array<i64: 1, 64>}, {pipeline_mode = #tpu.pipeline_mode<synchronous>, transform_indices = @transform_6, window_bounds = array<i64: 1, 64>}, {pipeline_mode = #tpu.pipeline_mode<synchronous>, transform_indices = @transform_7, window_bounds = array<i64: 3, 16, 16>}, {pipeline_mode = #tpu.pipeline_mode<synchronous>, transform_indices = @transform_8, window_bounds = array<i64: 8, 16, 16>}]} {
    %c0 = arith.constant 0 : index
    %c0_0 = arith.constant 0 : index
    %0 = vector.load %arg1[%c0, %c0_0] : memref<1024x48xf32, #tpu.memory_space<vmem>>, vector<1024x48xf32>
    %c0_1 = arith.constant 0 : index
    %c0_2 = arith.constant 0 : index
    %1 = vector.load %arg2[%c0_1, %c0_2] : memref<48x8xf32, #tpu.memory_space<vmem>>, vector<48x8xf32>
    %cst = arith.constant dense<0.000000e+00> : vector<1024x8xf32>
    %2 = tpu.matmul %0, %1, %cst {dimension_numbers = #tpu.dot_dimension_numbers<[1], [0], [0], [1], [0, 0, 1, 1], [], []>} : vector<1024x48xf32>, vector<48x8xf32>, vector<1024x8xf32> -> vector<1024x8xf32>
    %c0_3 = arith.constant 0 : index
    %c0_4 = arith.constant 0 : index
    %3 = vector.load %arg3[%c0_3, %c0_4] : memref<1x8xf32, #tpu.memory_space<vmem>>, vector<1x8xf32>
    %4 = vector.broadcast %3 : vector<1x8xf32> to vector<1024x8xf32>
    %5 = arith.addf %2, %4 : vector<1024x8xf32>
    %cst_5 = arith.constant 0.000000e+00 : f32
    %6 = vector.broadcast %cst_5 : f32 to vector<1024x8xf32>
    %7 = arith.maximumf %5, %6 : vector<1024x8xf32>
    %c0_6 = arith.constant 0 : index
    %c0_7 = arith.constant 0 : index
    %8 = vector.load %arg4[%c0_6, %c0_7] : memref<8x16xf32, #tpu.memory_space<vmem>>, vector<8x16xf32>
    %cst_8 = arith.constant dense<0.000000e+00> : vector<1024x16xf32>
    %9 = tpu.matmul %7, %8, %cst_8 {dimension_numbers = #tpu.dot_dimension_numbers<[1], [0], [0], [1], [0, 0, 1, 1], [], []>} : vector<1024x8xf32>, vector<8x16xf32>, vector<1024x16xf32> -> vector<1024x16xf32>
    %c0_9 = arith.constant 0 : index
    %c0_10 = arith.constant 0 : index
    %10 = vector.load %arg5[%c0_9, %c0_10] : memref<1x16xf32, #tpu.memory_space<vmem>>, vector<1x16xf32>
    %11 = vector.broadcast %10 : vector<1x16xf32> to vector<1024x16xf32>
    %12 = arith.addf %9, %11 : vector<1024x16xf32>
    %13 = vector.shape_cast %12 : vector<1024x16xf32> to vector<16x64x16xf32>
    %14 = vector.shape_cast %7 : vector<1024x8xf32> to vector<16x64x8xf32>
    "tpu.trace_start"() <{level = 10 : i32, message = "thf,thj->ftj"}> : () -> ()
    %cst_11 = arith.constant dense<0.000000e+00> : vector<16x16x8xf32>
    %15 = tpu.matmul %13, %14, %cst_11 {dimension_numbers = #tpu.dot_dimension_numbers<[1], [1], [2], [2], [0, 0, 0, 2, 1, 2], [0], [0]>} : vector<16x64x16xf32>, vector<16x64x8xf32>, vector<16x16x8xf32> -> vector<16x16x8xf32>
    %16 = tpu.transpose %15, [2, 0, 1] : vector<16x16x8xf32> -> vector<8x16x16xf32>
    "tpu.trace_stop"() : () -> ()
    %c0_12 = arith.constant 0 : index
    %c0_13 = arith.constant 0 : index
    %c0_14 = arith.constant 0 : index
    %17 = vector.load %arg9[%c0_12, %c0_13, %c0_14] : memref<8x16x16xf32, #tpu.memory_space<vmem>>, vector<8x16x16xf32>
    tpu.vector_store %arg9[%c0_12, %c0_13, %c0_14], %16 {strides = array<i32>} : memref<8x16x16xf32, #tpu.memory_space<vmem>>, vector<8x16x16xf32>,
    %18 = tpu.transpose %13, [0, 2, 1] : vector<16x64x16xf32> -> vector<16x16x64xf32>
    %cst_15 = arith.constant dense<0xFF800000> : vector<16x16xf32>
    %19 = vector.multi_reduction <maximumf>, %18, %cst_15 [2] : vector<16x16x64xf32> to vector<16x16xf32>
    %20 = vector.shape_cast %19 : vector<16x16xf32> to vector<16x16x1xf32>
    %21 = vector.broadcast %20 : vector<16x16x1xf32> to vector<16x16x64xf32>
    %22 = arith.subf %18, %21 : vector<16x16x64xf32>
    %23 = math.exp %22 : vector<16x16x64xf32>
    %cst_16 = arith.constant dense<0.000000e+00> : vector<16x16xf32>
    %24 = vector.multi_reduction <add>, %23, %cst_16 [2] : vector<16x16x64xf32> to vector<16x16xf32>
    %25 = vector.shape_cast %24 : vector<16x16xf32> to vector<16x16x1xf32>
    %26 = vector.broadcast %25 : vector<16x16x1xf32> to vector<16x16x64xf32>
    %27 = arith.divf %23, %26 : vector<16x16x64xf32>
    %c0_17 = arith.constant 0 : index
    %c0_18 = arith.constant 0 : index
    %28 = vector.load %arg6[%c0_17, %c0_18] : memref<1x64xf32, #tpu.memory_space<vmem>>, vector<1x64xf32>
    %29 = vector.shape_cast %28 : vector<1x64xf32> to vector<1x1x64xf32>
    %c0_19 = arith.constant 0 : index
    %c0_20 = arith.constant 0 : index
    %30 = vector.load %arg7[%c0_19, %c0_20] : memref<1x64xf32, #tpu.memory_space<vmem>>, vector<1x64xf32>
    %31 = vector.shape_cast %30 : vector<1x64xf32> to vector<1x1x64xf32>
    %32 = vector.broadcast %29 : vector<1x1x64xf32> to vector<16x16x64xf32>
    %33 = arith.mulf %27, %32 : vector<16x16x64xf32>
    %cst_21 = arith.constant dense<0.000000e+00> : vector<16x16xf32>
    %34 = vector.multi_reduction <add>, %33, %cst_21 [2] : vector<16x16x64xf32> to vector<16x16xf32>
    %c0_22 = arith.constant 0 : index
    %c0_23 = arith.constant 0 : index
    %c0_24 = arith.constant 0 : index
    %35 = vector.load %arg8[%c0_22, %c0_23, %c0_24] : memref<3x16x16xf32, #tpu.memory_space<vmem>>, vector<1x16x16xf32>
    %36 = vector.shape_cast %35 : vector<1x16x16xf32> to vector<16x16xf32>
    %37 = vector.shape_cast %34 : vector<16x16xf32> to vector<1x16x16xf32>
    tpu.vector_store %arg8[%c0_22, %c0_23, %c0_24], %37 {strides = array<i32>} : memref<3x16x16xf32, #tpu.memory_space<vmem>>, vector<1x16x16xf32>,
    %38 = vector.broadcast %31 : vector<1x1x64xf32> to vector<16x16x64xf32>
    %39 = arith.mulf %27, %38 : vector<16x16x64xf32>
    %cst_25 = arith.constant dense<0.000000e+00> : vector<16x16xf32>
    %40 = vector.multi_reduction <add>, %39, %cst_25 [2] : vector<16x16x64xf32> to vector<16x16xf32>
    %c1 = arith.constant 1 : index
    %c0_26 = arith.constant 0 : index
    %c0_27 = arith.constant 0 : index
    %41 = vector.load %arg8[%c1, %c0_26, %c0_27] : memref<3x16x16xf32, #tpu.memory_space<vmem>>, vector<1x16x16xf32>
    %42 = vector.shape_cast %41 : vector<1x16x16xf32> to vector<16x16xf32>
    %43 = vector.shape_cast %40 : vector<16x16xf32> to vector<1x16x16xf32>
    tpu.vector_store %arg8[%c1, %c0_26, %c0_27], %43 {strides = array<i32>} : memref<3x16x16xf32, #tpu.memory_space<vmem>>, vector<1x16x16xf32>,
    %cst_28 = arith.constant dense<0xFF800000> : vector<16x16xf32>
    %44 = vector.multi_reduction <maximumf>, %18, %cst_28 [2] : vector<16x16x64xf32> to vector<16x16xf32>
    %45 = arith.negf %44 : vector<16x16xf32>
    %46 = math.exp %45 : vector<16x16xf32>
    %cst_29 = arith.constant 1.000000e+00 : f32
    %47 = vector.broadcast %cst_29 : f32 to vector<16x16xf32>
    %48 = arith.addf %47, %46 : vector<16x16xf32>
    %49 = arith.divf %47, %48 : vector<16x16xf32>
    %c2 = arith.constant 2 : index
    %c0_30 = arith.constant 0 : index
    %c0_31 = arith.constant 0 : index
    %50 = vector.load %arg8[%c2, %c0_30, %c0_31] : memref<3x16x16xf32, #tpu.memory_space<vmem>>, vector<1x16x16xf32>
    %51 = vector.shape_cast %50 : vector<1x16x16xf32> to vector<16x16xf32>
    %52 = vector.shape_cast %49 : vector<16x16xf32> to vector<1x16x16xf32>
    tpu.vector_store %arg8[%c2, %c0_30, %c0_31], %52 {strides = array<i32>} : memref<3x16x16xf32, #tpu.memory_space<vmem>>, vector<1x16x16xf32>,
    return
  }
  func.func @transform_0(%arg0: i32) -> (i32, i32) {
    %c0_i32 = arith.constant 0 : i32
    %c0_i32_0 = arith.constant 0 : i32
    %c0_i32_1 = arith.constant 0 : i32
    return %c0_i32, %c0_i32_0 : i32, i32
  }
  func.func @transform_1(%arg0: i32) -> (i32, i32) {
    %c0_i32 = arith.constant 0 : i32
    %c0_i32_0 = arith.constant 0 : i32
    %c0_i32_1 = arith.constant 0 : i32
    return %c0_i32, %c0_i32_0 : i32, i32
  }
  func.func @transform_2(%arg0: i32) -> (i32, i32) {
    %c0_i32 = arith.constant 0 : i32
    %c0_i32_0 = arith.constant 0 : i32
    %c0_i32_1 = arith.constant 0 : i32
    return %c0_i32, %c0_i32_0 : i32, i32
  }
  func.func @transform_3(%arg0: i32) -> (i32, i32) {
    %c0_i32 = arith.constant 0 : i32
    %c0_i32_0 = arith.constant 0 : i32
    %c0_i32_1 = arith.constant 0 : i32
    return %c0_i32, %c0_i32_0 : i32, i32
  }
  func.func @transform_4(%arg0: i32) -> (i32, i32) {
    %c0_i32 = arith.constant 0 : i32
    %c0_i32_0 = arith.constant 0 : i32
    %c0_i32_1 = arith.constant 0 : i32
    return %c0_i32, %c0_i32_0 : i32, i32
  }
  func.func @transform_5(%arg0: i32) -> (i32, i32) {
    %c0_i32 = arith.constant 0 : i32
    %c0_i32_0 = arith.constant 0 : i32
    %c0_i32_1 = arith.constant 0 : i32
    return %c0_i32, %c0_i32_0 : i32, i32
  }
  func.func @transform_6(%arg0: i32) -> (i32, i32) {
    %c0_i32 = arith.constant 0 : i32
    %c0_i32_0 = arith.constant 0 : i32
    %c0_i32_1 = arith.constant 0 : i32
    return %c0_i32, %c0_i32_0 : i32, i32
  }
  func.func @transform_7(%arg0: i32) -> (i32, i32, i32) {
    %c0_i32 = arith.constant 0 : i32
    %c0_i32_0 = arith.constant 0 : i32
    %c0_i32_1 = arith.constant 0 : i32
    %c0_i32_2 = arith.constant 0 : i32
    return %c0_i32, %c0_i32_0, %c0_i32_1 : i32, i32, i32
  }
  func.func @transform_8(%arg0: i32) -> (i32, i32, i32) {
    %c0_i32 = arith.constant 0 : i32
    %c0_i32_0 = arith.constant 0 : i32
    %c0_i32_1 = arith.constant 0 : i32
    %c0_i32_2 = arith.constant 0 : i32
    return %c0_i32, %c0_i32_0, %c0_i32_1 : i32, i32, i32
  }
}

module attributes {stable_mosaic.version = 11 : i64} {
  func.func @_action_models_kernel(%arg0: i32, %arg1: memref<1x16x128xf32, #tpu.memory_space<vmem>>, %arg2: memref<1x128x32xf32, #tpu.memory_space<vmem>>, %arg3: memref<1x1x32xf32, #tpu.memory_space<vmem>>, %arg4: memref<1x4x32x32xf32, #tpu.memory_space<vmem>>, %arg5: memref<1x4x1x32xf32, #tpu.memory_space<vmem>>, %arg6: memref<1x4x32x10xf32, #tpu.memory_space<vmem>>, %arg7: memref<1x4x1x10xf32, #tpu.memory_space<vmem>>, %arg8: memref<1x4x10x32xf32, #tpu.memory_space<vmem>>, %arg9: memref<1x4x1x32xf32, #tpu.memory_space<vmem>>, %arg10: memref<1x4x16x10xf32, #tpu.memory_space<vmem>>) attributes {dimension_semantics = [#tpu.dimension_semantics<parallel>], iteration_bounds = array<i64: 2>, scalar_prefetch = 0 : i64, scratch_operands = 0 : i64, tpu.core_type = #tpu.core_type<tc>, window_params = [{transform_indices = @transform_0, window_bounds = array<i64: 1, 16, 128>}, {transform_indices = @transform_1, window_bounds = array<i64: 1, 128, 32>}, {transform_indices = @transform_2, window_bounds = array<i64: 1, 1, 32>}, {transform_indices = @transform_3, window_bounds = array<i64: 1, 4, 32, 32>}, {transform_indices = @transform_4, window_bounds = array<i64: 1, 4, 1, 32>}, {transform_indices = @transform_5, window_bounds = array<i64: 1, 4, 32, 10>}, {transform_indices = @transform_6, window_bounds = array<i64: 1, 4, 1, 10>}, {transform_indices = @transform_7, window_bounds = array<i64: 1, 4, 10, 32>}, {transform_indices = @transform_8, window_bounds = array<i64: 1, 4, 1, 32>}, {transform_indices = @transform_9, window_bounds = array<i64: 1, 4, 16, 10>}]} {
    %c0 = arith.constant 0 : index
    %c0_0 = arith.constant 0 : index
    %c0_1 = arith.constant 0 : index
    %0 = vector.load %arg1[%c0, %c0_0, %c0_1] : memref<1x16x128xf32, #tpu.memory_space<vmem>>, vector<1x16x128xf32>
    %1 = vector.shape_cast %0 : vector<1x16x128xf32> to vector<16x128xf32>
    %c0_2 = arith.constant 0 : index
    %c0_3 = arith.constant 0 : index
    %c0_4 = arith.constant 0 : index
    %2 = vector.load %arg2[%c0_2, %c0_3, %c0_4] : memref<1x128x32xf32, #tpu.memory_space<vmem>>, vector<1x128x32xf32>
    %3 = vector.shape_cast %2 : vector<1x128x32xf32> to vector<128x32xf32>
    %cst = arith.constant dense<0.000000e+00> : vector<16x32xf32>
    %4 = tpu.matmul %1, %3, %cst {dimension_numbers = #tpu.dot_dimension_numbers<[1], [0], [0], [1], [0, 0, 1, 1], [], []>} : vector<16x128xf32>, vector<128x32xf32>, vector<16x32xf32> -> vector<16x32xf32>
    %c0_5 = arith.constant 0 : index
    %c0_6 = arith.constant 0 : index
    %c0_7 = arith.constant 0 : index
    %5 = vector.load %arg3[%c0_5, %c0_6, %c0_7] : memref<1x1x32xf32, #tpu.memory_space<vmem>>, vector<1x1x32xf32>
    %6 = vector.shape_cast %5 : vector<1x1x32xf32> to vector<1x32xf32>
    %7 = vector.broadcast %6 : vector<1x32xf32> to vector<16x32xf32>
    %8 = arith.addf %4, %7 : vector<16x32xf32>
    %cst_8 = arith.constant 0.000000e+00 : f32
    %9 = vector.broadcast %cst_8 : f32 to vector<16x32xf32>
    %10 = arith.maximumf %8, %9 : vector<16x32xf32>
    %c0_9 = arith.constant 0 : index
    %c0_10 = arith.constant 0 : index
    %c0_11 = arith.constant 0 : index
    %c0_12 = arith.constant 0 : index
    %11 = vector.load %arg4[%c0_9, %c0_10, %c0_11, %c0_12] : memref<1x4x32x32xf32, #tpu.memory_space<vmem>>, vector<1x1x32x32xf32>
    %12 = vector.shape_cast %11 : vector<1x1x32x32xf32> to vector<32x32xf32>
    %cst_13 = arith.constant dense<0.000000e+00> : vector<16x32xf32>
    %13 = tpu.matmul %10, %12, %cst_13 {dimension_numbers = #tpu.dot_dimension_numbers<[1], [0], [0], [1], [0, 0, 1, 1], [], []>} : vector<16x32xf32>, vector<32x32xf32>, vector<16x32xf32> -> vector<16x32xf32>
    %c0_14 = arith.constant 0 : index
    %c0_15 = arith.constant 0 : index
    %c0_16 = arith.constant 0 : index
    %c0_17 = arith.constant 0 : index
    %14 = vector.load %arg5[%c0_14, %c0_15, %c0_16, %c0_17] : memref<1x4x1x32xf32, #tpu.memory_space<vmem>>, vector<1x1x1x32xf32>
    %15 = vector.shape_cast %14 : vector<1x1x1x32xf32> to vector<1x32xf32>
    %16 = vector.broadcast %15 : vector<1x32xf32> to vector<16x32xf32>
    %17 = arith.addf %13, %16 : vector<16x32xf32>
    %cst_18 = arith.constant 0.000000e+00 : f32
    %18 = vector.broadcast %cst_18 : f32 to vector<16x32xf32>
    %19 = arith.maximumf %17, %18 : vector<16x32xf32>
    %c0_19 = arith.constant 0 : index
    %c0_20 = arith.constant 0 : index
    %c0_21 = arith.constant 0 : index
    %c0_22 = arith.constant 0 : index
    %20 = vector.load %arg6[%c0_19, %c0_20, %c0_21, %c0_22] : memref<1x4x32x10xf32, #tpu.memory_space<vmem>>, vector<1x1x32x10xf32>
    %21 = vector.shape_cast %20 : vector<1x1x32x10xf32> to vector<32x10xf32>
    %cst_23 = arith.constant dense<0.000000e+00> : vector<16x10xf32>
    %22 = tpu.matmul %19, %21, %cst_23 {dimension_numbers = #tpu.dot_dimension_numbers<[1], [0], [0], [1], [0, 0, 1, 1], [], []>} : vector<16x32xf32>, vector<32x10xf32>, vector<16x10xf32> -> vector<16x10xf32>
    %c0_24 = arith.constant 0 : index
    %c0_25 = arith.constant 0 : index
    %c0_26 = arith.constant 0 : index
    %c0_27 = arith.constant 0 : index
    %23 = vector.load %arg7[%c0_24, %c0_25, %c0_26, %c0_27] : memref<1x4x1x10xf32, #tpu.memory_space<vmem>>, vector<1x1x1x10xf32>
    %24 = vector.shape_cast %23 : vector<1x1x1x10xf32> to vector<1x10xf32>
    %25 = vector.broadcast %24 : vector<1x10xf32> to vector<16x10xf32>
    %26 = arith.addf %22, %25 : vector<16x10xf32>
    %c0_28 = arith.constant 0 : index
    %c0_29 = arith.constant 0 : index
    %c0_30 = arith.constant 0 : index
    %c0_31 = arith.constant 0 : index
    %27 = vector.load %arg8[%c0_28, %c0_29, %c0_30, %c0_31] : memref<1x4x10x32xf32, #tpu.memory_space<vmem>>, vector<1x1x10x32xf32>
    %28 = vector.shape_cast %27 : vector<1x1x10x32xf32> to vector<10x32xf32>
    %cst_32 = arith.constant dense<0.000000e+00> : vector<16x32xf32>
    %29 = tpu.matmul %26, %28, %cst_32 {dimension_numbers = #tpu.dot_dimension_numbers<[1], [0], [0], [1], [0, 0, 1, 1], [], []>} : vector<16x10xf32>, vector<10x32xf32>, vector<16x32xf32> -> vector<16x32xf32>
    %30 = arith.addf %19, %29 : vector<16x32xf32>
    %c0_33 = arith.constant 0 : index
    %c0_34 = arith.constant 0 : index
    %c0_35 = arith.constant 0 : index
    %c0_36 = arith.constant 0 : index
    %31 = vector.load %arg9[%c0_33, %c0_34, %c0_35, %c0_36] : memref<1x4x1x32xf32, #tpu.memory_space<vmem>>, vector<1x1x1x32xf32>
    %32 = vector.shape_cast %31 : vector<1x1x1x32xf32> to vector<1x32xf32>
    %33 = vector.broadcast %32 : vector<1x32xf32> to vector<16x32xf32>
    %34 = arith.addf %30, %33 : vector<16x32xf32>
    %c0_37 = arith.constant 0 : index
    %c0_38 = arith.constant 0 : index
    %c0_39 = arith.constant 0 : index
    %c0_40 = arith.constant 0 : index
    %35 = vector.load %arg10[%c0_37, %c0_38, %c0_39, %c0_40] : memref<1x4x16x10xf32, #tpu.memory_space<vmem>>, vector<1x1x16x10xf32>
    %36 = vector.shape_cast %35 : vector<1x1x16x10xf32> to vector<16x10xf32>
    %37 = vector.shape_cast %26 : vector<16x10xf32> to vector<1x1x16x10xf32>
    tpu.vector_store %arg10[%c0_37, %c0_38, %c0_39, %c0_40], %37 {strides = array<i32>} : memref<1x4x16x10xf32, #tpu.memory_space<vmem>>, vector<1x1x16x10xf32>,
    %c0_41 = arith.constant 0 : index
    %c1 = arith.constant 1 : index
    %c0_42 = arith.constant 0 : index
    %c0_43 = arith.constant 0 : index
    %38 = vector.load %arg4[%c0_41, %c1, %c0_42, %c0_43] : memref<1x4x32x32xf32, #tpu.memory_space<vmem>>, vector<1x1x32x32xf32>
    %39 = vector.shape_cast %38 : vector<1x1x32x32xf32> to vector<32x32xf32>
    %cst_44 = arith.constant dense<0.000000e+00> : vector<16x32xf32>
    %40 = tpu.matmul %34, %39, %cst_44 {dimension_numbers = #tpu.dot_dimension_numbers<[1], [0], [0], [1], [0, 0, 1, 1], [], []>} : vector<16x32xf32>, vector<32x32xf32>, vector<16x32xf32> -> vector<16x32xf32>
    %c0_45 = arith.constant 0 : index
    %c1_46 = arith.constant 1 : index
    %c0_47 = arith.constant 0 : index
    %c0_48 = arith.constant 0 : index
    %41 = vector.load %arg5[%c0_45, %c1_46, %c0_47, %c0_48] : memref<1x4x1x32xf32, #tpu.memory_space<vmem>>, vector<1x1x1x32xf32>
    %42 = vector.shape_cast %41 : vector<1x1x1x32xf32> to vector<1x32xf32>
    %43 = vector.broadcast %42 : vector<1x32xf32> to vector<16x32xf32>
    %44 = arith.addf %40, %43 : vector<16x32xf32>
    %cst_49 = arith.constant 0.000000e+00 : f32
    %45 = vector.broadcast %cst_49 : f32 to vector<16x32xf32>
    %46 = arith.maximumf %44, %45 : vector<16x32xf32>
    %c0_50 = arith.constant 0 : index
    %c1_51 = arith.constant 1 : index
    %c0_52 = arith.constant 0 : index
    %c0_53 = arith.constant 0 : index
    %47 = vector.load %arg6[%c0_50, %c1_51, %c0_52, %c0_53] : memref<1x4x32x10xf32, #tpu.memory_space<vmem>>, vector<1x1x32x10xf32>
    %48 = vector.shape_cast %47 : vector<1x1x32x10xf32> to vector<32x10xf32>
    %cst_54 = arith.constant dense<0.000000e+00> : vector<16x10xf32>
    %49 = tpu.matmul %46, %48, %cst_54 {dimension_numbers = #tpu.dot_dimension_numbers<[1], [0], [0], [1], [0, 0, 1, 1], [], []>} : vector<16x32xf32>, vector<32x10xf32>, vector<16x10xf32> -> vector<16x10xf32>
    %c0_55 = arith.constant 0 : index
    %c1_56 = arith.constant 1 : index
    %c0_57 = arith.constant 0 : index
    %c0_58 = arith.constant 0 : index
    %50 = vector.load %arg7[%c0_55, %c1_56, %c0_57, %c0_58] : memref<1x4x1x10xf32, #tpu.memory_space<vmem>>, vector<1x1x1x10xf32>
    %51 = vector.shape_cast %50 : vector<1x1x1x10xf32> to vector<1x10xf32>
    %52 = vector.broadcast %51 : vector<1x10xf32> to vector<16x10xf32>
    %53 = arith.addf %49, %52 : vector<16x10xf32>
    %c0_59 = arith.constant 0 : index
    %c1_60 = arith.constant 1 : index
    %c0_61 = arith.constant 0 : index
    %c0_62 = arith.constant 0 : index
    %54 = vector.load %arg8[%c0_59, %c1_60, %c0_61, %c0_62] : memref<1x4x10x32xf32, #tpu.memory_space<vmem>>, vector<1x1x10x32xf32>
    %55 = vector.shape_cast %54 : vector<1x1x10x32xf32> to vector<10x32xf32>
    %cst_63 = arith.constant dense<0.000000e+00> : vector<16x32xf32>
    %56 = tpu.matmul %53, %55, %cst_63 {dimension_numbers = #tpu.dot_dimension_numbers<[1], [0], [0], [1], [0, 0, 1, 1], [], []>} : vector<16x10xf32>, vector<10x32xf32>, vector<16x32xf32> -> vector<16x32xf32>
    %57 = arith.addf %46, %56 : vector<16x32xf32>
    %c0_64 = arith.constant 0 : index
    %c1_65 = arith.constant 1 : index
    %c0_66 = arith.constant 0 : index
    %c0_67 = arith.constant 0 : index
    %58 = vector.load %arg9[%c0_64, %c1_65, %c0_66, %c0_67] : memref<1x4x1x32xf32, #tpu.memory_space<vmem>>, vector<1x1x1x32xf32>
    %59 = vector.shape_cast %58 : vector<1x1x1x32xf32> to vector<1x32xf32>
    %60 = vector.broadcast %59 : vector<1x32xf32> to vector<16x32xf32>
    %61 = arith.addf %57, %60 : vector<16x32xf32>
    %c0_68 = arith.constant 0 : index
    %c1_69 = arith.constant 1 : index
    %c0_70 = arith.constant 0 : index
    %c0_71 = arith.constant 0 : index
    %62 = vector.load %arg10[%c0_68, %c1_69, %c0_70, %c0_71] : memref<1x4x16x10xf32, #tpu.memory_space<vmem>>, vector<1x1x16x10xf32>
    %63 = vector.shape_cast %62 : vector<1x1x16x10xf32> to vector<16x10xf32>
    %64 = vector.shape_cast %53 : vector<16x10xf32> to vector<1x1x16x10xf32>
    tpu.vector_store %arg10[%c0_68, %c1_69, %c0_70, %c0_71], %64 {strides = array<i32>} : memref<1x4x16x10xf32, #tpu.memory_space<vmem>>, vector<1x1x16x10xf32>,
    %c0_72 = arith.constant 0 : index
    %c2 = arith.constant 2 : index
    %c0_73 = arith.constant 0 : index
    %c0_74 = arith.constant 0 : index
    %65 = vector.load %arg4[%c0_72, %c2, %c0_73, %c0_74] : memref<1x4x32x32xf32, #tpu.memory_space<vmem>>, vector<1x1x32x32xf32>
    %66 = vector.shape_cast %65 : vector<1x1x32x32xf32> to vector<32x32xf32>
    %cst_75 = arith.constant dense<0.000000e+00> : vector<16x32xf32>
    %67 = tpu.matmul %61, %66, %cst_75 {dimension_numbers = #tpu.dot_dimension_numbers<[1], [0], [0], [1], [0, 0, 1, 1], [], []>} : vector<16x32xf32>, vector<32x32xf32>, vector<16x32xf32> -> vector<16x32xf32>
    %c0_76 = arith.constant 0 : index
    %c2_77 = arith.constant 2 : index
    %c0_78 = arith.constant 0 : index
    %c0_79 = arith.constant 0 : index
    %68 = vector.load %arg5[%c0_76, %c2_77, %c0_78, %c0_79] : memref<1x4x1x32xf32, #tpu.memory_space<vmem>>, vector<1x1x1x32xf32>
    %69 = vector.shape_cast %68 : vector<1x1x1x32xf32> to vector<1x32xf32>
    %70 = vector.broadcast %69 : vector<1x32xf32> to vector<16x32xf32>
    %71 = arith.addf %67, %70 : vector<16x32xf32>
    %cst_80 = arith.constant 0.000000e+00 : f32
    %72 = vector.broadcast %cst_80 : f32 to vector<16x32xf32>
    %73 = arith.maximumf %71, %72 : vector<16x32xf32>
    %c0_81 = arith.constant 0 : index
    %c2_82 = arith.constant 2 : index
    %c0_83 = arith.constant 0 : index
    %c0_84 = arith.constant 0 : index
    %74 = vector.load %arg6[%c0_81, %c2_82, %c0_83, %c0_84] : memref<1x4x32x10xf32, #tpu.memory_space<vmem>>, vector<1x1x32x10xf32>
    %75 = vector.shape_cast %74 : vector<1x1x32x10xf32> to vector<32x10xf32>
    %cst_85 = arith.constant dense<0.000000e+00> : vector<16x10xf32>
    %76 = tpu.matmul %73, %75, %cst_85 {dimension_numbers = #tpu.dot_dimension_numbers<[1], [0], [0], [1], [0, 0, 1, 1], [], []>} : vector<16x32xf32>, vector<32x10xf32>, vector<16x10xf32> -> vector<16x10xf32>
    %c0_86 = arith.constant 0 : index
    %c2_87 = arith.constant 2 : index
    %c0_88 = arith.constant 0 : index
    %c0_89 = arith.constant 0 : index
    %77 = vector.load %arg7[%c0_86, %c2_87, %c0_88, %c0_89] : memref<1x4x1x10xf32, #tpu.memory_space<vmem>>, vector<1x1x1x10xf32>
    %78 = vector.shape_cast %77 : vector<1x1x1x10xf32> to vector<1x10xf32>
    %79 = vector.broadcast %78 : vector<1x10xf32> to vector<16x10xf32>
    %80 = arith.addf %76, %79 : vector<16x10xf32>
    %c0_90 = arith.constant 0 : index
    %c2_91 = arith.constant 2 : index
    %c0_92 = arith.constant 0 : index
    %c0_93 = arith.constant 0 : index
    %81 = vector.load %arg8[%c0_90, %c2_91, %c0_92, %c0_93] : memref<1x4x10x32xf32, #tpu.memory_space<vmem>>, vector<1x1x10x32xf32>
    %82 = vector.shape_cast %81 : vector<1x1x10x32xf32> to vector<10x32xf32>
    %cst_94 = arith.constant dense<0.000000e+00> : vector<16x32xf32>
    %83 = tpu.matmul %80, %82, %cst_94 {dimension_numbers = #tpu.dot_dimension_numbers<[1], [0], [0], [1], [0, 0, 1, 1], [], []>} : vector<16x10xf32>, vector<10x32xf32>, vector<16x32xf32> -> vector<16x32xf32>
    %84 = arith.addf %73, %83 : vector<16x32xf32>
    %c0_95 = arith.constant 0 : index
    %c2_96 = arith.constant 2 : index
    %c0_97 = arith.constant 0 : index
    %c0_98 = arith.constant 0 : index
    %85 = vector.load %arg9[%c0_95, %c2_96, %c0_97, %c0_98] : memref<1x4x1x32xf32, #tpu.memory_space<vmem>>, vector<1x1x1x32xf32>
    %86 = vector.shape_cast %85 : vector<1x1x1x32xf32> to vector<1x32xf32>
    %87 = vector.broadcast %86 : vector<1x32xf32> to vector<16x32xf32>
    %88 = arith.addf %84, %87 : vector<16x32xf32>
    %c0_99 = arith.constant 0 : index
    %c2_100 = arith.constant 2 : index
    %c0_101 = arith.constant 0 : index
    %c0_102 = arith.constant 0 : index
    %89 = vector.load %arg10[%c0_99, %c2_100, %c0_101, %c0_102] : memref<1x4x16x10xf32, #tpu.memory_space<vmem>>, vector<1x1x16x10xf32>
    %90 = vector.shape_cast %89 : vector<1x1x16x10xf32> to vector<16x10xf32>
    %91 = vector.shape_cast %80 : vector<16x10xf32> to vector<1x1x16x10xf32>
    tpu.vector_store %arg10[%c0_99, %c2_100, %c0_101, %c0_102], %91 {strides = array<i32>} : memref<1x4x16x10xf32, #tpu.memory_space<vmem>>, vector<1x1x16x10xf32>,
    %c0_103 = arith.constant 0 : index
    %c3 = arith.constant 3 : index
    %c0_104 = arith.constant 0 : index
    %c0_105 = arith.constant 0 : index
    %92 = vector.load %arg4[%c0_103, %c3, %c0_104, %c0_105] : memref<1x4x32x32xf32, #tpu.memory_space<vmem>>, vector<1x1x32x32xf32>
    %93 = vector.shape_cast %92 : vector<1x1x32x32xf32> to vector<32x32xf32>
    %cst_106 = arith.constant dense<0.000000e+00> : vector<16x32xf32>
    %94 = tpu.matmul %88, %93, %cst_106 {dimension_numbers = #tpu.dot_dimension_numbers<[1], [0], [0], [1], [0, 0, 1, 1], [], []>} : vector<16x32xf32>, vector<32x32xf32>, vector<16x32xf32> -> vector<16x32xf32>
    %c0_107 = arith.constant 0 : index
    %c3_108 = arith.constant 3 : index
    %c0_109 = arith.constant 0 : index
    %c0_110 = arith.constant 0 : index
    %95 = vector.load %arg5[%c0_107, %c3_108, %c0_109, %c0_110] : memref<1x4x1x32xf32, #tpu.memory_space<vmem>>, vector<1x1x1x32xf32>
    %96 = vector.shape_cast %95 : vector<1x1x1x32xf32> to vector<1x32xf32>
    %97 = vector.broadcast %96 : vector<1x32xf32> to vector<16x32xf32>
    %98 = arith.addf %94, %97 : vector<16x32xf32>
    %cst_111 = arith.constant 0.000000e+00 : f32
    %99 = vector.broadcast %cst_111 : f32 to vector<16x32xf32>
    %100 = arith.maximumf %98, %99 : vector<16x32xf32>
    %c0_112 = arith.constant 0 : index
    %c3_113 = arith.constant 3 : index
    %c0_114 = arith.constant 0 : index
    %c0_115 = arith.constant 0 : index
    %101 = vector.load %arg6[%c0_112, %c3_113, %c0_114, %c0_115] : memref<1x4x32x10xf32, #tpu.memory_space<vmem>>, vector<1x1x32x10xf32>
    %102 = vector.shape_cast %101 : vector<1x1x32x10xf32> to vector<32x10xf32>
    %cst_116 = arith.constant dense<0.000000e+00> : vector<16x10xf32>
    %103 = tpu.matmul %100, %102, %cst_116 {dimension_numbers = #tpu.dot_dimension_numbers<[1], [0], [0], [1], [0, 0, 1, 1], [], []>} : vector<16x32xf32>, vector<32x10xf32>, vector<16x10xf32> -> vector<16x10xf32>
    %c0_117 = arith.constant 0 : index
    %c3_118 = arith.constant 3 : index
    %c0_119 = arith.constant 0 : index
    %c0_120 = arith.constant 0 : index
    %104 = vector.load %arg7[%c0_117, %c3_118, %c0_119, %c0_120] : memref<1x4x1x10xf32, #tpu.memory_space<vmem>>, vector<1x1x1x10xf32>
    %105 = vector.shape_cast %104 : vector<1x1x1x10xf32> to vector<1x10xf32>
    %106 = vector.broadcast %105 : vector<1x10xf32> to vector<16x10xf32>
    %107 = arith.addf %103, %106 : vector<16x10xf32>
    %c0_121 = arith.constant 0 : index
    %c3_122 = arith.constant 3 : index
    %c0_123 = arith.constant 0 : index
    %c0_124 = arith.constant 0 : index
    %108 = vector.load %arg10[%c0_121, %c3_122, %c0_123, %c0_124] : memref<1x4x16x10xf32, #tpu.memory_space<vmem>>, vector<1x1x16x10xf32>
    %109 = vector.shape_cast %108 : vector<1x1x16x10xf32> to vector<16x10xf32>
    %110 = vector.shape_cast %107 : vector<16x10xf32> to vector<1x1x16x10xf32>
    tpu.vector_store %arg10[%c0_121, %c3_122, %c0_123, %c0_124], %110 {strides = array<i32>} : memref<1x4x16x10xf32, #tpu.memory_space<vmem>>, vector<1x1x16x10xf32>,
    return
  }
  func.func @transform_0(%arg0: i32) -> (i32, i32, i32) {
    %c0_i32 = arith.constant 0 : i32
    %c0_i32_0 = arith.constant 0 : i32
    %c0_i32_1 = arith.constant 0 : i32
    return %arg0, %c0_i32, %c0_i32_0 : i32, i32, i32
  }
  func.func @transform_1(%arg0: i32) -> (i32, i32, i32) {
    %c0_i32 = arith.constant 0 : i32
    %c0_i32_0 = arith.constant 0 : i32
    %c0_i32_1 = arith.constant 0 : i32
    return %arg0, %c0_i32, %c0_i32_0 : i32, i32, i32
  }
  func.func @transform_2(%arg0: i32) -> (i32, i32, i32) {
    %c0_i32 = arith.constant 0 : i32
    %c0_i32_0 = arith.constant 0 : i32
    %c0_i32_1 = arith.constant 0 : i32
    return %arg0, %c0_i32, %c0_i32_0 : i32, i32, i32
  }
  func.func @transform_3(%arg0: i32) -> (i32, i32, i32, i32) {
    %c0_i32 = arith.constant 0 : i32
    %c0_i32_0 = arith.constant 0 : i32
    %c0_i32_1 = arith.constant 0 : i32
    %c0_i32_2 = arith.constant 0 : i32
    return %arg0, %c0_i32, %c0_i32_0, %c0_i32_1 : i32, i32, i32, i32
  }
  func.func @transform_4(%arg0: i32) -> (i32, i32, i32, i32) {
    %c0_i32 = arith.constant 0 : i32
    %c0_i32_0 = arith.constant 0 : i32
    %c0_i32_1 = arith.constant 0 : i32
    %c0_i32_2 = arith.constant 0 : i32
    return %arg0, %c0_i32, %c0_i32_0, %c0_i32_1 : i32, i32, i32, i32
  }
  func.func @transform_5(%arg0: i32) -> (i32, i32, i32, i32) {
    %c0_i32 = arith.constant 0 : i32
    %c0_i32_0 = arith.constant 0 : i32
    %c0_i32_1 = arith.constant 0 : i32
    %c0_i32_2 = arith.constant 0 : i32
    return %arg0, %c0_i32, %c0_i32_0, %c0_i32_1 : i32, i32, i32, i32
  }
  func.func @transform_6(%arg0: i32) -> (i32, i32, i32, i32) {
    %c0_i32 = arith.constant 0 : i32
    %c0_i32_0 = arith.constant 0 : i32
    %c0_i32_1 = arith.constant 0 : i32
    %c0_i32_2 = arith.constant 0 : i32
    return %arg0, %c0_i32, %c0_i32_0, %c0_i32_1 : i32, i32, i32, i32
  }
  func.func @transform_7(%arg0: i32) -> (i32, i32, i32, i32) {
    %c0_i32 = arith.constant 0 : i32
    %c0_i32_0 = arith.constant 0 : i32
    %c0_i32_1 = arith.constant 0 : i32
    %c0_i32_2 = arith.constant 0 : i32
    return %arg0, %c0_i32, %c0_i32_0, %c0_i32_1 : i32, i32, i32, i32
  }
  func.func @transform_8(%arg0: i32) -> (i32, i32, i32, i32) {
    %c0_i32 = arith.constant 0 : i32
    %c0_i32_0 = arith.constant 0 : i32
    %c0_i32_1 = arith.constant 0 : i32
    %c0_i32_2 = arith.constant 0 : i32
    return %arg0, %c0_i32, %c0_i32_0, %c0_i32_1 : i32, i32, i32, i32
  }
  func.func @transform_9(%arg0: i32) -> (i32, i32, i32, i32) {
    %c0_i32 = arith.constant 0 : i32
    %c0_i32_0 = arith.constant 0 : i32
    %c0_i32_1 = arith.constant 0 : i32
    %c0_i32_2 = arith.constant 0 : i32
    return %arg0, %c0_i32, %c0_i32_0, %c0_i32_1 : i32, i32, i32, i32
  }
}

module attributes {stable_mosaic.version = 11 : i64} {
  func.func @_final_stage_kernel(%arg0: i32, %arg1: memref<2x4x16x10xf32, #tpu.memory_space<vmem>>, %arg2: memref<10x10xf32, #tpu.memory_space<vmem>>, %arg3: memref<1x10xf32, #tpu.memory_space<vmem>>, %arg4: memref<9x10xf32, #tpu.memory_space<vmem>>) attributes {dimension_semantics = [#tpu.dimension_semantics<arbitrary>], iteration_bounds = array<i64: 1>, scalar_prefetch = 0 : i64, scratch_operands = 0 : i64, tpu.core_type = #tpu.core_type<tc>, window_params = [{pipeline_mode = #tpu.pipeline_mode<synchronous>, transform_indices = @transform_0, window_bounds = array<i64: 2, 4, 16, 10>}, {pipeline_mode = #tpu.pipeline_mode<synchronous>, transform_indices = @transform_1, window_bounds = array<i64: 10, 10>}, {pipeline_mode = #tpu.pipeline_mode<synchronous>, transform_indices = @transform_2, window_bounds = array<i64: 1, 10>}, {pipeline_mode = #tpu.pipeline_mode<synchronous>, transform_indices = @transform_3, window_bounds = array<i64: 9, 10>}]} {
    %c0 = arith.constant 0 : index
    %c0_0 = arith.constant 0 : index
    %c0_1 = arith.constant 0 : index
    %c0_2 = arith.constant 0 : index
    %0 = vector.load %arg1[%c0, %c0_0, %c0_1, %c0_2] : memref<2x4x16x10xf32, #tpu.memory_space<vmem>>, vector<2x4x16x10xf32>
    %cst = arith.constant dense<0xFF800000> : vector<2x4x10xf32>
    %1 = vector.multi_reduction <maximumf>, %0, %cst [2] : vector<2x4x16x10xf32> to vector<2x4x10xf32>
    %cst_3 = arith.constant dense<0x7F800000> : vector<2x4x10xf32>
    %2 = vector.multi_reduction <minimumf>, %0, %cst_3 [2] : vector<2x4x16x10xf32> to vector<2x4x10xf32>
    %3 = arith.addf %1, %2 : vector<2x4x10xf32>
    %cst_4 = arith.constant dense<0xFF800000> : vector<2x4xf32>
    %4 = vector.multi_reduction <maximumf>, %3, %cst_4 [2] : vector<2x4x10xf32> to vector<2x4xf32>
    %5 = vector.shape_cast %4 : vector<2x4xf32> to vector<2x4x1xf32>
    %6 = vector.broadcast %5 : vector<2x4x1xf32> to vector<2x4x10xf32>
    %7 = arith.subf %3, %6 : vector<2x4x10xf32>
    %8 = math.exp %7 : vector<2x4x10xf32>
    %cst_5 = arith.constant dense<0.000000e+00> : vector<2x4xf32>
    %9 = vector.multi_reduction <add>, %8, %cst_5 [2] : vector<2x4x10xf32> to vector<2x4xf32>
    %10 = vector.shape_cast %9 : vector<2x4xf32> to vector<2x4x1xf32>
    %11 = vector.broadcast %10 : vector<2x4x1xf32> to vector<2x4x10xf32>
    %12 = arith.divf %8, %11 : vector<2x4x10xf32>
    %13 = vector.extract_strided_slice %12 {offsets = [0, 0, 0], sizes = [1, 4, 10], strides = [1, 1, 1]} : vector<2x4x10xf32> to vector<1x4x10xf32>
    %14 = vector.shape_cast %13 : vector<1x4x10xf32> to vector<4x10xf32>
    %c0_6 = arith.constant 0 : index
    %c0_7 = arith.constant 0 : index
    %15 = vector.load %arg4[%c0_6, %c0_7] : memref<9x10xf32, #tpu.memory_space<vmem>>, vector<4x10xf32>
    tpu.vector_store %arg4[%c0_6, %c0_7], %14 {strides = array<i32>} : memref<9x10xf32, #tpu.memory_space<vmem>>, vector<4x10xf32>,
    %16 = vector.extract_strided_slice %12 {offsets = [1, 0, 0], sizes = [1, 4, 10], strides = [1, 1, 1]} : vector<2x4x10xf32> to vector<1x4x10xf32>
    %17 = vector.shape_cast %16 : vector<1x4x10xf32> to vector<4x10xf32>
    %c4 = arith.constant 4 : index
    %c0_8 = arith.constant 0 : index
    %18 = vector.load %arg4[%c4, %c0_8] : memref<9x10xf32, #tpu.memory_space<vmem>>, vector<4x10xf32>
    tpu.vector_store %arg4[%c4, %c0_8], %17 {strides = array<i32>} : memref<9x10xf32, #tpu.memory_space<vmem>>, vector<4x10xf32>,
    %c0_9 = arith.constant 0 : index
    %c0_10 = arith.constant 0 : index
    %19 = vector.load %arg2[%c0_9, %c0_10] : memref<10x10xf32, #tpu.memory_space<vmem>>, vector<10x10xf32>
    %c0_11 = arith.constant 0 : index
    %c0_12 = arith.constant 0 : index
    %20 = vector.load %arg3[%c0_11, %c0_12] : memref<1x10xf32, #tpu.memory_space<vmem>>, vector<1x10xf32>
    %21 = vector.extract_strided_slice %0 {offsets = [0, 3, 0, 0], sizes = [1, 1, 16, 10], strides = [1, 1, 1, 1]} : vector<2x4x16x10xf32> to vector<1x1x16x10xf32>
    %22 = vector.shape_cast %21 : vector<1x1x16x10xf32> to vector<16x10xf32>
    %cst_13 = arith.constant dense<0.000000e+00> : vector<16x10xf32>
    %23 = tpu.matmul %22, %19, %cst_13 {dimension_numbers = #tpu.dot_dimension_numbers<[1], [0], [0], [1], [0, 0, 1, 1], [], []>} : vector<16x10xf32>, vector<10x10xf32>, vector<16x10xf32> -> vector<16x10xf32>
    %24 = vector.broadcast %20 : vector<1x10xf32> to vector<16x10xf32>
    %25 = arith.addf %23, %24 : vector<16x10xf32>
    %26 = vector.extract_strided_slice %0 {offsets = [1, 3, 0, 0], sizes = [1, 1, 16, 10], strides = [1, 1, 1, 1]} : vector<2x4x16x10xf32> to vector<1x1x16x10xf32>
    %27 = vector.shape_cast %26 : vector<1x1x16x10xf32> to vector<16x10xf32>
    %cst_14 = arith.constant dense<0.000000e+00> : vector<16x10xf32>
    %28 = tpu.matmul %27, %19, %cst_14 {dimension_numbers = #tpu.dot_dimension_numbers<[1], [0], [0], [1], [0, 0, 1, 1], [], []>} : vector<16x10xf32>, vector<10x10xf32>, vector<16x10xf32> -> vector<16x10xf32>
    %29 = vector.broadcast %20 : vector<1x10xf32> to vector<16x10xf32>
    %30 = arith.addf %28, %29 : vector<16x10xf32>
    %31 = arith.addf %25, %30 : vector<16x10xf32>
    %cst_15 = arith.constant dense<0xFF800000> : vector<10xf32>
    %32 = vector.multi_reduction <maximumf>, %31, %cst_15 [0] : vector<16x10xf32> to vector<10xf32>
    %33 = vector.shape_cast %32 : vector<10xf32> to vector<1x10xf32>
    %cst_16 = arith.constant dense<0x7F800000> : vector<10xf32>
    %34 = vector.multi_reduction <minimumf>, %31, %cst_16 [0] : vector<16x10xf32> to vector<10xf32>
    %35 = vector.shape_cast %34 : vector<10xf32> to vector<1x10xf32>
    %36 = arith.addf %33, %35 : vector<1x10xf32>
    %cst_17 = arith.constant dense<0xFF800000> : vector<1xf32>
    %37 = vector.multi_reduction <maximumf>, %36, %cst_17 [1] : vector<1x10xf32> to vector<1xf32>
    %38 = vector.shape_cast %37 : vector<1xf32> to vector<1x1xf32>
    %39 = vector.broadcast %38 : vector<1x1xf32> to vector<1x10xf32>
    %40 = arith.subf %36, %39 : vector<1x10xf32>
    %41 = math.exp %40 : vector<1x10xf32>
    %cst_18 = arith.constant dense<0.000000e+00> : vector<1xf32>
    %42 = vector.multi_reduction <add>, %41, %cst_18 [1] : vector<1x10xf32> to vector<1xf32>
    %43 = vector.shape_cast %42 : vector<1xf32> to vector<1x1xf32>
    %44 = vector.broadcast %43 : vector<1x1xf32> to vector<1x10xf32>
    %45 = arith.divf %41, %44 : vector<1x10xf32>
    %c8 = arith.constant 8 : index
    %c0_19 = arith.constant 0 : index
    %46 = vector.load %arg4[%c8, %c0_19] : memref<9x10xf32, #tpu.memory_space<vmem>>, vector<1x10xf32>
    tpu.vector_store %arg4[%c8, %c0_19], %45 {strides = array<i32>} : memref<9x10xf32, #tpu.memory_space<vmem>>, vector<1x10xf32>,
    return
  }
  func.func @transform_0(%arg0: i32) -> (i32, i32, i32, i32) {
    %c0_i32 = arith.constant 0 : i32
    %c0_i32_0 = arith.constant 0 : i32
    %c0_i32_1 = arith.constant 0 : i32
    %c0_i32_2 = arith.constant 0 : i32
    %c0_i32_3 = arith.constant 0 : i32
    return %c0_i32, %c0_i32_0, %c0_i32_1, %c0_i32_2 : i32, i32, i32, i32
  }
  func.func @transform_1(%arg0: i32) -> (i32, i32) {
    %c0_i32 = arith.constant 0 : i32
    %c0_i32_0 = arith.constant 0 : i32
    %c0_i32_1 = arith.constant 0 : i32
    return %c0_i32, %c0_i32_0 : i32, i32
  }
  func.func @transform_2(%arg0: i32) -> (i32, i32) {
    %c0_i32 = arith.constant 0 : i32
    %c0_i32_0 = arith.constant 0 : i32
    %c0_i32_1 = arith.constant 0 : i32
    return %c0_i32, %c0_i32_0 : i32, i32
  }
  func.func @transform_3(%arg0: i32) -> (i32, i32) {
    %c0_i32 = arith.constant 0 : i32
    %c0_i32_0 = arith.constant 0 : i32
    %c0_i32_1 = arith.constant 0 : i32
    return %c0_i32, %c0_i32_0 : i32, i32
  }
}

</mosaic_0001>

<llo_original>
// kernel: deephar_forward.3
$region0: #{deephar_forward.3}
  #allocation0 [shape = 'u32[]', space=smem, size = 0x4, offset = 0x4, fixed_abs, tag = 'smem constant byte address 0x4 - core index']
  #allocation1 [shape = 'u32[144,128]{1,0:T(1,128)}', space=vmem, size = 0x12000, scoped, tag = 'internal scratch']
  %s0 = inlined_call_operand.vmem [shape: f32[1024,48], index: 0, kind: input, shape index: {}]
  %s1 = inlined_call_operand.vmem [shape: f32[48,8], index: 1, kind: input, shape index: {}]
  %s2 = inlined_call_operand.vmem [shape: f32[1,8], index: 2, kind: input, shape index: {}]
  %s3 = inlined_call_operand.vmem [shape: f32[8,16], index: 3, kind: input, shape index: {}]
  %s4 = inlined_call_operand.vmem [shape: f32[1,16], index: 4, kind: input, shape index: {}]
  %s5 = inlined_call_operand.vmem [shape: f32[1,64], index: 5, kind: input, shape index: {}]
  %s6 = inlined_call_operand.vmem [shape: f32[1,64], index: 6, kind: input, shape index: {}]
  %s7 = inlined_call_operand.vmem [shape: f32[3,16,16], index: 7, kind: output, shape index: {0}]
  %s8 = inlined_call_operand.vmem [shape: f32[8,16,16], index: 8, kind: output, shape index: {1}]
  %9 = xla_tuple %s7, %s8
  %s10 = sld [smem:[#allocation0]]
  $region46: #{deephar_forward.3} parent=0
    _
  %s12 = ssub.s32 1, %s10
  %s13 = scalar_select 0, %s12, %s10
  // Predicated region
  $region2: #{deephar_forward.3} parent=0 // pred_check
    _
  $region3: #{deephar_forward.3} parent=0 // pred_check_branch
    %15 = sbr.rel (0) target = $region5
  $region4: #{deephar_forward.3} parent=0 // pred_region
    _
  $region5: #{deephar_forward.3} parent=0 // pred_fallthru
    _
  // Predicated region
  $region6: #{deephar_forward.3} parent=0 // pred_check
    _
  $region7: #{deephar_forward.3} parent=0 // pred_check_branch
    %17 = sbr.rel (0) target = $region9
  $region8: #{deephar_forward.3} parent=0 // pred_region
    _
  $region9: #{deephar_forward.3} parent=0 // pred_fallthru
    _
  // Predicated region
  $region10: #{deephar_forward.3} parent=0 // pred_check
    _
  $region11: #{deephar_forward.3} parent=0 // pred_check_branch
    %19 = sbr.rel (0) target = $region13
  $region12: #{deephar_forward.3} parent=0 // pred_region
    _
  $region13: #{deephar_forward.3} parent=0 // pred_fallthru
    _
  // Predicated region
  $region14: #{deephar_forward.3} parent=0 // pred_check
    _
  $region15: #{deephar_forward.3} parent=0 // pred_check_branch
    %21 = sbr.rel (0) target = $region17
  $region16: #{deephar_forward.3} parent=0 // pred_region
    _
  $region17: #{deephar_forward.3} parent=0 // pred_fallthru
    _
  // Predicated region
  $region18: #{deephar_forward.3} parent=0 // pred_check
    _
  $region19: #{deephar_forward.3} parent=0 // pred_check_branch
    %23 = sbr.rel (0) target = $region21
  $region20: #{deephar_forward.3} parent=0 // pred_region
    _
  $region21: #{deephar_forward.3} parent=0 // pred_fallthru
    _
  // Predicated region
  $region22: #{deephar_forward.3} parent=0 // pred_check
    _
  $region23: #{deephar_forward.3} parent=0 // pred_check_branch
    %25 = sbr.rel (0) target = $region25
  $region24: #{deephar_forward.3} parent=0 // pred_region
    _
  $region25: #{deephar_forward.3} parent=0 // pred_fallthru
    _
  // Predicated region
  $region26: #{deephar_forward.3} parent=0 // pred_check
    _
  $region27: #{deephar_forward.3} parent=0 // pred_check_branch
    %27 = sbr.rel (0) target = $region29
  $region28: #{deephar_forward.3} parent=0 // pred_region
    _
  $region29: #{deephar_forward.3} parent=0 // pred_fallthru
    _
  %v28 = vld [vmem:[%s0] sm:$0xff]
  %v29 = vld [vmem:[%s0 + $0x8] sm:$0xff]
  %v30 = vld [vmem:[%s0 + $0x10] sm:$0xff]
  %v31 = vld [vmem:[%s0 + $0x18] sm:$0xff]
  %v32 = vld [vmem:[%s0 + $0x20] sm:$0xff]
  %v33 = vld [vmem:[%s0 + $0x28] sm:$0xff]
  %v34 = vld [vmem:[%s0 + $0x30] sm:$0xff]
  %v35 = vld [vmem:[%s0 + $0x38] sm:$0xff]
  %v36 = vld [vmem:[%s0 + $0x40] sm:$0xff]
  %v37 = vld [vmem:[%s0 + $0x48] sm:$0xff]
  %v38 = vld [vmem:[%s0 + $0x50] sm:$0xff]
  %v39 = vld [vmem:[%s0 + $0x58] sm:$0xff]
  %v40 = vld [vmem:[%s0 + $0x60] sm:$0xff]
  %v41 = vld [vmem:[%s0 + $0x68] sm:$0xff]
  %v42 = vld [vmem:[%s0 + $0x70] sm:$0xff]
  %v43 = vld [vmem:[%s0 + $0x78] sm:$0xff]
  %v44 = vld [vmem:[%s0 + $0x80] sm:$0xff]
  %v45 = vld [vmem:[%s0 + $0x88] sm:$0xff]
  %v46 = vld [vmem:[%s0 + $0x90] sm:$0xff]
  %v47 = vld [vmem:[%s0 + $0x98] sm:$0xff]
  %v48 = vld [vmem:[%s0 + $0xa0] sm:$0xff]
  %v49 = vld [vmem:[%s0 + $0xa8] sm:$0xff]
  %v50 = vld [vmem:[%s0 + $0xb0] sm:$0xff]
  %v51 = vld [vmem:[%s0 + $0xb8] sm:$0xff]
  %v52 = vld [vmem:[%s0 + $0xc0] sm:$0xff]
  %v53 = vld [vmem:[%s0 + $0xc8] sm:$0xff]
  %v54 = vld [vmem:[%s0 + $0xd0] sm:$0xff]
  %v55 = vld [vmem:[%s0 + $0xd8] sm:$0xff]
  %v56 = vld [vmem:[%s0 + $0xe0] sm:$0xff]
  %v57 = vld [vmem:[%s0 + $0xe8] sm:$0xff]
  %v58 = vld [vmem:[%s0 + $0xf0] sm:$0xff]
  %v59 = vld [vmem:[%s0 + $0xf8] sm:$0xff]
  %v60 = vld [vmem:[%s0 + $0x100] sm:$0xff]
  %v61 = vld [vmem:[%s0 + $0x108] sm:$0xff]
  %v62 = vld [vmem:[%s0 + $0x110] sm:$0xff]
  %v63 = vld [vmem:[%s0 + $0x118] sm:$0xff]
  %v64 = vld [vmem:[%s0 + $0x120] sm:$0xff]
  %v65 = vld [vmem:[%s0 + $0x128] sm:$0xff]
  %v66 = vld [vmem:[%s0 + $0x130] sm:$0xff]
  %v67 = vld [vmem:[%s0 + $0x138] sm:$0xff]
  %v68 = vld [vmem:[%s0 + $0x140] sm:$0xff]
  %v69 = vld [vmem:[%s0 + $0x148] sm:$0xff]
  %v70 = vld [vmem:[%s0 + $0x150] sm:$0xff]
  %v71 = vld [vmem:[%s0 + $0x158] sm:$0xff]
  %v72 = vld [vmem:[%s0 + $0x160] sm:$0xff]
  %v73 = vld [vmem:[%s0 + $0x168] sm:$0xff]
  %v74 = vld [vmem:[%s0 + $0x170] sm:$0xff]
  %v75 = vld [vmem:[%s0 + $0x178] sm:$0xff]
  %v76 = vld [vmem:[%s0 + $0x180] sm:$0xff]
  %v77 = vld [vmem:[%s0 + $0x188] sm:$0xff]
  %v78 = vld [vmem:[%s0 + $0x190] sm:$0xff]
  %v79 = vld [vmem:[%s0 + $0x198] sm:$0xff]
  %v80 = vld [vmem:[%s0 + $0x1a0] sm:$0xff]
  %v81 = vld [vmem:[%s0 + $0x1a8] sm:$0xff]
  %v82 = vld [vmem:[%s0 + $0x1b0] sm:$0xff]
  %v83 = vld [vmem:[%s0 + $0x1b8] sm:$0xff]
  %v84 = vld [vmem:[%s0 + $0x1c0] sm:$0xff]
  %v85 = vld [vmem:[%s0 + $0x1c8] sm:$0xff]
  %v86 = vld [vmem:[%s0 + $0x1d0] sm:$0xff]
  %v87 = vld [vmem:[%s0 + $0x1d8] sm:$0xff]
  %v88 = vld [vmem:[%s0 + $0x1e0] sm:$0xff]
  %v89 = vld [vmem:[%s0 + $0x1e8] sm:$0xff]
  %v90 = vld [vmem:[%s0 + $0x1f0] sm:$0xff]
  %v91 = vld [vmem:[%s0 + $0x1f8] sm:$0xff]
  %v92 = vld [vmem:[%s0 + $0x200] sm:$0xff]
  %v93 = vld [vmem:[%s0 + $0x208] sm:$0xff]
  %v94 = vld [vmem:[%s0 + $0x210] sm:$0xff]
  %v95 = vld [vmem:[%s0 + $0x218] sm:$0xff]
  %v96 = vld [vmem:[%s0 + $0x220] sm:$0xff]
  %v97 = vld [vmem:[%s0 + $0x228] sm:$0xff]
  %v98 = vld [vmem:[%s0 + $0x230] sm:$0xff]
  %v99 = vld [vmem:[%s0 + $0x238] sm:$0xff]
  %v100 = vld [vmem:[%s0 + $0x240] sm:$0xff]
  %v101 = vld [vmem:[%s0 + $0x248] sm:$0xff]
  %v102 = vld [vmem:[%s0 + $0x250] sm:$0xff]
  %v103 = vld [vmem:[%s0 + $0x258] sm:$0xff]
  %v104 = vld [vmem:[%s0 + $0x260] sm:$0xff]
  %v105 = vld [vmem:[%s0 + $0x268] sm:$0xff]
  %v106 = vld [vmem:[%s0 + $0x270] sm:$0xff]
  %v107 = vld [vmem:[%s0 + $0x278] sm:$0xff]
  %v108 = vld [vmem:[%s0 + $0x280] sm:$0xff]
  %v109 = vld [vmem:[%s0 + $0x288] sm:$0xff]
  %v110 = vld [vmem:[%s0 + $0x290] sm:$0xff]
  %v111 = vld [vmem:[%s0 + $0x298] sm:$0xff]
  %v112 = vld [vmem:[%s0 + $0x2a0] sm:$0xff]
  %v113 = vld [vmem:[%s0 + $0x2a8] sm:$0xff]
  %v114 = vld [vmem:[%s0 + $0x2b0] sm:$0xff]
  %v115 = vld [vmem:[%s0 + $0x2b8] sm:$0xff]
  %v116 = vld [vmem:[%s0 + $0x2c0] sm:$0xff]
  %v117 = vld [vmem:[%s0 + $0x2c8] sm:$0xff]
  %v118 = vld [vmem:[%s0 + $0x2d0] sm:$0xff]
  %v119 = vld [vmem:[%s0 + $0x2d8] sm:$0xff]
  %v120 = vld [vmem:[%s0 + $0x2e0] sm:$0xff]
  %v121 = vld [vmem:[%s0 + $0x2e8] sm:$0xff]
  %v122 = vld [vmem:[%s0 + $0x2f0] sm:$0xff]
  %v123 = vld [vmem:[%s0 + $0x2f8] sm:$0xff]
  %v124 = vld [vmem:[%s0 + $0x300] sm:$0xff]
  %v125 = vld [vmem:[%s0 + $0x308] sm:$0xff]
  %v126 = vld [vmem:[%s0 + $0x310] sm:$0xff]
  %v127 = vld [vmem:[%s0 + $0x318] sm:$0xff]
  %v128 = vld [vmem:[%s0 + $0x320] sm:$0xff]
  %v129 = vld [vmem:[%s0 + $0x328] sm:$0xff]
  %v130 = vld [vmem:[%s0 + $0x330] sm:$0xff]
  %v131 = vld [vmem:[%s0 + $0x338] sm:$0xff]
  %v132 = vld [vmem:[%s0 + $0x340] sm:$0xff]
  %v133 = vld [vmem:[%s0 + $0x348] sm:$0xff]
  %v134 = vld [vmem:[%s0 + $0x350] sm:$0xff]
  %v135 = vld [vmem:[%s0 + $0x358] sm:$0xff]
  %v136 = vld [vmem:[%s0 + $0x360] sm:$0xff]
  %v137 = vld [vmem:[%s0 + $0x368] sm:$0xff]
  %v138 = vld [vmem:[%s0 + $0x370] sm:$0xff]
  %v139 = vld [vmem:[%s0 + $0x378] sm:$0xff]
  %v140 = vld [vmem:[%s0 + $0x380] sm:$0xff]
  %v141 = vld [vmem:[%s0 + $0x388] sm:$0xff]
  %v142 = vld [vmem:[%s0 + $0x390] sm:$0xff]
  %v143 = vld [vmem:[%s0 + $0x398] sm:$0xff]
  %v144 = vld [vmem:[%s0 + $0x3a0] sm:$0xff]
  %v145 = vld [vmem:[%s0 + $0x3a8] sm:$0xff]
  %v146 = vld [vmem:[%s0 + $0x3b0] sm:$0xff]
  %v147 = vld [vmem:[%s0 + $0x3b8] sm:$0xff]
  %v148 = vld [vmem:[%s0 + $0x3c0] sm:$0xff]
  %v149 = vld [vmem:[%s0 + $0x3c8] sm:$0xff]
  %v150 = vld [vmem:[%s0 + $0x3d0] sm:$0xff]
  %v151 = vld [vmem:[%s0 + $0x3d8] sm:$0xff]
  %v152 = vld [vmem:[%s0 + $0x3e0] sm:$0xff]
  %v153 = vld [vmem:[%s0 + $0x3e8] sm:$0xff]
  %v154 = vld [vmem:[%s0 + $0x3f0] sm:$0xff]
  %v155 = vld [vmem:[%s0 + $0x3f8] sm:$0xff]
  %v156 = vld [vmem:[%s1] sm:$0xff]
  %v157 = vld [vmem:[%s1 + $0x8] sm:$0xff]
  %v158 = vld [vmem:[%s1 + $0x10] sm:$0xff]
  %v159 = vld [vmem:[%s1 + $0x18] sm:$0xff]
  %v160 = vld [vmem:[%s1 + $0x20] sm:$0xff]
  %v161 = vld [vmem:[%s1 + $0x28] sm:$0xff]
  %v162 = vld [vmem:[%s2] sm:$0x1]
  %v164 = vlaneseq
  %v165 = vshrl.u32 %v164, 7
  %v166 = vsub.s32 0, %v165
  %v167 = vrot.slane %v162, %v166
  %vm169 = vcmask 392192
  %v171 = vsel %vm169, %v28, 0
  %v174 = vsel %vm169, %v29, 0
  %v177 = vsel %vm169, %v30, 0
  %v180 = vsel %vm169, %v31, 0
  %v183 = vsel %vm169, %v32, 0
  %v186 = vsel %vm169, %v33, 0
  %v189 = vsel %vm169, %v34, 0
  %v192 = vsel %vm169, %v35, 0
  %v195 = vsel %vm169, %v36, 0
  %v198 = vsel %vm169, %v37, 0
  %v201 = vsel %vm169, %v38, 0
  %v204 = vsel %vm169, %v39, 0
  %v207 = vsel %vm169, %v40, 0
  %v210 = vsel %vm169, %v41, 0
  %v213 = vsel %vm169, %v42, 0
  %v216 = vsel %vm169, %v43, 0
  %v219 = vsel %vm169, %v44, 0
  %v222 = vsel %vm169, %v45, 0
  %v225 = vsel %vm169, %v46, 0
  %v228 = vsel %vm169, %v47, 0
  %v231 = vsel %vm169, %v48, 0
  %v234 = vsel %vm169, %v49, 0
  %v237 = vsel %vm169, %v50, 0
  %v240 = vsel %vm169, %v51, 0
  %v243 = vsel %vm169, %v52, 0
  %v246 = vsel %vm169, %v53, 0
  %v249 = vsel %vm169, %v54, 0
  %v252 = vsel %vm169, %v55, 0
  %v255 = vsel %vm169, %v56, 0
  %v258 = vsel %vm169, %v57, 0
  %v261 = vsel %vm169, %v58, 0
  %v264 = vsel %vm169, %v59, 0
  %v267 = vsel %vm169, %v60, 0
  %v270 = vsel %vm169, %v61, 0
  %v273 = vsel %vm169, %v62, 0
  %v276 = vsel %vm169, %v63, 0
  %v279 = vsel %vm169, %v64, 0
  %v282 = vsel %vm169, %v65, 0
  %v285 = vsel %vm169, %v66, 0
  %v288 = vsel %vm169, %v67, 0
  %v291 = vsel %vm169, %v68, 0
  %v294 = vsel %vm169, %v69, 0
  %v297 = vsel %vm169, %v70, 0
  %v300 = vsel %vm169, %v71, 0
  %v303 = vsel %vm169, %v72, 0
  %v306 = vsel %vm169, %v73, 0
  %v309 = vsel %vm169, %v74, 0
  %v312 = vsel %vm169, %v75, 0
  %v315 = vsel %vm169, %v76, 0
  %v318 = vsel %vm169, %v77, 0
  %v321 = vsel %vm169, %v78, 0
  %v324 = vsel %vm169, %v79, 0
  %v327 = vsel %vm169, %v80, 0
  %v330 = vsel %vm169, %v81, 0
  %v333 = vsel %vm169, %v82, 0
  %v336 = vsel %vm169, %v83, 0
  %v339 = vsel %vm169, %v84, 0
  %v342 = vsel %vm169, %v85, 0
  %v345 = vsel %vm169, %v86, 0
  %v348 = vsel %vm169, %v87, 0
  %v351 = vsel %vm169, %v88, 0
  %v354 = vsel %vm169, %v89, 0
  %v357 = vsel %vm169, %v90, 0
  %v360 = vsel %vm169, %v91, 0
  %v363 = vsel %vm169, %v92, 0
  %v366 = vsel %vm169, %v93, 0
  %v369 = vsel %vm169, %v94, 0
  %v372 = vsel %vm169, %v95, 0
  %v375 = vsel %vm169, %v96, 0
  %v378 = vsel %vm169, %v97, 0
  %v381 = vsel %vm169, %v98, 0
  %v384 = vsel %vm169, %v99, 0
  %v387 = vsel %vm169, %v100, 0
  %v390 = vsel %vm169, %v101, 0
  %v393 = vsel %vm169, %v102, 0
  %v396 = vsel %vm169, %v103, 0
  %v399 = vsel %vm169, %v104, 0
  %v402 = vsel %vm169, %v105, 0
  %v405 = vsel %vm169, %v106, 0
  %v408 = vsel %vm169, %v107, 0
  %v411 = vsel %vm169, %v108, 0
  %v414 = vsel %vm169, %v109, 0
  %v417 = vsel %vm169, %v110, 0
  %v420 = vsel %vm169, %v111, 0
  %v423 = vsel %vm169, %v112, 0
  %v426 = vsel %vm169, %v113, 0
  %v429 = vsel %vm169, %v114, 0
  %v432 = vsel %vm169, %v115, 0
  %v435 = vsel %vm169, %v116, 0
  %v438 = vsel %vm169, %v117, 0
  %v441 = vsel %vm169, %v118, 0
  %v444 = vsel %vm169, %v119, 0
  %v447 = vsel %vm169, %v120, 0
  %v450 = vsel %vm169, %v121, 0
  %v453 = vsel %vm169, %v122, 0
  %v456 = vsel %vm169, %v123, 0
  %v459 = vsel %vm169, %v124, 0
  %v462 = vsel %vm169, %v125, 0
  %v465 = vsel %vm169, %v126, 0
  %v468 = vsel %vm169, %v127, 0
  %v471 = vsel %vm169, %v128, 0
  %v474 = vsel %vm169, %v129, 0
  %v477 = vsel %vm169, %v130, 0
  %v480 = vsel %vm169, %v131, 0
  %v483 = vsel %vm169, %v132, 0
  %v486 = vsel %vm169, %v133, 0
  %v489 = vsel %vm169, %v134, 0
  %v492 = vsel %vm169, %v135, 0
  %v495 = vsel %vm169, %v136, 0
  %v498 = vsel %vm169, %v137, 0
  %v501 = vsel %vm169, %v138, 0
  %v504 = vsel %vm169, %v139, 0
  %v507 = vsel %vm169, %v140, 0
  %v510 = vsel %vm169, %v141, 0
  %v513 = vsel %vm169, %v142, 0
  %v516 = vsel %vm169, %v143, 0
  %v519 = vsel %vm169, %v144, 0
  %v522 = vsel %vm169, %v145, 0
  %v525 = vsel %vm169, %v146, 0
  %v528 = vsel %vm169, %v147, 0
  %v531 = vsel %vm169, %v148, 0
  %v534 = vsel %vm169, %v149, 0
  %v537 = vsel %vm169, %v150, 0
  %v540 = vsel %vm169, %v151, 0
  %v543 = vsel %vm169, %v152, 0
  %v546 = vsel %vm169, %v153, 0
  %v549 = vsel %vm169, %v154, 0
  %v552 = vsel %vm169, %v155, 0
  %554 = vmatprep.subr.mxu0 0.0
  %555 = vmatpush1.msra.mxu0 %v156
  %556 = vmatprep.subr.mxu0 0.0
  %557 = vmatpush1.msra.mxu0 %v157
  %558 = vmatprep.subr.mxu0 0.0
  %559 = vmatpush1.msra.mxu0 %v158
  %560 = vmatprep.subr.mxu0 0.0
  %561 = vmatpush1.msra.mxu0 %v159
  %562 = vmatprep.subr.mxu0 0.0
  %563 = vmatpush1.msra.mxu0 %v160
  %564 = vmatprep.subr.mxu0 0.0
  %565 = vmatpush1.msra.mxu0 %v161
  %566 = vmatprep.subr.mxu0 0.0
  %567 = vmatpush1.msra.mxu0 0.0
  %568 = vmatprep.subr.mxu0 0.0
  %569 = vmatpush1.msra.mxu0 0.0
  %570 = vmatprep.subr.mxu0 0.0
  %571 = vmatpush1.msra.mxu0 0.0
  %572 = vmatprep.subr.mxu0 0.0
  %573 = vmatpush1.msra.mxu0 0.0
  %574 = vmatprep.subr.mxu0 0.0
  %575 = vmatpush1.msra.mxu0 0.0
  %576 = vmatprep.subr.mxu0 0.0
  %577 = vmatpush1.msra.mxu0 0.0
  %578 = vmatprep.subr.mxu0 0.0
  %579 = vmatpush1.msra.mxu0 0.0
  %580 = vmatprep.subr.mxu0 0.0
  %581 = vmatpush1.msra.mxu0 0.0
  %582 = vmatprep.subr.mxu0 0.0
  %583 = vmatpush1.msra.mxu0 0.0
  %584 = vmatprep.subr.mxu0 0.0
  %585 = vmatpush1.msra.mxu0 0.0
  %586 = vmatprep.subr.mxu0 0.0
  %587 = vmatpush1.msra.mxu0 0.0
  %588 = vmatprep.subr.mxu0 0.0
  %589 = vmatpush1.msra.mxu0 0.0
  %590 = vmatprep.subr.mxu0 0.0
  %591 = vmatpush1.msra.mxu0 0.0
  %592 = vmatprep.subr.mxu0 0.0
  %593 = vmatpush1.msra.mxu0 0.0
  %594 = vmatprep.subr.mxu0 0.0
  %595 = vmatpush1.msra.mxu0 0.0
  %596 = vmatprep.subr.mxu0 0.0
  %597 = vmatpush1.msra.mxu0 0.0
  %598 = vmatprep.subr.mxu0 0.0
  %599 = vmatpush1.msra.mxu0 0.0
  %600 = vmatprep.subr.mxu0 0.0
  %601 = vmatpush1.msra.mxu0 0.0
  %602 = vmatprep.subr.mxu0 0.0
  %603 = vmatpush1.msra.mxu0 0.0
  %604 = vmatprep.subr.mxu0 0.0
  %605 = vmatpush1.msra.mxu0 0.0
  %606 = vmatprep.subr.mxu0 0.0
  %607 = vmatpush1.msra.mxu0 0.0
  %608 = vmatprep.subr.mxu0 0.0
  %609 = vmatpush1.msra.mxu0 0.0
  %610 = vmatprep.subr.mxu0 0.0
  %611 = vmatpush1.msra.mxu0 0.0
  %612 = vmatprep.subr.mxu0 0.0
  %613 = vmatpush1.msra.mxu0 0.0
  %614 = vmatprep.subr.mxu0 0.0
  %615 = vmatpush1.msra.mxu0 0.0
  %616 = vmatprep.subr.mxu0 0.0
  %617 = vmatpush1.msra.mxu0 0.0
  %618 = vmatprep.mubr.f32.mxu0 0.0
  %619 = vmatmul.mubr.f32.gmra.mrb[0].mxu0 %v171
  %v620 = vpop.f32.mrb[0].mxu0
  %v621 = vadd.f32 %v167, %v620
  %v622 = vpop.f32.mrb[0].mxu0
  %623 = vmatprep.mubr.f32.mxu0 0.0
  %624 = vmatmul.mubr.f32.gmra.mrb[0].mxu0 %v174
  %v625 = vpop.f32.mrb[0].mxu0
  %v626 = vadd.f32 %v167, %v625
  %v627 = vpop.f32.mrb[0].mxu0
  %628 = vmatprep.mubr.f32.mxu0 0.0
  %629 = vmatmul.mubr.f32.gmra.mrb[0].mxu0 %v177
  %v630 = vpop.f32.mrb[0].mxu0
  %v631 = vadd.f32 %v167, %v630
  %v632 = vpop.f32.mrb[0].mxu0
  %633 = vmatprep.mubr.f32.mxu0 0.0
  %634 = vmatmul.mubr.f32.gmra.mrb[0].mxu0 %v180
  %v635 = vpop.f32.mrb[0].mxu0
  %v636 = vadd.f32 %v167, %v635
  %v637 = vpop.f32.mrb[0].mxu0
  %638 = vmatprep.mubr.f32.mxu0 0.0
  %639 = vmatmul.mubr.f32.gmra.mrb[0].mxu0 %v183
  %v640 = vpop.f32.mrb[0].mxu0
  %v641 = vadd.f32 %v167, %v640
  %v642 = vpop.f32.mrb[0].mxu0
  %643 = vmatprep.mubr.f32.mxu0 0.0
  %644 = vmatmul.mubr.f32.gmra.mrb[0].mxu0 %v186
  %v645 = vpop.f32.mrb[0].mxu0
  %v646 = vadd.f32 %v167, %v645
  %v647 = vpop.f32.mrb[0].mxu0
  %648 = vmatprep.mubr.f32.mxu0 0.0
  %649 = vmatmul.mubr.f32.gmra.mrb[0].mxu0 %v189
  %v650 = vpop.f32.mrb[0].mxu0
  %v651 = vadd.f32 %v167, %v650
  %v652 = vpop.f32.mrb[0].mxu0
  %653 = vmatprep.mubr.f32.mxu0 0.0
  %654 = vmatmul.mubr.f32.gmra.mrb[0].mxu0 %v192
  %v655 = vpop.f32.mrb[0].mxu0
  %v656 = vadd.f32 %v167, %v655
  %v657 = vpop.f32.mrb[0].mxu0
  %658 = vmatprep.mubr.f32.mxu0 0.0
  %659 = vmatmul.mubr.f32.gmra.mrb[0].mxu0 %v195
  %v660 = vpop.f32.mrb[0].mxu0
  %v661 = vadd.f32 %v167, %v660
  %v662 = vpop.f32.mrb[0].mxu0
  %663 = vmatprep.mubr.f32.mxu0 0.0
  %664 = vmatmul.mubr.f32.gmra.mrb[0].mxu0 %v198
  %v665 = vpop.f32.mrb[0].mxu0
  %v666 = vadd.f32 %v167, %v665
  %v667 = vpop.f32.mrb[0].mxu0
  %668 = vmatprep.mubr.f32.mxu0 0.0
  %669 = vmatmul.mubr.f32.gmra.mrb[0].mxu0 %v201
  %v670 = vpop.f32.mrb[0].mxu0
  %v671 = vadd.f32 %v167, %v670
  %v672 = vpop.f32.mrb[0].mxu0
  %673 = vmatprep.mubr.f32.mxu0 0.0
  %674 = vmatmul.mubr.f32.gmra.mrb[0].mxu0 %v204
  %v675 = vpop.f32.mrb[0].mxu0
  %v676 = vadd.f32 %v167, %v675
  %v677 = vpop.f32.mrb[0].mxu0
  %678 = vmatprep.mubr.f32.mxu0 0.0
  %679 = vmatmul.mubr.f32.gmra.mrb[0].mxu0 %v207
  %v680 = vpop.f32.mrb[0].mxu0
  %v681 = vadd.f32 %v167, %v680
  %v682 = vpop.f32.mrb[0].mxu0
  %683 = vmatprep.mubr.f32.mxu0 0.0
  %684 = vmatmul.mubr.f32.gmra.mrb[0].mxu0 %v210
  %v685 = vpop.f32.mrb[0].mxu0
  %v686 = vadd.f32 %v167, %v685
  %v687 = vpop.f32.mrb[0].mxu0
  %688 = vmatprep.mubr.f32.mxu0 0.0
  %689 = vmatmul.mubr.f32.gmra.mrb[0].mxu0 %v213
  %v690 = vpop.f32.mrb[0].mxu0
  %v691 = vadd.f32 %v167, %v690
  %v692 = vpop.f32.mrb[0].mxu0
  %693 = vmatprep.mubr.f32.mxu0 0.0
  %694 = vmatmul.mubr.f32.gmra.mrb[0].mxu0 %v216
  %v695 = vpop.f32.mrb[0].mxu0
  %v696 = vadd.f32 %v167, %v695
  %v697 = vpop.f32.mrb[0].mxu0
  %698 = vmatprep.mubr.f32.mxu0 0.0
  %699 = vmatmul.mubr.f32.gmra.mrb[0].mxu0 %v219
  %v700 = vpop.f32.mrb[0].mxu0
  %v701 = vadd.f32 %v167, %v700
  %v702 = vpop.f32.mrb[0].mxu0
  %703 = vmatprep.mubr.f32.mxu0 0.0
  %704 = vmatmul.mubr.f32.gmra.mrb[0].mxu0 %v222
  %v705 = vpop.f32.mrb[0].mxu0
  %v706 = vadd.f32 %v167, %v705
  %v707 = vpop.f32.mrb[0].mxu0
  %708 = vmatprep.mubr.f32.mxu0 0.0
  %709 = vmatmul.mubr.f32.gmra.mrb[0].mxu0 %v225
  %v710 = vpop.f32.mrb[0].mxu0
  %v711 = vadd.f32 %v167, %v710
  %v712 = vpop.f32.mrb[0].mxu0
  %713 = vmatprep.mubr.f32.mxu0 0.0
  %714 = vmatmul.mubr.f32.gmra.mrb[0].mxu0 %v228
  %v715 = vpop.f32.mrb[0].mxu0
  %v716 = vadd.f32 %v167, %v715
  %v717 = vpop.f32.mrb[0].mxu0
  %718 = vmatprep.mubr.f32.mxu0 0.0
  %719 = vmatmul.mubr.f32.gmra.mrb[0].mxu0 %v231
  %v720 = vpop.f32.mrb[0].mxu0
  %v721 = vadd.f32 %v167, %v720
  %v722 = vpop.f32.mrb[0].mxu0
  %723 = vmatprep.mubr.f32.mxu0 0.0
  %724 = vmatmul.mubr.f32.gmra.mrb[0].mxu0 %v234
  %v725 = vpop.f32.mrb[0].mxu0
  %v726 = vadd.f32 %v167, %v725
  %v727 = vpop.f32.mrb[0].mxu0
  %728 = vmatprep.mubr.f32.mxu0 0.0
  %729 = vmatmul.mubr.f32.gmra.mrb[0].mxu0 %v237
  %v730 = vpop.f32.mrb[0].mxu0
  %v731 = vadd.f32 %v167, %v730
  %v732 = vpop.f32.mrb[0].mxu0
  %733 = vmatprep.mubr.f32.mxu0 0.0
  %734 = vmatmul.mubr.f32.gmra.mrb[0].mxu0 %v240
  %v735 = vpop.f32.mrb[0].mxu0
  %v736 = vadd.f32 %v167, %v735
  %v737 = vpop.f32.mrb[0].mxu0
  %738 = vmatprep.mubr.f32.mxu0 0.0
  %739 = vmatmul.mubr.f32.gmra.mrb[0].mxu0 %v243
  %v740 = vpop.f32.mrb[0].mxu0
  %v741 = vadd.f32 %v167, %v740
  %v742 = vpop.f32.mrb[0].mxu0
  %743 = vmatprep.mubr.f32.mxu0 0.0
  %744 = vmatmul.mubr.f32.gmra.mrb[0].mxu0 %v246
  %v745 = vpop.f32.mrb[0].mxu0
  %v746 = vadd.f32 %v167, %v745
  %v747 = vpop.f32.mrb[0].mxu0
  %748 = vmatprep.mubr.f32.mxu0 0.0
  %749 = vmatmul.mubr.f32.gmra.mrb[0].mxu0 %v249
  %v750 = vpop.f32.mrb[0].mxu0
  %v751 = vadd.f32 %v167, %v750
  %v752 = vpop.f32.mrb[0].mxu0
  %753 = vmatprep.mubr.f32.mxu0 0.0
  %754 = vmatmul.mubr.f32.gmra.mrb[0].mxu0 %v252
  %v755 = vpop.f32.mrb[0].mxu0
  %v756 = vadd.f32 %v167, %v755
  %v757 = vpop.f32.mrb[0].mxu0
  %758 = vmatprep.mubr.f32.mxu0 0.0
  %759 = vmatmul.mubr.f32.gmra.mrb[0].mxu0 %v255
  %v760 = vpop.f32.mrb[0].mxu0
  %v761 = vadd.f32 %v167, %v760
  %v762 = vpop.f32.mrb[0].mxu0
  %763 = vmatprep.mubr.f32.mxu0 0.0
  %764 = vmatmul.mubr.f32.gmra.mrb[0].mxu0 %v258
  %v765 = vpop.f32.mrb[0].mxu0
  %v766 = vadd.f32 %v167, %v765
  %v767 = vpop.f32.mrb[0].mxu0
  %768 = vmatprep.mubr.f32.mxu0 0.0
  %769 = vmatmul.mubr.f32.gmra.mrb[0].mxu0 %v261
  %v770 = vpop.f32.mrb[0].mxu0
  %v771 = vadd.f32 %v167, %v770
  %v772 = vpop.f32.mrb[0].mxu0
  %773 = vmatprep.mubr.f32.mxu0 0.0
  %774 = vmatmul.mubr.f32.gmra.mrb[0].mxu0 %v264
  %v775 = vpop.f32.mrb[0].mxu0
  %v776 = vadd.f32 %v167, %v775
  %v777 = vpop.f32.mrb[0].mxu0
  %778 = vmatprep.mubr.f32.mxu0 0.0
  %779 = vmatmul.mubr.f32.gmra.mrb[0].mxu0 %v267
  %v780 = vpop.f32.mrb[0].mxu0
  %v781 = vadd.f32 %v167, %v780
  %v782 = vpop.f32.mrb[0].mxu0
  %783 = vmatprep.mubr.f32.mxu0 0.0
  %784 = vmatmul.mubr.f32.gmra.mrb[0].mxu0 %v270
  %v785 = vpop.f32.mrb[0].mxu0
  %v786 = vadd.f32 %v167, %v785
  %v787 = vpop.f32.mrb[0].mxu0
  %788 = vmatprep.mubr.f32.mxu0 0.0
  %789 = vmatmul.mubr.f32.gmra.mrb[0].mxu0 %v273
  %v790 = vpop.f32.mrb[0].mxu0
  %v791 = vadd.f32 %v167, %v790
  %v792 = vpop.f32.mrb[0].mxu0
  %793 = vmatprep.mubr.f32.mxu0 0.0
  %794 = vmatmul.mubr.f32.gmra.mrb[0].mxu0 %v276
  %v795 = vpop.f32.mrb[0].mxu0
  %v796 = vadd.f32 %v167, %v795
  %v797 = vpop.f32.mrb[0].mxu0
  %798 = vmatprep.mubr.f32.mxu0 0.0
  %799 = vmatmul.mubr.f32.gmra.mrb[0].mxu0 %v279
  %v800 = vpop.f32.mrb[0].mxu0
  %v801 = vadd.f32 %v167, %v800
  %v802 = vpop.f32.mrb[0].mxu0
  %803 = vmatprep.mubr.f32.mxu0 0.0
  %804 = vmatmul.mubr.f32.gmra.mrb[0].mxu0 %v282
  %v805 = vpop.f32.mrb[0].mxu0
  %v806 = vadd.f32 %v167, %v805
  %v807 = vpop.f32.mrb[0].mxu0
  %808 = vmatprep.mubr.f32.mxu0 0.0
  %809 = vmatmul.mubr.f32.gmra.mrb[0].mxu0 %v285
  %v810 = vpop.f32.mrb[0].mxu0
  %v811 = vadd.f32 %v167, %v810
  %v812 = vpop.f32.mrb[0].mxu0
  %813 = vmatprep.mubr.f32.mxu0 0.0
  %814 = vmatmul.mubr.f32.gmra.mrb[0].mxu0 %v288
  %v815 = vpop.f32.mrb[0].mxu0
  %v816 = vadd.f32 %v167, %v815
  %v817 = vpop.f32.mrb[0].mxu0
  %818 = vmatprep.mubr.f32.mxu0 0.0
  %819 = vmatmul.mubr.f32.gmra.mrb[0].mxu0 %v291
  %v820 = vpop.f32.mrb[0].mxu0
  %v821 = vadd.f32 %v167, %v820
  %v822 = vpop.f32.mrb[0].mxu0
  %823 = vmatprep.mubr.f32.mxu0 0.0
  %824 = vmatmul.mubr.f32.gmra.mrb[0].mxu0 %v294
  %v825 = vpop.f32.mrb[0].mxu0
  %v826 = vadd.f32 %v167, %v825
  %v827 = vpop.f32.mrb[0].mxu0
  %828 = vmatprep.mubr.f32.mxu0 0.0
  %829 = vmatmul.mubr.f32.gmra.mrb[0].mxu0 %v297
  %v830 = vpop.f32.mrb[0].mxu0
  %v831 = vadd.f32 %v167, %v830
  %v832 = vpop.f32.mrb[0].mxu0
  %833 = vmatprep.mubr.f32.mxu0 0.0
  %834 = vmatmul.mubr.f32.gmra.mrb[0].mxu0 %v300
  %v835 = vpop.f32.mrb[0].mxu0
  %v836 = vadd.f32 %v167, %v835
  %v837 = vpop.f32.mrb[0].mxu0
  %838 = vmatprep.mubr.f32.mxu0 0.0
  %839 = vmatmul.mubr.f32.gmra.mrb[0].mxu0 %v303
  %v840 = vpop.f32.mrb[0].mxu0
  %v841 = vadd.f32 %v167, %v840
  %v842 = vpop.f32.mrb[0].mxu0
  %843 = vmatprep.mubr.f32.mxu0 0.0
  %844 = vmatmul.mubr.f32.gmra.mrb[0].mxu0 %v306
  %v845 = vpop.f32.mrb[0].mxu0
  %v846 = vadd.f32 %v167, %v845
  %v847 = vpop.f32.mrb[0].mxu0
  %848 = vmatprep.mubr.f32.mxu0 0.0
  %849 = vmatmul.mubr.f32.gmra.mrb[0].mxu0 %v309
  %v850 = vpop.f32.mrb[0].mxu0
  %v851 = vadd.f32 %v167, %v850
  %v852 = vpop.f32.mrb[0].mxu0
  %853 = vmatprep.mubr.f32.mxu0 0.0
  %854 = vmatmul.mubr.f32.gmra.mrb[0].mxu0 %v312
  %v855 = vpop.f32.mrb[0].mxu0
  %v856 = vadd.f32 %v167, %v855
  %v857 = vpop.f32.mrb[0].mxu0
  %858 = vmatprep.mubr.f32.mxu0 0.0
  %859 = vmatmul.mubr.f32.gmra.mrb[0].mxu0 %v315
  %v860 = vpop.f32.mrb[0].mxu0
  %v861 = vadd.f32 %v167, %v860
  %v862 = vpop.f32.mrb[0].mxu0
  %863 = vmatprep.mubr.f32.mxu0 0.0
  %864 = vmatmul.mubr.f32.gmra.mrb[0].mxu0 %v318
  %v865 = vpop.f32.mrb[0].mxu0
  %v866 = vadd.f32 %v167, %v865
  %v867 = vpop.f32.mrb[0].mxu0
  %868 = vmatprep.mubr.f32.mxu0 0.0
  %869 = vmatmul.mubr.f32.gmra.mrb[0].mxu0 %v321
  %v870 = vpop.f32.mrb[0].mxu0
  %v871 = vadd.f32 %v167, %v870
  %v872 = vpop.f32.mrb[0].mxu0
  %873 = vmatprep.mubr.f32.mxu0 0.0
  %874 = vmatmul.mubr.f32.gmra.mrb[0].mxu0 %v324
  %v875 = vpop.f32.mrb[0].mxu0
  %v876 = vadd.f32 %v167, %v875
  %v877 = vpop.f32.mrb[0].mxu0
  %878 = vmatprep.mubr.f32.mxu0 0.0
  %879 = vmatmul.mubr.f32.gmra.mrb[0].mxu0 %v327
  %v880 = vpop.f32.mrb[0].mxu0
  %v881 = vadd.f32 %v167, %v880
  %v882 = vpop.f32.mrb[0].mxu0
  %883 = vmatprep.mubr.f32.mxu0 0.0
  %884 = vmatmul.mubr.f32.gmra.mrb[0].mxu0 %v330
  %v885 = vpop.f32.mrb[0].mxu0
  %v886 = vadd.f32 %v167, %v885
  %v887 = vpop.f32.mrb[0].mxu0
  %888 = vmatprep.mubr.f32.mxu0 0.0
  %889 = vmatmul.mubr.f32.gmra.mrb[0].mxu0 %v333
  %v890 = vpop.f32.mrb[0].mxu0
  %v891 = vadd.f32 %v167, %v890
  %v892 = vpop.f32.mrb[0].mxu0
  %893 = vmatprep.mubr.f32.mxu0 0.0
  %894 = vmatmul.mubr.f32.gmra.mrb[0].mxu0 %v336
  %v895 = vpop.f32.mrb[0].mxu0
  %v896 = vadd.f32 %v167, %v895
  %v897 = vpop.f32.mrb[0].mxu0
  %898 = vmatprep.mubr.f32.mxu0 0.0
  %899 = vmatmul.mubr.f32.gmra.mrb[0].mxu0 %v339
  %v900 = vpop.f32.mrb[0].mxu0
  %v901 = vadd.f32 %v167, %v900
  %v902 = vpop.f32.mrb[0].mxu0
  %903 = vmatprep.mubr.f32.mxu0 0.0
  %904 = vmatmul.mubr.f32.gmra.mrb[0].mxu0 %v342
  %v905 = vpop.f32.mrb[0].mxu0
  %v906 = vadd.f32 %v167, %v905
  %v907 = vpop.f32.mrb[0].mxu0
  %908 = vmatprep.mubr.f32.mxu0 0.0
  %909 = vmatmul.mubr.f32.gmra.mrb[0].mxu0 %v345
  %v910 = vpop.f32.mrb[0].mxu0
  %v911 = vadd.f32 %v167, %v910
  %v912 = vpop.f32.mrb[0].mxu0
  %913 = vmatprep.mubr.f32.mxu0 0.0
  %914 = vmatmul.mubr.f32.gmra.mrb[0].mxu0 %v348
  %v915 = vpop.f32.mrb[0].mxu0
  %v916 = vadd.f32 %v167, %v915
  %v917 = vpop.f32.mrb[0].mxu0
  %918 = vmatprep.mubr.f32.mxu0 0.0
  %919 = vmatmul.mubr.f32.gmra.mrb[0].mxu0 %v351
  %v920 = vpop.f32.mrb[0].mxu0
  %v921 = vadd.f32 %v167, %v920
  %v922 = vpop.f32.mrb[0].mxu0
  %923 = vmatprep.mubr.f32.mxu0 0.0
  %924 = vmatmul.mubr.f32.gmra.mrb[0].mxu0 %v354
  %v925 = vpop.f32.mrb[0].mxu0
  %v926 = vadd.f32 %v167, %v925
  %v927 = vpop.f32.mrb[0].mxu0
  %928 = vmatprep.mubr.f32.mxu0 0.0
  %929 = vmatmul.mubr.f32.gmra.mrb[0].mxu0 %v357
  %v930 = vpop.f32.mrb[0].mxu0
  %v931 = vadd.f32 %v167, %v930
  %v932 = vpop.f32.mrb[0].mxu0
  %933 = vmatprep.mubr.f32.mxu0 0.0
  %934 = vmatmul.mubr.f32.gmra.mrb[0].mxu0 %v360
  %v935 = vpop.f32.mrb[0].mxu0
  %v936 = vadd.f32 %v167, %v935
  %v937 = vpop.f32.mrb[0].mxu0
  %938 = vmatprep.mubr.f32.mxu0 0.0
  %939 = vmatmul.mubr.f32.gmra.mrb[0].mxu0 %v363
  %v940 = vpop.f32.mrb[0].mxu0
  %v941 = vadd.f32 %v167, %v940
  %v942 = vpop.f32.mrb[0].mxu0
  %943 = vmatprep.mubr.f32.mxu0 0.0
  %944 = vmatmul.mubr.f32.gmra.mrb[0].mxu0 %v366
  %v945 = vpop.f32.mrb[0].mxu0
  %v946 = vadd.f32 %v167, %v945
  %v947 = vpop.f32.mrb[0].mxu0
  %948 = vmatprep.mubr.f32.mxu0 0.0
  %949 = vmatmul.mubr.f32.gmra.mrb[0].mxu0 %v369
  %v950 = vpop.f32.mrb[0].mxu0
  %v951 = vadd.f32 %v167, %v950
  %v952 = vpop.f32.mrb[0].mxu0
  %953 = vmatprep.mubr.f32.mxu0 0.0
  %954 = vmatmul.mubr.f32.gmra.mrb[0].mxu0 %v372
  %v955 = vpop.f32.mrb[0].mxu0
  %v956 = vadd.f32 %v167, %v955
  %v957 = vpop.f32.mrb[0].mxu0
  %958 = vmatprep.mubr.f32.mxu0 0.0
  %959 = vmatmul.mubr.f32.gmra.mrb[0].mxu0 %v375
  %v960 = vpop.f32.mrb[0].mxu0
  %v961 = vadd.f32 %v167, %v960
  %v962 = vpop.f32.mrb[0].mxu0
  %963 = vmatprep.mubr.f32.mxu0 0.0
  %964 = vmatmul.mubr.f32.gmra.mrb[0].mxu0 %v378
  %v965 = vpop.f32.mrb[0].mxu0
  %v966 = vadd.f32 %v167, %v965
  %v967 = vpop.f32.mrb[0].mxu0
  %968 = vmatprep.mubr.f32.mxu0 0.0
  %969 = vmatmul.mubr.f32.gmra.mrb[0].mxu0 %v381
  %v970 = vpop.f32.mrb[0].mxu0
  %v971 = vadd.f32 %v167, %v970
  %v972 = vpop.f32.mrb[0].mxu0
  %973 = vmatprep.mubr.f32.mxu0 0.0
  %974 = vmatmul.mubr.f32.gmra.mrb[0].mxu0 %v384
  %v975 = vpop.f32.mrb[0].mxu0
  %v976 = vadd.f32 %v167, %v975
  %v977 = vpop.f32.mrb[0].mxu0
  %978 = vmatprep.mubr.f32.mxu0 0.0
  %979 = vmatmul.mubr.f32.gmra.mrb[0].mxu0 %v387
  %v980 = vpop.f32.mrb[0].mxu0
  %v981 = vadd.f32 %v167, %v980
  %v982 = vpop.f32.mrb[0].mxu0
  %983 = vmatprep.mubr.f32.mxu0 0.0
  %984 = vmatmul.mubr.f32.gmra.mrb[0].mxu0 %v390
  %v985 = vpop.f32.mrb[0].mxu0
  %v986 = vadd.f32 %v167, %v985
  %v987 = vpop.f32.mrb[0].mxu0
  %988 = vmatprep.mubr.f32.mxu0 0.0
  %989 = vmatmul.mubr.f32.gmra.mrb[0].mxu0 %v393
  %v990 = vpop.f32.mrb[0].mxu0
  %v991 = vadd.f32 %v167, %v990
  %v992 = vpop.f32.mrb[0].mxu0
  %993 = vmatprep.mubr.f32.mxu0 0.0
  %994 = vmatmul.mubr.f32.gmra.mrb[0].mxu0 %v396
  %v995 = vpop.f32.mrb[0].mxu0
  %v996 = vadd.f32 %v167, %v995
  %v997 = vpop.f32.mrb[0].mxu0
  %998 = vmatprep.mubr.f32.mxu0 0.0
  %999 = vmatmul.mubr.f32.gmra.mrb[0].mxu0 %v399
  %v1000 = vpop.f32.mrb[0].mxu0
  %v1001 = vadd.f32 %v167, %v1000
  %v1002 = vpop.f32.mrb[0].mxu0
  %1003 = vmatprep.mubr.f32.mxu0 0.0
  %1004 = vmatmul.mubr.f32.gmra.mrb[0].mxu0 %v402
  %v1005 = vpop.f32.mrb[0].mxu0
  %v1006 = vadd.f32 %v167, %v1005
  %v1007 = vpop.f32.mrb[0].mxu0
  %1008 = vmatprep.mubr.f32.mxu0 0.0
  %1009 = vmatmul.mubr.f32.gmra.mrb[0].mxu0 %v405
  %v1010 = vpop.f32.mrb[0].mxu0
  %v1011 = vadd.f32 %v167, %v1010
  %v1012 = vpop.f32.mrb[0].mxu0
  %1013 = vmatprep.mubr.f32.mxu0 0.0
  %1014 = vmatmul.mubr.f32.gmra.mrb[0].mxu0 %v408
  %v1015 = vpop.f32.mrb[0].mxu0
  %v1016 = vadd.f32 %v167, %v1015
  %v1017 = vpop.f32.mrb[0].mxu0
  %1018 = vmatprep.mubr.f32.mxu0 0.0
  %1019 = vmatmul.mubr.f32.gmra.mrb[0].mxu0 %v411
  %v1020 = vpop.f32.mrb[0].mxu0
  %v1021 = vadd.f32 %v167, %v1020
  %v1022 = vpop.f32.mrb[0].mxu0
  %1023 = vmatprep.mubr.f32.mxu0 0.0
  %1024 = vmatmul.mubr.f32.gmra.mrb[0].mxu0 %v414
  %v1025 = vpop.f32.mrb[0].mxu0
  %v1026 = vadd.f32 %v167, %v1025
  %v1027 = vpop.f32.mrb[0].mxu0
  %1028 = vmatprep.mubr.f32.mxu0 0.0
  %1029 = vmatmul.mubr.f32.gmra.mrb[0].mxu0 %v417
  %v1030 = vpop.f32.mrb[0].mxu0
  %v1031 = vadd.f32 %v167, %v1030
  %v1032 = vpop.f32.mrb[0].mxu0
  %1033 = vmatprep.mubr.f32.mxu0 0.0
  %1034 = vmatmul.mubr.f32.gmra.mrb[0].mxu0 %v420
  %v1035 = vpop.f32.mrb[0].mxu0
  %v1036 = vadd.f32 %v167, %v1035
  %v1037 = vpop.f32.mrb[0].mxu0
  %1038 = vmatprep.mubr.f32.mxu0 0.0
  %1039 = vmatmul.mubr.f32.gmra.mrb[0].mxu0 %v423
  %v1040 = vpop.f32.mrb[0].mxu0
  %v1041 = vadd.f32 %v167, %v1040
  %v1042 = vpop.f32.mrb[0].mxu0
  %1043 = vmatprep.mubr.f32.mxu0 0.0
  %1044 = vmatmul.mubr.f32.gmra.mrb[0].mxu0 %v426
  %v1045 = vpop.f32.mrb[0].mxu0
  %v1046 = vadd.f32 %v167, %v1045
  %v1047 = vpop.f32.mrb[0].mxu0
  %1048 = vmatprep.mubr.f32.mxu0 0.0
  %1049 = vmatmul.mubr.f32.gmra.mrb[0].mxu0 %v429
  %v1050 = vpop.f32.mrb[0].mxu0
  %v1051 = vadd.f32 %v167, %v1050
  %v1052 = vpop.f32.mrb[0].mxu0
  %1053 = vmatprep.mubr.f32.mxu0 0.0
  %1054 = vmatmul.mubr.f32.gmra.mrb[0].mxu0 %v432
  %v1055 = vpop.f32.mrb[0].mxu0
  %v1056 = vadd.f32 %v167, %v1055
  %v1057 = vpop.f32.mrb[0].mxu0
  %1058 = vmatprep.mubr.f32.mxu0 0.0
  %1059 = vmatmul.mubr.f32.gmra.mrb[0].mxu0 %v435
  %v1060 = vpop.f32.mrb[0].mxu0
  %v1061 = vadd.f32 %v167, %v1060
  %v1062 = vpop.f32.mrb[0].mxu0
  %1063 = vmatprep.mubr.f32.mxu0 0.0
  %1064 = vmatmul.mubr.f32.gmra.mrb[0].mxu0 %v438
  %v1065 = vpop.f32.mrb[0].mxu0
  %v1066 = vadd.f32 %v167, %v1065
  %v1067 = vpop.f32.mrb[0].mxu0
  %1068 = vmatprep.mubr.f32.mxu0 0.0
  %1069 = vmatmul.mubr.f32.gmra.mrb[0].mxu0 %v441
  %v1070 = vpop.f32.mrb[0].mxu0
  %v1071 = vadd.f32 %v167, %v1070
  %v1072 = vpop.f32.mrb[0].mxu0
  %1073 = vmatprep.mubr.f32.mxu0 0.0
  %1074 = vmatmul.mubr.f32.gmra.mrb[0].mxu0 %v444
  %v1075 = vpop.f32.mrb[0].mxu0
  %v1076 = vadd.f32 %v167, %v1075
  %v1077 = vpop.f32.mrb[0].mxu0
  %1078 = vmatprep.mubr.f32.mxu0 0.0
  %1079 = vmatmul.mubr.f32.gmra.mrb[0].mxu0 %v447
  %v1080 = vpop.f32.mrb[0].mxu0
  %v1081 = vadd.f32 %v167, %v1080
  %v1082 = vpop.f32.mrb[0].mxu0
  %1083 = vmatprep.mubr.f32.mxu0 0.0
  %1084 = vmatmul.mubr.f32.gmra.mrb[0].mxu0 %v450
  %v1085 = vpop.f32.mrb[0].mxu0
  %v1086 = vadd.f32 %v167, %v1085
  %v1087 = vpop.f32.mrb[0].mxu0
  %1088 = vmatprep.mubr.f32.mxu0 0.0
  %1089 = vmatmul.mubr.f32.gmra.mrb[0].mxu0 %v453
  %v1090 = vpop.f32.mrb[0].mxu0
  %v1091 = vadd.f32 %v167, %v1090
  %v1092 = vpop.f32.mrb[0].mxu0
  %1093 = vmatprep.mubr.f32.mxu0 0.0
  %1094 = vmatmul.mubr.f32.gmra.mrb[0].mxu0 %v456
  %v1095 = vpop.f32.mrb[0].mxu0
  %v1096 = vadd.f32 %v167, %v1095
  %v1097 = vpop.f32.mrb[0].mxu0
  %1098 = vmatprep.mubr.f32.mxu0 0.0
  %1099 = vmatmul.mubr.f32.gmra.mrb[0].mxu0 %v459
  %v1100 = vpop.f32.mrb[0].mxu0
  %v1101 = vadd.f32 %v167, %v1100
  %v1102 = vpop.f32.mrb[0].mxu0
  %1103 = vmatprep.mubr.f32.mxu0 0.0
  %1104 = vmatmul.mubr.f32.gmra.mrb[0].mxu0 %v462
  %v1105 = vpop.f32.mrb[0].mxu0
  %v1106 = vadd.f32 %v167, %v1105
  %v1107 = vpop.f32.mrb[0].mxu0
  %1108 = vmatprep.mubr.f32.mxu0 0.0
  %1109 = vmatmul.mubr.f32.gmra.mrb[0].mxu0 %v465
  %v1110 = vpop.f32.mrb[0].mxu0
  %v1111 = vadd.f32 %v167, %v1110
  %v1112 = vpop.f32.mrb[0].mxu0
  %1113 = vmatprep.mubr.f32.mxu0 0.0
  %1114 = vmatmul.mubr.f32.gmra.mrb[0].mxu0 %v468
  %v1115 = vpop.f32.mrb[0].mxu0
  %v1116 = vadd.f32 %v167, %v1115
  %v1117 = vpop.f32.mrb[0].mxu0
  %1118 = vmatprep.mubr.f32.mxu0 0.0
  %1119 = vmatmul.mubr.f32.gmra.mrb[0].mxu0 %v471
  %v1120 = vpop.f32.mrb[0].mxu0
  %v1121 = vadd.f32 %v167, %v1120
  %v1122 = vpop.f32.mrb[0].mxu0
  %1123 = vmatprep.mubr.f32.mxu0 0.0
  %1124 = vmatmul.mubr.f32.gmra.mrb[0].mxu0 %v474
  %v1125 = vpop.f32.mrb[0].mxu0
  %v1126 = vadd.f32 %v167, %v1125
  %v1127 = vpop.f32.mrb[0].mxu0
  %1128 = vmatprep.mubr.f32.mxu0 0.0
  %1129 = vmatmul.mubr.f32.gmra.mrb[0].mxu0 %v477
  %v1130 = vpop.f32.mrb[0].mxu0
  %v1131 = vadd.f32 %v167, %v1130
  %v1132 = vpop.f32.mrb[0].mxu0
  %1133 = vmatprep.mubr.f32.mxu0 0.0
  %1134 = vmatmul.mubr.f32.gmra.mrb[0].mxu0 %v480
  %v1135 = vpop.f32.mrb[0].mxu0
  %v1136 = vadd.f32 %v167, %v1135
  %v1137 = vpop.f32.mrb[0].mxu0
  %1138 = vmatprep.mubr.f32.mxu0 0.0
  %1139 = vmatmul.mubr.f32.gmra.mrb[0].mxu0 %v483
  %v1140 = vpop.f32.mrb[0].mxu0
  %v1141 = vadd.f32 %v167, %v1140
  %v1142 = vpop.f32.mrb[0].mxu0
  %1143 = vmatprep.mubr.f32.mxu0 0.0
  %1144 = vmatmul.mubr.f32.gmra.mrb[0].mxu0 %v486
  %v1145 = vpop.f32.mrb[0].mxu0
  %v1146 = vadd.f32 %v167, %v1145
  %v1147 = vpop.f32.mrb[0].mxu0
  %1148 = vmatprep.mubr.f32.mxu0 0.0
  %1149 = vmatmul.mubr.f32.gmra.mrb[0].mxu0 %v489
  %v1150 = vpop.f32.mrb[0].mxu0
  %v1151 = vadd.f32 %v167, %v1150
  %v1152 = vpop.f32.mrb[0].mxu0
  %1153 = vmatprep.mubr.f32.mxu0 0.0
  %1154 = vmatmul.mubr.f32.gmra.mrb[0].mxu0 %v492
  %v1155 = vpop.f32.mrb[0].mxu0
  %v1156 = vadd.f32 %v167, %v1155
  %v1157 = vpop.f32.mrb[0].mxu0
  %1158 = vmatprep.mubr.f32.mxu0 0.0
  %1159 = vmatmul.mubr.f32.gmra.mrb[0].mxu0 %v495
  %v1160 = vpop.f32.mrb[0].mxu0
  %v1161 = vadd.f32 %v167, %v1160
  %v1162 = vpop.f32.mrb[0].mxu0
  %1163 = vmatprep.mubr.f32.mxu0 0.0
  %1164 = vmatmul.mubr.f32.gmra.mrb[0].mxu0 %v498
  %v1165 = vpop.f32.mrb[0].mxu0
  %v1166 = vadd.f32 %v167, %v1165
  %v1167 = vpop.f32.mrb[0].mxu0
  %1168 = vmatprep.mubr.f32.mxu0 0.0
  %1169 = vmatmul.mubr.f32.gmra.mrb[0].mxu0 %v501
  %v1170 = vpop.f32.mrb[0].mxu0
  %v1171 = vadd.f32 %v167, %v1170
  %v1172 = vpop.f32.mrb[0].mxu0
  %1173 = vmatprep.mubr.f32.mxu0 0.0
  %1174 = vmatmul.mubr.f32.gmra.mrb[0].mxu0 %v504
  %v1175 = vpop.f32.mrb[0].mxu0
  %v1176 = vadd.f32 %v167, %v1175
  %v1177 = vpop.f32.mrb[0].mxu0
  %1178 = vmatprep.mubr.f32.mxu0 0.0
  %1179 = vmatmul.mubr.f32.gmra.mrb[0].mxu0 %v507
  %v1180 = vpop.f32.mrb[0].mxu0
  %v1181 = vadd.f32 %v167, %v1180
  %v1182 = vpop.f32.mrb[0].mxu0
  %1183 = vmatprep.mubr.f32.mxu0 0.0
  %1184 = vmatmul.mubr.f32.gmra.mrb[0].mxu0 %v510
  %v1185 = vpop.f32.mrb[0].mxu0
  %v1186 = vadd.f32 %v167, %v1185
  %v1187 = vpop.f32.mrb[0].mxu0
  %1188 = vmatprep.mubr.f32.mxu0 0.0
  %1189 = vmatmul.mubr.f32.gmra.mrb[0].mxu0 %v513
  %v1190 = vpop.f32.mrb[0].mxu0
  %v1191 = vadd.f32 %v167, %v1190
  %v1192 = vpop.f32.mrb[0].mxu0
  %1193 = vmatprep.mubr.f32.mxu0 0.0
  %1194 = vmatmul.mubr.f32.gmra.mrb[0].mxu0 %v516
  %v1195 = vpop.f32.mrb[0].mxu0
  %v1196 = vadd.f32 %v167, %v1195
  %v1197 = vpop.f32.mrb[0].mxu0
  %1198 = vmatprep.mubr.f32.mxu0 0.0
  %1199 = vmatmul.mubr.f32.gmra.mrb[0].mxu0 %v519
  %v1200 = vpop.f32.mrb[0].mxu0
  %v1201 = vadd.f32 %v167, %v1200
  %v1202 = vpop.f32.mrb[0].mxu0
  %1203 = vmatprep.mubr.f32.mxu0 0.0
  %1204 = vmatmul.mubr.f32.gmra.mrb[0].mxu0 %v522
  %v1205 = vpop.f32.mrb[0].mxu0
  %v1206 = vadd.f32 %v167, %v1205
  %v1207 = vpop.f32.mrb[0].mxu0
  %1208 = vmatprep.mubr.f32.mxu0 0.0
  %1209 = vmatmul.mubr.f32.gmra.mrb[0].mxu0 %v525
  %v1210 = vpop.f32.mrb[0].mxu0
  %v1211 = vadd.f32 %v167, %v1210
  %v1212 = vpop.f32.mrb[0].mxu0
  %1213 = vmatprep.mubr.f32.mxu0 0.0
  %1214 = vmatmul.mubr.f32.gmra.mrb[0].mxu0 %v528
  %v1215 = vpop.f32.mrb[0].mxu0
  %v1216 = vadd.f32 %v167, %v1215
  %v1217 = vpop.f32.mrb[0].mxu0
  %1218 = vmatprep.mubr.f32.mxu0 0.0
  %1219 = vmatmul.mubr.f32.gmra.mrb[0].mxu0 %v531
  %v1220 = vpop.f32.mrb[0].mxu0
  %v1221 = vadd.f32 %v167, %v1220
  %v1222 = vpop.f32.mrb[0].mxu0
  %1223 = vmatprep.mubr.f32.mxu0 0.0
  %1224 = vmatmul.mubr.f32.gmra.mrb[0].mxu0 %v534
  %v1225 = vpop.f32.mrb[0].mxu0
  %v1226 = vadd.f32 %v167, %v1225
  %v1227 = vpop.f32.mrb[0].mxu0
  %1228 = vmatprep.mubr.f32.mxu0 0.0
  %1229 = vmatmul.mubr.f32.gmra.mrb[0].mxu0 %v537
  %v1230 = vpop.f32.mrb[0].mxu0
  %v1231 = vadd.f32 %v167, %v1230
  %v1232 = vpop.f32.mrb[0].mxu0
  %1233 = vmatprep.mubr.f32.mxu0 0.0
  %1234 = vmatmul.mubr.f32.gmra.mrb[0].mxu0 %v540
  %v1235 = vpop.f32.mrb[0].mxu0
  %v1236 = vadd.f32 %v167, %v1235
  %v1237 = vpop.f32.mrb[0].mxu0
  %1238 = vmatprep.mubr.f32.mxu0 0.0
  %1239 = vmatmul.mubr.f32.gmra.mrb[0].mxu0 %v543
  %v1240 = vpop.f32.mrb[0].mxu0
  %v1241 = vadd.f32 %v167, %v1240
  %v1242 = vpop.f32.mrb[0].mxu0
  %1243 = vmatprep.mubr.f32.mxu0 0.0
  %1244 = vmatmul.mubr.f32.gmra.mrb[0].mxu0 %v546
  %v1245 = vpop.f32.mrb[0].mxu0
  %v1246 = vadd.f32 %v167, %v1245
  %v1247 = vpop.f32.mrb[0].mxu0
  %1248 = vmatprep.mubr.f32.mxu0 0.0
  %1249 = vmatmul.mubr.f32.gmra.mrb[0].mxu0 %v549
  %v1250 = vpop.f32.mrb[0].mxu0
  %v1251 = vadd.f32 %v167, %v1250
  %v1252 = vpop.f32.mrb[0].mxu0
  %1253 = vmatprep.mubr.f32.mxu0 0.0
  %1254 = vmatmul.mubr.f32.gmra.mrb[0].mxu0 %v552
  %v1255 = vpop.f32.mrb[0].mxu0
  %v1256 = vadd.f32 %v167, %v1255
  %v1257 = vpop.f32.mrb[0].mxu0
  %1258 = vdwg.mxu0
  %v1259 = vmax.f32 %v621, 0.0
  %v1260 = vmax.f32 %v626, 0.0
  %v1261 = vmax.f32 %v631, 0.0
  %v1262 = vmax.f32 %v636, 0.0
  %v1263 = vmax.f32 %v641, 0.0
  %v1264 = vmax.f32 %v646, 0.0
  %v1265 = vmax.f32 %v651, 0.0
  %v1266 = vmax.f32 %v656, 0.0
  %v1267 = vmax.f32 %v661, 0.0
  %v1268 = vmax.f32 %v666, 0.0
  %v1269 = vmax.f32 %v671, 0.0
  %v1270 = vmax.f32 %v676, 0.0
  %v1271 = vmax.f32 %v681, 0.0
  %v1272 = vmax.f32 %v686, 0.0
  %v1273 = vmax.f32 %v691, 0.0
  %v1274 = vmax.f32 %v696, 0.0
  %v1275 = vmax.f32 %v701, 0.0
  %v1276 = vmax.f32 %v706, 0.0
  %v1277 = vmax.f32 %v711, 0.0
  %v1278 = vmax.f32 %v716, 0.0
  %v1279 = vmax.f32 %v721, 0.0
  %v1280 = vmax.f32 %v726, 0.0
  %v1281 = vmax.f32 %v731, 0.0
  %v1282 = vmax.f32 %v736, 0.0
  %v1283 = vmax.f32 %v741, 0.0
  %v1284 = vmax.f32 %v746, 0.0
  %v1285 = vmax.f32 %v751, 0.0
  %v1286 = vmax.f32 %v756, 0.0
  %v1287 = vmax.f32 %v761, 0.0
  %v1288 = vmax.f32 %v766, 0.0
  %v1289 = vmax.f32 %v771, 0.0
  %v1290 = vmax.f32 %v776, 0.0
  %v1291 = vmax.f32 %v781, 0.0
  %v1292 = vmax.f32 %v786, 0.0
  %v1293 = vmax.f32 %v791, 0.0
  %v1294 = vmax.f32 %v796, 0.0
  %v1295 = vmax.f32 %v801, 0.0
  %v1296 = vmax.f32 %v806, 0.0
  %v1297 = vmax.f32 %v811, 0.0
  %v1298 = vmax.f32 %v816, 0.0
  %v1299 = vmax.f32 %v821, 0.0
  %v1300 = vmax.f32 %v826, 0.0
  %v1301 = vmax.f32 %v831, 0.0
  %v1302 = vmax.f32 %v836, 0.0
  %v1303 = vmax.f32 %v841, 0.0
  %v1304 = vmax.f32 %v846, 0.0
  %v1305 = vmax.f32 %v851, 0.0
  %v1306 = vmax.f32 %v856, 0.0
  %v1307 = vmax.f32 %v861, 0.0
  %v1308 = vmax.f32 %v866, 0.0
  %v1309 = vmax.f32 %v871, 0.0
  %v1310 = vmax.f32 %v876, 0.0
  %v1311 = vmax.f32 %v881, 0.0
  %v1312 = vmax.f32 %v886, 0.0
  %v1313 = vmax.f32 %v891, 0.0
  %v1314 = vmax.f32 %v896, 0.0
  %v1315 = vmax.f32 %v901, 0.0
  %v1316 = vmax.f32 %v906, 0.0
  %v1317 = vmax.f32 %v911, 0.0
  %v1318 = vmax.f32 %v916, 0.0
  %v1319 = vmax.f32 %v921, 0.0
  %v1320 = vmax.f32 %v926, 0.0
  %v1321 = vmax.f32 %v931, 0.0
  %v1322 = vmax.f32 %v936, 0.0
  %v1323 = vmax.f32 %v941, 0.0
  %v1324 = vmax.f32 %v946, 0.0
  %v1325 = vmax.f32 %v951, 0.0
  %v1326 = vmax.f32 %v956, 0.0
  %v1327 = vmax.f32 %v961, 0.0
  %v1328 = vmax.f32 %v966, 0.0
  %v1329 = vmax.f32 %v971, 0.0
  %v1330 = vmax.f32 %v976, 0.0
  %v1331 = vmax.f32 %v981, 0.0
  %v1332 = vmax.f32 %v986, 0.0
  %v1333 = vmax.f32 %v991, 0.0
  %v1334 = vmax.f32 %v996, 0.0
  %v1335 = vmax.f32 %v1001, 0.0
  %v1336 = vmax.f32 %v1006, 0.0
  %v1337 = vmax.f32 %v1011, 0.0
  %v1338 = vmax.f32 %v1016, 0.0
  %v1339 = vmax.f32 %v1021, 0.0
  %v1340 = vmax.f32 %v1026, 0.0
  %v1341 = vmax.f32 %v1031, 0.0
  %v1342 = vmax.f32 %v1036, 0.0
  %v1343 = vmax.f32 %v1041, 0.0
  %v1344 = vmax.f32 %v1046, 0.0
  %v1345 = vmax.f32 %v1051, 0.0
  %v1346 = vmax.f32 %v1056, 0.0
  %v1347 = vmax.f32 %v1061, 0.0
  %v1348 = vmax.f32 %v1066, 0.0
  %v1349 = vmax.f32 %v1071, 0.0
  %v1350 = vmax.f32 %v1076, 0.0
  %v1351 = vmax.f32 %v1081, 0.0
  %v1352 = vmax.f32 %v1086, 0.0
  %v1353 = vmax.f32 %v1091, 0.0
  %v1354 = vmax.f32 %v1096, 0.0
  %v1355 = vmax.f32 %v1101, 0.0
  %v1356 = vmax.f32 %v1106, 0.0
  %v1357 = vmax.f32 %v1111, 0.0
  %v1358 = vmax.f32 %v1116, 0.0
  %v1359 = vmax.f32 %v1121, 0.0
  %v1360 = vmax.f32 %v1126, 0.0
  %v1361 = vmax.f32 %v1131, 0.0
  %v1362 = vmax.f32 %v1136, 0.0
  %v1363 = vmax.f32 %v1141, 0.0
  %v1364 = vmax.f32 %v1146, 0.0
  %v1365 = vmax.f32 %v1151, 0.0
  %v1366 = vmax.f32 %v1156, 0.0
  %v1367 = vmax.f32 %v1161, 0.0
  %v1368 = vmax.f32 %v1166, 0.0
  %v1369 = vmax.f32 %v1171, 0.0
  %v1370 = vmax.f32 %v1176, 0.0
  %v1371 = vmax.f32 %v1181, 0.0
  %v1372 = vmax.f32 %v1186, 0.0
  %v1373 = vmax.f32 %v1191, 0.0
  %v1374 = vmax.f32 %v1196, 0.0
  %v1375 = vmax.f32 %v1201, 0.0
  %v1376 = vmax.f32 %v1206, 0.0
  %v1377 = vmax.f32 %v1211, 0.0
  %v1378 = vmax.f32 %v1216, 0.0
  %v1379 = vmax.f32 %v1221, 0.0
  %v1380 = vmax.f32 %v1226, 0.0
  %v1381 = vmax.f32 %v1231, 0.0
  %v1382 = vmax.f32 %v1236, 0.0
  %v1383 = vmax.f32 %v1241, 0.0
  %v1384 = vmax.f32 %v1246, 0.0
  %v1385 = vmax.f32 %v1251, 0.0
  %v1386 = vmax.f32 %v1256, 0.0
  %v1387 = vld [vmem:[%s3] sm:$0xff]
  %v1388 = vld [vmem:[%s4] sm:$0x1]
  %v1390 = vlaneseq
  %v1391 = vshrl.u32 %v1390, 7
  %v1392 = vsub.s32 0, %v1391
  %v1393 = vrot.slane %v1388, %v1392
  %vm1395 = vcmask 64512
  %v1397 = vsel %vm1395, %v1259, 0
  %v1400 = vsel %vm1395, %v1260, 0
  %v1403 = vsel %vm1395, %v1261, 0
  %v1406 = vsel %vm1395, %v1262, 0
  %v1409 = vsel %vm1395, %v1263, 0
  %v1412 = vsel %vm1395, %v1264, 0
  %v1415 = vsel %vm1395, %v1265, 0
  %v1418 = vsel %vm1395, %v1266, 0
  %v1421 = vsel %vm1395, %v1267, 0
  %v1424 = vsel %vm1395, %v1268, 0
  %v1427 = vsel %vm1395, %v1269, 0
  %v1430 = vsel %vm1395, %v1270, 0
  %v1433 = vsel %vm1395, %v1271, 0
  %v1436 = vsel %vm1395, %v1272, 0
  %v1439 = vsel %vm1395, %v1273, 0
  %v1442 = vsel %vm1395, %v1274, 0
  %v1445 = vsel %vm1395, %v1275, 0
  %v1448 = vsel %vm1395, %v1276, 0
  %v1451 = vsel %vm1395, %v1277, 0
  %v1454 = vsel %vm1395, %v1278, 0
  %v1457 = vsel %vm1395, %v1279, 0
  %v1460 = vsel %vm1395, %v1280, 0
  %v1463 = vsel %vm1395, %v1281, 0
  %v1466 = vsel %vm1395, %v1282, 0
  %v1469 = vsel %vm1395, %v1283, 0
  %v1472 = vsel %vm1395, %v1284, 0
  %v1475 = vsel %vm1395, %v1285, 0
  %v1478 = vsel %vm1395, %v1286, 0
  %v1481 = vsel %vm1395, %v1287, 0
  %v1484 = vsel %vm1395, %v1288, 0
  %v1487 = vsel %vm1395, %v1289, 0
  %v1490 = vsel %vm1395, %v1290, 0
  %v1493 = vsel %vm1395, %v1291, 0
  %v1496 = vsel %vm1395, %v1292, 0
  %v1499 = vsel %vm1395, %v1293, 0
  %v1502 = vsel %vm1395, %v1294, 0
  %v1505 = vsel %vm1395, %v1295, 0
  %v1508 = vsel %vm1395, %v1296, 0
  %v1511 = vsel %vm1395, %v1297, 0
  %v1514 = vsel %vm1395, %v1298, 0
  %v1517 = vsel %vm1395, %v1299, 0
  %v1520 = vsel %vm1395, %v1300, 0
  %v1523 = vsel %vm1395, %v1301, 0
  %v1526 = vsel %vm1395, %v1302, 0
  %v1529 = vsel %vm1395, %v1303, 0
  %v1532 = vsel %vm1395, %v1304, 0
  %v1535 = vsel %vm1395, %v1305, 0
  %v1538 = vsel %vm1395, %v1306, 0
  %v1541 = vsel %vm1395, %v1307, 0
  %v1544 = vsel %vm1395, %v1308, 0
  %v1547 = vsel %vm1395, %v1309, 0
  %v1550 = vsel %vm1395, %v1310, 0
  %v1553 = vsel %vm1395, %v1311, 0
  %v1556 = vsel %vm1395, %v1312, 0
  %v1559 = vsel %vm1395, %v1313, 0
  %v1562 = vsel %vm1395, %v1314, 0
  %v1565 = vsel %vm1395, %v1315, 0
  %v1568 = vsel %vm1395, %v1316, 0
  %v1571 = vsel %vm1395, %v1317, 0
  %v1574 = vsel %vm1395, %v1318, 0
  %v1577 = vsel %vm1395, %v1319, 0
  %v1580 = vsel %vm1395, %v1320, 0
  %v1583 = vsel %vm1395, %v1321, 0
  %v1586 = vsel %vm1395, %v1322, 0
  %v1589 = vsel %vm1395, %v1323, 0
  %v1592 = vsel %vm1395, %v1324, 0
  %v1595 = vsel %vm1395, %v1325, 0
  %v1598 = vsel %vm1395, %v1326, 0
  %v1601 = vsel %vm1395, %v1327, 0
  %v1604 = vsel %vm1395, %v1328, 0
  %v1607 = vsel %vm1395, %v1329, 0
  %v1610 = vsel %vm1395, %v1330, 0
  %v1613 = vsel %vm1395, %v1331, 0
  %v1616 = vsel %vm1395, %v1332, 0
  %v1619 = vsel %vm1395, %v1333, 0
  %v1622 = vsel %vm1395, %v1334, 0
  %v1625 = vsel %vm1395, %v1335, 0
  %v1628 = vsel %vm1395, %v1336, 0
  %v1631 = vsel %vm1395, %v1337, 0
  %v1634 = vsel %vm1395, %v1338, 0
  %v1637 = vsel %vm1395, %v1339, 0
  %v1640 = vsel %vm1395, %v1340, 0
  %v1643 = vsel %vm1395, %v1341, 0
  %v1646 = vsel %vm1395, %v1342, 0
  %v1649 = vsel %vm1395, %v1343, 0
  %v1652 = vsel %vm1395, %v1344, 0
  %v1655 = vsel %vm1395, %v1345, 0
  %v1658 = vsel %vm1395, %v1346, 0
  %v1661 = vsel %vm1395, %v1347, 0
  %v1664 = vsel %vm1395, %v1348, 0
  %v1667 = vsel %vm1395, %v1349, 0
  %v1670 = vsel %vm1395, %v1350, 0
  %v1673 = vsel %vm1395, %v1351, 0
  %v1676 = vsel %vm1395, %v1352, 0
  %v1679 = vsel %vm1395, %v1353, 0
  %v1682 = vsel %vm1395, %v1354, 0
  %v1685 = vsel %vm1395, %v1355, 0
  %v1688 = vsel %vm1395, %v1356, 0
  %v1691 = vsel %vm1395, %v1357, 0
  %v1694 = vsel %vm1395, %v1358, 0
  %v1697 = vsel %vm1395, %v1359, 0
  %v1700 = vsel %vm1395, %v1360, 0
  %v1703 = vsel %vm1395, %v1361, 0
  %v1706 = vsel %vm1395, %v1362, 0
  %v1709 = vsel %vm1395, %v1363, 0
  %v1712 = vsel %vm1395, %v1364, 0
  %v1715 = vsel %vm1395, %v1365, 0
  %v1718 = vsel %vm1395, %v1366, 0
  %v1721 = vsel %vm1395, %v1367, 0
  %v1724 = vsel %vm1395, %v1368, 0
  %v1727 = vsel %vm1395, %v1369, 0
  %v1730 = vsel %vm1395, %v1370, 0
  %v1733 = vsel %vm1395, %v1371, 0
  %v1736 = vsel %vm1395, %v1372, 0
  %v1739 = vsel %vm1395, %v1373, 0
  %v1742 = vsel %vm1395, %v1374, 0
  %v1745 = vsel %vm1395, %v1375, 0
  %v1748 = vsel %vm1395, %v1376, 0
  %v1751 = vsel %vm1395, %v1377, 0
  %v1754 = vsel %vm1395, %v1378, 0
  %v1757 = vsel %vm1395, %v1379, 0
  %v1760 = vsel %vm1395, %v1380, 0
  %v1763 = vsel %vm1395, %v1381, 0
  %v1766 = vsel %vm1395, %v1382, 0
  %v1769 = vsel %vm1395, %v1383, 0
  %v1772 = vsel %vm1395, %v1384, 0
  %v1775 = vsel %vm1395, %v1385, 0
  %v1778 = vsel %vm1395, %v1386, 0
  %1780 = vmatprep.subr.mxu0 0.0
  %1781 = vmatpush1.msra.mxu0 %v1387
  %1782 = vmatprep.subr.mxu0 0.0
  %1783 = vmatpush1.msra.mxu0 0.0
  %1784 = vmatprep.subr.mxu0 0.0
  %1785 = vmatpush1.msra.mxu0 0.0
  %1786 = vmatprep.subr.mxu0 0.0
  %1787 = vmatpush1.msra.mxu0 0.0
  %1788 = vmatprep.subr.mxu0 0.0
  %1789 = vmatpush1.msra.mxu0 0.0
  %1790 = vmatprep.subr.mxu0 0.0
  %1791 = vmatpush1.msra.mxu0 0.0
  %1792 = vmatprep.subr.mxu0 0.0
  %1793 = vmatpush1.msra.mxu0 0.0
  %1794 = vmatprep.subr.mxu0 0.0
  %1795 = vmatpush1.msra.mxu0 0.0
  %1796 = vmatprep.subr.mxu0 0.0
  %1797 = vmatpush1.msra.mxu0 0.0
  %1798 = vmatprep.subr.mxu0 0.0
  %1799 = vmatpush1.msra.mxu0 0.0
  %1800 = vmatprep.subr.mxu0 0.0
  %1801 = vmatpush1.msra.mxu0 0.0
  %1802 = vmatprep.subr.mxu0 0.0
  %1803 = vmatpush1.msra.mxu0 0.0
  %1804 = vmatprep.subr.mxu0 0.0
  %1805 = vmatpush1.msra.mxu0 0.0
  %1806 = vmatprep.subr.mxu0 0.0
  %1807 = vmatpush1.msra.mxu0 0.0
  %1808 = vmatprep.subr.mxu0 0.0
  %1809 = vmatpush1.msra.mxu0 0.0
  %1810 = vmatprep.subr.mxu0 0.0
  %1811 = vmatpush1.msra.mxu0 0.0
  %1812 = vmatprep.subr.mxu0 0.0
  %1813 = vmatpush1.msra.mxu0 0.0
  %1814 = vmatprep.subr.mxu0 0.0
  %1815 = vmatpush1.msra.mxu0 0.0
  %1816 = vmatprep.subr.mxu0 0.0
  %1817 = vmatpush1.msra.mxu0 0.0
  %1818 = vmatprep.subr.mxu0 0.0
  %1819 = vmatpush1.msra.mxu0 0.0
  %1820 = vmatprep.subr.mxu0 0.0
  %1821 = vmatpush1.msra.mxu0 0.0
  %1822 = vmatprep.subr.mxu0 0.0
  %1823 = vmatpush1.msra.mxu0 0.0
  %1824 = vmatprep.subr.mxu0 0.0
  %1825 = vmatpush1.msra.mxu0 0.0
  %1826 = vmatprep.subr.mxu0 0.0
  %1827 = vmatpush1.msra.mxu0 0.0
  %1828 = vmatprep.subr.mxu0 0.0
  %1829 = vmatpush1.msra.mxu0 0.0
  %1830 = vmatprep.subr.mxu0 0.0
  %1831 = vmatpush1.msra.mxu0 0.0
  %1832 = vmatprep.subr.mxu0 0.0
  %1833 = vmatpush1.msra.mxu0 0.0
  %1834 = vmatprep.subr.mxu0 0.0
  %1835 = vmatpush1.msra.mxu0 0.0
  %1836 = vmatprep.subr.mxu0 0.0
  %1837 = vmatpush1.msra.mxu0 0.0
  %1838 = vmatprep.subr.mxu0 0.0
  %1839 = vmatpush1.msra.mxu0 0.0
  %1840 = vmatprep.subr.mxu0 0.0
  %1841 = vmatpush1.msra.mxu0 0.0
  %1842 = vmatprep.subr.mxu0 0.0
  %1843 = vmatpush1.msra.mxu0 0.0
  %1844 = vmatprep.mubr.f32.mxu0 0.0
  %1845 = vmatmul.mubr.f32.gmra.mrb[0].mxu0 %v1397
  %v1846 = vpop.f32.mrb[0].mxu0
  %v1847 = vadd.f32 %v1393, %v1846
  %v1848 = vpop.f32.mrb[0].mxu0
  %1849 = vmatprep.mubr.f32.mxu0 0.0
  %1850 = vmatmul.mubr.f32.gmra.mrb[0].mxu0 %v1400
  %v1851 = vpop.f32.mrb[0].mxu0
  %v1852 = vadd.f32 %v1393, %v1851
  %v1853 = vpop.f32.mrb[0].mxu0
  %1854 = vmatprep.mubr.f32.mxu0 0.0
  %1855 = vmatmul.mubr.f32.gmra.mrb[0].mxu0 %v1403
  %v1856 = vpop.f32.mrb[0].mxu0
  %v1857 = vadd.f32 %v1393, %v1856
  %v1858 = vpop.f32.mrb[0].mxu0
  %1859 = vmatprep.mubr.f32.mxu0 0.0
  %1860 = vmatmul.mubr.f32.gmra.mrb[0].mxu0 %v1406
  %v1861 = vpop.f32.mrb[0].mxu0
  %v1862 = vadd.f32 %v1393, %v1861
  %v1863 = vpop.f32.mrb[0].mxu0
  %1864 = vmatprep.mubr.f32.mxu0 0.0
  %1865 = vmatmul.mubr.f32.gmra.mrb[0].mxu0 %v1409
  %v1866 = vpop.f32.mrb[0].mxu0
  %v1867 = vadd.f32 %v1393, %v1866
  %v1868 = vpop.f32.mrb[0].mxu0
  %1869 = vmatprep.mubr.f32.mxu0 0.0
  %1870 = vmatmul.mubr.f32.gmra.mrb[0].mxu0 %v1412
  %v1871 = vpop.f32.mrb[0].mxu0
  %v1872 = vadd.f32 %v1393, %v1871
  %v1873 = vpop.f32.mrb[0].mxu0
  %1874 = vmatprep.mubr.f32.mxu0 0.0
  %1875 = vmatmul.mubr.f32.gmra.mrb[0].mxu0 %v1415
  %v1876 = vpop.f32.mrb[0].mxu0
  %v1877 = vadd.f32 %v1393, %v1876
  %v1878 = vpop.f32.mrb[0].mxu0
  %1879 = vmatprep.mubr.f32.mxu0 0.0
  %1880 = vmatmul.mubr.f32.gmra.mrb[0].mxu0 %v1418
  %v1881 = vpop.f32.mrb[0].mxu0
  %v1882 = vadd.f32 %v1393, %v1881
  %v1883 = vpop.f32.mrb[0].mxu0
  %1884 = vmatprep.mubr.f32.mxu0 0.0
  %1885 = vmatmul.mubr.f32.gmra.mrb[0].mxu0 %v1421
  %v1886 = vpop.f32.mrb[0].mxu0
  %v1887 = vadd.f32 %v1393, %v1886
  %v1888 = vpop.f32.mrb[0].mxu0
  %1889 = vmatprep.mubr.f32.mxu0 0.0
  %1890 = vmatmul.mubr.f32.gmra.mrb[0].mxu0 %v1424
  %v1891 = vpop.f32.mrb[0].mxu0
  %v1892 = vadd.f32 %v1393, %v1891
  %v1893 = vpop.f32.mrb[0].mxu0
  %1894 = vmatprep.mubr.f32.mxu0 0.0
  %1895 = vmatmul.mubr.f32.gmra.mrb[0].mxu0 %v1427
  %v1896 = vpop.f32.mrb[0].mxu0
  %v1897 = vadd.f32 %v1393, %v1896
  %v1898 = vpop.f32.mrb[0].mxu0
  %1899 = vmatprep.mubr.f32.mxu0 0.0
  %1900 = vmatmul.mubr.f32.gmra.mrb[0].mxu0 %v1430
  %v1901 = vpop.f32.mrb[0].mxu0
  %v1902 = vadd.f32 %v1393, %v1901
  %v1903 = vpop.f32.mrb[0].mxu0
  %1904 = vmatprep.mubr.f32.mxu0 0.0
  %1905 = vmatmul.mubr.f32.gmra.mrb[0].mxu0 %v1433
  %v1906 = vpop.f32.mrb[0].mxu0
  %v1907 = vadd.f32 %v1393, %v1906
  %v1908 = vpop.f32.mrb[0].mxu0
  %1909 = vmatprep.mubr.f32.mxu0 0.0
  %1910 = vmatmul.mubr.f32.gmra.mrb[0].mxu0 %v1436
  %v1911 = vpop.f32.mrb[0].mxu0
  %v1912 = vadd.f32 %v1393, %v1911
  %v1913 = vpop.f32.mrb[0].mxu0
  %1914 = vmatprep.mubr.f32.mxu0 0.0
  %1915 = vmatmul.mubr.f32.gmra.mrb[0].mxu0 %v1439
  %v1916 = vpop.f32.mrb[0].mxu0
  %v1917 = vadd.f32 %v1393, %v1916
  %v1918 = vpop.f32.mrb[0].mxu0
  %1919 = vmatprep.mubr.f32.mxu0 0.0
  %1920 = vmatmul.mubr.f32.gmra.mrb[0].mxu0 %v1442
  %v1921 = vpop.f32.mrb[0].mxu0
  %v1922 = vadd.f32 %v1393, %v1921
  %v1923 = vpop.f32.mrb[0].mxu0
  %1924 = vmatprep.mubr.f32.mxu0 0.0
  %1925 = vmatmul.mubr.f32.gmra.mrb[0].mxu0 %v1445
  %v1926 = vpop.f32.mrb[0].mxu0
  %v1927 = vadd.f32 %v1393, %v1926
  %v1928 = vpop.f32.mrb[0].mxu0
  %1929 = vmatprep.mubr.f32.mxu0 0.0
  %1930 = vmatmul.mubr.f32.gmra.mrb[0].mxu0 %v1448
  %v1931 = vpop.f32.mrb[0].mxu0
  %v1932 = vadd.f32 %v1393, %v1931
  %v1933 = vpop.f32.mrb[0].mxu0
  %1934 = vmatprep.mubr.f32.mxu0 0.0
  %1935 = vmatmul.mubr.f32.gmra.mrb[0].mxu0 %v1451
  %v1936 = vpop.f32.mrb[0].mxu0
  %v1937 = vadd.f32 %v1393, %v1936
  %v1938 = vpop.f32.mrb[0].mxu0
  %1939 = vmatprep.mubr.f32.mxu0 0.0
  %1940 = vmatmul.mubr.f32.gmra.mrb[0].mxu0 %v1454
  %v1941 = vpop.f32.mrb[0].mxu0
  %v1942 = vadd.f32 %v1393, %v1941
  %v1943 = vpop.f32.mrb[0].mxu0
  %1944 = vmatprep.mubr.f32.mxu0 0.0
  %1945 = vmatmul.mubr.f32.gmra.mrb[0].mxu0 %v1457
  %v1946 = vpop.f32.mrb[0].mxu0
  %v1947 = vadd.f32 %v1393, %v1946
  %v1948 = vpop.f32.mrb[0].mxu0
  %1949 = vmatprep.mubr.f32.mxu0 0.0
  %1950 = vmatmul.mubr.f32.gmra.mrb[0].mxu0 %v1460
  %v1951 = vpop.f32.mrb[0].mxu0
  %v1952 = vadd.f32 %v1393, %v1951
  %v1953 = vpop.f32.mrb[0].mxu0
  %1954 = vmatprep.mubr.f32.mxu0 0.0
  %1955 = vmatmul.mubr.f32.gmra.mrb[0].mxu0 %v1463
  %v1956 = vpop.f32.mrb[0].mxu0
  %v1957 = vadd.f32 %v1393, %v1956
  %v1958 = vpop.f32.mrb[0].mxu0
  %1959 = vmatprep.mubr.f32.mxu0 0.0
  %1960 = vmatmul.mubr.f32.gmra.mrb[0].mxu0 %v1466
  %v1961 = vpop.f32.mrb[0].mxu0
  %v1962 = vadd.f32 %v1393, %v1961
  %v1963 = vpop.f32.mrb[0].mxu0
  %1964 = vmatprep.mubr.f32.mxu0 0.0
  %1965 = vmatmul.mubr.f32.gmra.mrb[0].mxu0 %v1469
  %v1966 = vpop.f32.mrb[0].mxu0
  %v1967 = vadd.f32 %v1393, %v1966
  %v1968 = vpop.f32.mrb[0].mxu0
  %1969 = vmatprep.mubr.f32.mxu0 0.0
  %1970 = vmatmul.mubr.f32.gmra.mrb[0].mxu0 %v1472
  %v1971 = vpop.f32.mrb[0].mxu0
  %v1972 = vadd.f32 %v1393, %v1971
  %v1973 = vpop.f32.mrb[0].mxu0
  %1974 = vmatprep.mubr.f32.mxu0 0.0
  %1975 = vmatmul.mubr.f32.gmra.mrb[0].mxu0 %v1475
  %v1976 = vpop.f32.mrb[0].mxu0
  %v1977 = vadd.f32 %v1393, %v1976
  %v1978 = vpop.f32.mrb[0].mxu0
  %1979 = vmatprep.mubr.f32.mxu0 0.0
  %1980 = vmatmul.mubr.f32.gmra.mrb[0].mxu0 %v1478
  %v1981 = vpop.f32.mrb[0].mxu0
  %v1982 = vadd.f32 %v1393, %v1981
  %v1983 = vpop.f32.mrb[0].mxu0
  %1984 = vmatprep.mubr.f32.mxu0 0.0
  %1985 = vmatmul.mubr.f32.gmra.mrb[0].mxu0 %v1481
  %v1986 = vpop.f32.mrb[0].mxu0
  %v1987 = vadd.f32 %v1393, %v1986
  %v1988 = vpop.f32.mrb[0].mxu0
  %1989 = vmatprep.mubr.f32.mxu0 0.0
  %1990 = vmatmul.mubr.f32.gmra.mrb[0].mxu0 %v1484
  %v1991 = vpop.f32.mrb[0].mxu0
  %v1992 = vadd.f32 %v1393, %v1991
  %v1993 = vpop.f32.mrb[0].mxu0
  %1994 = vmatprep.mubr.f32.mxu0 0.0
  %1995 = vmatmul.mubr.f32.gmra.mrb[0].mxu0 %v1487
  %v1996 = vpop.f32.mrb[0].mxu0
  %v1997 = vadd.f32 %v1393, %v1996
  %v1998 = vpop.f32.mrb[0].mxu0
  %1999 = vmatprep.mubr.f32.mxu0 0.0
  %2000 = vmatmul.mubr.f32.gmra.mrb[0].mxu0 %v1490
  %v2001 = vpop.f32.mrb[0].mxu0
  %v2002 = vadd.f32 %v1393, %v2001
  %v2003 = vpop.f32.mrb[0].mxu0
  %2004 = vmatprep.mubr.f32.mxu0 0.0
  %2005 = vmatmul.mubr.f32.gmra.mrb[0].mxu0 %v1493
  %v2006 = vpop.f32.mrb[0].mxu0
  %v2007 = vadd.f32 %v1393, %v2006
  %v2008 = vpop.f32.mrb[0].mxu0
  %2009 = vmatprep.mubr.f32.mxu0 0.0
  %2010 = vmatmul.mubr.f32.gmra.mrb[0].mxu0 %v1496
  %v2011 = vpop.f32.mrb[0].mxu0
  %v2012 = vadd.f32 %v1393, %v2011
  %v2013 = vpop.f32.mrb[0].mxu0
  %2014 = vmatprep.mubr.f32.mxu0 0.0
  %2015 = vmatmul.mubr.f32.gmra.mrb[0].mxu0 %v1499
  %v2016 = vpop.f32.mrb[0].mxu0
  %v2017 = vadd.f32 %v1393, %v2016
  %v2018 = vpop.f32.mrb[0].mxu0
  %2019 = vmatprep.mubr.f32.mxu0 0.0
  %2020 = vmatmul.mubr.f32.gmra.mrb[0].mxu0 %v1502
  %v2021 = vpop.f32.mrb[0].mxu0
  %v2022 = vadd.f32 %v1393, %v2021
  %v2023 = vpop.f32.mrb[0].mxu0
  %2024 = vmatprep.mubr.f32.mxu0 0.0
  %2025 = vmatmul.mubr.f32.gmra.mrb[0].mxu0 %v1505
  %v2026 = vpop.f32.mrb[0].mxu0
  %v2027 = vadd.f32 %v1393, %v2026
  %v2028 = vpop.f32.mrb[0].mxu0
  %2029 = vmatprep.mubr.f32.mxu0 0.0
  %2030 = vmatmul.mubr.f32.gmra.mrb[0].mxu0 %v1508
  %v2031 = vpop.f32.mrb[0].mxu0
  %v2032 = vadd.f32 %v1393, %v2031
  %v2033 = vpop.f32.mrb[0].mxu0
  %2034 = vmatprep.mubr.f32.mxu0 0.0
  %2035 = vmatmul.mubr.f32.gmra.mrb[0].mxu0 %v1511
  %v2036 = vpop.f32.mrb[0].mxu0
  %v2037 = vadd.f32 %v1393, %v2036
  %v2038 = vpop.f32.mrb[0].mxu0
  %2039 = vmatprep.mubr.f32.mxu0 0.0
  %2040 = vmatmul.mubr.f32.gmra.mrb[0].mxu0 %v1514
  %v2041 = vpop.f32.mrb[0].mxu0
  %v2042 = vadd.f32 %v1393, %v2041
  %v2043 = vpop.f32.mrb[0].mxu0
  %2044 = vmatprep.mubr.f32.mxu0 0.0
  %2045 = vmatmul.mubr.f32.gmra.mrb[0].mxu0 %v1517
  %v2046 = vpop.f32.mrb[0].mxu0
  %v2047 = vadd.f32 %v1393, %v2046
  %v2048 = vpop.f32.mrb[0].mxu0
  %2049 = vmatprep.mubr.f32.mxu0 0.0
  %2050 = vmatmul.mubr.f32.gmra.mrb[0].mxu0 %v1520
  %v2051 = vpop.f32.mrb[0].mxu0
  %v2052 = vadd.f32 %v1393, %v2051
  %v2053 = vpop.f32.mrb[0].mxu0
  %2054 = vmatprep.mubr.f32.mxu0 0.0
  %2055 = vmatmul.mubr.f32.gmra.mrb[0].mxu0 %v1523
  %v2056 = vpop.f32.mrb[0].mxu0
  %v2057 = vadd.f32 %v1393, %v2056
  %v2058 = vpop.f32.mrb[0].mxu0
  %2059 = vmatprep.mubr.f32.mxu0 0.0
  %2060 = vmatmul.mubr.f32.gmra.mrb[0].mxu0 %v1526
  %v2061 = vpop.f32.mrb[0].mxu0
  %v2062 = vadd.f32 %v1393, %v2061
  %v2063 = vpop.f32.mrb[0].mxu0
  %2064 = vmatprep.mubr.f32.mxu0 0.0
  %2065 = vmatmul.mubr.f32.gmra.mrb[0].mxu0 %v1529
  %v2066 = vpop.f32.mrb[0].mxu0
  %v2067 = vadd.f32 %v1393, %v2066
  %v2068 = vpop.f32.mrb[0].mxu0
  %2069 = vmatprep.mubr.f32.mxu0 0.0
  %2070 = vmatmul.mubr.f32.gmra.mrb[0].mxu0 %v1532
  %v2071 = vpop.f32.mrb[0].mxu0
  %v2072 = vadd.f32 %v1393, %v2071
  %v2073 = vpop.f32.mrb[0].mxu0
  %2074 = vmatprep.mubr.f32.mxu0 0.0
  %2075 = vmatmul.mubr.f32.gmra.mrb[0].mxu0 %v1535
  %v2076 = vpop.f32.mrb[0].mxu0
  %v2077 = vadd.f32 %v1393, %v2076
  %v2078 = vpop.f32.mrb[0].mxu0
  %2079 = vmatprep.mubr.f32.mxu0 0.0
  %2080 = vmatmul.mubr.f32.gmra.mrb[0].mxu0 %v1538
  %v2081 = vpop.f32.mrb[0].mxu0
  %v2082 = vadd.f32 %v1393, %v2081
  %v2083 = vpop.f32.mrb[0].mxu0
  %2084 = vmatprep.mubr.f32.mxu0 0.0
  %2085 = vmatmul.mubr.f32.gmra.mrb[0].mxu0 %v1541
  %v2086 = vpop.f32.mrb[0].mxu0
  %v2087 = vadd.f32 %v1393, %v2086
  %v2088 = vpop.f32.mrb[0].mxu0
  %2089 = vmatprep.mubr.f32.mxu0 0.0
  %2090 = vmatmul.mubr.f32.gmra.mrb[0].mxu0 %v1544
  %v2091 = vpop.f32.mrb[0].mxu0
  %v2092 = vadd.f32 %v1393, %v2091
  %v2093 = vpop.f32.mrb[0].mxu0
  %2094 = vmatprep.mubr.f32.mxu0 0.0
  %2095 = vmatmul.mubr.f32.gmra.mrb[0].mxu0 %v1547
  %v2096 = vpop.f32.mrb[0].mxu0
  %v2097 = vadd.f32 %v1393, %v2096
  %v2098 = vpop.f32.mrb[0].mxu0
  %2099 = vmatprep.mubr.f32.mxu0 0.0
  %2100 = vmatmul.mubr.f32.gmra.mrb[0].mxu0 %v1550
  %v2101 = vpop.f32.mrb[0].mxu0
  %v2102 = vadd.f32 %v1393, %v2101
  %v2103 = vpop.f32.mrb[0].mxu0
  %2104 = vmatprep.mubr.f32.mxu0 0.0
  %2105 = vmatmul.mubr.f32.gmra.mrb[0].mxu0 %v1553
  %v2106 = vpop.f32.mrb[0].mxu0
  %v2107 = vadd.f32 %v1393, %v2106
  %v2108 = vpop.f32.mrb[0].mxu0
  %2109 = vmatprep.mubr.f32.mxu0 0.0
  %2110 = vmatmul.mubr.f32.gmra.mrb[0].mxu0 %v1556
  %v2111 = vpop.f32.mrb[0].mxu0
  %v2112 = vadd.f32 %v1393, %v2111
  %v2113 = vpop.f32.mrb[0].mxu0
  %2114 = vmatprep.mubr.f32.mxu0 0.0
  %2115 = vmatmul.mubr.f32.gmra.mrb[0].mxu0 %v1559
  %v2116 = vpop.f32.mrb[0].mxu0
  %v2117 = vadd.f32 %v1393, %v2116
  %v2118 = vpop.f32.mrb[0].mxu0
  %2119 = vmatprep.mubr.f32.mxu0 0.0
  %2120 = vmatmul.mubr.f32.gmra.mrb[0].mxu0 %v1562
  %v2121 = vpop.f32.mrb[0].mxu0
  %v2122 = vadd.f32 %v1393, %v2121
  %v2123 = vpop.f32.mrb[0].mxu0
  %2124 = vmatprep.mubr.f32.mxu0 0.0
  %2125 = vmatmul.mubr.f32.gmra.mrb[0].mxu0 %v1565
  %v2126 = vpop.f32.mrb[0].mxu0
  %v2127 = vadd.f32 %v1393, %v2126
  %v2128 = vpop.f32.mrb[0].mxu0
  %2129 = vmatprep.mubr.f32.mxu0 0.0
  %2130 = vmatmul.mubr.f32.gmra.mrb[0].mxu0 %v1568
  %v2131 = vpop.f32.mrb[0].mxu0
  %v2132 = vadd.f32 %v1393, %v2131
  %v2133 = vpop.f32.mrb[0].mxu0
  %2134 = vmatprep.mubr.f32.mxu0 0.0
  %2135 = vmatmul.mubr.f32.gmra.mrb[0].mxu0 %v1571
  %v2136 = vpop.f32.mrb[0].mxu0
  %v2137 = vadd.f32 %v1393, %v2136
  %v2138 = vpop.f32.mrb[0].mxu0
  %2139 = vmatprep.mubr.f32.mxu0 0.0
  %2140 = vmatmul.mubr.f32.gmra.mrb[0].mxu0 %v1574
  %v2141 = vpop.f32.mrb[0].mxu0
  %v2142 = vadd.f32 %v1393, %v2141
  %v2143 = vpop.f32.mrb[0].mxu0
  %2144 = vmatprep.mubr.f32.mxu0 0.0
  %2145 = vmatmul.mubr.f32.gmra.mrb[0].mxu0 %v1577
  %v2146 = vpop.f32.mrb[0].mxu0
  %v2147 = vadd.f32 %v1393, %v2146
  %v2148 = vpop.f32.mrb[0].mxu0
  %2149 = vmatprep.mubr.f32.mxu0 0.0
  %2150 = vmatmul.mubr.f32.gmra.mrb[0].mxu0 %v1580
  %v2151 = vpop.f32.mrb[0].mxu0
  %v2152 = vadd.f32 %v1393, %v2151
  %v2153 = vpop.f32.mrb[0].mxu0
  %2154 = vmatprep.mubr.f32.mxu0 0.0
  %2155 = vmatmul.mubr.f32.gmra.mrb[0].mxu0 %v1583
  %v2156 = vpop.f32.mrb[0].mxu0
  %v2157 = vadd.f32 %v1393, %v2156
  %v2158 = vpop.f32.mrb[0].mxu0
  %2159 = vmatprep.mubr.f32.mxu0 0.0
  %2160 = vmatmul.mubr.f32.gmra.mrb[0].mxu0 %v1586
  %v2161 = vpop.f32.mrb[0].mxu0
  %v2162 = vadd.f32 %v1393, %v2161
  %v2163 = vpop.f32.mrb[0].mxu0
  %2164 = vmatprep.mubr.f32.mxu0 0.0
  %2165 = vmatmul.mubr.f32.gmra.mrb[0].mxu0 %v1589
  %v2166 = vpop.f32.mrb[0].mxu0
  %v2167 = vadd.f32 %v1393, %v2166
  %v2168 = vpop.f32.mrb[0].mxu0
  %2169 = vmatprep.mubr.f32.mxu0 0.0
  %2170 = vmatmul.mubr.f32.gmra.mrb[0].mxu0 %v1592
  %v2171 = vpop.f32.mrb[0].mxu0
  %v2172 = vadd.f32 %v1393, %v2171
  %v2173 = vpop.f32.mrb[0].mxu0
  %2174 = vmatprep.mubr.f32.mxu0 0.0
  %2175 = vmatmul.mubr.f32.gmra.mrb[0].mxu0 %v1595
  %v2176 = vpop.f32.mrb[0].mxu0
  %v2177 = vadd.f32 %v1393, %v2176
  %v2178 = vpop.f32.mrb[0].mxu0
  %2179 = vmatprep.mubr.f32.mxu0 0.0
  %2180 = vmatmul.mubr.f32.gmra.mrb[0].mxu0 %v1598
  %v2181 = vpop.f32.mrb[0].mxu0
  %v2182 = vadd.f32 %v1393, %v2181
  %v2183 = vpop.f32.mrb[0].mxu0
  %2184 = vmatprep.mubr.f32.mxu0 0.0
  %2185 = vmatmul.mubr.f32.gmra.mrb[0].mxu0 %v1601
  %v2186 = vpop.f32.mrb[0].mxu0
  %v2187 = vadd.f32 %v1393, %v2186
  %v2188 = vpop.f32.mrb[0].mxu0
  %2189 = vmatprep.mubr.f32.mxu0 0.0
  %2190 = vmatmul.mubr.f32.gmra.mrb[0].mxu0 %v1604
  %v2191 = vpop.f32.mrb[0].mxu0
  %v2192 = vadd.f32 %v1393, %v2191
  %v2193 = vpop.f32.mrb[0].mxu0
  %2194 = vmatprep.mubr.f32.mxu0 0.0
  %2195 = vmatmul.mubr.f32.gmra.mrb[0].mxu0 %v1607
  %v2196 = vpop.f32.mrb[0].mxu0
  %v2197 = vadd.f32 %v1393, %v2196
  %v2198 = vpop.f32.mrb[0].mxu0
  %2199 = vmatprep.mubr.f32.mxu0 0.0
  %2200 = vmatmul.mubr.f32.gmra.mrb[0].mxu0 %v1610
  %v2201 = vpop.f32.mrb[0].mxu0
  %v2202 = vadd.f32 %v1393, %v2201
  %v2203 = vpop.f32.mrb[0].mxu0
  %2204 = vmatprep.mubr.f32.mxu0 0.0
  %2205 = vmatmul.mubr.f32.gmra.mrb[0].mxu0 %v1613
  %v2206 = vpop.f32.mrb[0].mxu0
  %v2207 = vadd.f32 %v1393, %v2206
  %v2208 = vpop.f32.mrb[0].mxu0
  %2209 = vmatprep.mubr.f32.mxu0 0.0
  %2210 = vmatmul.mubr.f32.gmra.mrb[0].mxu0 %v1616
  %v2211 = vpop.f32.mrb[0].mxu0
  %v2212 = vadd.f32 %v1393, %v2211
  %v2213 = vpop.f32.mrb[0].mxu0
  %2214 = vmatprep.mubr.f32.mxu0 0.0
  %2215 = vmatmul.mubr.f32.gmra.mrb[0].mxu0 %v1619
  %v2216 = vpop.f32.mrb[0].mxu0
  %v2217 = vadd.f32 %v1393, %v2216
  %v2218 = vpop.f32.mrb[0].mxu0
  %2219 = vmatprep.mubr.f32.mxu0 0.0
  %2220 = vmatmul.mubr.f32.gmra.mrb[0].mxu0 %v1622
  %v2221 = vpop.f32.mrb[0].mxu0
  %v2222 = vadd.f32 %v1393, %v2221
  %v2223 = vpop.f32.mrb[0].mxu0
  %2224 = vmatprep.mubr.f32.mxu0 0.0
  %2225 = vmatmul.mubr.f32.gmra.mrb[0].mxu0 %v1625
  %v2226 = vpop.f32.mrb[0].mxu0
  %v2227 = vadd.f32 %v1393, %v2226
  %v2228 = vpop.f32.mrb[0].mxu0
  %2229 = vmatprep.mubr.f32.mxu0 0.0
  %2230 = vmatmul.mubr.f32.gmra.mrb[0].mxu0 %v1628
  %v2231 = vpop.f32.mrb[0].mxu0
  %v2232 = vadd.f32 %v1393, %v2231
  %v2233 = vpop.f32.mrb[0].mxu0
  %2234 = vmatprep.mubr.f32.mxu0 0.0
  %2235 = vmatmul.mubr.f32.gmra.mrb[0].mxu0 %v1631
  %v2236 = vpop.f32.mrb[0].mxu0
  %v2237 = vadd.f32 %v1393, %v2236
  %v2238 = vpop.f32.mrb[0].mxu0
  %2239 = vmatprep.mubr.f32.mxu0 0.0
  %2240 = vmatmul.mubr.f32.gmra.mrb[0].mxu0 %v1634
  %v2241 = vpop.f32.mrb[0].mxu0
  %v2242 = vadd.f32 %v1393, %v2241
  %v2243 = vpop.f32.mrb[0].mxu0
  %2244 = vmatprep.mubr.f32.mxu0 0.0
  %2245 = vmatmul.mubr.f32.gmra.mrb[0].mxu0 %v1637
  %v2246 = vpop.f32.mrb[0].mxu0
  %v2247 = vadd.f32 %v1393, %v2246
  %v2248 = vpop.f32.mrb[0].mxu0
  %2249 = vmatprep.mubr.f32.mxu0 0.0
  %2250 = vmatmul.mubr.f32.gmra.mrb[0].mxu0 %v1640
  %v2251 = vpop.f32.mrb[0].mxu0
  %v2252 = vadd.f32 %v1393, %v2251
  %v2253 = vpop.f32.mrb[0].mxu0
  %2254 = vmatprep.mubr.f32.mxu0 0.0
  %2255 = vmatmul.mubr.f32.gmra.mrb[0].mxu0 %v1643
  %v2256 = vpop.f32.mrb[0].mxu0
  %v2257 = vadd.f32 %v1393, %v2256
  %v2258 = vpop.f32.mrb[0].mxu0
  %2259 = vmatprep.mubr.f32.mxu0 0.0
  %2260 = vmatmul.mubr.f32.gmra.mrb[0].mxu0 %v1646
  %v2261 = vpop.f32.mrb[0].mxu0
  %v2262 = vadd.f32 %v1393, %v2261
  %v2263 = vpop.f32.mrb[0].mxu0
  %2264 = vmatprep.mubr.f32.mxu0 0.0
  %2265 = vmatmul.mubr.f32.gmra.mrb[0].mxu0 %v1649
  %v2266 = vpop.f32.mrb[0].mxu0
  %v2267 = vadd.f32 %v1393, %v2266
  %v2268 = vpop.f32.mrb[0].mxu0
  %2269 = vmatprep.mubr.f32.mxu0 0.0
  %2270 = vmatmul.mubr.f32.gmra.mrb[0].mxu0 %v1652
  %v2271 = vpop.f32.mrb[0].mxu0
  %v2272 = vadd.f32 %v1393, %v2271
  %v2273 = vpop.f32.mrb[0].mxu0
  %2274 = vmatprep.mubr.f32.mxu0 0.0
  %2275 = vmatmul.mubr.f32.gmra.mrb[0].mxu0 %v1655
  %v2276 = vpop.f32.mrb[0].mxu0
  %v2277 = vadd.f32 %v1393, %v2276
  %v2278 = vpop.f32.mrb[0].mxu0
  %2279 = vmatprep.mubr.f32.mxu0 0.0
  %2280 = vmatmul.mubr.f32.gmra.mrb[0].mxu0 %v1658
  %v2281 = vpop.f32.mrb[0].mxu0
  %v2282 = vadd.f32 %v1393, %v2281
  %v2283 = vpop.f32.mrb[0].mxu0
  %2284 = vmatprep.mubr.f32.mxu0 0.0
  %2285 = vmatmul.mubr.f32.gmra.mrb[0].mxu0 %v1661
  %v2286 = vpop.f32.mrb[0].mxu0
  %v2287 = vadd.f32 %v1393, %v2286
  %v2288 = vpop.f32.mrb[0].mxu0
  %2289 = vmatprep.mubr.f32.mxu0 0.0
  %2290 = vmatmul.mubr.f32.gmra.mrb[0].mxu0 %v1664
  %v2291 = vpop.f32.mrb[0].mxu0
  %v2292 = vadd.f32 %v1393, %v2291
  %v2293 = vpop.f32.mrb[0].mxu0
  %2294 = vmatprep.mubr.f32.mxu0 0.0
  %2295 = vmatmul.mubr.f32.gmra.mrb[0].mxu0 %v1667
  %v2296 = vpop.f32.mrb[0].mxu0
  %v2297 = vadd.f32 %v1393, %v2296
  %v2298 = vpop.f32.mrb[0].mxu0
  %2299 = vmatprep.mubr.f32.mxu0 0.0
  %2300 = vmatmul.mubr.f32.gmra.mrb[0].mxu0 %v1670
  %v2301 = vpop.f32.mrb[0].mxu0
  %v2302 = vadd.f32 %v1393, %v2301
  %v2303 = vpop.f32.mrb[0].mxu0
  %2304 = vmatprep.mubr.f32.mxu0 0.0
  %2305 = vmatmul.mubr.f32.gmra.mrb[0].mxu0 %v1673
  %v2306 = vpop.f32.mrb[0].mxu0
  %v2307 = vadd.f32 %v1393, %v2306
  %v2308 = vpop.f32.mrb[0].mxu0
  %2309 = vmatprep.mubr.f32.mxu0 0.0
  %2310 = vmatmul.mubr.f32.gmra.mrb[0].mxu0 %v1676
  %v2311 = vpop.f32.mrb[0].mxu0
  %v2312 = vadd.f32 %v1393, %v2311
  %v2313 = vpop.f32.mrb[0].mxu0
  %2314 = vmatprep.mubr.f32.mxu0 0.0
  %2315 = vmatmul.mubr.f32.gmra.mrb[0].mxu0 %v1679
  %v2316 = vpop.f32.mrb[0].mxu0
  %v2317 = vadd.f32 %v1393, %v2316
  %v2318 = vpop.f32.mrb[0].mxu0
  %2319 = vmatprep.mubr.f32.mxu0 0.0
  %2320 = vmatmul.mubr.f32.gmra.mrb[0].mxu0 %v1682
  %v2321 = vpop.f32.mrb[0].mxu0
  %v2322 = vadd.f32 %v1393, %v2321
  %v2323 = vpop.f32.mrb[0].mxu0
  %2324 = vmatprep.mubr.f32.mxu0 0.0
  %2325 = vmatmul.mubr.f32.gmra.mrb[0].mxu0 %v1685
  %v2326 = vpop.f32.mrb[0].mxu0
  %v2327 = vadd.f32 %v1393, %v2326
  %v2328 = vpop.f32.mrb[0].mxu0
  %2329 = vmatprep.mubr.f32.mxu0 0.0
  %2330 = vmatmul.mubr.f32.gmra.mrb[0].mxu0 %v1688
  %v2331 = vpop.f32.mrb[0].mxu0
  %v2332 = vadd.f32 %v1393, %v2331
  %v2333 = vpop.f32.mrb[0].mxu0
  %2334 = vmatprep.mubr.f32.mxu0 0.0
  %2335 = vmatmul.mubr.f32.gmra.mrb[0].mxu0 %v1691
  %v2336 = vpop.f32.mrb[0].mxu0
  %v2337 = vadd.f32 %v1393, %v2336
  %v2338 = vpop.f32.mrb[0].mxu0
  %2339 = vmatprep.mubr.f32.mxu0 0.0
  %2340 = vmatmul.mubr.f32.gmra.mrb[0].mxu0 %v1694
  %v2341 = vpop.f32.mrb[0].mxu0
  %v2342 = vadd.f32 %v1393, %v2341
  %v2343 = vpop.f32.mrb[0].mxu0
  %2344 = vmatprep.mubr.f32.mxu0 0.0
  %2345 = vmatmul.mubr.f32.gmra.mrb[0].mxu0 %v1697
  %v2346 = vpop.f32.mrb[0].mxu0
  %v2347 = vadd.f32 %v1393, %v2346
  %v2348 = vpop.f32.mrb[0].mxu0
  %2349 = vmatprep.mubr.f32.mxu0 0.0
  %2350 = vmatmul.mubr.f32.gmra.mrb[0].mxu0 %v1700
  %v2351 = vpop.f32.mrb[0].mxu0
  %v2352 = vadd.f32 %v1393, %v2351
  %v2353 = vpop.f32.mrb[0].mxu0
  %2354 = vmatprep.mubr.f32.mxu0 0.0
  %2355 = vmatmul.mubr.f32.gmra.mrb[0].mxu0 %v1703
  %v2356 = vpop.f32.mrb[0].mxu0
  %v2357 = vadd.f32 %v1393, %v2356
  %v2358 = vpop.f32.mrb[0].mxu0
  %2359 = vmatprep.mubr.f32.mxu0 0.0
  %2360 = vmatmul.mubr.f32.gmra.mrb[0].mxu0 %v1706
  %v2361 = vpop.f32.mrb[0].mxu0
  %v2362 = vadd.f32 %v1393, %v2361
  %v2363 = vpop.f32.mrb[0].mxu0
  %2364 = vmatprep.mubr.f32.mxu0 0.0
  %2365 = vmatmul.mubr.f32.gmra.mrb[0].mxu0 %v1709
  %v2366 = vpop.f32.mrb[0].mxu0
  %v2367 = vadd.f32 %v1393, %v2366
  %v2368 = vpop.f32.mrb[0].mxu0
  %2369 = vmatprep.mubr.f32.mxu0 0.0
  %2370 = vmatmul.mubr.f32.gmra.mrb[0].mxu0 %v1712
  %v2371 = vpop.f32.mrb[0].mxu0
  %v2372 = vadd.f32 %v1393, %v2371
  %v2373 = vpop.f32.mrb[0].mxu0
  %2374 = vmatprep.mubr.f32.mxu0 0.0
  %2375 = vmatmul.mubr.f32.gmra.mrb[0].mxu0 %v1715
  %v2376 = vpop.f32.mrb[0].mxu0
  %v2377 = vadd.f32 %v1393, %v2376
  %v2378 = vpop.f32.mrb[0].mxu0
  %2379 = vmatprep.mubr.f32.mxu0 0.0
  %2380 = vmatmul.mubr.f32.gmra.mrb[0].mxu0 %v1718
  %v2381 = vpop.f32.mrb[0].mxu0
  %v2382 = vadd.f32 %v1393, %v2381
  %v2383 = vpop.f32.mrb[0].mxu0
  %2384 = vmatprep.mubr.f32.mxu0 0.0
  %2385 = vmatmul.mubr.f32.gmra.mrb[0].mxu0 %v1721
  %v2386 = vpop.f32.mrb[0].mxu0
  %v2387 = vadd.f32 %v1393, %v2386
  %v2388 = vpop.f32.mrb[0].mxu0
  %2389 = vmatprep.mubr.f32.mxu0 0.0
  %2390 = vmatmul.mubr.f32.gmra.mrb[0].mxu0 %v1724
  %v2391 = vpop.f32.mrb[0].mxu0
  %v2392 = vadd.f32 %v1393, %v2391
  %v2393 = vpop.f32.mrb[0].mxu0
  %2394 = vmatprep.mubr.f32.mxu0 0.0
  %2395 = vmatmul.mubr.f32.gmra.mrb[0].mxu0 %v1727
  %v2396 = vpop.f32.mrb[0].mxu0
  %v2397 = vadd.f32 %v1393, %v2396
  %v2398 = vpop.f32.mrb[0].mxu0
  %2399 = vmatprep.mubr.f32.mxu0 0.0
  %2400 = vmatmul.mubr.f32.gmra.mrb[0].mxu0 %v1730
  %v2401 = vpop.f32.mrb[0].mxu0
  %v2402 = vadd.f32 %v1393, %v2401
  %v2403 = vpop.f32.mrb[0].mxu0
  %2404 = vmatprep.mubr.f32.mxu0 0.0
  %2405 = vmatmul.mubr.f32.gmra.mrb[0].mxu0 %v1733
  %v2406 = vpop.f32.mrb[0].mxu0
  %v2407 = vadd.f32 %v1393, %v2406
  %v2408 = vpop.f32.mrb[0].mxu0
  %2409 = vmatprep.mubr.f32.mxu0 0.0
  %2410 = vmatmul.mubr.f32.gmra.mrb[0].mxu0 %v1736
  %v2411 = vpop.f32.mrb[0].mxu0
  %v2412 = vadd.f32 %v1393, %v2411
  %v2413 = vpop.f32.mrb[0].mxu0
  %2414 = vmatprep.mubr.f32.mxu0 0.0
  %2415 = vmatmul.mubr.f32.gmra.mrb[0].mxu0 %v1739
  %v2416 = vpop.f32.mrb[0].mxu0
  %v2417 = vadd.f32 %v1393, %v2416
  %v2418 = vpop.f32.mrb[0].mxu0
  %2419 = vmatprep.mubr.f32.mxu0 0.0
  %2420 = vmatmul.mubr.f32.gmra.mrb[0].mxu0 %v1742
  %v2421 = vpop.f32.mrb[0].mxu0
  %v2422 = vadd.f32 %v1393, %v2421
  %v2423 = vpop.f32.mrb[0].mxu0
  %2424 = vmatprep.mubr.f32.mxu0 0.0
  %2425 = vmatmul.mubr.f32.gmra.mrb[0].mxu0 %v1745
  %v2426 = vpop.f32.mrb[0].mxu0
  %v2427 = vadd.f32 %v1393, %v2426
  %v2428 = vpop.f32.mrb[0].mxu0
  %2429 = vmatprep.mubr.f32.mxu0 0.0
  %2430 = vmatmul.mubr.f32.gmra.mrb[0].mxu0 %v1748
  %v2431 = vpop.f32.mrb[0].mxu0
  %v2432 = vadd.f32 %v1393, %v2431
  %v2433 = vpop.f32.mrb[0].mxu0
  %2434 = vmatprep.mubr.f32.mxu0 0.0
  %2435 = vmatmul.mubr.f32.gmra.mrb[0].mxu0 %v1751
  %v2436 = vpop.f32.mrb[0].mxu0
  %v2437 = vadd.f32 %v1393, %v2436
  %v2438 = vpop.f32.mrb[0].mxu0
  %2439 = vmatprep.mubr.f32.mxu0 0.0
  %2440 = vmatmul.mubr.f32.gmra.mrb[0].mxu0 %v1754
  %v2441 = vpop.f32.mrb[0].mxu0
  %v2442 = vadd.f32 %v1393, %v2441
  %v2443 = vpop.f32.mrb[0].mxu0
  %2444 = vmatprep.mubr.f32.mxu0 0.0
  %2445 = vmatmul.mubr.f32.gmra.mrb[0].mxu0 %v1757
  %v2446 = vpop.f32.mrb[0].mxu0
  %v2447 = vadd.f32 %v1393, %v2446
  %v2448 = vpop.f32.mrb[0].mxu0
  %2449 = vmatprep.mubr.f32.mxu0 0.0
  %2450 = vmatmul.mubr.f32.gmra.mrb[0].mxu0 %v1760
  %v2451 = vpop.f32.mrb[0].mxu0
  %v2452 = vadd.f32 %v1393, %v2451
  %v2453 = vpop.f32.mrb[0].mxu0
  %2454 = vmatprep.mubr.f32.mxu0 0.0
  %2455 = vmatmul.mubr.f32.gmra.mrb[0].mxu0 %v1763
  %v2456 = vpop.f32.mrb[0].mxu0
  %v2457 = vadd.f32 %v1393, %v2456
  %v2458 = vpop.f32.mrb[0].mxu0
  %2459 = vmatprep.mubr.f32.mxu0 0.0
  %2460 = vmatmul.mubr.f32.gmra.mrb[0].mxu0 %v1766
  %v2461 = vpop.f32.mrb[0].mxu0
  %v2462 = vadd.f32 %v1393, %v2461
  %v2463 = vpop.f32.mrb[0].mxu0
  %2464 = vmatprep.mubr.f32.mxu0 0.0
  %2465 = vmatmul.mubr.f32.gmra.mrb[0].mxu0 %v1769
  %v2466 = vpop.f32.mrb[0].mxu0
  %v2467 = vadd.f32 %v1393, %v2466
  %v2468 = vpop.f32.mrb[0].mxu0
  %2469 = vmatprep.mubr.f32.mxu0 0.0
  %2470 = vmatmul.mubr.f32.gmra.mrb[0].mxu0 %v1772
  %v2471 = vpop.f32.mrb[0].mxu0
  %v2472 = vadd.f32 %v1393, %v2471
  %v2473 = vpop.f32.mrb[0].mxu0
  %2474 = vmatprep.mubr.f32.mxu0 0.0
  %2475 = vmatmul.mubr.f32.gmra.mrb[0].mxu0 %v1775
  %v2476 = vpop.f32.mrb[0].mxu0
  %v2477 = vadd.f32 %v1393, %v2476
  %v2478 = vpop.f32.mrb[0].mxu0
  %2479 = vmatprep.mubr.f32.mxu0 0.0
  %2480 = vmatmul.mubr.f32.gmra.mrb[0].mxu0 %v1778
  %v2481 = vpop.f32.mrb[0].mxu0
  %v2482 = vadd.f32 %v1393, %v2481
  %v2483 = vpop.f32.mrb[0].mxu0
  %2484 = vdwg.mxu0
  %2485 = vxpose.xlu0.b32.start [1/16] %v1847, 128
  %2486 = vxpose.xlu0.b32.cont [2/16] %v1852, 128
  %2487 = vxpose.xlu0.b32.cont [3/16] %v1857, 128
  %2488 = vxpose.xlu0.b32.cont [4/16] %v1862, 128
  %2489 = vxpose.xlu0.b32.cont [5/16] %v1867, 128
  %2490 = vxpose.xlu0.b32.cont [6/16] %v1872, 128
  %2491 = vxpose.xlu0.b32.cont [7/16] %v1877, 128
  %2492 = vxpose.xlu0.b32.cont [8/16] %v1882, 128
  %2493 = vxpose.xlu0.b32.cont [9/16] 0.0, 128
  %2494 = vxpose.xlu0.b32.cont [10/16] 0.0, 128
  %2495 = vxpose.xlu0.b32.cont [11/16] 0.0, 128
  %2496 = vxpose.xlu0.b32.cont [12/16] 0.0, 128
  %2497 = vxpose.xlu0.b32.cont [13/16] 0.0, 128
  %2498 = vxpose.xlu0.b32.cont [14/16] 0.0, 128
  %2499 = vxpose.xlu0.b32.cont [15/16] 0.0, 128
  %2500 = vxpose.xlu0.b32.end [16/16] 0.0, 128
  %v2501 = vpop.trf.xlu0
  %v2502 = vpop.trf.xlu0
  %v2503 = vpop.trf.xlu0
  %v2504 = vpop.trf.xlu0
  %v2505 = vpop.trf.xlu0
  %v2506 = vpop.trf.xlu0
  %v2507 = vpop.trf.xlu0
  %v2508 = vpop.trf.xlu0
  %v2509 = vpop.trf.xlu0
  %v2510 = vpop.trf.xlu0
  %v2511 = vpop.trf.xlu0
  %v2512 = vpop.trf.xlu0
  %v2513 = vpop.trf.xlu0
  %v2514 = vpop.trf.xlu0
  %v2515 = vpop.trf.xlu0
  %v2516 = vpop.trf.xlu0
  %vm2517 = vcmask 523264
  %v2519 = vsel %vm2517, %v2501, 0
  %v2522 = vsel %vm2517, %v2502, 0
  %2524 = vmatprep.subr.mxu0 0.0
  %2525 = vmatpush1.msra.mxu0 %v1259
  %2526 = vmatprep.subr.mxu0 0.0
  %2527 = vmatpush1.msra.mxu0 %v1260
  %2528 = vmatprep.subr.mxu0 0.0
  %2529 = vmatpush1.msra.mxu0 %v1261
  %2530 = vmatprep.subr.mxu0 0.0
  %2531 = vmatpush1.msra.mxu0 %v1262
  %2532 = vmatprep.subr.mxu0 0.0
  %2533 = vmatpush1.msra.mxu0 %v1263
  %2534 = vmatprep.subr.mxu0 0.0
  %2535 = vmatpush1.msra.mxu0 %v1264
  %2536 = vmatprep.subr.mxu0 0.0
  %2537 = vmatpush1.msra.mxu0 %v1265
  %2538 = vmatprep.subr.mxu0 0.0
  %2539 = vmatpush1.msra.mxu0 %v1266
  %2540 = vmatprep.subr.mxu0 0.0
  %2541 = vmatpush1.msra.mxu0 0.0
  %2542 = vmatprep.subr.mxu0 0.0
  %2543 = vmatpush1.msra.mxu0 0.0
  %2544 = vmatprep.subr.mxu0 0.0
  %2545 = vmatpush1.msra.mxu0 0.0
  %2546 = vmatprep.subr.mxu0 0.0
  %2547 = vmatpush1.msra.mxu0 0.0
  %2548 = vmatprep.subr.mxu0 0.0
  %2549 = vmatpush1.msra.mxu0 0.0
  %2550 = vmatprep.subr.mxu0 0.0
  %2551 = vmatpush1.msra.mxu0 0.0
  %2552 = vmatprep.subr.mxu0 0.0
  %2553 = vmatpush1.msra.mxu0 0.0
  %2554 = vmatprep.subr.mxu0 0.0
  %2555 = vmatpush1.msra.mxu0 0.0
  %2556 = vmatprep.subr.mxu0 0.0
  %2557 = vmatpush1.msra.mxu0 0.0
  %2558 = vmatprep.subr.mxu0 0.0
  %2559 = vmatpush1.msra.mxu0 0.0
  %2560 = vmatprep.subr.mxu0 0.0
  %2561 = vmatpush1.msra.mxu0 0.0
  %2562 = vmatprep.subr.mxu0 0.0
  %2563 = vmatpush1.msra.mxu0 0.0
  %2564 = vmatprep.subr.mxu0 0.0
  %2565 = vmatpush1.msra.mxu0 0.0
  %2566 = vmatprep.subr.mxu0 0.0
  %2567 = vmatpush1.msra.mxu0 0.0
  %2568 = vmatprep.subr.mxu0 0.0
  %2569 = vmatpush1.msra.mxu0 0.0
  %2570 = vmatprep.subr.mxu0 0.0
  %2571 = vmatpush1.msra.mxu0 0.0
  %2572 = vmatprep.subr.mxu0 0.0
  %2573 = vmatpush1.msra.mxu0 0.0
  %2574 = vmatprep.subr.mxu0 0.0
  %2575 = vmatpush1.msra.mxu0 0.0
  %2576 = vmatprep.subr.mxu0 0.0
  %2577 = vmatpush1.msra.mxu0 0.0
  %2578 = vmatprep.subr.mxu0 0.0
  %2579 = vmatpush1.msra.mxu0 0.0
  %2580 = vmatprep.subr.mxu0 0.0
  %2581 = vmatpush1.msra.mxu0 0.0
  %2582 = vmatprep.subr.mxu0 0.0
  %2583 = vmatpush1.msra.mxu0 0.0
  %2584 = vmatprep.subr.mxu0 0.0
  %2585 = vmatpush1.msra.mxu0 0.0
  %2586 = vmatprep.subr.mxu0 0.0
  %2587 = vmatpush1.msra.mxu0 0.0
  %2588 = vmatprep.mubr.f32.mxu0 0.0
  %2589 = vmatmul.mubr.f32.gmra.mrb[0].mxu0 %v2519
  %v2590 = vpop.f32.mrb[0].mxu0
  %v2591 = vadd.f32 0.0, %v2590
  %v2592 = vpop.f32.mrb[0].mxu0
  %2593 = vmatprep.mubr.f32.mxu0 0.0
  %2594 = vmatmul.mubr.f32.gmra.mrb[0].mxu0 %v2522
  %v2595 = vpop.f32.mrb[0].mxu0
  %v2596 = vadd.f32 0.0, %v2595
  %v2597 = vpop.f32.mrb[0].mxu0
  %2598 = vdwg.mxu0
  %2599 = vxpose.xlu0.b32.start [1/16] %v1887, 128
  %2600 = vxpose.xlu0.b32.cont [2/16] %v1892, 128
  %2601 = vxpose.xlu0.b32.cont [3/16] %v1897, 128
  %2602 = vxpose.xlu0.b32.cont [4/16] %v1902, 128
  %2603 = vxpose.xlu0.b32.cont [5/16] %v1907, 128
  %2604 = vxpose.xlu0.b32.cont [6/16] %v1912, 128
  %2605 = vxpose.xlu0.b32.cont [7/16] %v1917, 128
  %2606 = vxpose.xlu0.b32.cont [8/16] %v1922, 128
  %2607 = vxpose.xlu0.b32.cont [9/16] 0.0, 128
  %2608 = vxpose.xlu0.b32.cont [10/16] 0.0, 128
  %2609 = vxpose.xlu0.b32.cont [11/16] 0.0, 128
  %2610 = vxpose.xlu0.b32.cont [12/16] 0.0, 128
  %2611 = vxpose.xlu0.b32.cont [13/16] 0.0, 128
  %2612 = vxpose.xlu0.b32.cont [14/16] 0.0, 128
  %2613 = vxpose.xlu0.b32.cont [15/16] 0.0, 128
  %2614 = vxpose.xlu0.b32.end [16/16] 0.0, 128
  %v2615 = vpop.trf.xlu0
  %v2616 = vpop.trf.xlu0
  %v2617 = vpop.trf.xlu0
  %v2618 = vpop.trf.xlu0
  %v2619 = vpop.trf.xlu0
  %v2620 = vpop.trf.xlu0
  %v2621 = vpop.trf.xlu0
  %v2622 = vpop.trf.xlu0
  %v2623 = vpop.trf.xlu0
  %v2624 = vpop.trf.xlu0
  %v2625 = vpop.trf.xlu0
  %v2626 = vpop.trf.xlu0
  %v2627 = vpop.trf.xlu0
  %v2628 = vpop.trf.xlu0
  %v2629 = vpop.trf.xlu0
  %v2630 = vpop.trf.xlu0
  %v2632 = vsel %vm2517, %v2615, 0
  %v2635 = vsel %vm2517, %v2616, 0
  %2637 = vmatprep.subr.mxu0 0.0
  %2638 = vmatpush1.msra.mxu0 %v1267
  %2639 = vmatprep.subr.mxu0 0.0
  %2640 = vmatpush1.msra.mxu0 %v1268
  %2641 = vmatprep.subr.mxu0 0.0
  %2642 = vmatpush1.msra.mxu0 %v1269
  %2643 = vmatprep.subr.mxu0 0.0
  %2644 = vmatpush1.msra.mxu0 %v1270
  %2645 = vmatprep.subr.mxu0 0.0
  %2646 = vmatpush1.msra.mxu0 %v1271
  %2647 = vmatprep.subr.mxu0 0.0
  %2648 = vmatpush1.msra.mxu0 %v1272
  %2649 = vmatprep.subr.mxu0 0.0
  %2650 = vmatpush1.msra.mxu0 %v1273
  %2651 = vmatprep.subr.mxu0 0.0
  %2652 = vmatpush1.msra.mxu0 %v1274
  %2653 = vmatprep.subr.mxu0 0.0
  %2654 = vmatpush1.msra.mxu0 0.0
  %2655 = vmatprep.subr.mxu0 0.0
  %2656 = vmatpush1.msra.mxu0 0.0
  %2657 = vmatprep.subr.mxu0 0.0
  %2658 = vmatpush1.msra.mxu0 0.0
  %2659 = vmatprep.subr.mxu0 0.0
  %2660 = vmatpush1.msra.mxu0 0.0
  %2661 = vmatprep.subr.mxu0 0.0
  %2662 = vmatpush1.msra.mxu0 0.0
  %2663 = vmatprep.subr.mxu0 0.0
  %2664 = vmatpush1.msra.mxu0 0.0
  %2665 = vmatprep.subr.mxu0 0.0
  %2666 = vmatpush1.msra.mxu0 0.0
  %2667 = vmatprep.subr.mxu0 0.0
  %2668 = vmatpush1.msra.mxu0 0.0
  %2669 = vmatprep.subr.mxu0 0.0
  %2670 = vmatpush1.msra.mxu0 0.0
  %2671 = vmatprep.subr.mxu0 0.0
  %2672 = vmatpush1.msra.mxu0 0.0
  %2673 = vmatprep.subr.mxu0 0.0
  %2674 = vmatpush1.msra.mxu0 0.0
  %2675 = vmatprep.subr.mxu0 0.0
  %2676 = vmatpush1.msra.mxu0 0.0
  %2677 = vmatprep.subr.mxu0 0.0
  %2678 = vmatpush1.msra.mxu0 0.0
  %2679 = vmatprep.subr.mxu0 0.0
  %2680 = vmatpush1.msra.mxu0 0.0
  %2681 = vmatprep.subr.mxu0 0.0
  %2682 = vmatpush1.msra.mxu0 0.0
  %2683 = vmatprep.subr.mxu0 0.0
  %2684 = vmatpush1.msra.mxu0 0.0
  %2685 = vmatprep.subr.mxu0 0.0
  %2686 = vmatpush1.msra.mxu0 0.0
  %2687 = vmatprep.subr.mxu0 0.0
  %2688 = vmatpush1.msra.mxu0 0.0
  %2689 = vmatprep.subr.mxu0 0.0
  %2690 = vmatpush1.msra.mxu0 0.0
  %2691 = vmatprep.subr.mxu0 0.0
  %2692 = vmatpush1.msra.mxu0 0.0
  %2693 = vmatprep.subr.mxu0 0.0
  %2694 = vmatpush1.msra.mxu0 0.0
  %2695 = vmatprep.subr.mxu0 0.0
  %2696 = vmatpush1.msra.mxu0 0.0
  %2697 = vmatprep.subr.mxu0 0.0
  %2698 = vmatpush1.msra.mxu0 0.0
  %2699 = vmatprep.subr.mxu0 0.0
  %2700 = vmatpush1.msra.mxu0 0.0
  %2701 = vmatprep.mubr.f32.mxu0 0.0
  %2702 = vmatmul.mubr.f32.gmra.mrb[0].mxu0 %v2632
  %v2703 = vpop.f32.mrb[0].mxu0
  %v2704 = vadd.f32 0.0, %v2703
  %v2705 = vpop.f32.mrb[0].mxu0
  %2706 = vmatprep.mubr.f32.mxu0 0.0
  %2707 = vmatmul.mubr.f32.gmra.mrb[0].mxu0 %v2635
  %v2708 = vpop.f32.mrb[0].mxu0
  %v2709 = vadd.f32 0.0, %v2708
  %v2710 = vpop.f32.mrb[0].mxu0
  %2711 = vdwg.mxu0
  %2712 = vxpose.xlu0.b32.start [1/16] %v1927, 128
  %2713 = vxpose.xlu0.b32.cont [2/16] %v1932, 128
  %2714 = vxpose.xlu0.b32.cont [3/16] %v1937, 128
  %2715 = vxpose.xlu0.b32.cont [4/16] %v1942, 128
  %2716 = vxpose.xlu0.b32.cont [5/16] %v1947, 128
  %2717 = vxpose.xlu0.b32.cont [6/16] %v1952, 128
  %2718 = vxpose.xlu0.b32.cont [7/16] %v1957, 128
  %2719 = vxpose.xlu0.b32.cont [8/16] %v1962, 128
  %2720 = vxpose.xlu0.b32.cont [9/16] 0.0, 128
  %2721 = vxpose.xlu0.b32.cont [10/16] 0.0, 128
  %2722 = vxpose.xlu0.b32.cont [11/16] 0.0, 128
  %2723 = vxpose.xlu0.b32.cont [12/16] 0.0, 128
  %2724 = vxpose.xlu0.b32.cont [13/16] 0.0, 128
  %2725 = vxpose.xlu0.b32.cont [14/16] 0.0, 128
  %2726 = vxpose.xlu0.b32.cont [15/16] 0.0, 128
  %2727 = vxpose.xlu0.b32.end [16/16] 0.0, 128
  %v2728 = vpop.trf.xlu0
  %v2729 = vpop.trf.xlu0
  %v2730 = vpop.trf.xlu0
  %v2731 = vpop.trf.xlu0
  %v2732 = vpop.trf.xlu0
  %v2733 = vpop.trf.xlu0
  %v2734 = vpop.trf.xlu0
  %v2735 = vpop.trf.xlu0
  %v2736 = vpop.trf.xlu0
  %v2737 = vpop.trf.xlu0
  %v2738 = vpop.trf.xlu0
  %v2739 = vpop.trf.xlu0
  %v2740 = vpop.trf.xlu0
  %v2741 = vpop.trf.xlu0
  %v2742 = vpop.trf.xlu0
  %v2743 = vpop.trf.xlu0
  %v2745 = vsel %vm2517, %v2728, 0
  %v2748 = vsel %vm2517, %v2729, 0
  %2750 = vmatprep.subr.mxu0 0.0
  %2751 = vmatpush1.msra.mxu0 %v1275
  %2752 = vmatprep.subr.mxu0 0.0
  %2753 = vmatpush1.msra.mxu0 %v1276
  %2754 = vmatprep.subr.mxu0 0.0
  %2755 = vmatpush1.msra.mxu0 %v1277
  %2756 = vmatprep.subr.mxu0 0.0
  %2757 = vmatpush1.msra.mxu0 %v1278
  %2758 = vmatprep.subr.mxu0 0.0
  %2759 = vmatpush1.msra.mxu0 %v1279
  %2760 = vmatprep.subr.mxu0 0.0
  %2761 = vmatpush1.msra.mxu0 %v1280
  %2762 = vmatprep.subr.mxu0 0.0
  %2763 = vmatpush1.msra.mxu0 %v1281
  %2764 = vmatprep.subr.mxu0 0.0
  %2765 = vmatpush1.msra.mxu0 %v1282
  %2766 = vmatprep.subr.mxu0 0.0
  %2767 = vmatpush1.msra.mxu0 0.0
  %2768 = vmatprep.subr.mxu0 0.0
  %2769 = vmatpush1.msra.mxu0 0.0
  %2770 = vmatprep.subr.mxu0 0.0
  %2771 = vmatpush1.msra.mxu0 0.0
  %2772 = vmatprep.subr.mxu0 0.0
  %2773 = vmatpush1.msra.mxu0 0.0
  %2774 = vmatprep.subr.mxu0 0.0
  %2775 = vmatpush1.msra.mxu0 0.0
  %2776 = vmatprep.subr.mxu0 0.0
  %2777 = vmatpush1.msra.mxu0 0.0
  %2778 = vmatprep.subr.mxu0 0.0
  %2779 = vmatpush1.msra.mxu0 0.0
  %2780 = vmatprep.subr.mxu0 0.0
  %2781 = vmatpush1.msra.mxu0 0.0
  %2782 = vmatprep.subr.mxu0 0.0
  %2783 = vmatpush1.msra.mxu0 0.0
  %2784 = vmatprep.subr.mxu0 0.0
  %2785 = vmatpush1.msra.mxu0 0.0
  %2786 = vmatprep.subr.mxu0 0.0
  %2787 = vmatpush1.msra.mxu0 0.0
  %2788 = vmatprep.subr.mxu0 0.0
  %2789 = vmatpush1.msra.mxu0 0.0
  %2790 = vmatprep.subr.mxu0 0.0
  %2791 = vmatpush1.msra.mxu0 0.0
  %2792 = vmatprep.subr.mxu0 0.0
  %2793 = vmatpush1.msra.mxu0 0.0
  %2794 = vmatprep.subr.mxu0 0.0
  %2795 = vmatpush1.msra.mxu0 0.0
  %2796 = vmatprep.subr.mxu0 0.0
  %2797 = vmatpush1.msra.mxu0 0.0
  %2798 = vmatprep.subr.mxu0 0.0
  %2799 = vmatpush1.msra.mxu0 0.0
  %2800 = vmatprep.subr.mxu0 0.0
  %2801 = vmatpush1.msra.mxu0 0.0
  %2802 = vmatprep.subr.mxu0 0.0
  %2803 = vmatpush1.msra.mxu0 0.0
  %2804 = vmatprep.subr.mxu0 0.0
  %2805 = vmatpush1.msra.mxu0 0.0
  %2806 = vmatprep.subr.mxu0 0.0
  %2807 = vmatpush1.msra.mxu0 0.0
  %2808 = vmatprep.subr.mxu0 0.0
  %2809 = vmatpush1.msra.mxu0 0.0
  %2810 = vmatprep.subr.mxu0 0.0
  %2811 = vmatpush1.msra.mxu0 0.0
  %2812 = vmatprep.subr.mxu0 0.0
  %2813 = vmatpush1.msra.mxu0 0.0
  %2814 = vmatprep.mubr.f32.mxu0 0.0
  %2815 = vmatmul.mubr.f32.gmra.mrb[0].mxu0 %v2745
  %v2816 = vpop.f32.mrb[0].mxu0
  %v2817 = vadd.f32 0.0, %v2816
  %v2818 = vpop.f32.mrb[0].mxu0
  %2819 = vmatprep.mubr.f32.mxu0 0.0
  %2820 = vmatmul.mubr.f32.gmra.mrb[0].mxu0 %v2748
  %v2821 = vpop.f32.mrb[0].mxu0
  %v2822 = vadd.f32 0.0, %v2821
  %v2823 = vpop.f32.mrb[0].mxu0
  %2824 = vdwg.mxu0
  %2825 = vxpose.xlu0.b32.start [1/16] %v1967, 128
  %2826 = vxpose.xlu0.b32.cont [2/16] %v1972, 128
  %2827 = vxpose.xlu0.b32.cont [3/16] %v1977, 128
  %2828 = vxpose.xlu0.b32.cont [4/16] %v1982, 128
  %2829 = vxpose.xlu0.b32.cont [5/16] %v1987, 128
  %2830 = vxpose.xlu0.b32.cont [6/16] %v1992, 128
  %2831 = vxpose.xlu0.b32.cont [7/16] %v1997, 128
  %2832 = vxpose.xlu0.b32.cont [8/16] %v2002, 128
  %2833 = vxpose.xlu0.b32.cont [9/16] 0.0, 128
  %2834 = vxpose.xlu0.b32.cont [10/16] 0.0, 128
  %2835 = vxpose.xlu0.b32.cont [11/16] 0.0, 128
  %2836 = vxpose.xlu0.b32.cont [12/16] 0.0, 128
  %2837 = vxpose.xlu0.b32.cont [13/16] 0.0, 128
  %2838 = vxpose.xlu0.b32.cont [14/16] 0.0, 128
  %2839 = vxpose.xlu0.b32.cont [15/16] 0.0, 128
  %2840 = vxpose.xlu0.b32.end [16/16] 0.0, 128
  %v2841 = vpop.trf.xlu0
  %v2842 = vpop.trf.xlu0
  %v2843 = vpop.trf.xlu0
  %v2844 = vpop.trf.xlu0
  %v2845 = vpop.trf.xlu0
  %v2846 = vpop.trf.xlu0
  %v2847 = vpop.trf.xlu0
  %v2848 = vpop.trf.xlu0
  %v2849 = vpop.trf.xlu0
  %v2850 = vpop.trf.xlu0
  %v2851 = vpop.trf.xlu0
  %v2852 = vpop.trf.xlu0
  %v2853 = vpop.trf.xlu0
  %v2854 = vpop.trf.xlu0
  %v2855 = vpop.trf.xlu0
  %v2856 = vpop.trf.xlu0
  %v2858 = vsel %vm2517, %v2841, 0
  %v2861 = vsel %vm2517, %v2842, 0
  %2863 = vmatprep.subr.mxu0 0.0
  %2864 = vmatpush1.msra.mxu0 %v1283
  %2865 = vmatprep.subr.mxu0 0.0
  %2866 = vmatpush1.msra.mxu0 %v1284
  %2867 = vmatprep.subr.mxu0 0.0
  %2868 = vmatpush1.msra.mxu0 %v1285
  %2869 = vmatprep.subr.mxu0 0.0
  %2870 = vmatpush1.msra.mxu0 %v1286
  %2871 = vmatprep.subr.mxu0 0.0
  %2872 = vmatpush1.msra.mxu0 %v1287
  %2873 = vmatprep.subr.mxu0 0.0
  %2874 = vmatpush1.msra.mxu0 %v1288
  %2875 = vmatprep.subr.mxu0 0.0
  %2876 = vmatpush1.msra.mxu0 %v1289
  %2877 = vmatprep.subr.mxu0 0.0
  %2878 = vmatpush1.msra.mxu0 %v1290
  %2879 = vmatprep.subr.mxu0 0.0
  %2880 = vmatpush1.msra.mxu0 0.0
  %2881 = vmatprep.subr.mxu0 0.0
  %2882 = vmatpush1.msra.mxu0 0.0
  %2883 = vmatprep.subr.mxu0 0.0
  %2884 = vmatpush1.msra.mxu0 0.0
  %2885 = vmatprep.subr.mxu0 0.0
  %2886 = vmatpush1.msra.mxu0 0.0
  %2887 = vmatprep.subr.mxu0 0.0
  %2888 = vmatpush1.msra.mxu0 0.0
  %2889 = vmatprep.subr.mxu0 0.0
  %2890 = vmatpush1.msra.mxu0 0.0
  %2891 = vmatprep.subr.mxu0 0.0
  %2892 = vmatpush1.msra.mxu0 0.0
  %2893 = vmatprep.subr.mxu0 0.0
  %2894 = vmatpush1.msra.mxu0 0.0
  %2895 = vmatprep.subr.mxu0 0.0
  %2896 = vmatpush1.msra.mxu0 0.0
  %2897 = vmatprep.subr.mxu0 0.0
  %2898 = vmatpush1.msra.mxu0 0.0
  %2899 = vmatprep.subr.mxu0 0.0
  %2900 = vmatpush1.msra.mxu0 0.0
  %2901 = vmatprep.subr.mxu0 0.0
  %2902 = vmatpush1.msra.mxu0 0.0
  %2903 = vmatprep.subr.mxu0 0.0
  %2904 = vmatpush1.msra.mxu0 0.0
  %2905 = vmatprep.subr.mxu0 0.0
  %2906 = vmatpush1.msra.mxu0 0.0
  %2907 = vmatprep.subr.mxu0 0.0
  %2908 = vmatpush1.msra.mxu0 0.0
  %2909 = vmatprep.subr.mxu0 0.0
  %2910 = vmatpush1.msra.mxu0 0.0
  %2911 = vmatprep.subr.mxu0 0.0
  %2912 = vmatpush1.msra.mxu0 0.0
  %2913 = vmatprep.subr.mxu0 0.0
  %2914 = vmatpush1.msra.mxu0 0.0
  %2915 = vmatprep.subr.mxu0 0.0
  %2916 = vmatpush1.msra.mxu0 0.0
  %2917 = vmatprep.subr.mxu0 0.0
  %2918 = vmatpush1.msra.mxu0 0.0
  %2919 = vmatprep.subr.mxu0 0.0
  %2920 = vmatpush1.msra.mxu0 0.0
  %2921 = vmatprep.subr.mxu0 0.0
  %2922 = vmatpush1.msra.mxu0 0.0
  %2923 = vmatprep.subr.mxu0 0.0
  %2924 = vmatpush1.msra.mxu0 0.0
  %2925 = vmatprep.subr.mxu0 0.0
  %2926 = vmatpush1.msra.mxu0 0.0
  %2927 = vmatprep.mubr.f32.mxu0 0.0
  %2928 = vmatmul.mubr.f32.gmra.mrb[0].mxu0 %v2858
  %v2929 = vpop.f32.mrb[0].mxu0
  %v2930 = vadd.f32 0.0, %v2929
  %v2931 = vpop.f32.mrb[0].mxu0
  %2932 = vmatprep.mubr.f32.mxu0 0.0
  %2933 = vmatmul.mubr.f32.gmra.mrb[0].mxu0 %v2861
  %v2934 = vpop.f32.mrb[0].mxu0
  %v2935 = vadd.f32 0.0, %v2934
  %v2936 = vpop.f32.mrb[0].mxu0
  %2937 = vdwg.mxu0
  %2938 = vxpose.xlu0.b32.start [1/16] %v2007, 128
  %2939 = vxpose.xlu0.b32.cont [2/16] %v2012, 128
  %2940 = vxpose.xlu0.b32.cont [3/16] %v2017, 128
  %2941 = vxpose.xlu0.b32.cont [4/16] %v2022, 128
  %2942 = vxpose.xlu0.b32.cont [5/16] %v2027, 128
  %2943 = vxpose.xlu0.b32.cont [6/16] %v2032, 128
  %2944 = vxpose.xlu0.b32.cont [7/16] %v2037, 128
  %2945 = vxpose.xlu0.b32.cont [8/16] %v2042, 128
  %2946 = vxpose.xlu0.b32.cont [9/16] 0.0, 128
  %2947 = vxpose.xlu0.b32.cont [10/16] 0.0, 128
  %2948 = vxpose.xlu0.b32.cont [11/16] 0.0, 128
  %2949 = vxpose.xlu0.b32.cont [12/16] 0.0, 128
  %2950 = vxpose.xlu0.b32.cont [13/16] 0.0, 128
  %2951 = vxpose.xlu0.b32.cont [14/16] 0.0, 128
  %2952 = vxpose.xlu0.b32.cont [15/16] 0.0, 128
  %2953 = vxpose.xlu0.b32.end [16/16] 0.0, 128
  %v2954 = vpop.trf.xlu0
  %v2955 = vpop.trf.xlu0
  %v2956 = vpop.trf.xlu0
  %v2957 = vpop.trf.xlu0
  %v2958 = vpop.trf.xlu0
  %v2959 = vpop.trf.xlu0
  %v2960 = vpop.trf.xlu0
  %v2961 = vpop.trf.xlu0
  %v2962 = vpop.trf.xlu0
  %v2963 = vpop.trf.xlu0
  %v2964 = vpop.trf.xlu0
  %v2965 = vpop.trf.xlu0
  %v2966 = vpop.trf.xlu0
  %v2967 = vpop.trf.xlu0
  %v2968 = vpop.trf.xlu0
  %v2969 = vpop.trf.xlu0
  %v2971 = vsel %vm2517, %v2954, 0
  %v2974 = vsel %vm2517, %v2955, 0
  %2976 = vmatprep.subr.mxu0 0.0
  %2977 = vmatpush1.msra.mxu0 %v1291
  %2978 = vmatprep.subr.mxu0 0.0
  %2979 = vmatpush1.msra.mxu0 %v1292
  %2980 = vmatprep.subr.mxu0 0.0
  %2981 = vmatpush1.msra.mxu0 %v1293
  %2982 = vmatprep.subr.mxu0 0.0
  %2983 = vmatpush1.msra.mxu0 %v1294
  %2984 = vmatprep.subr.mxu0 0.0
  %2985 = vmatpush1.msra.mxu0 %v1295
  %2986 = vmatprep.subr.mxu0 0.0
  %2987 = vmatpush1.msra.mxu0 %v1296
  %2988 = vmatprep.subr.mxu0 0.0
  %2989 = vmatpush1.msra.mxu0 %v1297
  %2990 = vmatprep.subr.mxu0 0.0
  %2991 = vmatpush1.msra.mxu0 %v1298
  %2992 = vmatprep.subr.mxu0 0.0
  %2993 = vmatpush1.msra.mxu0 0.0
  %2994 = vmatprep.subr.mxu0 0.0
  %2995 = vmatpush1.msra.mxu0 0.0
  %2996 = vmatprep.subr.mxu0 0.0
  %2997 = vmatpush1.msra.mxu0 0.0
  %2998 = vmatprep.subr.mxu0 0.0
  %2999 = vmatpush1.msra.mxu0 0.0
  %3000 = vmatprep.subr.mxu0 0.0
  %3001 = vmatpush1.msra.mxu0 0.0
  %3002 = vmatprep.subr.mxu0 0.0
  %3003 = vmatpush1.msra.mxu0 0.0
  %3004 = vmatprep.subr.mxu0 0.0
  %3005 = vmatpush1.msra.mxu0 0.0
  %3006 = vmatprep.subr.mxu0 0.0
  %3007 = vmatpush1.msra.mxu0 0.0
  %3008 = vmatprep.subr.mxu0 0.0
  %3009 = vmatpush1.msra.mxu0 0.0
  %3010 = vmatprep.subr.mxu0 0.0
  %3011 = vmatpush1.msra.mxu0 0.0
  %3012 = vmatprep.subr.mxu0 0.0
  %3013 = vmatpush1.msra.mxu0 0.0
  %3014 = vmatprep.subr.mxu0 0.0
  %3015 = vmatpush1.msra.mxu0 0.0
  %3016 = vmatprep.subr.mxu0 0.0
  %3017 = vmatpush1.msra.mxu0 0.0
  %3018 = vmatprep.subr.mxu0 0.0
  %3019 = vmatpush1.msra.mxu0 0.0
  %3020 = vmatprep.subr.mxu0 0.0
  %3021 = vmatpush1.msra.mxu0 0.0
  %3022 = vmatprep.subr.mxu0 0.0
  %3023 = vmatpush1.msra.mxu0 0.0
  %3024 = vmatprep.subr.mxu0 0.0
  %3025 = vmatpush1.msra.mxu0 0.0
  %3026 = vmatprep.subr.mxu0 0.0
  %3027 = vmatpush1.msra.mxu0 0.0
  %3028 = vmatprep.subr.mxu0 0.0
  %3029 = vmatpush1.msra.mxu0 0.0
  %3030 = vmatprep.subr.mxu0 0.0
  %3031 = vmatpush1.msra.mxu0 0.0
  %3032 = vmatprep.subr.mxu0 0.0
  %3033 = vmatpush1.msra.mxu0 0.0
  %3034 = vmatprep.subr.mxu0 0.0
  %3035 = vmatpush1.msra.mxu0 0.0
  %3036 = vmatprep.subr.mxu0 0.0
  %3037 = vmatpush1.msra.mxu0 0.0
  %3038 = vmatprep.subr.mxu0 0.0
  %3039 = vmatpush1.msra.mxu0 0.0
  %3040 = vmatprep.mubr.f32.mxu0 0.0
  %3041 = vmatmul.mubr.f32.gmra.mrb[0].mxu0 %v2971
  %v3042 = vpop.f32.mrb[0].mxu0
  %v3043 = vadd.f32 0.0, %v3042
  %v3044 = vpop.f32.mrb[0].mxu0
  %3045 = vmatprep.mubr.f32.mxu0 0.0
  %3046 = vmatmul.mubr.f32.gmra.mrb[0].mxu0 %v2974
  %v3047 = vpop.f32.mrb[0].mxu0
  %v3048 = vadd.f32 0.0, %v3047
  %v3049 = vpop.f32.mrb[0].mxu0
  %3050 = vdwg.mxu0
  %3051 = vxpose.xlu0.b32.start [1/16] %v2047, 128
  %3052 = vxpose.xlu0.b32.cont [2/16] %v2052, 128
  %3053 = vxpose.xlu0.b32.cont [3/16] %v2057, 128
  %3054 = vxpose.xlu0.b32.cont [4/16] %v2062, 128
  %3055 = vxpose.xlu0.b32.cont [5/16] %v2067, 128
  %3056 = vxpose.xlu0.b32.cont [6/16] %v2072, 128
  %3057 = vxpose.xlu0.b32.cont [7/16] %v2077, 128
  %3058 = vxpose.xlu0.b32.cont [8/16] %v2082, 128
  %3059 = vxpose.xlu0.b32.cont [9/16] 0.0, 128
  %3060 = vxpose.xlu0.b32.cont [10/16] 0.0, 128
  %3061 = vxpose.xlu0.b32.cont [11/16] 0.0, 128
  %3062 = vxpose.xlu0.b32.cont [12/16] 0.0, 128
  %3063 = vxpose.xlu0.b32.cont [13/16] 0.0, 128
  %3064 = vxpose.xlu0.b32.cont [14/16] 0.0, 128
  %3065 = vxpose.xlu0.b32.cont [15/16] 0.0, 128
  %3066 = vxpose.xlu0.b32.end [16/16] 0.0, 128
  %v3067 = vpop.trf.xlu0
  %v3068 = vpop.trf.xlu0
  %v3069 = vpop.trf.xlu0
  %v3070 = vpop.trf.xlu0
  %v3071 = vpop.trf.xlu0
  %v3072 = vpop.trf.xlu0
  %v3073 = vpop.trf.xlu0
  %v3074 = vpop.trf.xlu0
  %v3075 = vpop.trf.xlu0
  %v3076 = vpop.trf.xlu0
  %v3077 = vpop.trf.xlu0
  %v3078 = vpop.trf.xlu0
  %v3079 = vpop.trf.xlu0
  %v3080 = vpop.trf.xlu0
  %v3081 = vpop.trf.xlu0
  %v3082 = vpop.trf.xlu0
  %v3084 = vsel %vm2517, %v3067, 0
  %v3087 = vsel %vm2517, %v3068, 0
  %3089 = vmatprep.subr.mxu0 0.0
  %3090 = vmatpush1.msra.mxu0 %v1299
  %3091 = vmatprep.subr.mxu0 0.0
  %3092 = vmatpush1.msra.mxu0 %v1300
  %3093 = vmatprep.subr.mxu0 0.0
  %3094 = vmatpush1.msra.mxu0 %v1301
  %3095 = vmatprep.subr.mxu0 0.0
  %3096 = vmatpush1.msra.mxu0 %v1302
  %3097 = vmatprep.subr.mxu0 0.0
  %3098 = vmatpush1.msra.mxu0 %v1303
  %3099 = vmatprep.subr.mxu0 0.0
  %3100 = vmatpush1.msra.mxu0 %v1304
  %3101 = vmatprep.subr.mxu0 0.0
  %3102 = vmatpush1.msra.mxu0 %v1305
  %3103 = vmatprep.subr.mxu0 0.0
  %3104 = vmatpush1.msra.mxu0 %v1306
  %3105 = vmatprep.subr.mxu0 0.0
  %3106 = vmatpush1.msra.mxu0 0.0
  %3107 = vmatprep.subr.mxu0 0.0
  %3108 = vmatpush1.msra.mxu0 0.0
  %3109 = vmatprep.subr.mxu0 0.0
  %3110 = vmatpush1.msra.mxu0 0.0
  %3111 = vmatprep.subr.mxu0 0.0
  %3112 = vmatpush1.msra.mxu0 0.0
  %3113 = vmatprep.subr.mxu0 0.0
  %3114 = vmatpush1.msra.mxu0 0.0
  %3115 = vmatprep.subr.mxu0 0.0
  %3116 = vmatpush1.msra.mxu0 0.0
  %3117 = vmatprep.subr.mxu0 0.0
  %3118 = vmatpush1.msra.mxu0 0.0
  %3119 = vmatprep.subr.mxu0 0.0
  %3120 = vmatpush1.msra.mxu0 0.0
  %3121 = vmatprep.subr.mxu0 0.0
  %3122 = vmatpush1.msra.mxu0 0.0
  %3123 = vmatprep.subr.mxu0 0.0
  %3124 = vmatpush1.msra.mxu0 0.0
  %3125 = vmatprep.subr.mxu0 0.0
  %3126 = vmatpush1.msra.mxu0 0.0
  %3127 = vmatprep.subr.mxu0 0.0
  %3128 = vmatpush1.msra.mxu0 0.0
  %3129 = vmatprep.subr.mxu0 0.0
  %3130 = vmatpush1.msra.mxu0 0.0
  %3131 = vmatprep.subr.mxu0 0.0
  %3132 = vmatpush1.msra.mxu0 0.0
  %3133 = vmatprep.subr.mxu0 0.0
  %3134 = vmatpush1.msra.mxu0 0.0
  %3135 = vmatprep.subr.mxu0 0.0
  %3136 = vmatpush1.msra.mxu0 0.0
  %3137 = vmatprep.subr.mxu0 0.0
  %3138 = vmatpush1.msra.mxu0 0.0
  %3139 = vmatprep.subr.mxu0 0.0
  %3140 = vmatpush1.msra.mxu0 0.0
  %3141 = vmatprep.subr.mxu0 0.0
  %3142 = vmatpush1.msra.mxu0 0.0
  %3143 = vmatprep.subr.mxu0 0.0
  %3144 = vmatpush1.msra.mxu0 0.0
  %3145 = vmatprep.subr.mxu0 0.0
  %3146 = vmatpush1.msra.mxu0 0.0
  %3147 = vmatprep.subr.mxu0 0.0
  %3148 = vmatpush1.msra.mxu0 0.0
  %3149 = vmatprep.subr.mxu0 0.0
  %3150 = vmatpush1.msra.mxu0 0.0
  %3151 = vmatprep.subr.mxu0 0.0
  %3152 = vmatpush1.msra.mxu0 0.0
  %3153 = vmatprep.mubr.f32.mxu0 0.0
  %3154 = vmatmul.mubr.f32.gmra.mrb[0].mxu0 %v3084
  %v3155 = vpop.f32.mrb[0].mxu0
  %v3156 = vadd.f32 0.0, %v3155
  %v3157 = vpop.f32.mrb[0].mxu0
  %3158 = vmatprep.mubr.f32.mxu0 0.0
  %3159 = vmatmul.mubr.f32.gmra.mrb[0].mxu0 %v3087
  %v3160 = vpop.f32.mrb[0].mxu0
  %v3161 = vadd.f32 0.0, %v3160
  %v3162 = vpop.f32.mrb[0].mxu0
  %3163 = vdwg.mxu0
  %3164 = vxpose.xlu0.b32.start [1/16] %v2087, 128
  %3165 = vxpose.xlu0.b32.cont [2/16] %v2092, 128
  %3166 = vxpose.xlu0.b32.cont [3/16] %v2097, 128
  %3167 = vxpose.xlu0.b32.cont [4/16] %v2102, 128
  %3168 = vxpose.xlu0.b32.cont [5/16] %v2107, 128
  %3169 = vxpose.xlu0.b32.cont [6/16] %v2112, 128
  %3170 = vxpose.xlu0.b32.cont [7/16] %v2117, 128
  %3171 = vxpose.xlu0.b32.cont [8/16] %v2122, 128
  %3172 = vxpose.xlu0.b32.cont [9/16] 0.0, 128
  %3173 = vxpose.xlu0.b32.cont [10/16] 0.0, 128
  %3174 = vxpose.xlu0.b32.cont [11/16] 0.0, 128
  %3175 = vxpose.xlu0.b32.cont [12/16] 0.0, 128
  %3176 = vxpose.xlu0.b32.cont [13/16] 0.0, 128
  %3177 = vxpose.xlu0.b32.cont [14/16] 0.0, 128
  %3178 = vxpose.xlu0.b32.cont [15/16] 0.0, 128
  %3179 = vxpose.xlu0.b32.end [16/16] 0.0, 128
  %v3180 = vpop.trf.xlu0
  %v3181 = vpop.trf.xlu0
  %v3182 = vpop.trf.xlu0
  %v3183 = vpop.trf.xlu0
  %v3184 = vpop.trf.xlu0
  %v3185 = vpop.trf.xlu0
  %v3186 = vpop.trf.xlu0
  %v3187 = vpop.trf.xlu0
  %v3188 = vpop.trf.xlu0
  %v3189 = vpop.trf.xlu0
  %v3190 = vpop.trf.xlu0
  %v3191 = vpop.trf.xlu0
  %v3192 = vpop.trf.xlu0
  %v3193 = vpop.trf.xlu0
  %v3194 = vpop.trf.xlu0
  %v3195 = vpop.trf.xlu0
  %v3197 = vsel %vm2517, %v3180, 0
  %v3200 = vsel %vm2517, %v3181, 0
  %3202 = vmatprep.subr.mxu0 0.0
  %3203 = vmatpush1.msra.mxu0 %v1307
  %3204 = vmatprep.subr.mxu0 0.0
  %3205 = vmatpush1.msra.mxu0 %v1308
  %3206 = vmatprep.subr.mxu0 0.0
  %3207 = vmatpush1.msra.mxu0 %v1309
  %3208 = vmatprep.subr.mxu0 0.0
  %3209 = vmatpush1.msra.mxu0 %v1310
  %3210 = vmatprep.subr.mxu0 0.0
  %3211 = vmatpush1.msra.mxu0 %v1311
  %3212 = vmatprep.subr.mxu0 0.0
  %3213 = vmatpush1.msra.mxu0 %v1312
  %3214 = vmatprep.subr.mxu0 0.0
  %3215 = vmatpush1.msra.mxu0 %v1313
  %3216 = vmatprep.subr.mxu0 0.0
  %3217 = vmatpush1.msra.mxu0 %v1314
  %3218 = vmatprep.subr.mxu0 0.0
  %3219 = vmatpush1.msra.mxu0 0.0
  %3220 = vmatprep.subr.mxu0 0.0
  %3221 = vmatpush1.msra.mxu0 0.0
  %3222 = vmatprep.subr.mxu0 0.0
  %3223 = vmatpush1.msra.mxu0 0.0
  %3224 = vmatprep.subr.mxu0 0.0
  %3225 = vmatpush1.msra.mxu0 0.0
  %3226 = vmatprep.subr.mxu0 0.0
  %3227 = vmatpush1.msra.mxu0 0.0
  %3228 = vmatprep.subr.mxu0 0.0
  %3229 = vmatpush1.msra.mxu0 0.0
  %3230 = vmatprep.subr.mxu0 0.0
  %3231 = vmatpush1.msra.mxu0 0.0
  %3232 = vmatprep.subr.mxu0 0.0
  %3233 = vmatpush1.msra.mxu0 0.0
  %3234 = vmatprep.subr.mxu0 0.0
  %3235 = vmatpush1.msra.mxu0 0.0
  %3236 = vmatprep.subr.mxu0 0.0
  %3237 = vmatpush1.msra.mxu0 0.0
  %3238 = vmatprep.subr.mxu0 0.0
  %3239 = vmatpush1.msra.mxu0 0.0
  %3240 = vmatprep.subr.mxu0 0.0
  %3241 = vmatpush1.msra.mxu0 0.0
  %3242 = vmatprep.subr.mxu0 0.0
  %3243 = vmatpush1.msra.mxu0 0.0
  %3244 = vmatprep.subr.mxu0 0.0
  %3245 = vmatpush1.msra.mxu0 0.0
  %3246 = vmatprep.subr.mxu0 0.0
  %3247 = vmatpush1.msra.mxu0 0.0
  %3248 = vmatprep.subr.mxu0 0.0
  %3249 = vmatpush1.msra.mxu0 0.0
  %3250 = vmatprep.subr.mxu0 0.0
  %3251 = vmatpush1.msra.mxu0 0.0
  %3252 = vmatprep.subr.mxu0 0.0
  %3253 = vmatpush1.msra.mxu0 0.0
  %3254 = vmatprep.subr.mxu0 0.0
  %3255 = vmatpush1.msra.mxu0 0.0
  %3256 = vmatprep.subr.mxu0 0.0
  %3257 = vmatpush1.msra.mxu0 0.0
  %3258 = vmatprep.subr.mxu0 0.0
  %3259 = vmatpush1.msra.mxu0 0.0
  %3260 = vmatprep.subr.mxu0 0.0
  %3261 = vmatpush1.msra.mxu0 0.0
  %3262 = vmatprep.subr.mxu0 0.0
  %3263 = vmatpush1.msra.mxu0 0.0
  %3264 = vmatprep.subr.mxu0 0.0
  %3265 = vmatpush1.msra.mxu0 0.0
  %3266 = vmatprep.mubr.f32.mxu0 0.0
  %3267 = vmatmul.mubr.f32.gmra.mrb[0].mxu0 %v3197
  %v3268 = vpop.f32.mrb[0].mxu0
  %v3269 = vadd.f32 0.0, %v3268
  %v3270 = vpop.f32.mrb[0].mxu0
  %3271 = vmatprep.mubr.f32.mxu0 0.0
  %3272 = vmatmul.mubr.f32.gmra.mrb[0].mxu0 %v3200
  %v3273 = vpop.f32.mrb[0].mxu0
  %v3274 = vadd.f32 0.0, %v3273
  %v3275 = vpop.f32.mrb[0].mxu0
  %3276 = vdwg.mxu0
  %3277 = vxpose.xlu0.b32.start [1/16] %v2127, 128
  %3278 = vxpose.xlu0.b32.cont [2/16] %v2132, 128
  %3279 = vxpose.xlu0.b32.cont [3/16] %v2137, 128
  %3280 = vxpose.xlu0.b32.cont [4/16] %v2142, 128
  %3281 = vxpose.xlu0.b32.cont [5/16] %v2147, 128
  %3282 = vxpose.xlu0.b32.cont [6/16] %v2152, 128
  %3283 = vxpose.xlu0.b32.cont [7/16] %v2157, 128
  %3284 = vxpose.xlu0.b32.cont [8/16] %v2162, 128
  %3285 = vxpose.xlu0.b32.cont [9/16] 0.0, 128
  %3286 = vxpose.xlu0.b32.cont [10/16] 0.0, 128
  %3287 = vxpose.xlu0.b32.cont [11/16] 0.0, 128
  %3288 = vxpose.xlu0.b32.cont [12/16] 0.0, 128
  %3289 = vxpose.xlu0.b32.cont [13/16] 0.0, 128
  %3290 = vxpose.xlu0.b32.cont [14/16] 0.0, 128
  %3291 = vxpose.xlu0.b32.cont [15/16] 0.0, 128
  %3292 = vxpose.xlu0.b32.end [16/16] 0.0, 128
  %v3293 = vpop.trf.xlu0
  %v3294 = vpop.trf.xlu0
  %v3295 = vpop.trf.xlu0
  %v3296 = vpop.trf.xlu0
  %v3297 = vpop.trf.xlu0
  %v3298 = vpop.trf.xlu0
  %v3299 = vpop.trf.xlu0
  %v3300 = vpop.trf.xlu0
  %v3301 = vpop.trf.xlu0
  %v3302 = vpop.trf.xlu0
  %v3303 = vpop.trf.xlu0
  %v3304 = vpop.trf.xlu0
  %v3305 = vpop.trf.xlu0
  %v3306 = vpop.trf.xlu0
  %v3307 = vpop.trf.xlu0
  %v3308 = vpop.trf.xlu0
  %v3310 = vsel %vm2517, %v3293, 0
  %v3313 = vsel %vm2517, %v3294, 0
  %3315 = vmatprep.subr.mxu0 0.0
  %3316 = vmatpush1.msra.mxu0 %v1315
  %3317 = vmatprep.subr.mxu0 0.0
  %3318 = vmatpush1.msra.mxu0 %v1316
  %3319 = vmatprep.subr.mxu0 0.0
  %3320 = vmatpush1.msra.mxu0 %v1317
  %3321 = vmatprep.subr.mxu0 0.0
  %3322 = vmatpush1.msra.mxu0 %v1318
  %3323 = vmatprep.subr.mxu0 0.0
  %3324 = vmatpush1.msra.mxu0 %v1319
  %3325 = vmatprep.subr.mxu0 0.0
  %3326 = vmatpush1.msra.mxu0 %v1320
  %3327 = vmatprep.subr.mxu0 0.0
  %3328 = vmatpush1.msra.mxu0 %v1321
  %3329 = vmatprep.subr.mxu0 0.0
  %3330 = vmatpush1.msra.mxu0 %v1322
  %3331 = vmatprep.subr.mxu0 0.0
  %3332 = vmatpush1.msra.mxu0 0.0
  %3333 = vmatprep.subr.mxu0 0.0
  %3334 = vmatpush1.msra.mxu0 0.0
  %3335 = vmatprep.subr.mxu0 0.0
  %3336 = vmatpush1.msra.mxu0 0.0
  %3337 = vmatprep.subr.mxu0 0.0
  %3338 = vmatpush1.msra.mxu0 0.0
  %3339 = vmatprep.subr.mxu0 0.0
  %3340 = vmatpush1.msra.mxu0 0.0
  %3341 = vmatprep.subr.mxu0 0.0
  %3342 = vmatpush1.msra.mxu0 0.0
  %3343 = vmatprep.subr.mxu0 0.0
  %3344 = vmatpush1.msra.mxu0 0.0
  %3345 = vmatprep.subr.mxu0 0.0
  %3346 = vmatpush1.msra.mxu0 0.0
  %3347 = vmatprep.subr.mxu0 0.0
  %3348 = vmatpush1.msra.mxu0 0.0
  %3349 = vmatprep.subr.mxu0 0.0
  %3350 = vmatpush1.msra.mxu0 0.0
  %3351 = vmatprep.subr.mxu0 0.0
  %3352 = vmatpush1.msra.mxu0 0.0
  %3353 = vmatprep.subr.mxu0 0.0
  %3354 = vmatpush1.msra.mxu0 0.0
  %3355 = vmatprep.subr.mxu0 0.0
  %3356 = vmatpush1.msra.mxu0 0.0
  %3357 = vmatprep.subr.mxu0 0.0
  %3358 = vmatpush1.msra.mxu0 0.0
  %3359 = vmatprep.subr.mxu0 0.0
  %3360 = vmatpush1.msra.mxu0 0.0
  %3361 = vmatprep.subr.mxu0 0.0
  %3362 = vmatpush1.msra.mxu0 0.0
  %3363 = vmatprep.subr.mxu0 0.0
  %3364 = vmatpush1.msra.mxu0 0.0
  %3365 = vmatprep.subr.mxu0 0.0
  %3366 = vmatpush1.msra.mxu0 0.0
  %3367 = vmatprep.subr.mxu0 0.0
  %3368 = vmatpush1.msra.mxu0 0.0
  %3369 = vmatprep.subr.mxu0 0.0
  %3370 = vmatpush1.msra.mxu0 0.0
  %3371 = vmatprep.subr.mxu0 0.0
  %3372 = vmatpush1.msra.mxu0 0.0
  %3373 = vmatprep.subr.mxu0 0.0
  %3374 = vmatpush1.msra.mxu0 0.0
  %3375 = vmatprep.subr.mxu0 0.0
  %3376 = vmatpush1.msra.mxu0 0.0
  %3377 = vmatprep.subr.mxu0 0.0
  %3378 = vmatpush1.msra.mxu0 0.0
  %3379 = vmatprep.mubr.f32.mxu0 0.0
  %3380 = vmatmul.mubr.f32.gmra.mrb[0].mxu0 %v3310
  %v3381 = vpop.f32.mrb[0].mxu0
  %v3382 = vadd.f32 0.0, %v3381
  %v3383 = vpop.f32.mrb[0].mxu0
  %3384 = vmatprep.mubr.f32.mxu0 0.0
  %3385 = vmatmul.mubr.f32.gmra.mrb[0].mxu0 %v3313
  %v3386 = vpop.f32.mrb[0].mxu0
  %v3387 = vadd.f32 0.0, %v3386
  %v3388 = vpop.f32.mrb[0].mxu0
  %3389 = vdwg.mxu0
  %3390 = vxpose.xlu0.b32.start [1/16] %v2167, 128
  %3391 = vxpose.xlu0.b32.cont [2/16] %v2172, 128
  %3392 = vxpose.xlu0.b32.cont [3/16] %v2177, 128
  %3393 = vxpose.xlu0.b32.cont [4/16] %v2182, 128
  %3394 = vxpose.xlu0.b32.cont [5/16] %v2187, 128
  %3395 = vxpose.xlu0.b32.cont [6/16] %v2192, 128
  %3396 = vxpose.xlu0.b32.cont [7/16] %v2197, 128
  %3397 = vxpose.xlu0.b32.cont [8/16] %v2202, 128
  %3398 = vxpose.xlu0.b32.cont [9/16] 0.0, 128
  %3399 = vxpose.xlu0.b32.cont [10/16] 0.0, 128
  %3400 = vxpose.xlu0.b32.cont [11/16] 0.0, 128
  %3401 = vxpose.xlu0.b32.cont [12/16] 0.0, 128
  %3402 = vxpose.xlu0.b32.cont [13/16] 0.0, 128
  %3403 = vxpose.xlu0.b32.cont [14/16] 0.0, 128
  %3404 = vxpose.xlu0.b32.cont [15/16] 0.0, 128
  %3405 = vxpose.xlu0.b32.end [16/16] 0.0, 128
  %v3406 = vpop.trf.xlu0
  %v3407 = vpop.trf.xlu0
  %v3408 = vpop.trf.xlu0
  %v3409 = vpop.trf.xlu0
  %v3410 = vpop.trf.xlu0
  %v3411 = vpop.trf.xlu0
  %v3412 = vpop.trf.xlu0
  %v3413 = vpop.trf.xlu0
  %v3414 = vpop.trf.xlu0
  %v3415 = vpop.trf.xlu0
  %v3416 = vpop.trf.xlu0
  %v3417 = vpop.trf.xlu0
  %v3418 = vpop.trf.xlu0
  %v3419 = vpop.trf.xlu0
  %v3420 = vpop.trf.xlu0
  %v3421 = vpop.trf.xlu0
  %v3423 = vsel %vm2517, %v3406, 0
  %v3426 = vsel %vm2517, %v3407, 0
  %3428 = vmatprep.subr.mxu0 0.0
  %3429 = vmatpush1.msra.mxu0 %v1323
  %3430 = vmatprep.subr.mxu0 0.0
  %3431 = vmatpush1.msra.mxu0 %v1324
  %3432 = vmatprep.subr.mxu0 0.0
  %3433 = vmatpush1.msra.mxu0 %v1325
  %3434 = vmatprep.subr.mxu0 0.0
  %3435 = vmatpush1.msra.mxu0 %v1326
  %3436 = vmatprep.subr.mxu0 0.0
  %3437 = vmatpush1.msra.mxu0 %v1327
  %3438 = vmatprep.subr.mxu0 0.0
  %3439 = vmatpush1.msra.mxu0 %v1328
  %3440 = vmatprep.subr.mxu0 0.0
  %3441 = vmatpush1.msra.mxu0 %v1329
  %3442 = vmatprep.subr.mxu0 0.0
  %3443 = vmatpush1.msra.mxu0 %v1330
  %3444 = vmatprep.subr.mxu0 0.0
  %3445 = vmatpush1.msra.mxu0 0.0
  %3446 = vmatprep.subr.mxu0 0.0
  %3447 = vmatpush1.msra.mxu0 0.0
  %3448 = vmatprep.subr.mxu0 0.0
  %3449 = vmatpush1.msra.mxu0 0.0
  %3450 = vmatprep.subr.mxu0 0.0
  %3451 = vmatpush1.msra.mxu0 0.0
  %3452 = vmatprep.subr.mxu0 0.0
  %3453 = vmatpush1.msra.mxu0 0.0
  %3454 = vmatprep.subr.mxu0 0.0
  %3455 = vmatpush1.msra.mxu0 0.0
  %3456 = vmatprep.subr.mxu0 0.0
  %3457 = vmatpush1.msra.mxu0 0.0
  %3458 = vmatprep.subr.mxu0 0.0
  %3459 = vmatpush1.msra.mxu0 0.0
  %3460 = vmatprep.subr.mxu0 0.0
  %3461 = vmatpush1.msra.mxu0 0.0
  %3462 = vmatprep.subr.mxu0 0.0
  %3463 = vmatpush1.msra.mxu0 0.0
  %3464 = vmatprep.subr.mxu0 0.0
  %3465 = vmatpush1.msra.mxu0 0.0
  %3466 = vmatprep.subr.mxu0 0.0
  %3467 = vmatpush1.msra.mxu0 0.0
  %3468 = vmatprep.subr.mxu0 0.0
  %3469 = vmatpush1.msra.mxu0 0.0
  %3470 = vmatprep.subr.mxu0 0.0
  %3471 = vmatpush1.msra.mxu0 0.0
  %3472 = vmatprep.subr.mxu0 0.0
  %3473 = vmatpush1.msra.mxu0 0.0
  %3474 = vmatprep.subr.mxu0 0.0
  %3475 = vmatpush1.msra.mxu0 0.0
  %3476 = vmatprep.subr.mxu0 0.0
  %3477 = vmatpush1.msra.mxu0 0.0
  %3478 = vmatprep.subr.mxu0 0.0
  %3479 = vmatpush1.msra.mxu0 0.0
  %3480 = vmatprep.subr.mxu0 0.0
  %3481 = vmatpush1.msra.mxu0 0.0
  %3482 = vmatprep.subr.mxu0 0.0
  %3483 = vmatpush1.msra.mxu0 0.0
  %3484 = vmatprep.subr.mxu0 0.0
  %3485 = vmatpush1.msra.mxu0 0.0
  %3486 = vmatprep.subr.mxu0 0.0
  %3487 = vmatpush1.msra.mxu0 0.0
  %3488 = vmatprep.subr.mxu0 0.0
  %3489 = vmatpush1.msra.mxu0 0.0
  %3490 = vmatprep.subr.mxu0 0.0
  %3491 = vmatpush1.msra.mxu0 0.0
  %3492 = vmatprep.mubr.f32.mxu0 0.0
  %3493 = vmatmul.mubr.f32.gmra.mrb[0].mxu0 %v3423
  %v3494 = vpop.f32.mrb[0].mxu0
  %v3495 = vadd.f32 0.0, %v3494
  %v3496 = vpop.f32.mrb[0].mxu0
  %3497 = vmatprep.mubr.f32.mxu0 0.0
  %3498 = vmatmul.mubr.f32.gmra.mrb[0].mxu0 %v3426
  %v3499 = vpop.f32.mrb[0].mxu0
  %v3500 = vadd.f32 0.0, %v3499
  %v3501 = vpop.f32.mrb[0].mxu0
  %3502 = vdwg.mxu0
  %3503 = vxpose.xlu0.b32.start [1/16] %v2207, 128
  %3504 = vxpose.xlu0.b32.cont [2/16] %v2212, 128
  %3505 = vxpose.xlu0.b32.cont [3/16] %v2217, 128
  %3506 = vxpose.xlu0.b32.cont [4/16] %v2222, 128
  %3507 = vxpose.xlu0.b32.cont [5/16] %v2227, 128
  %3508 = vxpose.xlu0.b32.cont [6/16] %v2232, 128
  %3509 = vxpose.xlu0.b32.cont [7/16] %v2237, 128
  %3510 = vxpose.xlu0.b32.cont [8/16] %v2242, 128
  %3511 = vxpose.xlu0.b32.cont [9/16] 0.0, 128
  %3512 = vxpose.xlu0.b32.cont [10/16] 0.0, 128
  %3513 = vxpose.xlu0.b32.cont [11/16] 0.0, 128
  %3514 = vxpose.xlu0.b32.cont [12/16] 0.0, 128
  %3515 = vxpose.xlu0.b32.cont [13/16] 0.0, 128
  %3516 = vxpose.xlu0.b32.cont [14/16] 0.0, 128
  %3517 = vxpose.xlu0.b32.cont [15/16] 0.0, 128
  %3518 = vxpose.xlu0.b32.end [16/16] 0.0, 128
  %v3519 = vpop.trf.xlu0
  %v3520 = vpop.trf.xlu0
  %v3521 = vpop.trf.xlu0
  %v3522 = vpop.trf.xlu0
  %v3523 = vpop.trf.xlu0
  %v3524 = vpop.trf.xlu0
  %v3525 = vpop.trf.xlu0
  %v3526 = vpop.trf.xlu0
  %v3527 = vpop.trf.xlu0
  %v3528 = vpop.trf.xlu0
  %v3529 = vpop.trf.xlu0
  %v3530 = vpop.trf.xlu0
  %v3531 = vpop.trf.xlu0
  %v3532 = vpop.trf.xlu0
  %v3533 = vpop.trf.xlu0
  %v3534 = vpop.trf.xlu0
  %v3536 = vsel %vm2517, %v3519, 0
  %v3539 = vsel %vm2517, %v3520, 0
  %3541 = vmatprep.subr.mxu0 0.0
  %3542 = vmatpush1.msra.mxu0 %v1331
  %3543 = vmatprep.subr.mxu0 0.0
  %3544 = vmatpush1.msra.mxu0 %v1332
  %3545 = vmatprep.subr.mxu0 0.0
  %3546 = vmatpush1.msra.mxu0 %v1333
  %3547 = vmatprep.subr.mxu0 0.0
  %3548 = vmatpush1.msra.mxu0 %v1334
  %3549 = vmatprep.subr.mxu0 0.0
  %3550 = vmatpush1.msra.mxu0 %v1335
  %3551 = vmatprep.subr.mxu0 0.0
  %3552 = vmatpush1.msra.mxu0 %v1336
  %3553 = vmatprep.subr.mxu0 0.0
  %3554 = vmatpush1.msra.mxu0 %v1337
  %3555 = vmatprep.subr.mxu0 0.0
  %3556 = vmatpush1.msra.mxu0 %v1338
  %3557 = vmatprep.subr.mxu0 0.0
  %3558 = vmatpush1.msra.mxu0 0.0
  %3559 = vmatprep.subr.mxu0 0.0
  %3560 = vmatpush1.msra.mxu0 0.0
  %3561 = vmatprep.subr.mxu0 0.0
  %3562 = vmatpush1.msra.mxu0 0.0
  %3563 = vmatprep.subr.mxu0 0.0
  %3564 = vmatpush1.msra.mxu0 0.0
  %3565 = vmatprep.subr.mxu0 0.0
  %3566 = vmatpush1.msra.mxu0 0.0
  %3567 = vmatprep.subr.mxu0 0.0
  %3568 = vmatpush1.msra.mxu0 0.0
  %3569 = vmatprep.subr.mxu0 0.0
  %3570 = vmatpush1.msra.mxu0 0.0
  %3571 = vmatprep.subr.mxu0 0.0
  %3572 = vmatpush1.msra.mxu0 0.0
  %3573 = vmatprep.subr.mxu0 0.0
  %3574 = vmatpush1.msra.mxu0 0.0
  %3575 = vmatprep.subr.mxu0 0.0
  %3576 = vmatpush1.msra.mxu0 0.0
  %3577 = vmatprep.subr.mxu0 0.0
  %3578 = vmatpush1.msra.mxu0 0.0
  %3579 = vmatprep.subr.mxu0 0.0
  %3580 = vmatpush1.msra.mxu0 0.0
  %3581 = vmatprep.subr.mxu0 0.0
  %3582 = vmatpush1.msra.mxu0 0.0
  %3583 = vmatprep.subr.mxu0 0.0
  %3584 = vmatpush1.msra.mxu0 0.0
  %3585 = vmatprep.subr.mxu0 0.0
  %3586 = vmatpush1.msra.mxu0 0.0
  %3587 = vmatprep.subr.mxu0 0.0
  %3588 = vmatpush1.msra.mxu0 0.0
  %3589 = vmatprep.subr.mxu0 0.0
  %3590 = vmatpush1.msra.mxu0 0.0
  %3591 = vmatprep.subr.mxu0 0.0
  %3592 = vmatpush1.msra.mxu0 0.0
  %3593 = vmatprep.subr.mxu0 0.0
  %3594 = vmatpush1.msra.mxu0 0.0
  %3595 = vmatprep.subr.mxu0 0.0
  %3596 = vmatpush1.msra.mxu0 0.0
  %3597 = vmatprep.subr.mxu0 0.0
  %3598 = vmatpush1.msra.mxu0 0.0
  %3599 = vmatprep.subr.mxu0 0.0
  %3600 = vmatpush1.msra.mxu0 0.0
  %3601 = vmatprep.subr.mxu0 0.0
  %3602 = vmatpush1.msra.mxu0 0.0
  %3603 = vmatprep.subr.mxu0 0.0
  %3604 = vmatpush1.msra.mxu0 0.0
  %3605 = vmatprep.mubr.f32.mxu0 0.0
  %3606 = vmatmul.mubr.f32.gmra.mrb[0].mxu0 %v3536
  %v3607 = vpop.f32.mrb[0].mxu0
  %v3608 = vadd.f32 0.0, %v3607
  %v3609 = vpop.f32.mrb[0].mxu0
  %3610 = vmatprep.mubr.f32.mxu0 0.0
  %3611 = vmatmul.mubr.f32.gmra.mrb[0].mxu0 %v3539
  %v3612 = vpop.f32.mrb[0].mxu0
  %v3613 = vadd.f32 0.0, %v3612
  %v3614 = vpop.f32.mrb[0].mxu0
  %3615 = vdwg.mxu0
  %3616 = vxpose.xlu0.b32.start [1/16] %v2247, 128
  %3617 = vxpose.xlu0.b32.cont [2/16] %v2252, 128
  %3618 = vxpose.xlu0.b32.cont [3/16] %v2257, 128
  %3619 = vxpose.xlu0.b32.cont [4/16] %v2262, 128
  %3620 = vxpose.xlu0.b32.cont [5/16] %v2267, 128
  %3621 = vxpose.xlu0.b32.cont [6/16] %v2272, 128
  %3622 = vxpose.xlu0.b32.cont [7/16] %v2277, 128
  %3623 = vxpose.xlu0.b32.cont [8/16] %v2282, 128
  %3624 = vxpose.xlu0.b32.cont [9/16] 0.0, 128
  %3625 = vxpose.xlu0.b32.cont [10/16] 0.0, 128
  %3626 = vxpose.xlu0.b32.cont [11/16] 0.0, 128
  %3627 = vxpose.xlu0.b32.cont [12/16] 0.0, 128
  %3628 = vxpose.xlu0.b32.cont [13/16] 0.0, 128
  %3629 = vxpose.xlu0.b32.cont [14/16] 0.0, 128
  %3630 = vxpose.xlu0.b32.cont [15/16] 0.0, 128
  %3631 = vxpose.xlu0.b32.end [16/16] 0.0, 128
  %v3632 = vpop.trf.xlu0
  %v3633 = vpop.trf.xlu0
  %v3634 = vpop.trf.xlu0
  %v3635 = vpop.trf.xlu0
  %v3636 = vpop.trf.xlu0
  %v3637 = vpop.trf.xlu0
  %v3638 = vpop.trf.xlu0
  %v3639 = vpop.trf.xlu0
  %v3640 = vpop.trf.xlu0
  %v3641 = vpop.trf.xlu0
  %v3642 = vpop.trf.xlu0
  %v3643 = vpop.trf.xlu0
  %v3644 = vpop.trf.xlu0
  %v3645 = vpop.trf.xlu0
  %v3646 = vpop.trf.xlu0
  %v3647 = vpop.trf.xlu0
  %v3649 = vsel %vm2517, %v3632, 0
  %v3652 = vsel %vm2517, %v3633, 0
  %3654 = vmatprep.subr.mxu0 0.0
  %3655 = vmatpush1.msra.mxu0 %v1339
  %3656 = vmatprep.subr.mxu0 0.0
  %3657 = vmatpush1.msra.mxu0 %v1340
  %3658 = vmatprep.subr.mxu0 0.0
  %3659 = vmatpush1.msra.mxu0 %v1341
  %3660 = vmatprep.subr.mxu0 0.0
  %3661 = vmatpush1.msra.mxu0 %v1342
  %3662 = vmatprep.subr.mxu0 0.0
  %3663 = vmatpush1.msra.mxu0 %v1343
  %3664 = vmatprep.subr.mxu0 0.0
  %3665 = vmatpush1.msra.mxu0 %v1344
  %3666 = vmatprep.subr.mxu0 0.0
  %3667 = vmatpush1.msra.mxu0 %v1345
  %3668 = vmatprep.subr.mxu0 0.0
  %3669 = vmatpush1.msra.mxu0 %v1346
  %3670 = vmatprep.subr.mxu0 0.0
  %3671 = vmatpush1.msra.mxu0 0.0
  %3672 = vmatprep.subr.mxu0 0.0
  %3673 = vmatpush1.msra.mxu0 0.0
  %3674 = vmatprep.subr.mxu0 0.0
  %3675 = vmatpush1.msra.mxu0 0.0
  %3676 = vmatprep.subr.mxu0 0.0
  %3677 = vmatpush1.msra.mxu0 0.0
  %3678 = vmatprep.subr.mxu0 0.0
  %3679 = vmatpush1.msra.mxu0 0.0
  %3680 = vmatprep.subr.mxu0 0.0
  %3681 = vmatpush1.msra.mxu0 0.0
  %3682 = vmatprep.subr.mxu0 0.0
  %3683 = vmatpush1.msra.mxu0 0.0
  %3684 = vmatprep.subr.mxu0 0.0
  %3685 = vmatpush1.msra.mxu0 0.0
  %3686 = vmatprep.subr.mxu0 0.0
  %3687 = vmatpush1.msra.mxu0 0.0
  %3688 = vmatprep.subr.mxu0 0.0
  %3689 = vmatpush1.msra.mxu0 0.0
  %3690 = vmatprep.subr.mxu0 0.0
  %3691 = vmatpush1.msra.mxu0 0.0
  %3692 = vmatprep.subr.mxu0 0.0
  %3693 = vmatpush1.msra.mxu0 0.0
  %3694 = vmatprep.subr.mxu0 0.0
  %3695 = vmatpush1.msra.mxu0 0.0
  %3696 = vmatprep.subr.mxu0 0.0
  %3697 = vmatpush1.msra.mxu0 0.0
  %3698 = vmatprep.subr.mxu0 0.0
  %3699 = vmatpush1.msra.mxu0 0.0
  %3700 = vmatprep.subr.mxu0 0.0
  %3701 = vmatpush1.msra.mxu0 0.0
  %3702 = vmatprep.subr.mxu0 0.0
  %3703 = vmatpush1.msra.mxu0 0.0
  %3704 = vmatprep.subr.mxu0 0.0
  %3705 = vmatpush1.msra.mxu0 0.0
  %3706 = vmatprep.subr.mxu0 0.0
  %3707 = vmatpush1.msra.mxu0 0.0
  %3708 = vmatprep.subr.mxu0 0.0
  %3709 = vmatpush1.msra.mxu0 0.0
  %3710 = vmatprep.subr.mxu0 0.0
  %3711 = vmatpush1.msra.mxu0 0.0
  %3712 = vmatprep.subr.mxu0 0.0
  %3713 = vmatpush1.msra.mxu0 0.0
  %3714 = vmatprep.subr.mxu0 0.0
  %3715 = vmatpush1.msra.mxu0 0.0
  %3716 = vmatprep.subr.mxu0 0.0
  %3717 = vmatpush1.msra.mxu0 0.0
  %3718 = vmatprep.mubr.f32.mxu0 0.0
  %3719 = vmatmul.mubr.f32.gmra.mrb[0].mxu0 %v3649
  %v3720 = vpop.f32.mrb[0].mxu0
  %v3721 = vadd.f32 0.0, %v3720
  %v3722 = vpop.f32.mrb[0].mxu0
  %3723 = vmatprep.mubr.f32.mxu0 0.0
  %3724 = vmatmul.mubr.f32.gmra.mrb[0].mxu0 %v3652
  %v3725 = vpop.f32.mrb[0].mxu0
  %v3726 = vadd.f32 0.0, %v3725
  %v3727 = vpop.f32.mrb[0].mxu0
  %3728 = vdwg.mxu0
  %3729 = vxpose.xlu0.b32.start [1/16] %v2287, 128
  %3730 = vxpose.xlu0.b32.cont [2/16] %v2292, 128
  %3731 = vxpose.xlu0.b32.cont [3/16] %v2297, 128
  %3732 = vxpose.xlu0.b32.cont [4/16] %v2302, 128
  %3733 = vxpose.xlu0.b32.cont [5/16] %v2307, 128
  %3734 = vxpose.xlu0.b32.cont [6/16] %v2312, 128
  %3735 = vxpose.xlu0.b32.cont [7/16] %v2317, 128
  %3736 = vxpose.xlu0.b32.cont [8/16] %v2322, 128
  %3737 = vxpose.xlu0.b32.cont [9/16] 0.0, 128
  %3738 = vxpose.xlu0.b32.cont [10/16] 0.0, 128
  %3739 = vxpose.xlu0.b32.cont [11/16] 0.0, 128
  %3740 = vxpose.xlu0.b32.cont [12/16] 0.0, 128
  %3741 = vxpose.xlu0.b32.cont [13/16] 0.0, 128
  %3742 = vxpose.xlu0.b32.cont [14/16] 0.0, 128
  %3743 = vxpose.xlu0.b32.cont [15/16] 0.0, 128
  %3744 = vxpose.xlu0.b32.end [16/16] 0.0, 128
  %v3745 = vpop.trf.xlu0
  %v3746 = vpop.trf.xlu0
  %v3747 = vpop.trf.xlu0
  %v3748 = vpop.trf.xlu0
  %v3749 = vpop.trf.xlu0
  %v3750 = vpop.trf.xlu0
  %v3751 = vpop.trf.xlu0
  %v3752 = vpop.trf.xlu0
  %v3753 = vpop.trf.xlu0
  %v3754 = vpop.trf.xlu0
  %v3755 = vpop.trf.xlu0
  %v3756 = vpop.trf.xlu0
  %v3757 = vpop.trf.xlu0
  %v3758 = vpop.trf.xlu0
  %v3759 = vpop.trf.xlu0
  %v3760 = vpop.trf.xlu0
  %v3762 = vsel %vm2517, %v3745, 0
  %v3765 = vsel %vm2517, %v3746, 0
  %3767 = vmatprep.subr.mxu0 0.0
  %3768 = vmatpush1.msra.mxu0 %v1347
  %3769 = vmatprep.subr.mxu0 0.0
  %3770 = vmatpush1.msra.mxu0 %v1348
  %3771 = vmatprep.subr.mxu0 0.0
  %3772 = vmatpush1.msra.mxu0 %v1349
  %3773 = vmatprep.subr.mxu0 0.0
  %3774 = vmatpush1.msra.mxu0 %v1350
  %3775 = vmatprep.subr.mxu0 0.0
  %3776 = vmatpush1.msra.mxu0 %v1351
  %3777 = vmatprep.subr.mxu0 0.0
  %3778 = vmatpush1.msra.mxu0 %v1352
  %3779 = vmatprep.subr.mxu0 0.0
  %3780 = vmatpush1.msra.mxu0 %v1353
  %3781 = vmatprep.subr.mxu0 0.0
  %3782 = vmatpush1.msra.mxu0 %v1354
  %3783 = vmatprep.subr.mxu0 0.0
  %3784 = vmatpush1.msra.mxu0 0.0
  %3785 = vmatprep.subr.mxu0 0.0
  %3786 = vmatpush1.msra.mxu0 0.0
  %3787 = vmatprep.subr.mxu0 0.0
  %3788 = vmatpush1.msra.mxu0 0.0
  %3789 = vmatprep.subr.mxu0 0.0
  %3790 = vmatpush1.msra.mxu0 0.0
  %3791 = vmatprep.subr.mxu0 0.0
  %3792 = vmatpush1.msra.mxu0 0.0
  %3793 = vmatprep.subr.mxu0 0.0
  %3794 = vmatpush1.msra.mxu0 0.0
  %3795 = vmatprep.subr.mxu0 0.0
  %3796 = vmatpush1.msra.mxu0 0.0
  %3797 = vmatprep.subr.mxu0 0.0
  %3798 = vmatpush1.msra.mxu0 0.0
  %3799 = vmatprep.subr.mxu0 0.0
  %3800 = vmatpush1.msra.mxu0 0.0
  %3801 = vmatprep.subr.mxu0 0.0
  %3802 = vmatpush1.msra.mxu0 0.0
  %3803 = vmatprep.subr.mxu0 0.0
  %3804 = vmatpush1.msra.mxu0 0.0
  %3805 = vmatprep.subr.mxu0 0.0
  %3806 = vmatpush1.msra.mxu0 0.0
  %3807 = vmatprep.subr.mxu0 0.0
  %3808 = vmatpush1.msra.mxu0 0.0
  %3809 = vmatprep.subr.mxu0 0.0
  %3810 = vmatpush1.msra.mxu0 0.0
  %3811 = vmatprep.subr.mxu0 0.0
  %3812 = vmatpush1.msra.mxu0 0.0
  %3813 = vmatprep.subr.mxu0 0.0
  %3814 = vmatpush1.msra.mxu0 0.0
  %3815 = vmatprep.subr.mxu0 0.0
  %3816 = vmatpush1.msra.mxu0 0.0
  %3817 = vmatprep.subr.mxu0 0.0
  %3818 = vmatpush1.msra.mxu0 0.0
  %3819 = vmatprep.subr.mxu0 0.0
  %3820 = vmatpush1.msra.mxu0 0.0
  %3821 = vmatprep.subr.mxu0 0.0
  %3822 = vmatpush1.msra.mxu0 0.0
  %3823 = vmatprep.subr.mxu0 0.0
  %3824 = vmatpush1.msra.mxu0 0.0
  %3825 = vmatprep.subr.mxu0 0.0
  %3826 = vmatpush1.msra.mxu0 0.0
  %3827 = vmatprep.subr.mxu0 0.0
  %3828 = vmatpush1.msra.mxu0 0.0
  %3829 = vmatprep.subr.mxu0 0.0
  %3830 = vmatpush1.msra.mxu0 0.0
  %3831 = vmatprep.mubr.f32.mxu0 0.0
  %3832 = vmatmul.mubr.f32.gmra.mrb[0].mxu0 %v3762
  %v3833 = vpop.f32.mrb[0].mxu0
  %v3834 = vadd.f32 0.0, %v3833
  %v3835 = vpop.f32.mrb[0].mxu0
  %3836 = vmatprep.mubr.f32.mxu0 0.0
  %3837 = vmatmul.mubr.f32.gmra.mrb[0].mxu0 %v3765
  %v3838 = vpop.f32.mrb[0].mxu0
  %v3839 = vadd.f32 0.0, %v3838
  %v3840 = vpop.f32.mrb[0].mxu0
  %3841 = vdwg.mxu0
  %3842 = vxpose.xlu0.b32.start [1/16] %v2327, 128
  %3843 = vxpose.xlu0.b32.cont [2/16] %v2332, 128
  %3844 = vxpose.xlu0.b32.cont [3/16] %v2337, 128
  %3845 = vxpose.xlu0.b32.cont [4/16] %v2342, 128
  %3846 = vxpose.xlu0.b32.cont [5/16] %v2347, 128
  %3847 = vxpose.xlu0.b32.cont [6/16] %v2352, 128
  %3848 = vxpose.xlu0.b32.cont [7/16] %v2357, 128
  %3849 = vxpose.xlu0.b32.cont [8/16] %v2362, 128
  %3850 = vxpose.xlu0.b32.cont [9/16] 0.0, 128
  %3851 = vxpose.xlu0.b32.cont [10/16] 0.0, 128
  %3852 = vxpose.xlu0.b32.cont [11/16] 0.0, 128
  %3853 = vxpose.xlu0.b32.cont [12/16] 0.0, 128
  %3854 = vxpose.xlu0.b32.cont [13/16] 0.0, 128
  %3855 = vxpose.xlu0.b32.cont [14/16] 0.0, 128
  %3856 = vxpose.xlu0.b32.cont [15/16] 0.0, 128
  %3857 = vxpose.xlu0.b32.end [16/16] 0.0, 128
  %v3858 = vpop.trf.xlu0
  %v3859 = vpop.trf.xlu0
  %v3860 = vpop.trf.xlu0
  %v3861 = vpop.trf.xlu0
  %v3862 = vpop.trf.xlu0
  %v3863 = vpop.trf.xlu0
  %v3864 = vpop.trf.xlu0
  %v3865 = vpop.trf.xlu0
  %v3866 = vpop.trf.xlu0
  %v3867 = vpop.trf.xlu0
  %v3868 = vpop.trf.xlu0
  %v3869 = vpop.trf.xlu0
  %v3870 = vpop.trf.xlu0
  %v3871 = vpop.trf.xlu0
  %v3872 = vpop.trf.xlu0
  %v3873 = vpop.trf.xlu0
  %v3875 = vsel %vm2517, %v3858, 0
  %v3878 = vsel %vm2517, %v3859, 0
  %3880 = vmatprep.subr.mxu0 0.0
  %3881 = vmatpush1.msra.mxu0 %v1355
  %3882 = vmatprep.subr.mxu0 0.0
  %3883 = vmatpush1.msra.mxu0 %v1356
  %3884 = vmatprep.subr.mxu0 0.0
  %3885 = vmatpush1.msra.mxu0 %v1357
  %3886 = vmatprep.subr.mxu0 0.0
  %3887 = vmatpush1.msra.mxu0 %v1358
  %3888 = vmatprep.subr.mxu0 0.0
  %3889 = vmatpush1.msra.mxu0 %v1359
  %3890 = vmatprep.subr.mxu0 0.0
  %3891 = vmatpush1.msra.mxu0 %v1360
  %3892 = vmatprep.subr.mxu0 0.0
  %3893 = vmatpush1.msra.mxu0 %v1361
  %3894 = vmatprep.subr.mxu0 0.0
  %3895 = vmatpush1.msra.mxu0 %v1362
  %3896 = vmatprep.subr.mxu0 0.0
  %3897 = vmatpush1.msra.mxu0 0.0
  %3898 = vmatprep.subr.mxu0 0.0
  %3899 = vmatpush1.msra.mxu0 0.0
  %3900 = vmatprep.subr.mxu0 0.0
  %3901 = vmatpush1.msra.mxu0 0.0
  %3902 = vmatprep.subr.mxu0 0.0
  %3903 = vmatpush1.msra.mxu0 0.0
  %3904 = vmatprep.subr.mxu0 0.0
  %3905 = vmatpush1.msra.mxu0 0.0
  %3906 = vmatprep.subr.mxu0 0.0
  %3907 = vmatpush1.msra.mxu0 0.0
  %3908 = vmatprep.subr.mxu0 0.0
  %3909 = vmatpush1.msra.mxu0 0.0
  %3910 = vmatprep.subr.mxu0 0.0
  %3911 = vmatpush1.msra.mxu0 0.0
  %3912 = vmatprep.subr.mxu0 0.0
  %3913 = vmatpush1.msra.mxu0 0.0
  %3914 = vmatprep.subr.mxu0 0.0
  %3915 = vmatpush1.msra.mxu0 0.0
  %3916 = vmatprep.subr.mxu0 0.0
  %3917 = vmatpush1.msra.mxu0 0.0
  %3918 = vmatprep.subr.mxu0 0.0
  %3919 = vmatpush1.msra.mxu0 0.0
  %3920 = vmatprep.subr.mxu0 0.0
  %3921 = vmatpush1.msra.mxu0 0.0
  %3922 = vmatprep.subr.mxu0 0.0
  %3923 = vmatpush1.msra.mxu0 0.0
  %3924 = vmatprep.subr.mxu0 0.0
  %3925 = vmatpush1.msra.mxu0 0.0
  %3926 = vmatprep.subr.mxu0 0.0
  %3927 = vmatpush1.msra.mxu0 0.0
  %3928 = vmatprep.subr.mxu0 0.0
  %3929 = vmatpush1.msra.mxu0 0.0
  %3930 = vmatprep.subr.mxu0 0.0
  %3931 = vmatpush1.msra.mxu0 0.0
  %3932 = vmatprep.subr.mxu0 0.0
  %3933 = vmatpush1.msra.mxu0 0.0
  %3934 = vmatprep.subr.mxu0 0.0
  %3935 = vmatpush1.msra.mxu0 0.0
  %3936 = vmatprep.subr.mxu0 0.0
  %3937 = vmatpush1.msra.mxu0 0.0
  %3938 = vmatprep.subr.mxu0 0.0
  %3939 = vmatpush1.msra.mxu0 0.0
  %3940 = vmatprep.subr.mxu0 0.0
  %3941 = vmatpush1.msra.mxu0 0.0
  %3942 = vmatprep.subr.mxu0 0.0
  %3943 = vmatpush1.msra.mxu0 0.0
  %3944 = vmatprep.mubr.f32.mxu0 0.0
  %3945 = vmatmul.mubr.f32.gmra.mrb[0].mxu0 %v3875
  %v3946 = vpop.f32.mrb[0].mxu0
  %v3947 = vadd.f32 0.0, %v3946
  %v3948 = vpop.f32.mrb[0].mxu0
  %3949 = vmatprep.mubr.f32.mxu0 0.0
  %3950 = vmatmul.mubr.f32.gmra.mrb[0].mxu0 %v3878
  %v3951 = vpop.f32.mrb[0].mxu0
  %v3952 = vadd.f32 0.0, %v3951
  %v3953 = vpop.f32.mrb[0].mxu0
  %3954 = vdwg.mxu0
  %3955 = vxpose.xlu0.b32.start [1/16] %v2367, 128
  %3956 = vxpose.xlu0.b32.cont [2/16] %v2372, 128
  %3957 = vxpose.xlu0.b32.cont [3/16] %v2377, 128
  %3958 = vxpose.xlu0.b32.cont [4/16] %v2382, 128
  %3959 = vxpose.xlu0.b32.cont [5/16] %v2387, 128
  %3960 = vxpose.xlu0.b32.cont [6/16] %v2392, 128
  %3961 = vxpose.xlu0.b32.cont [7/16] %v2397, 128
  %3962 = vxpose.xlu0.b32.cont [8/16] %v2402, 128
  %3963 = vxpose.xlu0.b32.cont [9/16] 0.0, 128
  %3964 = vxpose.xlu0.b32.cont [10/16] 0.0, 128
  %3965 = vxpose.xlu0.b32.cont [11/16] 0.0, 128
  %3966 = vxpose.xlu0.b32.cont [12/16] 0.0, 128
  %3967 = vxpose.xlu0.b32.cont [13/16] 0.0, 128
  %3968 = vxpose.xlu0.b32.cont [14/16] 0.0, 128
  %3969 = vxpose.xlu0.b32.cont [15/16] 0.0, 128
  %3970 = vxpose.xlu0.b32.end [16/16] 0.0, 128
  %v3971 = vpop.trf.xlu0
  %v3972 = vpop.trf.xlu0
  %v3973 = vpop.trf.xlu0
  %v3974 = vpop.trf.xlu0
  %v3975 = vpop.trf.xlu0
  %v3976 = vpop.trf.xlu0
  %v3977 = vpop.trf.xlu0
  %v3978 = vpop.trf.xlu0
  %v3979 = vpop.trf.xlu0
  %v3980 = vpop.trf.xlu0
  %v3981 = vpop.trf.xlu0
  %v3982 = vpop.trf.xlu0
  %v3983 = vpop.trf.xlu0
  %v3984 = vpop.trf.xlu0
  %v3985 = vpop.trf.xlu0
  %v3986 = vpop.trf.xlu0
  %v3988 = vsel %vm2517, %v3971, 0
  %v3991 = vsel %vm2517, %v3972, 0
  %3993 = vmatprep.subr.mxu0 0.0
  %3994 = vmatpush1.msra.mxu0 %v1363
  %3995 = vmatprep.subr.mxu0 0.0
  %3996 = vmatpush1.msra.mxu0 %v1364
  %3997 = vmatprep.subr.mxu0 0.0
  %3998 = vmatpush1.msra.mxu0 %v1365
  %3999 = vmatprep.subr.mxu0 0.0
  %4000 = vmatpush1.msra.mxu0 %v1366
  %4001 = vmatprep.subr.mxu0 0.0
  %4002 = vmatpush1.msra.mxu0 %v1367
  %4003 = vmatprep.subr.mxu0 0.0
  %4004 = vmatpush1.msra.mxu0 %v1368
  %4005 = vmatprep.subr.mxu0 0.0
  %4006 = vmatpush1.msra.mxu0 %v1369
  %4007 = vmatprep.subr.mxu0 0.0
  %4008 = vmatpush1.msra.mxu0 %v1370
  %4009 = vmatprep.subr.mxu0 0.0
  %4010 = vmatpush1.msra.mxu0 0.0
  %4011 = vmatprep.subr.mxu0 0.0
  %4012 = vmatpush1.msra.mxu0 0.0
  %4013 = vmatprep.subr.mxu0 0.0
  %4014 = vmatpush1.msra.mxu0 0.0
  %4015 = vmatprep.subr.mxu0 0.0
  %4016 = vmatpush1.msra.mxu0 0.0
  %4017 = vmatprep.subr.mxu0 0.0
  %4018 = vmatpush1.msra.mxu0 0.0
  %4019 = vmatprep.subr.mxu0 0.0
  %4020 = vmatpush1.msra.mxu0 0.0
  %4021 = vmatprep.subr.mxu0 0.0
  %4022 = vmatpush1.msra.mxu0 0.0
  %4023 = vmatprep.subr.mxu0 0.0
  %4024 = vmatpush1.msra.mxu0 0.0
  %4025 = vmatprep.subr.mxu0 0.0
  %4026 = vmatpush1.msra.mxu0 0.0
  %4027 = vmatprep.subr.mxu0 0.0
  %4028 = vmatpush1.msra.mxu0 0.0
  %4029 = vmatprep.subr.mxu0 0.0
  %4030 = vmatpush1.msra.mxu0 0.0
  %4031 = vmatprep.subr.mxu0 0.0
  %4032 = vmatpush1.msra.mxu0 0.0
  %4033 = vmatprep.subr.mxu0 0.0
  %4034 = vmatpush1.msra.mxu0 0.0
  %4035 = vmatprep.subr.mxu0 0.0
  %4036 = vmatpush1.msra.mxu0 0.0
  %4037 = vmatprep.subr.mxu0 0.0
  %4038 = vmatpush1.msra.mxu0 0.0
  %4039 = vmatprep.subr.mxu0 0.0
  %4040 = vmatpush1.msra.mxu0 0.0
  %4041 = vmatprep.subr.mxu0 0.0
  %4042 = vmatpush1.msra.mxu0 0.0
  %4043 = vmatprep.subr.mxu0 0.0
  %4044 = vmatpush1.msra.mxu0 0.0
  %4045 = vmatprep.subr.mxu0 0.0
  %4046 = vmatpush1.msra.mxu0 0.0
  %4047 = vmatprep.subr.mxu0 0.0
  %4048 = vmatpush1.msra.mxu0 0.0
  %4049 = vmatprep.subr.mxu0 0.0
  %4050 = vmatpush1.msra.mxu0 0.0
  %4051 = vmatprep.subr.mxu0 0.0
  %4052 = vmatpush1.msra.mxu0 0.0
  %4053 = vmatprep.subr.mxu0 0.0
  %4054 = vmatpush1.msra.mxu0 0.0
  %4055 = vmatprep.subr.mxu0 0.0
  %4056 = vmatpush1.msra.mxu0 0.0
  %4057 = vmatprep.mubr.f32.mxu0 0.0
  %4058 = vmatmul.mubr.f32.gmra.mrb[0].mxu0 %v3988
  %v4059 = vpop.f32.mrb[0].mxu0
  %v4060 = vadd.f32 0.0, %v4059
  %v4061 = vpop.f32.mrb[0].mxu0
  %4062 = vmatprep.mubr.f32.mxu0 0.0
  %4063 = vmatmul.mubr.f32.gmra.mrb[0].mxu0 %v3991
  %v4064 = vpop.f32.mrb[0].mxu0
  %v4065 = vadd.f32 0.0, %v4064
  %v4066 = vpop.f32.mrb[0].mxu0
  %4067 = vdwg.mxu0
  %4068 = vxpose.xlu0.b32.start [1/16] %v2407, 128
  %4069 = vxpose.xlu0.b32.cont [2/16] %v2412, 128
  %4070 = vxpose.xlu0.b32.cont [3/16] %v2417, 128
  %4071 = vxpose.xlu0.b32.cont [4/16] %v2422, 128
  %4072 = vxpose.xlu0.b32.cont [5/16] %v2427, 128
  %4073 = vxpose.xlu0.b32.cont [6/16] %v2432, 128
  %4074 = vxpose.xlu0.b32.cont [7/16] %v2437, 128
  %4075 = vxpose.xlu0.b32.cont [8/16] %v2442, 128
  %4076 = vxpose.xlu0.b32.cont [9/16] 0.0, 128
  %4077 = vxpose.xlu0.b32.cont [10/16] 0.0, 128
  %4078 = vxpose.xlu0.b32.cont [11/16] 0.0, 128
  %4079 = vxpose.xlu0.b32.cont [12/16] 0.0, 128
  %4080 = vxpose.xlu0.b32.cont [13/16] 0.0, 128
  %4081 = vxpose.xlu0.b32.cont [14/16] 0.0, 128
  %4082 = vxpose.xlu0.b32.cont [15/16] 0.0, 128
  %4083 = vxpose.xlu0.b32.end [16/16] 0.0, 128
  %v4084 = vpop.trf.xlu0
  %v4085 = vpop.trf.xlu0
  %v4086 = vpop.trf.xlu0
  %v4087 = vpop.trf.xlu0
  %v4088 = vpop.trf.xlu0
  %v4089 = vpop.trf.xlu0
  %v4090 = vpop.trf.xlu0
  %v4091 = vpop.trf.xlu0
  %v4092 = vpop.trf.xlu0
  %v4093 = vpop.trf.xlu0
  %v4094 = vpop.trf.xlu0
  %v4095 = vpop.trf.xlu0
  %v4096 = vpop.trf.xlu0
  %v4097 = vpop.trf.xlu0
  %v4098 = vpop.trf.xlu0
  %v4099 = vpop.trf.xlu0
  %v4101 = vsel %vm2517, %v4084, 0
  %v4104 = vsel %vm2517, %v4085, 0
  %4106 = vmatprep.subr.mxu0 0.0
  %4107 = vmatpush1.msra.mxu0 %v1371
  %4108 = vmatprep.subr.mxu0 0.0
  %4109 = vmatpush1.msra.mxu0 %v1372
  %4110 = vmatprep.subr.mxu0 0.0
  %4111 = vmatpush1.msra.mxu0 %v1373
  %4112 = vmatprep.subr.mxu0 0.0
  %4113 = vmatpush1.msra.mxu0 %v1374
  %4114 = vmatprep.subr.mxu0 0.0
  %4115 = vmatpush1.msra.mxu0 %v1375
  %4116 = vmatprep.subr.mxu0 0.0
  %4117 = vmatpush1.msra.mxu0 %v1376
  %4118 = vmatprep.subr.mxu0 0.0
  %4119 = vmatpush1.msra.mxu0 %v1377
  %4120 = vmatprep.subr.mxu0 0.0
  %4121 = vmatpush1.msra.mxu0 %v1378
  %4122 = vmatprep.subr.mxu0 0.0
  %4123 = vmatpush1.msra.mxu0 0.0
  %4124 = vmatprep.subr.mxu0 0.0
  %4125 = vmatpush1.msra.mxu0 0.0
  %4126 = vmatprep.subr.mxu0 0.0
  %4127 = vmatpush1.msra.mxu0 0.0
  %4128 = vmatprep.subr.mxu0 0.0
  %4129 = vmatpush1.msra.mxu0 0.0
  %4130 = vmatprep.subr.mxu0 0.0
  %4131 = vmatpush1.msra.mxu0 0.0
  %4132 = vmatprep.subr.mxu0 0.0
  %4133 = vmatpush1.msra.mxu0 0.0
  %4134 = vmatprep.subr.mxu0 0.0
  %4135 = vmatpush1.msra.mxu0 0.0
  %4136 = vmatprep.subr.mxu0 0.0
  %4137 = vmatpush1.msra.mxu0 0.0
  %4138 = vmatprep.subr.mxu0 0.0
  %4139 = vmatpush1.msra.mxu0 0.0
  %4140 = vmatprep.subr.mxu0 0.0
  %4141 = vmatpush1.msra.mxu0 0.0
  %4142 = vmatprep.subr.mxu0 0.0
  %4143 = vmatpush1.msra.mxu0 0.0
  %4144 = vmatprep.subr.mxu0 0.0
  %4145 = vmatpush1.msra.mxu0 0.0
  %4146 = vmatprep.subr.mxu0 0.0
  %4147 = vmatpush1.msra.mxu0 0.0
  %4148 = vmatprep.subr.mxu0 0.0
  %4149 = vmatpush1.msra.mxu0 0.0
  %4150 = vmatprep.subr.mxu0 0.0
  %4151 = vmatpush1.msra.mxu0 0.0
  %4152 = vmatprep.subr.mxu0 0.0
  %4153 = vmatpush1.msra.mxu0 0.0
  %4154 = vmatprep.subr.mxu0 0.0
  %4155 = vmatpush1.msra.mxu0 0.0
  %4156 = vmatprep.subr.mxu0 0.0
  %4157 = vmatpush1.msra.mxu0 0.0
  %4158 = vmatprep.subr.mxu0 0.0
  %4159 = vmatpush1.msra.mxu0 0.0
  %4160 = vmatprep.subr.mxu0 0.0
  %4161 = vmatpush1.msra.mxu0 0.0
  %4162 = vmatprep.subr.mxu0 0.0
  %4163 = vmatpush1.msra.mxu0 0.0
  %4164 = vmatprep.subr.mxu0 0.0
  %4165 = vmatpush1.msra.mxu0 0.0
  %4166 = vmatprep.subr.mxu0 0.0
  %4167 = vmatpush1.msra.mxu0 0.0
  %4168 = vmatprep.subr.mxu0 0.0
  %4169 = vmatpush1.msra.mxu0 0.0
  %4170 = vmatprep.mubr.f32.mxu0 0.0
  %4171 = vmatmul.mubr.f32.gmra.mrb[0].mxu0 %v4101
  %v4172 = vpop.f32.mrb[0].mxu0
  %v4173 = vadd.f32 0.0, %v4172
  %v4174 = vpop.f32.mrb[0].mxu0
  %4175 = vmatprep.mubr.f32.mxu0 0.0
  %4176 = vmatmul.mubr.f32.gmra.mrb[0].mxu0 %v4104
  %v4177 = vpop.f32.mrb[0].mxu0
  %v4178 = vadd.f32 0.0, %v4177
  %v4179 = vpop.f32.mrb[0].mxu0
  %4180 = vdwg.mxu0
  %4181 = vxpose.xlu0.b32.start [1/16] %v2447, 128
  %4182 = vxpose.xlu0.b32.cont [2/16] %v2452, 128
  %4183 = vxpose.xlu0.b32.cont [3/16] %v2457, 128
  %4184 = vxpose.xlu0.b32.cont [4/16] %v2462, 128
  %4185 = vxpose.xlu0.b32.cont [5/16] %v2467, 128
  %4186 = vxpose.xlu0.b32.cont [6/16] %v2472, 128
  %4187 = vxpose.xlu0.b32.cont [7/16] %v2477, 128
  %4188 = vxpose.xlu0.b32.cont [8/16] %v2482, 128
  %4189 = vxpose.xlu0.b32.cont [9/16] 0.0, 128
  %4190 = vxpose.xlu0.b32.cont [10/16] 0.0, 128
  %4191 = vxpose.xlu0.b32.cont [11/16] 0.0, 128
  %4192 = vxpose.xlu0.b32.cont [12/16] 0.0, 128
  %4193 = vxpose.xlu0.b32.cont [13/16] 0.0, 128
  %4194 = vxpose.xlu0.b32.cont [14/16] 0.0, 128
  %4195 = vxpose.xlu0.b32.cont [15/16] 0.0, 128
  %4196 = vxpose.xlu0.b32.end [16/16] 0.0, 128
  %v4197 = vpop.trf.xlu0
  %v4198 = vpop.trf.xlu0
  %v4199 = vpop.trf.xlu0
  %v4200 = vpop.trf.xlu0
  %v4201 = vpop.trf.xlu0
  %v4202 = vpop.trf.xlu0
  %v4203 = vpop.trf.xlu0
  %v4204 = vpop.trf.xlu0
  %v4205 = vpop.trf.xlu0
  %v4206 = vpop.trf.xlu0
  %v4207 = vpop.trf.xlu0
  %v4208 = vpop.trf.xlu0
  %v4209 = vpop.trf.xlu0
  %v4210 = vpop.trf.xlu0
  %v4211 = vpop.trf.xlu0
  %v4212 = vpop.trf.xlu0
  %v4214 = vsel %vm2517, %v4197, 0
  %v4217 = vsel %vm2517, %v4198, 0
  %4219 = vmatprep.subr.mxu0 0.0
  %4220 = vmatpush1.msra.mxu0 %v1379
  %4221 = vmatprep.subr.mxu0 0.0
  %4222 = vmatpush1.msra.mxu0 %v1380
  %4223 = vmatprep.subr.mxu0 0.0
  %4224 = vmatpush1.msra.mxu0 %v1381
  %4225 = vmatprep.subr.mxu0 0.0
  %4226 = vmatpush1.msra.mxu0 %v1382
  %4227 = vmatprep.subr.mxu0 0.0
  %4228 = vmatpush1.msra.mxu0 %v1383
  %4229 = vmatprep.subr.mxu0 0.0
  %4230 = vmatpush1.msra.mxu0 %v1384
  %4231 = vmatprep.subr.mxu0 0.0
  %4232 = vmatpush1.msra.mxu0 %v1385
  %4233 = vmatprep.subr.mxu0 0.0
  %4234 = vmatpush1.msra.mxu0 %v1386
  %4235 = vmatprep.subr.mxu0 0.0
  %4236 = vmatpush1.msra.mxu0 0.0
  %4237 = vmatprep.subr.mxu0 0.0
  %4238 = vmatpush1.msra.mxu0 0.0
  %4239 = vmatprep.subr.mxu0 0.0
  %4240 = vmatpush1.msra.mxu0 0.0
  %4241 = vmatprep.subr.mxu0 0.0
  %4242 = vmatpush1.msra.mxu0 0.0
  %4243 = vmatprep.subr.mxu0 0.0
  %4244 = vmatpush1.msra.mxu0 0.0
  %4245 = vmatprep.subr.mxu0 0.0
  %4246 = vmatpush1.msra.mxu0 0.0
  %4247 = vmatprep.subr.mxu0 0.0
  %4248 = vmatpush1.msra.mxu0 0.0
  %4249 = vmatprep.subr.mxu0 0.0
  %4250 = vmatpush1.msra.mxu0 0.0
  %4251 = vmatprep.subr.mxu0 0.0
  %4252 = vmatpush1.msra.mxu0 0.0
  %4253 = vmatprep.subr.mxu0 0.0
  %4254 = vmatpush1.msra.mxu0 0.0
  %4255 = vmatprep.subr.mxu0 0.0
  %4256 = vmatpush1.msra.mxu0 0.0
  %4257 = vmatprep.subr.mxu0 0.0
  %4258 = vmatpush1.msra.mxu0 0.0
  %4259 = vmatprep.subr.mxu0 0.0
  %4260 = vmatpush1.msra.mxu0 0.0
  %4261 = vmatprep.subr.mxu0 0.0
  %4262 = vmatpush1.msra.mxu0 0.0
  %4263 = vmatprep.subr.mxu0 0.0
  %4264 = vmatpush1.msra.mxu0 0.0
  %4265 = vmatprep.subr.mxu0 0.0
  %4266 = vmatpush1.msra.mxu0 0.0
  %4267 = vmatprep.subr.mxu0 0.0
  %4268 = vmatpush1.msra.mxu0 0.0
  %4269 = vmatprep.subr.mxu0 0.0
  %4270 = vmatpush1.msra.mxu0 0.0
  %4271 = vmatprep.subr.mxu0 0.0
  %4272 = vmatpush1.msra.mxu0 0.0
  %4273 = vmatprep.subr.mxu0 0.0
  %4274 = vmatpush1.msra.mxu0 0.0
  %4275 = vmatprep.subr.mxu0 0.0
  %4276 = vmatpush1.msra.mxu0 0.0
  %4277 = vmatprep.subr.mxu0 0.0
  %4278 = vmatpush1.msra.mxu0 0.0
  %4279 = vmatprep.subr.mxu0 0.0
  %4280 = vmatpush1.msra.mxu0 0.0
  %4281 = vmatprep.subr.mxu0 0.0
  %4282 = vmatpush1.msra.mxu0 0.0
  %4283 = vmatprep.mubr.f32.mxu0 0.0
  %4284 = vmatmul.mubr.f32.gmra.mrb[0].mxu0 %v4214
  %v4285 = vpop.f32.mrb[0].mxu0
  %v4286 = vadd.f32 0.0, %v4285
  %v4287 = vpop.f32.mrb[0].mxu0
  %4288 = vmatprep.mubr.f32.mxu0 0.0
  %4289 = vmatmul.mubr.f32.gmra.mrb[0].mxu0 %v4217
  %v4290 = vpop.f32.mrb[0].mxu0
  %v4291 = vadd.f32 0.0, %v4290
  %v4292 = vpop.f32.mrb[0].mxu0
  %4293 = vdwg.mxu0
  %4294 = vxpose.xlu0.b32.start [1/16] %v2591, 128
  %4295 = vxpose.xlu0.b32.cont [2/16] %v2596, 128
  %4296 = vxpose.xlu0.b32.cont [3/16] 0.0, 128
  %4297 = vxpose.xlu0.b32.cont [4/16] 0.0, 128
  %4298 = vxpose.xlu0.b32.cont [5/16] 0.0, 128
  %4299 = vxpose.xlu0.b32.cont [6/16] 0.0, 128
  %4300 = vxpose.xlu0.b32.cont [7/16] 0.0, 128
  %4301 = vxpose.xlu0.b32.cont [8/16] 0.0, 128
  %4302 = vxpose.xlu0.b32.cont [9/16] 0.0, 128
  %4303 = vxpose.xlu0.b32.cont [10/16] 0.0, 128
  %4304 = vxpose.xlu0.b32.cont [11/16] 0.0, 128
  %4305 = vxpose.xlu0.b32.cont [12/16] 0.0, 128
  %4306 = vxpose.xlu0.b32.cont [13/16] 0.0, 128
  %4307 = vxpose.xlu0.b32.cont [14/16] 0.0, 128
  %4308 = vxpose.xlu0.b32.cont [15/16] 0.0, 128
  %4309 = vxpose.xlu0.b32.end [16/16] 0.0, 128
  %v4310 = vpop.trf.xlu0
  %v4311 = vpop.trf.xlu0
  %v4312 = vpop.trf.xlu0
  %v4313 = vpop.trf.xlu0
  %v4314 = vpop.trf.xlu0
  %v4315 = vpop.trf.xlu0
  %v4316 = vpop.trf.xlu0
  %v4317 = vpop.trf.xlu0
  %v4318 = vpop.trf.xlu0
  %v4319 = vpop.trf.xlu0
  %v4320 = vpop.trf.xlu0
  %v4321 = vpop.trf.xlu0
  %v4322 = vpop.trf.xlu0
  %v4323 = vpop.trf.xlu0
  %v4324 = vpop.trf.xlu0
  %v4325 = vpop.trf.xlu0
  %4326 = vxpose.xlu0.b32.start [1/16] %v2704, 128
  %4327 = vxpose.xlu0.b32.cont [2/16] %v2709, 128
  %4328 = vxpose.xlu0.b32.cont [3/16] 0.0, 128
  %4329 = vxpose.xlu0.b32.cont [4/16] 0.0, 128
  %4330 = vxpose.xlu0.b32.cont [5/16] 0.0, 128
  %4331 = vxpose.xlu0.b32.cont [6/16] 0.0, 128
  %4332 = vxpose.xlu0.b32.cont [7/16] 0.0, 128
  %4333 = vxpose.xlu0.b32.cont [8/16] 0.0, 128
  %4334 = vxpose.xlu0.b32.cont [9/16] 0.0, 128
  %4335 = vxpose.xlu0.b32.cont [10/16] 0.0, 128
  %4336 = vxpose.xlu0.b32.cont [11/16] 0.0, 128
  %4337 = vxpose.xlu0.b32.cont [12/16] 0.0, 128
  %4338 = vxpose.xlu0.b32.cont [13/16] 0.0, 128
  %4339 = vxpose.xlu0.b32.cont [14/16] 0.0, 128
  %4340 = vxpose.xlu0.b32.cont [15/16] 0.0, 128
  %4341 = vxpose.xlu0.b32.end [16/16] 0.0, 128
  %v4342 = vpop.trf.xlu0
  %v4343 = vpop.trf.xlu0
  %v4344 = vpop.trf.xlu0
  %v4345 = vpop.trf.xlu0
  %v4346 = vpop.trf.xlu0
  %v4347 = vpop.trf.xlu0
  %v4348 = vpop.trf.xlu0
  %v4349 = vpop.trf.xlu0
  %v4350 = vpop.trf.xlu0
  %v4351 = vpop.trf.xlu0
  %v4352 = vpop.trf.xlu0
  %v4353 = vpop.trf.xlu0
  %v4354 = vpop.trf.xlu0
  %v4355 = vpop.trf.xlu0
  %v4356 = vpop.trf.xlu0
  %v4357 = vpop.trf.xlu0
  %4358 = vxpose.xlu0.b32.start [1/16] %v2817, 128
  %4359 = vxpose.xlu0.b32.cont [2/16] %v2822, 128
  %4360 = vxpose.xlu0.b32.cont [3/16] 0.0, 128
  %4361 = vxpose.xlu0.b32.cont [4/16] 0.0, 128
  %4362 = vxpose.xlu0.b32.cont [5/16] 0.0, 128
  %4363 = vxpose.xlu0.b32.cont [6/16] 0.0, 128
  %4364 = vxpose.xlu0.b32.cont [7/16] 0.0, 128
  %4365 = vxpose.xlu0.b32.cont [8/16] 0.0, 128
  %4366 = vxpose.xlu0.b32.cont [9/16] 0.0, 128
  %4367 = vxpose.xlu0.b32.cont [10/16] 0.0, 128
  %4368 = vxpose.xlu0.b32.cont [11/16] 0.0, 128
  %4369 = vxpose.xlu0.b32.cont [12/16] 0.0, 128
  %4370 = vxpose.xlu0.b32.cont [13/16] 0.0, 128
  %4371 = vxpose.xlu0.b32.cont [14/16] 0.0, 128
  %4372 = vxpose.xlu0.b32.cont [15/16] 0.0, 128
  %4373 = vxpose.xlu0.b32.end [16/16] 0.0, 128
  %v4374 = vpop.trf.xlu0
  %v4375 = vpop.trf.xlu0
  %v4376 = vpop.trf.xlu0
  %v4377 = vpop.trf.xlu0
  %v4378 = vpop.trf.xlu0
  %v4379 = vpop.trf.xlu0
  %v4380 = vpop.trf.xlu0
  %v4381 = vpop.trf.xlu0
  %v4382 = vpop.trf.xlu0
  %v4383 = vpop.trf.xlu0
  %v4384 = vpop.trf.xlu0
  %v4385 = vpop.trf.xlu0
  %v4386 = vpop.trf.xlu0
  %v4387 = vpop.trf.xlu0
  %v4388 = vpop.trf.xlu0
  %v4389 = vpop.trf.xlu0
  %4390 = vxpose.xlu0.b32.start [1/16] %v2930, 128
  %4391 = vxpose.xlu0.b32.cont [2/16] %v2935, 128
  %4392 = vxpose.xlu0.b32.cont [3/16] 0.0, 128
  %4393 = vxpose.xlu0.b32.cont [4/16] 0.0, 128
  %4394 = vxpose.xlu0.b32.cont [5/16] 0.0, 128
  %4395 = vxpose.xlu0.b32.cont [6/16] 0.0, 128
  %4396 = vxpose.xlu0.b32.cont [7/16] 0.0, 128
  %4397 = vxpose.xlu0.b32.cont [8/16] 0.0, 128
  %4398 = vxpose.xlu0.b32.cont [9/16] 0.0, 128
  %4399 = vxpose.xlu0.b32.cont [10/16] 0.0, 128
  %4400 = vxpose.xlu0.b32.cont [11/16] 0.0, 128
  %4401 = vxpose.xlu0.b32.cont [12/16] 0.0, 128
  %4402 = vxpose.xlu0.b32.cont [13/16] 0.0, 128
  %4403 = vxpose.xlu0.b32.cont [14/16] 0.0, 128
  %4404 = vxpose.xlu0.b32.cont [15/16] 0.0, 128
  %4405 = vxpose.xlu0.b32.end [16/16] 0.0, 128
  %v4406 = vpop.trf.xlu0
  %v4407 = vpop.trf.xlu0
  %v4408 = vpop.trf.xlu0
  %v4409 = vpop.trf.xlu0
  %v4410 = vpop.trf.xlu0
  %v4411 = vpop.trf.xlu0
  %v4412 = vpop.trf.xlu0
  %v4413 = vpop.trf.xlu0
  %v4414 = vpop.trf.xlu0
  %v4415 = vpop.trf.xlu0
  %v4416 = vpop.trf.xlu0
  %v4417 = vpop.trf.xlu0
  %v4418 = vpop.trf.xlu0
  %v4419 = vpop.trf.xlu0
  %v4420 = vpop.trf.xlu0
  %v4421 = vpop.trf.xlu0
  %4422 = vxpose.xlu0.b32.start [1/16] %v3043, 128
  %4423 = vxpose.xlu0.b32.cont [2/16] %v3048, 128
  %4424 = vxpose.xlu0.b32.cont [3/16] 0.0, 128
  %4425 = vxpose.xlu0.b32.cont [4/16] 0.0, 128
  %4426 = vxpose.xlu0.b32.cont [5/16] 0.0, 128
  %4427 = vxpose.xlu0.b32.cont [6/16] 0.0, 128
  %4428 = vxpose.xlu0.b32.cont [7/16] 0.0, 128
  %4429 = vxpose.xlu0.b32.cont [8/16] 0.0, 128
  %4430 = vxpose.xlu0.b32.cont [9/16] 0.0, 128
  %4431 = vxpose.xlu0.b32.cont [10/16] 0.0, 128
  %4432 = vxpose.xlu0.b32.cont [11/16] 0.0, 128
  %4433 = vxpose.xlu0.b32.cont [12/16] 0.0, 128
  %4434 = vxpose.xlu0.b32.cont [13/16] 0.0, 128
  %4435 = vxpose.xlu0.b32.cont [14/16] 0.0, 128
  %4436 = vxpose.xlu0.b32.cont [15/16] 0.0, 128
  %4437 = vxpose.xlu0.b32.end [16/16] 0.0, 128
  %v4438 = vpop.trf.xlu0
  %v4439 = vpop.trf.xlu0
  %v4440 = vpop.trf.xlu0
  %v4441 = vpop.trf.xlu0
  %v4442 = vpop.trf.xlu0
  %v4443 = vpop.trf.xlu0
  %v4444 = vpop.trf.xlu0
  %v4445 = vpop.trf.xlu0
  %v4446 = vpop.trf.xlu0
  %v4447 = vpop.trf.xlu0
  %v4448 = vpop.trf.xlu0
  %v4449 = vpop.trf.xlu0
  %v4450 = vpop.trf.xlu0
  %v4451 = vpop.trf.xlu0
  %v4452 = vpop.trf.xlu0
  %v4453 = vpop.trf.xlu0
  %4454 = vxpose.xlu0.b32.start [1/16] %v3156, 128
  %4455 = vxpose.xlu0.b32.cont [2/16] %v3161, 128
  %4456 = vxpose.xlu0.b32.cont [3/16] 0.0, 128
  %4457 = vxpose.xlu0.b32.cont [4/16] 0.0, 128
  %4458 = vxpose.xlu0.b32.cont [5/16] 0.0, 128
  %4459 = vxpose.xlu0.b32.cont [6/16] 0.0, 128
  %4460 = vxpose.xlu0.b32.cont [7/16] 0.0, 128
  %4461 = vxpose.xlu0.b32.cont [8/16] 0.0, 128
  %4462 = vxpose.xlu0.b32.cont [9/16] 0.0, 128
  %4463 = vxpose.xlu0.b32.cont [10/16] 0.0, 128
  %4464 = vxpose.xlu0.b32.cont [11/16] 0.0, 128
  %4465 = vxpose.xlu0.b32.cont [12/16] 0.0, 128
  %4466 = vxpose.xlu0.b32.cont [13/16] 0.0, 128
  %4467 = vxpose.xlu0.b32.cont [14/16] 0.0, 128
  %4468 = vxpose.xlu0.b32.cont [15/16] 0.0, 128
  %4469 = vxpose.xlu0.b32.end [16/16] 0.0, 128
  %v4470 = vpop.trf.xlu0
  %v4471 = vpop.trf.xlu0
  %v4472 = vpop.trf.xlu0
  %v4473 = vpop.trf.xlu0
  %v4474 = vpop.trf.xlu0
  %v4475 = vpop.trf.xlu0
  %v4476 = vpop.trf.xlu0
  %v4477 = vpop.trf.xlu0
  %v4478 = vpop.trf.xlu0
  %v4479 = vpop.trf.xlu0
  %v4480 = vpop.trf.xlu0
  %v4481 = vpop.trf.xlu0
  %v4482 = vpop.trf.xlu0
  %v4483 = vpop.trf.xlu0
  %v4484 = vpop.trf.xlu0
  %v4485 = vpop.trf.xlu0
  %4486 = vxpose.xlu0.b32.start [1/16] %v3269, 128
  %4487 = vxpose.xlu0.b32.cont [2/16] %v3274, 128
  %4488 = vxpose.xlu0.b32.cont [3/16] 0.0, 128
  %4489 = vxpose.xlu0.b32.cont [4/16] 0.0, 128
  %4490 = vxpose.xlu0.b32.cont [5/16] 0.0, 128
  %4491 = vxpose.xlu0.b32.cont [6/16] 0.0, 128
  %4492 = vxpose.xlu0.b32.cont [7/16] 0.0, 128
  %4493 = vxpose.xlu0.b32.cont [8/16] 0.0, 128
  %4494 = vxpose.xlu0.b32.cont [9/16] 0.0, 128
  %4495 = vxpose.xlu0.b32.cont [10/16] 0.0, 128
  %4496 = vxpose.xlu0.b32.cont [11/16] 0.0, 128
  %4497 = vxpose.xlu0.b32.cont [12/16] 0.0, 128
  %4498 = vxpose.xlu0.b32.cont [13/16] 0.0, 128
  %4499 = vxpose.xlu0.b32.cont [14/16] 0.0, 128
  %4500 = vxpose.xlu0.b32.cont [15/16] 0.0, 128
  %4501 = vxpose.xlu0.b32.end [16/16] 0.0, 128
  %v4502 = vpop.trf.xlu0
  %v4503 = vpop.trf.xlu0
  %v4504 = vpop.trf.xlu0
  %v4505 = vpop.trf.xlu0
  %v4506 = vpop.trf.xlu0
  %v4507 = vpop.trf.xlu0
  %v4508 = vpop.trf.xlu0
  %v4509 = vpop.trf.xlu0
  %v4510 = vpop.trf.xlu0
  %v4511 = vpop.trf.xlu0
  %v4512 = vpop.trf.xlu0
  %v4513 = vpop.trf.xlu0
  %v4514 = vpop.trf.xlu0
  %v4515 = vpop.trf.xlu0
  %v4516 = vpop.trf.xlu0
  %v4517 = vpop.trf.xlu0
  %4518 = vxpose.xlu0.b32.start [1/16] %v3382, 128
  %4519 = vxpose.xlu0.b32.cont [2/16] %v3387, 128
  %4520 = vxpose.xlu0.b32.cont [3/16] 0.0, 128
  %4521 = vxpose.xlu0.b32.cont [4/16] 0.0, 128
  %4522 = vxpose.xlu0.b32.cont [5/16] 0.0, 128
  %4523 = vxpose.xlu0.b32.cont [6/16] 0.0, 128
  %4524 = vxpose.xlu0.b32.cont [7/16] 0.0, 128
  %4525 = vxpose.xlu0.b32.cont [8/16] 0.0, 128
  %4526 = vxpose.xlu0.b32.cont [9/16] 0.0, 128
  %4527 = vxpose.xlu0.b32.cont [10/16] 0.0, 128
  %4528 = vxpose.xlu0.b32.cont [11/16] 0.0, 128
  %4529 = vxpose.xlu0.b32.cont [12/16] 0.0, 128
  %4530 = vxpose.xlu0.b32.cont [13/16] 0.0, 128
  %4531 = vxpose.xlu0.b32.cont [14/16] 0.0, 128
  %4532 = vxpose.xlu0.b32.cont [15/16] 0.0, 128
  %4533 = vxpose.xlu0.b32.end [16/16] 0.0, 128
  %v4534 = vpop.trf.xlu0
  %v4535 = vpop.trf.xlu0
  %v4536 = vpop.trf.xlu0
  %v4537 = vpop.trf.xlu0
  %v4538 = vpop.trf.xlu0
  %v4539 = vpop.trf.xlu0
  %v4540 = vpop.trf.xlu0
  %v4541 = vpop.trf.xlu0
  %v4542 = vpop.trf.xlu0
  %v4543 = vpop.trf.xlu0
  %v4544 = vpop.trf.xlu0
  %v4545 = vpop.trf.xlu0
  %v4546 = vpop.trf.xlu0
  %v4547 = vpop.trf.xlu0
  %v4548 = vpop.trf.xlu0
  %v4549 = vpop.trf.xlu0
  %4550 = vxpose.xlu0.b32.start [1/16] %v3495, 128
  %4551 = vxpose.xlu0.b32.cont [2/16] %v3500, 128
  %4552 = vxpose.xlu0.b32.cont [3/16] 0.0, 128
  %4553 = vxpose.xlu0.b32.cont [4/16] 0.0, 128
  %4554 = vxpose.xlu0.b32.cont [5/16] 0.0, 128
  %4555 = vxpose.xlu0.b32.cont [6/16] 0.0, 128
  %4556 = vxpose.xlu0.b32.cont [7/16] 0.0, 128
  %4557 = vxpose.xlu0.b32.cont [8/16] 0.0, 128
  %4558 = vxpose.xlu0.b32.cont [9/16] 0.0, 128
  %4559 = vxpose.xlu0.b32.cont [10/16] 0.0, 128
  %4560 = vxpose.xlu0.b32.cont [11/16] 0.0, 128
  %4561 = vxpose.xlu0.b32.cont [12/16] 0.0, 128
  %4562 = vxpose.xlu0.b32.cont [13/16] 0.0, 128
  %4563 = vxpose.xlu0.b32.cont [14/16] 0.0, 128
  %4564 = vxpose.xlu0.b32.cont [15/16] 0.0, 128
  %4565 = vxpose.xlu0.b32.end [16/16] 0.0, 128
  %v4566 = vpop.trf.xlu0
  %v4567 = vpop.trf.xlu0
  %v4568 = vpop.trf.xlu0
  %v4569 = vpop.trf.xlu0
  %v4570 = vpop.trf.xlu0
  %v4571 = vpop.trf.xlu0
  %v4572 = vpop.trf.xlu0
  %v4573 = vpop.trf.xlu0
  %v4574 = vpop.trf.xlu0
  %v4575 = vpop.trf.xlu0
  %v4576 = vpop.trf.xlu0
  %v4577 = vpop.trf.xlu0
  %v4578 = vpop.trf.xlu0
  %v4579 = vpop.trf.xlu0
  %v4580 = vpop.trf.xlu0
  %v4581 = vpop.trf.xlu0
  %4582 = vxpose.xlu0.b32.start [1/16] %v3608, 128
  %4583 = vxpose.xlu0.b32.cont [2/16] %v3613, 128
  %4584 = vxpose.xlu0.b32.cont [3/16] 0.0, 128
  %4585 = vxpose.xlu0.b32.cont [4/16] 0.0, 128
  %4586 = vxpose.xlu0.b32.cont [5/16] 0.0, 128
  %4587 = vxpose.xlu0.b32.cont [6/16] 0.0, 128
  %4588 = vxpose.xlu0.b32.cont [7/16] 0.0, 128
  %4589 = vxpose.xlu0.b32.cont [8/16] 0.0, 128
  %4590 = vxpose.xlu0.b32.cont [9/16] 0.0, 128
  %4591 = vxpose.xlu0.b32.cont [10/16] 0.0, 128
  %4592 = vxpose.xlu0.b32.cont [11/16] 0.0, 128
  %4593 = vxpose.xlu0.b32.cont [12/16] 0.0, 128
  %4594 = vxpose.xlu0.b32.cont [13/16] 0.0, 128
  %4595 = vxpose.xlu0.b32.cont [14/16] 0.0, 128
  %4596 = vxpose.xlu0.b32.cont [15/16] 0.0, 128
  %4597 = vxpose.xlu0.b32.end [16/16] 0.0, 128
  %v4598 = vpop.trf.xlu0
  %v4599 = vpop.trf.xlu0
  %v4600 = vpop.trf.xlu0
  %v4601 = vpop.trf.xlu0
  %v4602 = vpop.trf.xlu0
  %v4603 = vpop.trf.xlu0
  %v4604 = vpop.trf.xlu0
  %v4605 = vpop.trf.xlu0
  %v4606 = vpop.trf.xlu0
  %v4607 = vpop.trf.xlu0
  %v4608 = vpop.trf.xlu0
  %v4609 = vpop.trf.xlu0
  %v4610 = vpop.trf.xlu0
  %v4611 = vpop.trf.xlu0
  %v4612 = vpop.trf.xlu0
  %v4613 = vpop.trf.xlu0
  %4614 = vxpose.xlu0.b32.start [1/16] %v3721, 128
  %4615 = vxpose.xlu0.b32.cont [2/16] %v3726, 128
  %4616 = vxpose.xlu0.b32.cont [3/16] 0.0, 128
  %4617 = vxpose.xlu0.b32.cont [4/16] 0.0, 128
  %4618 = vxpose.xlu0.b32.cont [5/16] 0.0, 128
  %4619 = vxpose.xlu0.b32.cont [6/16] 0.0, 128
  %4620 = vxpose.xlu0.b32.cont [7/16] 0.0, 128
  %4621 = vxpose.xlu0.b32.cont [8/16] 0.0, 128
  %4622 = vxpose.xlu0.b32.cont [9/16] 0.0, 128
  %4623 = vxpose.xlu0.b32.cont [10/16] 0.0, 128
  %4624 = vxpose.xlu0.b32.cont [11/16] 0.0, 128
  %4625 = vxpose.xlu0.b32.cont [12/16] 0.0, 128
  %4626 = vxpose.xlu0.b32.cont [13/16] 0.0, 128
  %4627 = vxpose.xlu0.b32.cont [14/16] 0.0, 128
  %4628 = vxpose.xlu0.b32.cont [15/16] 0.0, 128
  %4629 = vxpose.xlu0.b32.end [16/16] 0.0, 128
  %v4630 = vpop.trf.xlu0
  %v4631 = vpop.trf.xlu0
  %v4632 = vpop.trf.xlu0
  %v4633 = vpop.trf.xlu0
  %v4634 = vpop.trf.xlu0
  %v4635 = vpop.trf.xlu0
  %v4636 = vpop.trf.xlu0
  %v4637 = vpop.trf.xlu0
  %v4638 = vpop.trf.xlu0
  %v4639 = vpop.trf.xlu0
  %v4640 = vpop.trf.xlu0
  %v4641 = vpop.trf.xlu0
  %v4642 = vpop.trf.xlu0
  %v4643 = vpop.trf.xlu0
  %v4644 = vpop.trf.xlu0
  %v4645 = vpop.trf.xlu0
  %4646 = vxpose.xlu0.b32.start [1/16] %v3834, 128
  %4647 = vxpose.xlu0.b32.cont [2/16] %v3839, 128
  %4648 = vxpose.xlu0.b32.cont [3/16] 0.0, 128
  %4649 = vxpose.xlu0.b32.cont [4/16] 0.0, 128
  %4650 = vxpose.xlu0.b32.cont [5/16] 0.0, 128
  %4651 = vxpose.xlu0.b32.cont [6/16] 0.0, 128
  %4652 = vxpose.xlu0.b32.cont [7/16] 0.0, 128
  %4653 = vxpose.xlu0.b32.cont [8/16] 0.0, 128
  %4654 = vxpose.xlu0.b32.cont [9/16] 0.0, 128
  %4655 = vxpose.xlu0.b32.cont [10/16] 0.0, 128
  %4656 = vxpose.xlu0.b32.cont [11/16] 0.0, 128
  %4657 = vxpose.xlu0.b32.cont [12/16] 0.0, 128
  %4658 = vxpose.xlu0.b32.cont [13/16] 0.0, 128
  %4659 = vxpose.xlu0.b32.cont [14/16] 0.0, 128
  %4660 = vxpose.xlu0.b32.cont [15/16] 0.0, 128
  %4661 = vxpose.xlu0.b32.end [16/16] 0.0, 128
  %v4662 = vpop.trf.xlu0
  %v4663 = vpop.trf.xlu0
  %v4664 = vpop.trf.xlu0
  %v4665 = vpop.trf.xlu0
  %v4666 = vpop.trf.xlu0
  %v4667 = vpop.trf.xlu0
  %v4668 = vpop.trf.xlu0
  %v4669 = vpop.trf.xlu0
  %v4670 = vpop.trf.xlu0
  %v4671 = vpop.trf.xlu0
  %v4672 = vpop.trf.xlu0
  %v4673 = vpop.trf.xlu0
  %v4674 = vpop.trf.xlu0
  %v4675 = vpop.trf.xlu0
  %v4676 = vpop.trf.xlu0
  %v4677 = vpop.trf.xlu0
  %4678 = vxpose.xlu0.b32.start [1/16] %v3947, 128
  %4679 = vxpose.xlu0.b32.cont [2/16] %v3952, 128
  %4680 = vxpose.xlu0.b32.cont [3/16] 0.0, 128
  %4681 = vxpose.xlu0.b32.cont [4/16] 0.0, 128
  %4682 = vxpose.xlu0.b32.cont [5/16] 0.0, 128
  %4683 = vxpose.xlu0.b32.cont [6/16] 0.0, 128
  %4684 = vxpose.xlu0.b32.cont [7/16] 0.0, 128
  %4685 = vxpose.xlu0.b32.cont [8/16] 0.0, 128
  %4686 = vxpose.xlu0.b32.cont [9/16] 0.0, 128
  %4687 = vxpose.xlu0.b32.cont [10/16] 0.0, 128
  %4688 = vxpose.xlu0.b32.cont [11/16] 0.0, 128
  %4689 = vxpose.xlu0.b32.cont [12/16] 0.0, 128
  %4690 = vxpose.xlu0.b32.cont [13/16] 0.0, 128
  %4691 = vxpose.xlu0.b32.cont [14/16] 0.0, 128
  %4692 = vxpose.xlu0.b32.cont [15/16] 0.0, 128
  %4693 = vxpose.xlu0.b32.end [16/16] 0.0, 128
  %v4694 = vpop.trf.xlu0
  %v4695 = vpop.trf.xlu0
  %v4696 = vpop.trf.xlu0
  %v4697 = vpop.trf.xlu0
  %v4698 = vpop.trf.xlu0
  %v4699 = vpop.trf.xlu0
  %v4700 = vpop.trf.xlu0
  %v4701 = vpop.trf.xlu0
  %v4702 = vpop.trf.xlu0
  %v4703 = vpop.trf.xlu0
  %v4704 = vpop.trf.xlu0
  %v4705 = vpop.trf.xlu0
  %v4706 = vpop.trf.xlu0
  %v4707 = vpop.trf.xlu0
  %v4708 = vpop.trf.xlu0
  %v4709 = vpop.trf.xlu0
  %4710 = vxpose.xlu0.b32.start [1/16] %v4060, 128
  %4711 = vxpose.xlu0.b32.cont [2/16] %v4065, 128
  %4712 = vxpose.xlu0.b32.cont [3/16] 0.0, 128
  %4713 = vxpose.xlu0.b32.cont [4/16] 0.0, 128
  %4714 = vxpose.xlu0.b32.cont [5/16] 0.0, 128
  %4715 = vxpose.xlu0.b32.cont [6/16] 0.0, 128
  %4716 = vxpose.xlu0.b32.cont [7/16] 0.0, 128
  %4717 = vxpose.xlu0.b32.cont [8/16] 0.0, 128
  %4718 = vxpose.xlu0.b32.cont [9/16] 0.0, 128
  %4719 = vxpose.xlu0.b32.cont [10/16] 0.0, 128
  %4720 = vxpose.xlu0.b32.cont [11/16] 0.0, 128
  %4721 = vxpose.xlu0.b32.cont [12/16] 0.0, 128
  %4722 = vxpose.xlu0.b32.cont [13/16] 0.0, 128
  %4723 = vxpose.xlu0.b32.cont [14/16] 0.0, 128
  %4724 = vxpose.xlu0.b32.cont [15/16] 0.0, 128
  %4725 = vxpose.xlu0.b32.end [16/16] 0.0, 128
  %v4726 = vpop.trf.xlu0
  %v4727 = vpop.trf.xlu0
  %v4728 = vpop.trf.xlu0
  %v4729 = vpop.trf.xlu0
  %v4730 = vpop.trf.xlu0
  %v4731 = vpop.trf.xlu0
  %v4732 = vpop.trf.xlu0
  %v4733 = vpop.trf.xlu0
  %v4734 = vpop.trf.xlu0
  %v4735 = vpop.trf.xlu0
  %v4736 = vpop.trf.xlu0
  %v4737 = vpop.trf.xlu0
  %v4738 = vpop.trf.xlu0
  %v4739 = vpop.trf.xlu0
  %v4740 = vpop.trf.xlu0
  %v4741 = vpop.trf.xlu0
  %4742 = vxpose.xlu0.b32.start [1/16] %v4173, 128
  %4743 = vxpose.xlu0.b32.cont [2/16] %v4178, 128
  %4744 = vxpose.xlu0.b32.cont [3/16] 0.0, 128
  %4745 = vxpose.xlu0.b32.cont [4/16] 0.0, 128
  %4746 = vxpose.xlu0.b32.cont [5/16] 0.0, 128
  %4747 = vxpose.xlu0.b32.cont [6/16] 0.0, 128
  %4748 = vxpose.xlu0.b32.cont [7/16] 0.0, 128
  %4749 = vxpose.xlu0.b32.cont [8/16] 0.0, 128
  %4750 = vxpose.xlu0.b32.cont [9/16] 0.0, 128
  %4751 = vxpose.xlu0.b32.cont [10/16] 0.0, 128
  %4752 = vxpose.xlu0.b32.cont [11/16] 0.0, 128
  %4753 = vxpose.xlu0.b32.cont [12/16] 0.0, 128
  %4754 = vxpose.xlu0.b32.cont [13/16] 0.0, 128
  %4755 = vxpose.xlu0.b32.cont [14/16] 0.0, 128
  %4756 = vxpose.xlu0.b32.cont [15/16] 0.0, 128
  %4757 = vxpose.xlu0.b32.end [16/16] 0.0, 128
  %v4758 = vpop.trf.xlu0
  %v4759 = vpop.trf.xlu0
  %v4760 = vpop.trf.xlu0
  %v4761 = vpop.trf.xlu0
  %v4762 = vpop.trf.xlu0
  %v4763 = vpop.trf.xlu0
  %v4764 = vpop.trf.xlu0
  %v4765 = vpop.trf.xlu0
  %v4766 = vpop.trf.xlu0
  %v4767 = vpop.trf.xlu0
  %v4768 = vpop.trf.xlu0
  %v4769 = vpop.trf.xlu0
  %v4770 = vpop.trf.xlu0
  %v4771 = vpop.trf.xlu0
  %v4772 = vpop.trf.xlu0
  %v4773 = vpop.trf.xlu0
  %4774 = vxpose.xlu0.b32.start [1/16] %v4286, 128
  %4775 = vxpose.xlu0.b32.cont [2/16] %v4291, 128
  %4776 = vxpose.xlu0.b32.cont [3/16] 0.0, 128
  %4777 = vxpose.xlu0.b32.cont [4/16] 0.0, 128
  %4778 = vxpose.xlu0.b32.cont [5/16] 0.0, 128
  %4779 = vxpose.xlu0.b32.cont [6/16] 0.0, 128
  %4780 = vxpose.xlu0.b32.cont [7/16] 0.0, 128
  %4781 = vxpose.xlu0.b32.cont [8/16] 0.0, 128
  %4782 = vxpose.xlu0.b32.cont [9/16] 0.0, 128
  %4783 = vxpose.xlu0.b32.cont [10/16] 0.0, 128
  %4784 = vxpose.xlu0.b32.cont [11/16] 0.0, 128
  %4785 = vxpose.xlu0.b32.cont [12/16] 0.0, 128
  %4786 = vxpose.xlu0.b32.cont [13/16] 0.0, 128
  %4787 = vxpose.xlu0.b32.cont [14/16] 0.0, 128
  %4788 = vxpose.xlu0.b32.cont [15/16] 0.0, 128
  %4789 = vxpose.xlu0.b32.end [16/16] 0.0, 128
  %v4790 = vpop.trf.xlu0
  %v4791 = vpop.trf.xlu0
  %v4792 = vpop.trf.xlu0
  %v4793 = vpop.trf.xlu0
  %v4794 = vpop.trf.xlu0
  %v4795 = vpop.trf.xlu0
  %v4796 = vpop.trf.xlu0
  %v4797 = vpop.trf.xlu0
  %v4798 = vpop.trf.xlu0
  %v4799 = vpop.trf.xlu0
  %v4800 = vpop.trf.xlu0
  %v4801 = vpop.trf.xlu0
  %v4802 = vpop.trf.xlu0
  %v4803 = vpop.trf.xlu0
  %v4804 = vpop.trf.xlu0
  %v4805 = vpop.trf.xlu0
  %v4806 = vcombine.low %v4310, %v4374
  %v4807 = vcombine.high %v4310, %v4374
  %v4809 = vunpack.c.l.s4 1983009808
  %v4810 = vunpack.c.0.s8 %v4809
  %v4811 = vlaneseq
  %v4812 = vshrl.u32 %v4811, 7
  %v4813 = vsub.s32 %v4810, %v4812
  %v4814 = vrot.slane %v4806, %v4813
  %v4816 = vunpack.c.l.s4 1983009808
  %v4817 = vunpack.c.0.s8 %v4816
  %v4818 = vlaneseq
  %v4819 = vshrl.u32 %v4818, 7
  %v4820 = vsub.s32 %v4817, %v4819
  %v4821 = vrot.slane %v4807, %v4820
  %v4822 = vcombine.low %v4342, %v4406
  %v4823 = vcombine.high %v4342, %v4406
  %v4825 = vunpack.c.l.s4 1983009808
  %v4826 = vunpack.c.0.s8 %v4825
  %v4827 = vlaneseq
  %v4828 = vshrl.u32 %v4827, 7
  %v4829 = vsub.s32 %v4826, %v4828
  %v4830 = vrot.slane %v4822, %v4829
  %v4832 = vunpack.c.l.s4 1983009808
  %v4833 = vunpack.c.0.s8 %v4832
  %v4834 = vlaneseq
  %v4835 = vshrl.u32 %v4834, 7
  %v4836 = vsub.s32 %v4833, %v4835
  %v4837 = vrot.slane %v4823, %v4836
  %v4838 = vcombine.low %v4438, %v4502
  %v4839 = vcombine.high %v4438, %v4502
  %v4841 = vunpack.c.l.s4 1983009808
  %v4842 = vunpack.c.0.s8 %v4841
  %v4843 = vlaneseq
  %v4844 = vshrl.u32 %v4843, 7
  %v4845 = vsub.s32 %v4842, %v4844
  %v4846 = vrot.slane %v4838, %v4845
  %v4848 = vunpack.c.l.s4 1983009808
  %v4849 = vunpack.c.0.s8 %v4848
  %v4850 = vlaneseq
  %v4851 = vshrl.u32 %v4850, 7
  %v4852 = vsub.s32 %v4849, %v4851
  %v4853 = vrot.slane %v4839, %v4852
  %v4854 = vcombine.low %v4470, %v4534
  %v4855 = vcombine.high %v4470, %v4534
  %v4857 = vunpack.c.l.s4 1983009808
  %v4858 = vunpack.c.0.s8 %v4857
  %v4859 = vlaneseq
  %v4860 = vshrl.u32 %v4859, 7
  %v4861 = vsub.s32 %v4858, %v4860
  %v4862 = vrot.slane %v4854, %v4861
  %v4864 = vunpack.c.l.s4 1983009808
  %v4865 = vunpack.c.0.s8 %v4864
  %v4866 = vlaneseq
  %v4867 = vshrl.u32 %v4866, 7
  %v4868 = vsub.s32 %v4865, %v4867
  %v4869 = vrot.slane %v4855, %v4868
  %v4870 = vcombine.low %v4814, %v4830
  %v4871 = vcombine.high %v4814, %v4830
  %v4873 = vunpack.c.l.s4 1934713408
  %v4874 = vunpack.c.0.s8 %v4873
  %v4875 = vlaneseq
  %v4876 = vshrl.u32 %v4875, 7
  %v4877 = vsub.s32 %v4874, %v4876
  %v4878 = vrot.slane %v4870, %v4877
  %v4880 = vunpack.c.l.s4 1934713408
  %v4881 = vunpack.c.0.s8 %v4880
  %v4882 = vlaneseq
  %v4883 = vshrl.u32 %v4882, 7
  %v4884 = vsub.s32 %v4881, %v4883
  %v4885 = vrot.slane %v4871, %v4884
  %v4886 = vcombine.low %v4821, %v4837
  %v4887 = vcombine.high %v4821, %v4837
  %v4889 = vunpack.c.l.s4 1934713408
  %v4890 = vunpack.c.0.s8 %v4889
  %v4891 = vlaneseq
  %v4892 = vshrl.u32 %v4891, 7
  %v4893 = vsub.s32 %v4890, %v4892
  %v4894 = vrot.slane %v4886, %v4893
  %v4896 = vunpack.c.l.s4 1934713408
  %v4897 = vunpack.c.0.s8 %v4896
  %v4898 = vlaneseq
  %v4899 = vshrl.u32 %v4898, 7
  %v4900 = vsub.s32 %v4897, %v4899
  %v4901 = vrot.slane %v4887, %v4900
  %v4902 = vcombine.low %v4846, %v4862
  %v4903 = vcombine.high %v4846, %v4862
  %v4905 = vunpack.c.l.s4 1934713408
  %v4906 = vunpack.c.0.s8 %v4905
  %v4907 = vlaneseq
  %v4908 = vshrl.u32 %v4907, 7
  %v4909 = vsub.s32 %v4906, %v4908
  %v4910 = vrot.slane %v4902, %v4909
  %v4912 = vunpack.c.l.s4 1934713408
  %v4913 = vunpack.c.0.s8 %v4912
  %v4914 = vlaneseq
  %v4915 = vshrl.u32 %v4914, 7
  %v4916 = vsub.s32 %v4913, %v4915
  %v4917 = vrot.slane %v4903, %v4916
  %v4918 = vcombine.low %v4853, %v4869
  %v4919 = vcombine.high %v4853, %v4869
  %v4921 = vunpack.c.l.s4 1934713408
  %v4922 = vunpack.c.0.s8 %v4921
  %v4923 = vlaneseq
  %v4924 = vshrl.u32 %v4923, 7
  %v4925 = vsub.s32 %v4922, %v4924
  %v4926 = vrot.slane %v4918, %v4925
  %v4928 = vunpack.c.l.s4 1934713408
  %v4929 = vunpack.c.0.s8 %v4928
  %v4930 = vlaneseq
  %v4931 = vshrl.u32 %v4930, 7
  %v4932 = vsub.s32 %v4929, %v4931
  %v4933 = vrot.slane %v4919, %v4932
  %v4934 = vcombine.low %v4878, %v4910
  %v4935 = vcombine.high %v4878, %v4910
  %v4936 = vcombine.low %v4885, %v4917
  %v4937 = vcombine.high %v4885, %v4917
  %v4938 = vcombine.low %v4894, %v4926
  %v4939 = vcombine.high %v4894, %v4926
  %v4940 = vcombine.low %v4901, %v4933
  %v4941 = vcombine.high %v4901, %v4933
  %v4942 = vcombine.low %v4566, %v4630
  %v4943 = vcombine.high %v4566, %v4630
  %v4945 = vunpack.c.l.s4 1983009808
  %v4946 = vunpack.c.0.s8 %v4945
  %v4947 = vlaneseq
  %v4948 = vshrl.u32 %v4947, 7
  %v4949 = vsub.s32 %v4946, %v4948
  %v4950 = vrot.slane %v4942, %v4949
  %v4952 = vunpack.c.l.s4 1983009808
  %v4953 = vunpack.c.0.s8 %v4952
  %v4954 = vlaneseq
  %v4955 = vshrl.u32 %v4954, 7
  %v4956 = vsub.s32 %v4953, %v4955
  %v4957 = vrot.slane %v4943, %v4956
  %v4958 = vcombine.low %v4598, %v4662
  %v4959 = vcombine.high %v4598, %v4662
  %v4961 = vunpack.c.l.s4 1983009808
  %v4962 = vunpack.c.0.s8 %v4961
  %v4963 = vlaneseq
  %v4964 = vshrl.u32 %v4963, 7
  %v4965 = vsub.s32 %v4962, %v4964
  %v4966 = vrot.slane %v4958, %v4965
  %v4968 = vunpack.c.l.s4 1983009808
  %v4969 = vunpack.c.0.s8 %v4968
  %v4970 = vlaneseq
  %v4971 = vshrl.u32 %v4970, 7
  %v4972 = vsub.s32 %v4969, %v4971
  %v4973 = vrot.slane %v4959, %v4972
  %v4974 = vcombine.low %v4694, %v4758
  %v4975 = vcombine.high %v4694, %v4758
  %v4977 = vunpack.c.l.s4 1983009808
  %v4978 = vunpack.c.0.s8 %v4977
  %v4979 = vlaneseq
  %v4980 = vshrl.u32 %v4979, 7
  %v4981 = vsub.s32 %v4978, %v4980
  %v4982 = vrot.slane %v4974, %v4981
  %v4984 = vunpack.c.l.s4 1983009808
  %v4985 = vunpack.c.0.s8 %v4984
  %v4986 = vlaneseq
  %v4987 = vshrl.u32 %v4986, 7
  %v4988 = vsub.s32 %v4985, %v4987
  %v4989 = vrot.slane %v4975, %v4988
  %v4990 = vcombine.low %v4726, %v4790
  %v4991 = vcombine.high %v4726, %v4790
  %v4993 = vunpack.c.l.s4 1983009808
  %v4994 = vunpack.c.0.s8 %v4993
  %v4995 = vlaneseq
  %v4996 = vshrl.u32 %v4995, 7
  %v4997 = vsub.s32 %v4994, %v4996
  %v4998 = vrot.slane %v4990, %v4997
  %v5000 = vunpack.c.l.s4 1983009808
  %v5001 = vunpack.c.0.s8 %v5000
  %v5002 = vlaneseq
  %v5003 = vshrl.u32 %v5002, 7
  %v5004 = vsub.s32 %v5001, %v5003
  %v5005 = vrot.slane %v4991, %v5004
  %v5006 = vcombine.low %v4950, %v4966
  %v5007 = vcombine.high %v4950, %v4966
  %v5009 = vunpack.c.l.s4 1934713408
  %v5010 = vunpack.c.0.s8 %v5009
  %v5011 = vlaneseq
  %v5012 = vshrl.u32 %v5011, 7
  %v5013 = vsub.s32 %v5010, %v5012
  %v5014 = vrot.slane %v5006, %v5013
  %v5016 = vunpack.c.l.s4 1934713408
  %v5017 = vunpack.c.0.s8 %v5016
  %v5018 = vlaneseq
  %v5019 = vshrl.u32 %v5018, 7
  %v5020 = vsub.s32 %v5017, %v5019
  %v5021 = vrot.slane %v5007, %v5020
  %v5022 = vcombine.low %v4957, %v4973
  %v5023 = vcombine.high %v4957, %v4973
  %v5025 = vunpack.c.l.s4 1934713408
  %v5026 = vunpack.c.0.s8 %v5025
  %v5027 = vlaneseq
  %v5028 = vshrl.u32 %v5027, 7
  %v5029 = vsub.s32 %v5026, %v5028
  %v5030 = vrot.slane %v5022, %v5029
  %v5032 = vunpack.c.l.s4 1934713408
  %v5033 = vunpack.c.0.s8 %v5032
  %v5034 = vlaneseq
  %v5035 = vshrl.u32 %v5034, 7
  %v5036 = vsub.s32 %v5033, %v5035
  %v5037 = vrot.slane %v5023, %v5036
  %v5038 = vcombine.low %v4982, %v4998
  %v5039 = vcombine.high %v4982, %v4998
  %v5041 = vunpack.c.l.s4 1934713408
  %v5042 = vunpack.c.0.s8 %v5041
  %v5043 = vlaneseq
  %v5044 = vshrl.u32 %v5043, 7
  %v5045 = vsub.s32 %v5042, %v5044
  %v5046 = vrot.slane %v5038, %v5045
  %v5048 = vunpack.c.l.s4 1934713408
  %v5049 = vunpack.c.0.s8 %v5048
  %v5050 = vlaneseq
  %v5051 = vshrl.u32 %v5050, 7
  %v5052 = vsub.s32 %v5049, %v5051
  %v5053 = vrot.slane %v5039, %v5052
  %v5054 = vcombine.low %v4989, %v5005
  %v5055 = vcombine.high %v4989, %v5005
  %v5057 = vunpack.c.l.s4 1934713408
  %v5058 = vunpack.c.0.s8 %v5057
  %v5059 = vlaneseq
  %v5060 = vshrl.u32 %v5059, 7
  %v5061 = vsub.s32 %v5058, %v5060
  %v5062 = vrot.slane %v5054, %v5061
  %v5064 = vunpack.c.l.s4 1934713408
  %v5065 = vunpack.c.0.s8 %v5064
  %v5066 = vlaneseq
  %v5067 = vshrl.u32 %v5066, 7
  %v5068 = vsub.s32 %v5065, %v5067
  %v5069 = vrot.slane %v5055, %v5068
  %v5070 = vcombine.low %v5014, %v5046
  %v5071 = vcombine.high %v5014, %v5046
  %v5072 = vcombine.low %v5021, %v5053
  %v5073 = vcombine.high %v5021, %v5053
  %v5074 = vcombine.low %v5030, %v5062
  %v5075 = vcombine.high %v5030, %v5062
  %v5076 = vcombine.low %v5037, %v5069
  %v5077 = vcombine.high %v5037, %v5069
  %vm5078 = vcmask 130048
  %5079 = vst.msk [vmem:[%s8] sm:$0xff] %vm5078, %v4934
  %5080 = vst.msk [vmem:[%s8 + $0x8] sm:$0xff] %vm5078, %v5070
  %5081 = vst.msk [vmem:[%s8 + $0x10] sm:$0xff] %vm5078, %v4935
  %5082 = vst.msk [vmem:[%s8 + $0x18] sm:$0xff] %vm5078, %v5071
  %5083 = vst.msk [vmem:[%s8 + $0x20] sm:$0xff] %vm5078, %v4936
  %5084 = vst.msk [vmem:[%s8 + $0x28] sm:$0xff] %vm5078, %v5072
  %5085 = vst.msk [vmem:[%s8 + $0x30] sm:$0xff] %vm5078, %v4937
  %5086 = vst.msk [vmem:[%s8 + $0x38] sm:$0xff] %vm5078, %v5073
  %5087 = vst.msk [vmem:[%s8 + $0x40] sm:$0xff] %vm5078, %v4938
  %5088 = vst.msk [vmem:[%s8 + $0x48] sm:$0xff] %vm5078, %v5074
  %5089 = vst.msk [vmem:[%s8 + $0x50] sm:$0xff] %vm5078, %v4939
  %5090 = vst.msk [vmem:[%s8 + $0x58] sm:$0xff] %vm5078, %v5075
  %5091 = vst.msk [vmem:[%s8 + $0x60] sm:$0xff] %vm5078, %v4940
  %5092 = vst.msk [vmem:[%s8 + $0x68] sm:$0xff] %vm5078, %v5076
  %5093 = vst.msk [vmem:[%s8 + $0x70] sm:$0xff] %vm5078, %v4941
  %5094 = vst.msk [vmem:[%s8 + $0x78] sm:$0xff] %vm5078, %v5077
  %v5095 = vsel %vm2517, %v2501, -inf
  %5096 = vmax.xlane.f32.xlu0 %v5095
  %v5097 = vpop.xlane.xlu0 %5096
  %v5098 = vsel %vm2517, %v2502, -inf
  %5099 = vmax.xlane.f32.xlu0 %v5098
  %v5100 = vpop.xlane.xlu0 %5099
  %v5101 = vsel %vm2517, %v2615, -inf
  %5102 = vmax.xlane.f32.xlu0 %v5101
  %v5103 = vpop.xlane.xlu0 %5102
  %v5104 = vsel %vm2517, %v2616, -inf
  %5105 = vmax.xlane.f32.xlu0 %v5104
  %v5106 = vpop.xlane.xlu0 %5105
  %v5107 = vsel %vm2517, %v2728, -inf
  %5108 = vmax.xlane.f32.xlu0 %v5107
  %v5109 = vpop.xlane.xlu0 %5108
  %v5110 = vsel %vm2517, %v2729, -inf
  %5111 = vmax.xlane.f32.xlu0 %v5110
  %v5112 = vpop.xlane.xlu0 %5111
  %v5113 = vsel %vm2517, %v2841, -inf
  %5114 = vmax.xlane.f32.xlu0 %v5113
  %v5115 = vpop.xlane.xlu0 %5114
  %v5116 = vsel %vm2517, %v2842, -inf
  %5117 = vmax.xlane.f32.xlu0 %v5116
  %v5118 = vpop.xlane.xlu0 %5117
  %v5119 = vsel %vm2517, %v2954, -inf
  %5120 = vmax.xlane.f32.xlu0 %v5119
  %v5121 = vpop.xlane.xlu0 %5120
  %v5122 = vsel %vm2517, %v2955, -inf
  %5123 = vmax.xlane.f32.xlu0 %v5122
  %v5124 = vpop.xlane.xlu0 %5123
  %v5125 = vsel %vm2517, %v3067, -inf
  %5126 = vmax.xlane.f32.xlu0 %v5125
  %v5127 = vpop.xlane.xlu0 %5126
  %v5128 = vsel %vm2517, %v3068, -inf
  %5129 = vmax.xlane.f32.xlu0 %v5128
  %v5130 = vpop.xlane.xlu0 %5129
  %v5131 = vsel %vm2517, %v3180, -inf
  %5132 = vmax.xlane.f32.xlu0 %v5131
  %v5133 = vpop.xlane.xlu0 %5132
  %v5134 = vsel %vm2517, %v3181, -inf
  %5135 = vmax.xlane.f32.xlu0 %v5134
  %v5136 = vpop.xlane.xlu0 %5135
  %v5137 = vsel %vm2517, %v3293, -inf
  %5138 = vmax.xlane.f32.xlu0 %v5137
  %v5139 = vpop.xlane.xlu0 %5138
  %v5140 = vsel %vm2517, %v3294, -inf
  %5141 = vmax.xlane.f32.xlu0 %v5140
  %v5142 = vpop.xlane.xlu0 %5141
  %v5143 = vsel %vm2517, %v3406, -inf
  %5144 = vmax.xlane.f32.xlu0 %v5143
  %v5145 = vpop.xlane.xlu0 %5144
  %v5146 = vsel %vm2517, %v3407, -inf
  %5147 = vmax.xlane.f32.xlu0 %v5146
  %v5148 = vpop.xlane.xlu0 %5147
  %v5149 = vsel %vm2517, %v3519, -inf
  %5150 = vmax.xlane.f32.xlu0 %v5149
  %v5151 = vpop.xlane.xlu0 %5150
  %v5152 = vsel %vm2517, %v3520, -inf
  %5153 = vmax.xlane.f32.xlu0 %v5152
  %v5154 = vpop.xlane.xlu0 %5153
  %v5155 = vsel %vm2517, %v3632, -inf
  %5156 = vmax.xlane.f32.xlu0 %v5155
  %v5157 = vpop.xlane.xlu0 %5156
  %v5158 = vsel %vm2517, %v3633, -inf
  %5159 = vmax.xlane.f32.xlu0 %v5158
  %v5160 = vpop.xlane.xlu0 %5159
  %v5161 = vsel %vm2517, %v3745, -inf
  %5162 = vmax.xlane.f32.xlu0 %v5161
  %v5163 = vpop.xlane.xlu0 %5162
  %v5164 = vsel %vm2517, %v3746, -inf
  %5165 = vmax.xlane.f32.xlu0 %v5164
  %v5166 = vpop.xlane.xlu0 %5165
  %v5167 = vsel %vm2517, %v3858, -inf
  %5168 = vmax.xlane.f32.xlu0 %v5167
  %v5169 = vpop.xlane.xlu0 %5168
  %v5170 = vsel %vm2517, %v3859, -inf
  %5171 = vmax.xlane.f32.xlu0 %v5170
  %v5172 = vpop.xlane.xlu0 %5171
  %v5173 = vsel %vm2517, %v3971, -inf
  %5174 = vmax.xlane.f32.xlu0 %v5173
  %v5175 = vpop.xlane.xlu0 %5174
  %v5176 = vsel %vm2517, %v3972, -inf
  %5177 = vmax.xlane.f32.xlu0 %v5176
  %v5178 = vpop.xlane.xlu0 %5177
  %v5179 = vsel %vm2517, %v4084, -inf
  %5180 = vmax.xlane.f32.xlu0 %v5179
  %v5181 = vpop.xlane.xlu0 %5180
  %v5182 = vsel %vm2517, %v4085, -inf
  %5183 = vmax.xlane.f32.xlu0 %v5182
  %v5184 = vpop.xlane.xlu0 %5183
  %v5185 = vsel %vm2517, %v4197, -inf
  %5186 = vmax.xlane.f32.xlu0 %v5185
  %v5187 = vpop.xlane.xlu0 %5186
  %v5188 = vsel %vm2517, %v4198, -inf
  %5189 = vmax.xlane.f32.xlu0 %v5188
  %v5190 = vpop.xlane.xlu0 %5189
  %v5191 = vsub.f32 %v2501, %v5097
  %v5192 = vsub.f32 %v2502, %v5100
  %v5193 = vsub.f32 %v2615, %v5103
  %v5194 = vsub.f32 %v2616, %v5106
  %v5195 = vsub.f32 %v2728, %v5109
  %v5196 = vsub.f32 %v2729, %v5112
  %v5197 = vsub.f32 %v2841, %v5115
  %v5198 = vsub.f32 %v2842, %v5118
  %v5199 = vsub.f32 %v2954, %v5121
  %v5200 = vsub.f32 %v2955, %v5124
  %v5201 = vsub.f32 %v3067, %v5127
  %v5202 = vsub.f32 %v3068, %v5130
  %v5203 = vsub.f32 %v3180, %v5133
  %v5204 = vsub.f32 %v3181, %v5136
  %v5205 = vsub.f32 %v3293, %v5139
  %v5206 = vsub.f32 %v3294, %v5142
  %v5207 = vsub.f32 %v3406, %v5145
  %v5208 = vsub.f32 %v3407, %v5148
  %v5209 = vsub.f32 %v3519, %v5151
  %v5210 = vsub.f32 %v3520, %v5154
  %v5211 = vsub.f32 %v3632, %v5157
  %v5212 = vsub.f32 %v3633, %v5160
  %v5213 = vsub.f32 %v3745, %v5163
  %v5214 = vsub.f32 %v3746, %v5166
  %v5215 = vsub.f32 %v3858, %v5169
  %v5216 = vsub.f32 %v3859, %v5172
  %v5217 = vsub.f32 %v3971, %v5175
  %v5218 = vsub.f32 %v3972, %v5178
  %v5219 = vsub.f32 %v4084, %v5181
  %v5220 = vsub.f32 %v4085, %v5184
  %v5221 = vsub.f32 %v4197, %v5187
  %v5222 = vsub.f32 %v4198, %v5190
  %v5223 = vmul.f32 %v5191, 1.442695
  %v5224 = vpow.pop %v5223
  %v5225 = vmul.f32 %v5192, 1.442695
  %v5226 = vpow.pop %v5225
  %v5227 = vmul.f32 %v5193, 1.442695
  %v5228 = vpow.pop %v5227
  %v5229 = vmul.f32 %v5194, 1.442695
  %v5230 = vpow.pop %v5229
  %v5231 = vmul.f32 %v5195, 1.442695
  %v5232 = vpow.pop %v5231
  %v5233 = vmul.f32 %v5196, 1.442695
  %v5234 = vpow.pop %v5233
  %v5235 = vmul.f32 %v5197, 1.442695
  %v5236 = vpow.pop %v5235
  %v5237 = vmul.f32 %v5198, 1.442695
  %v5238 = vpow.pop %v5237
  %v5239 = vmul.f32 %v5199, 1.442695
  %v5240 = vpow.pop %v5239
  %v5241 = vmul.f32 %v5200, 1.442695
  %v5242 = vpow.pop %v5241
  %v5243 = vmul.f32 %v5201, 1.442695
  %v5244 = vpow.pop %v5243
  %v5245 = vmul.f32 %v5202, 1.442695
  %v5246 = vpow.pop %v5245
  %v5247 = vmul.f32 %v5203, 1.442695
  %v5248 = vpow.pop %v5247
  %v5249 = vmul.f32 %v5204, 1.442695
  %v5250 = vpow.pop %v5249
  %v5251 = vmul.f32 %v5205, 1.442695
  %v5252 = vpow.pop %v5251
  %v5253 = vmul.f32 %v5206, 1.442695
  %v5254 = vpow.pop %v5253
  %v5255 = vmul.f32 %v5207, 1.442695
  %v5256 = vpow.pop %v5255
  %v5257 = vmul.f32 %v5208, 1.442695
  %v5258 = vpow.pop %v5257
  %v5259 = vmul.f32 %v5209, 1.442695
  %v5260 = vpow.pop %v5259
  %v5261 = vmul.f32 %v5210, 1.442695
  %v5262 = vpow.pop %v5261
  %v5263 = vmul.f32 %v5211, 1.442695
  %v5264 = vpow.pop %v5263
  %v5265 = vmul.f32 %v5212, 1.442695
  %v5266 = vpow.pop %v5265
  %v5267 = vmul.f32 %v5213, 1.442695
  %v5268 = vpow.pop %v5267
  %v5269 = vmul.f32 %v5214, 1.442695
  %v5270 = vpow.pop %v5269
  %v5271 = vmul.f32 %v5215, 1.442695
  %v5272 = vpow.pop %v5271
  %v5273 = vmul.f32 %v5216, 1.442695
  %v5274 = vpow.pop %v5273
  %v5275 = vmul.f32 %v5217, 1.442695
  %v5276 = vpow.pop %v5275
  %v5277 = vmul.f32 %v5218, 1.442695
  %v5278 = vpow.pop %v5277
  %v5279 = vmul.f32 %v5219, 1.442695
  %v5280 = vpow.pop %v5279
  %v5281 = vmul.f32 %v5220, 1.442695
  %v5282 = vpow.pop %v5281
  %v5283 = vmul.f32 %v5221, 1.442695
  %v5284 = vpow.pop %v5283
  %v5285 = vmul.f32 %v5222, 1.442695
  %v5286 = vpow.pop %v5285
  %v5287 = vsel %vm2517, %v5224, 0.0
  %5288 = vadd.xlane.f32.xlu0 %v5287
  %v5289 = vpop.xlane.xlu0 %5288
  %v5290 = vsel %vm2517, %v5226, 0.0
  %5291 = vadd.xlane.f32.xlu0 %v5290
  %v5292 = vpop.xlane.xlu0 %5291
  %v5293 = vsel %vm2517, %v5228, 0.0
  %5294 = vadd.xlane.f32.xlu0 %v5293
  %v5295 = vpop.xlane.xlu0 %5294
  %v5296 = vsel %vm2517, %v5230, 0.0
  %5297 = vadd.xlane.f32.xlu0 %v5296
  %v5298 = vpop.xlane.xlu0 %5297
  %v5299 = vsel %vm2517, %v5232, 0.0
  %5300 = vadd.xlane.f32.xlu0 %v5299
  %v5301 = vpop.xlane.xlu0 %5300
  %v5302 = vsel %vm2517, %v5234, 0.0
  %5303 = vadd.xlane.f32.xlu0 %v5302
  %v5304 = vpop.xlane.xlu0 %5303
  %v5305 = vsel %vm2517, %v5236, 0.0
  %5306 = vadd.xlane.f32.xlu0 %v5305
  %v5307 = vpop.xlane.xlu0 %5306
  %v5308 = vsel %vm2517, %v5238, 0.0
  %5309 = vadd.xlane.f32.xlu0 %v5308
  %v5310 = vpop.xlane.xlu0 %5309
  %v5311 = vsel %vm2517, %v5240, 0.0
  %5312 = vadd.xlane.f32.xlu0 %v5311
  %v5313 = vpop.xlane.xlu0 %5312
  %v5314 = vsel %vm2517, %v5242, 0.0
  %5315 = vadd.xlane.f32.xlu0 %v5314
  %v5316 = vpop.xlane.xlu0 %5315
  %v5317 = vsel %vm2517, %v5244, 0.0
  %5318 = vadd.xlane.f32.xlu0 %v5317
  %v5319 = vpop.xlane.xlu0 %5318
  %v5320 = vsel %vm2517, %v5246, 0.0
  %5321 = vadd.xlane.f32.xlu0 %v5320
  %v5322 = vpop.xlane.xlu0 %5321
  %v5323 = vsel %vm2517, %v5248, 0.0
  %5324 = vadd.xlane.f32.xlu0 %v5323
  %v5325 = vpop.xlane.xlu0 %5324
  %v5326 = vsel %vm2517, %v5250, 0.0
  %5327 = vadd.xlane.f32.xlu0 %v5326
  %v5328 = vpop.xlane.xlu0 %5327
  %v5329 = vsel %vm2517, %v5252, 0.0
  %5330 = vadd.xlane.f32.xlu0 %v5329
  %v5331 = vpop.xlane.xlu0 %5330
  %v5332 = vsel %vm2517, %v5254, 0.0
  %5333 = vadd.xlane.f32.xlu0 %v5332
  %v5334 = vpop.xlane.xlu0 %5333
  %v5335 = vsel %vm2517, %v5256, 0.0
  %5336 = vadd.xlane.f32.xlu0 %v5335
  %v5337 = vpop.xlane.xlu0 %5336
  %v5338 = vsel %vm2517, %v5258, 0.0
  %5339 = vadd.xlane.f32.xlu0 %v5338
  %v5340 = vpop.xlane.xlu0 %5339
  %v5341 = vsel %vm2517, %v5260, 0.0
  %5342 = vadd.xlane.f32.xlu0 %v5341
  %v5343 = vpop.xlane.xlu0 %5342
  %v5344 = vsel %vm2517, %v5262, 0.0
  %5345 = vadd.xlane.f32.xlu0 %v5344
  %v5346 = vpop.xlane.xlu0 %5345
  %v5347 = vsel %vm2517, %v5264, 0.0
  %5348 = vadd.xlane.f32.xlu0 %v5347
  %v5349 = vpop.xlane.xlu0 %5348
  %v5350 = vsel %vm2517, %v5266, 0.0
  %5351 = vadd.xlane.f32.xlu0 %v5350
  %v5352 = vpop.xlane.xlu0 %5351
  %v5353 = vsel %vm2517, %v5268, 0.0
  %5354 = vadd.xlane.f32.xlu0 %v5353
  %v5355 = vpop.xlane.xlu0 %5354
  %v5356 = vsel %vm2517, %v5270, 0.0
  %5357 = vadd.xlane.f32.xlu0 %v5356
  %v5358 = vpop.xlane.xlu0 %5357
  %v5359 = vsel %vm2517, %v5272, 0.0
  %5360 = vadd.xlane.f32.xlu0 %v5359
  %v5361 = vpop.xlane.xlu0 %5360
  %v5362 = vsel %vm2517, %v5274, 0.0
  %5363 = vadd.xlane.f32.xlu0 %v5362
  %v5364 = vpop.xlane.xlu0 %5363
  %v5365 = vsel %vm2517, %v5276, 0.0
  %5366 = vadd.xlane.f32.xlu0 %v5365
  %v5367 = vpop.xlane.xlu0 %5366
  %v5368 = vsel %vm2517, %v5278, 0.0
  %5369 = vadd.xlane.f32.xlu0 %v5368
  %v5370 = vpop.xlane.xlu0 %5369
  %v5371 = vsel %vm2517, %v5280, 0.0
  %5372 = vadd.xlane.f32.xlu0 %v5371
  %v5373 = vpop.xlane.xlu0 %5372
  %v5374 = vsel %vm2517, %v5282, 0.0
  %5375 = vadd.xlane.f32.xlu0 %v5374
  %v5376 = vpop.xlane.xlu0 %5375
  %v5377 = vsel %vm2517, %v5284, 0.0
  %5378 = vadd.xlane.f32.xlu0 %v5377
  %v5379 = vpop.xlane.xlu0 %5378
  %v5380 = vsel %vm2517, %v5286, 0.0
  %5381 = vadd.xlane.f32.xlu0 %v5380
  %v5382 = vpop.xlane.xlu0 %5381
  %v5383 = vrcp.pop %v5289
  %v5384 = vmul.f32 %v5224, %v5383
  %v5385 = vrcp.pop %v5292
  %v5386 = vmul.f32 %v5226, %v5385
  %v5387 = vrcp.pop %v5295
  %v5388 = vmul.f32 %v5228, %v5387
  %v5389 = vrcp.pop %v5298
  %v5390 = vmul.f32 %v5230, %v5389
  %v5391 = vrcp.pop %v5301
  %v5392 = vmul.f32 %v5232, %v5391
  %v5393 = vrcp.pop %v5304
  %v5394 = vmul.f32 %v5234, %v5393
  %v5395 = vrcp.pop %v5307
  %v5396 = vmul.f32 %v5236, %v5395
  %v5397 = vrcp.pop %v5310
  %v5398 = vmul.f32 %v5238, %v5397
  %v5399 = vrcp.pop %v5313
  %v5400 = vmul.f32 %v5240, %v5399
  %v5401 = vrcp.pop %v5316
  %v5402 = vmul.f32 %v5242, %v5401
  %v5403 = vrcp.pop %v5319
  %v5404 = vmul.f32 %v5244, %v5403
  %v5405 = vrcp.pop %v5322
  %v5406 = vmul.f32 %v5246, %v5405
  %v5407 = vrcp.pop %v5325
  %v5408 = vmul.f32 %v5248, %v5407
  %v5409 = vrcp.pop %v5328
  %v5410 = vmul.f32 %v5250, %v5409
  %v5411 = vrcp.pop %v5331
  %v5412 = vmul.f32 %v5252, %v5411
  %v5413 = vrcp.pop %v5334
  %v5414 = vmul.f32 %v5254, %v5413
  %v5415 = vrcp.pop %v5337
  %v5416 = vmul.f32 %v5256, %v5415
  %v5417 = vrcp.pop %v5340
  %v5418 = vmul.f32 %v5258, %v5417
  %v5419 = vrcp.pop %v5343
  %v5420 = vmul.f32 %v5260, %v5419
  %v5421 = vrcp.pop %v5346
  %v5422 = vmul.f32 %v5262, %v5421
  %v5423 = vrcp.pop %v5349
  %v5424 = vmul.f32 %v5264, %v5423
  %v5425 = vrcp.pop %v5352
  %v5426 = vmul.f32 %v5266, %v5425
  %v5427 = vrcp.pop %v5355
  %v5428 = vmul.f32 %v5268, %v5427
  %v5429 = vrcp.pop %v5358
  %v5430 = vmul.f32 %v5270, %v5429
  %v5431 = vrcp.pop %v5361
  %v5432 = vmul.f32 %v5272, %v5431
  %v5433 = vrcp.pop %v5364
  %v5434 = vmul.f32 %v5274, %v5433
  %v5435 = vrcp.pop %v5367
  %v5436 = vmul.f32 %v5276, %v5435
  %v5437 = vrcp.pop %v5370
  %v5438 = vmul.f32 %v5278, %v5437
  %v5439 = vrcp.pop %v5373
  %v5440 = vmul.f32 %v5280, %v5439
  %v5441 = vrcp.pop %v5376
  %v5442 = vmul.f32 %v5282, %v5441
  %v5443 = vrcp.pop %v5379
  %v5444 = vmul.f32 %v5284, %v5443
  %v5445 = vrcp.pop %v5382
  %v5446 = vmul.f32 %v5286, %v5445
  %v5447 = vld [vmem:[%s5] sm:$0x1]
  %v5448 = vld [vmem:[%s6] sm:$0x1]
  %v5450 = vlaneseq
  %v5451 = vshrl.u32 %v5450, 7
  %v5452 = vsub.s32 0, %v5451
  %v5453 = vrot.slane %v5447, %v5452
  %v5455 = vmul.f32 %v5384, %v5453
  %v5456 = vmul.f32 %v5386, %v5453
  %v5457 = vmul.f32 %v5388, %v5453
  %v5458 = vmul.f32 %v5390, %v5453
  %v5459 = vmul.f32 %v5392, %v5453
  %v5460 = vmul.f32 %v5394, %v5453
  %v5461 = vmul.f32 %v5396, %v5453
  %v5462 = vmul.f32 %v5398, %v5453
  %v5463 = vmul.f32 %v5400, %v5453
  %v5464 = vmul.f32 %v5402, %v5453
  %v5465 = vmul.f32 %v5404, %v5453
  %v5466 = vmul.f32 %v5406, %v5453
  %v5467 = vmul.f32 %v5408, %v5453
  %v5468 = vmul.f32 %v5410, %v5453
  %v5469 = vmul.f32 %v5412, %v5453
  %v5470 = vmul.f32 %v5414, %v5453
  %v5471 = vmul.f32 %v5416, %v5453
  %v5472 = vmul.f32 %v5418, %v5453
  %v5473 = vmul.f32 %v5420, %v5453
  %v5474 = vmul.f32 %v5422, %v5453
  %v5475 = vmul.f32 %v5424, %v5453
  %v5476 = vmul.f32 %v5426, %v5453
  %v5477 = vmul.f32 %v5428, %v5453
  %v5478 = vmul.f32 %v5430, %v5453
  %v5479 = vmul.f32 %v5432, %v5453
  %v5480 = vmul.f32 %v5434, %v5453
  %v5481 = vmul.f32 %v5436, %v5453
  %v5482 = vmul.f32 %v5438, %v5453
  %v5483 = vmul.f32 %v5440, %v5453
  %v5484 = vmul.f32 %v5442, %v5453
  %v5485 = vmul.f32 %v5444, %v5453
  %v5486 = vmul.f32 %v5446, %v5453
  %v5487 = vsel %vm2517, %v5455, 0.0
  %5488 = vadd.xlane.f32.xlu0 %v5487
  %v5489 = vpop.xlane.xlu0 %5488
  %v5490 = vsel %vm2517, %v5456, 0.0
  %5491 = vadd.xlane.f32.xlu0 %v5490
  %v5492 = vpop.xlane.xlu0 %5491
  %v5493 = vsel %vm2517, %v5457, 0.0
  %5494 = vadd.xlane.f32.xlu0 %v5493
  %v5495 = vpop.xlane.xlu0 %5494
  %v5496 = vsel %vm2517, %v5458, 0.0
  %5497 = vadd.xlane.f32.xlu0 %v5496
  %v5498 = vpop.xlane.xlu0 %5497
  %v5499 = vsel %vm2517, %v5459, 0.0
  %5500 = vadd.xlane.f32.xlu0 %v5499
  %v5501 = vpop.xlane.xlu0 %5500
  %v5502 = vsel %vm2517, %v5460, 0.0
  %5503 = vadd.xlane.f32.xlu0 %v5502
  %v5504 = vpop.xlane.xlu0 %5503
  %v5505 = vsel %vm2517, %v5461, 0.0
  %5506 = vadd.xlane.f32.xlu0 %v5505
  %v5507 = vpop.xlane.xlu0 %5506
  %v5508 = vsel %vm2517, %v5462, 0.0
  %5509 = vadd.xlane.f32.xlu0 %v5508
  %v5510 = vpop.xlane.xlu0 %5509
  %v5511 = vsel %vm2517, %v5463, 0.0
  %5512 = vadd.xlane.f32.xlu0 %v5511
  %v5513 = vpop.xlane.xlu0 %5512
  %v5514 = vsel %vm2517, %v5464, 0.0
  %5515 = vadd.xlane.f32.xlu0 %v5514
  %v5516 = vpop.xlane.xlu0 %5515
  %v5517 = vsel %vm2517, %v5465, 0.0
  %5518 = vadd.xlane.f32.xlu0 %v5517
  %v5519 = vpop.xlane.xlu0 %5518
  %v5520 = vsel %vm2517, %v5466, 0.0
  %5521 = vadd.xlane.f32.xlu0 %v5520
  %v5522 = vpop.xlane.xlu0 %5521
  %v5523 = vsel %vm2517, %v5467, 0.0
  %5524 = vadd.xlane.f32.xlu0 %v5523
  %v5525 = vpop.xlane.xlu0 %5524
  %v5526 = vsel %vm2517, %v5468, 0.0
  %5527 = vadd.xlane.f32.xlu0 %v5526
  %v5528 = vpop.xlane.xlu0 %5527
  %v5529 = vsel %vm2517, %v5469, 0.0
  %5530 = vadd.xlane.f32.xlu0 %v5529
  %v5531 = vpop.xlane.xlu0 %5530
  %v5532 = vsel %vm2517, %v5470, 0.0
  %5533 = vadd.xlane.f32.xlu0 %v5532
  %v5534 = vpop.xlane.xlu0 %5533
  %v5535 = vsel %vm2517, %v5471, 0.0
  %5536 = vadd.xlane.f32.xlu0 %v5535
  %v5537 = vpop.xlane.xlu0 %5536
  %v5538 = vsel %vm2517, %v5472, 0.0
  %5539 = vadd.xlane.f32.xlu0 %v5538
  %v5540 = vpop.xlane.xlu0 %5539
  %v5541 = vsel %vm2517, %v5473, 0.0
  %5542 = vadd.xlane.f32.xlu0 %v5541
  %v5543 = vpop.xlane.xlu0 %5542
  %v5544 = vsel %vm2517, %v5474, 0.0
  %5545 = vadd.xlane.f32.xlu0 %v5544
  %v5546 = vpop.xlane.xlu0 %5545
  %v5547 = vsel %vm2517, %v5475, 0.0
  %5548 = vadd.xlane.f32.xlu0 %v5547
  %v5549 = vpop.xlane.xlu0 %5548
  %v5550 = vsel %vm2517, %v5476, 0.0
  %5551 = vadd.xlane.f32.xlu0 %v5550
  %v5552 = vpop.xlane.xlu0 %5551
  %v5553 = vsel %vm2517, %v5477, 0.0
  %5554 = vadd.xlane.f32.xlu0 %v5553
  %v5555 = vpop.xlane.xlu0 %5554
  %v5556 = vsel %vm2517, %v5478, 0.0
  %5557 = vadd.xlane.f32.xlu0 %v5556
  %v5558 = vpop.xlane.xlu0 %5557
  %v5559 = vsel %vm2517, %v5479, 0.0
  %5560 = vadd.xlane.f32.xlu0 %v5559
  %v5561 = vpop.xlane.xlu0 %5560
  %v5562 = vsel %vm2517, %v5480, 0.0
  %5563 = vadd.xlane.f32.xlu0 %v5562
  %v5564 = vpop.xlane.xlu0 %5563
  %v5565 = vsel %vm2517, %v5481, 0.0
  %5566 = vadd.xlane.f32.xlu0 %v5565
  %v5567 = vpop.xlane.xlu0 %5566
  %v5568 = vsel %vm2517, %v5482, 0.0
  %5569 = vadd.xlane.f32.xlu0 %v5568
  %v5570 = vpop.xlane.xlu0 %5569
  %v5571 = vsel %vm2517, %v5483, 0.0
  %5572 = vadd.xlane.f32.xlu0 %v5571
  %v5573 = vpop.xlane.xlu0 %5572
  %v5574 = vsel %vm2517, %v5484, 0.0
  %5575 = vadd.xlane.f32.xlu0 %v5574
  %v5576 = vpop.xlane.xlu0 %5575
  %v5577 = vsel %vm2517, %v5485, 0.0
  %5578 = vadd.xlane.f32.xlu0 %v5577
  %v5579 = vpop.xlane.xlu0 %5578
  %v5580 = vsel %vm2517, %v5486, 0.0
  %5581 = vadd.xlane.f32.xlu0 %v5580
  %v5582 = vpop.xlane.xlu0 %5581
  %v5615 = vlaneseq
  %v5616 = vand.u32 %v5615, 127
  %v5617 = vlaneseq
  %v5618 = vshrl.u32 %v5617, 7
  %v5619 = vsub.s32 %v5616, %v5618
  %v5620 = vrot.slane %v5489, %v5619
  %v5621 = vadd.s32 %v5616, 4294967288
  %v5622 = vlaneseq
  %v5623 = vshrl.u32 %v5622, 7
  %v5624 = vsub.s32 %v5621, %v5623
  %v5625 = vrot.slane %v5492, %v5624
  %vm5626 = vcmask 130112
  %v5627 = vsel %vm5626, %v5625, %v5620
  %v5628 = vlaneseq
  %v5629 = vshrl.u32 %v5628, 7
  %v5630 = vsub.s32 %v5616, %v5629
  %v5631 = vrot.slane %v5495, %v5630
  %v5632 = vlaneseq
  %v5633 = vshrl.u32 %v5632, 7
  %v5634 = vsub.s32 %v5621, %v5633
  %v5635 = vrot.slane %v5498, %v5634
  %v5636 = vsel %vm5626, %v5635, %v5631
  %v5637 = vlaneseq
  %v5638 = vshrl.u32 %v5637, 7
  %v5639 = vsub.s32 %v5616, %v5638
  %v5640 = vrot.slane %v5501, %v5639
  %v5641 = vlaneseq
  %v5642 = vshrl.u32 %v5641, 7
  %v5643 = vsub.s32 %v5621, %v5642
  %v5644 = vrot.slane %v5504, %v5643
  %v5645 = vsel %vm5626, %v5644, %v5640
  %v5646 = vlaneseq
  %v5647 = vshrl.u32 %v5646, 7
  %v5648 = vsub.s32 %v5616, %v5647
  %v5649 = vrot.slane %v5507, %v5648
  %v5650 = vlaneseq
  %v5651 = vshrl.u32 %v5650, 7
  %v5652 = vsub.s32 %v5621, %v5651
  %v5653 = vrot.slane %v5510, %v5652
  %v5654 = vsel %vm5626, %v5653, %v5649
  %v5655 = vlaneseq
  %v5656 = vshrl.u32 %v5655, 7
  %v5657 = vsub.s32 %v5616, %v5656
  %v5658 = vrot.slane %v5513, %v5657
  %v5659 = vlaneseq
  %v5660 = vshrl.u32 %v5659, 7
  %v5661 = vsub.s32 %v5621, %v5660
  %v5662 = vrot.slane %v5516, %v5661
  %v5663 = vsel %vm5626, %v5662, %v5658
  %v5664 = vlaneseq
  %v5665 = vshrl.u32 %v5664, 7
  %v5666 = vsub.s32 %v5616, %v5665
  %v5667 = vrot.slane %v5519, %v5666
  %v5668 = vlaneseq
  %v5669 = vshrl.u32 %v5668, 7
  %v5670 = vsub.s32 %v5621, %v5669
  %v5671 = vrot.slane %v5522, %v5670
  %v5672 = vsel %vm5626, %v5671, %v5667
  %v5673 = vlaneseq
  %v5674 = vshrl.u32 %v5673, 7
  %v5675 = vsub.s32 %v5616, %v5674
  %v5676 = vrot.slane %v5525, %v5675
  %v5677 = vlaneseq
  %v5678 = vshrl.u32 %v5677, 7
  %v5679 = vsub.s32 %v5621, %v5678
  %v5680 = vrot.slane %v5528, %v5679
  %v5681 = vsel %vm5626, %v5680, %v5676
  %v5682 = vlaneseq
  %v5683 = vshrl.u32 %v5682, 7
  %v5684 = vsub.s32 %v5616, %v5683
  %v5685 = vrot.slane %v5531, %v5684
  %v5686 = vlaneseq
  %v5687 = vshrl.u32 %v5686, 7
  %v5688 = vsub.s32 %v5621, %v5687
  %v5689 = vrot.slane %v5534, %v5688
  %v5690 = vsel %vm5626, %v5689, %v5685
  %v5691 = vlaneseq
  %v5692 = vshrl.u32 %v5691, 7
  %v5693 = vsub.s32 %v5616, %v5692
  %v5694 = vrot.slane %v5537, %v5693
  %v5695 = vlaneseq
  %v5696 = vshrl.u32 %v5695, 7
  %v5697 = vsub.s32 %v5621, %v5696
  %v5698 = vrot.slane %v5540, %v5697
  %v5699 = vsel %vm5626, %v5698, %v5694
  %v5700 = vlaneseq
  %v5701 = vshrl.u32 %v5700, 7
  %v5702 = vsub.s32 %v5616, %v5701
  %v5703 = vrot.slane %v5543, %v5702
  %v5704 = vlaneseq
  %v5705 = vshrl.u32 %v5704, 7
  %v5706 = vsub.s32 %v5621, %v5705
  %v5707 = vrot.slane %v5546, %v5706
  %v5708 = vsel %vm5626, %v5707, %v5703
  %v5709 = vlaneseq
  %v5710 = vshrl.u32 %v5709, 7
  %v5711 = vsub.s32 %v5616, %v5710
  %v5712 = vrot.slane %v5549, %v5711
  %v5713 = vlaneseq
  %v5714 = vshrl.u32 %v5713, 7
  %v5715 = vsub.s32 %v5621, %v5714
  %v5716 = vrot.slane %v5552, %v5715
  %v5717 = vsel %vm5626, %v5716, %v5712
  %v5718 = vlaneseq
  %v5719 = vshrl.u32 %v5718, 7
  %v5720 = vsub.s32 %v5616, %v5719
  %v5721 = vrot.slane %v5555, %v5720
  %v5722 = vlaneseq
  %v5723 = vshrl.u32 %v5722, 7
  %v5724 = vsub.s32 %v5621, %v5723
  %v5725 = vrot.slane %v5558, %v5724
  %v5726 = vsel %vm5626, %v5725, %v5721
  %v5727 = vlaneseq
  %v5728 = vshrl.u32 %v5727, 7
  %v5729 = vsub.s32 %v5616, %v5728
  %v5730 = vrot.slane %v5561, %v5729
  %v5731 = vlaneseq
  %v5732 = vshrl.u32 %v5731, 7
  %v5733 = vsub.s32 %v5621, %v5732
  %v5734 = vrot.slane %v5564, %v5733
  %v5735 = vsel %vm5626, %v5734, %v5730
  %v5736 = vlaneseq
  %v5737 = vshrl.u32 %v5736, 7
  %v5738 = vsub.s32 %v5616, %v5737
  %v5739 = vrot.slane %v5567, %v5738
  %v5740 = vlaneseq
  %v5741 = vshrl.u32 %v5740, 7
  %v5742 = vsub.s32 %v5621, %v5741
  %v5743 = vrot.slane %v5570, %v5742
  %v5744 = vsel %vm5626, %v5743, %v5739
  %v5745 = vlaneseq
  %v5746 = vshrl.u32 %v5745, 7
  %v5747 = vsub.s32 %v5616, %v5746
  %v5748 = vrot.slane %v5573, %v5747
  %v5749 = vlaneseq
  %v5750 = vshrl.u32 %v5749, 7
  %v5751 = vsub.s32 %v5621, %v5750
  %v5752 = vrot.slane %v5576, %v5751
  %v5753 = vsel %vm5626, %v5752, %v5748
  %v5754 = vlaneseq
  %v5755 = vshrl.u32 %v5754, 7
  %v5756 = vsub.s32 %v5616, %v5755
  %v5757 = vrot.slane %v5579, %v5756
  %v5758 = vlaneseq
  %v5759 = vshrl.u32 %v5758, 7
  %v5760 = vsub.s32 %v5621, %v5759
  %v5761 = vrot.slane %v5582, %v5760
  %v5762 = vsel %vm5626, %v5761, %v5757
  %vm5763 = vcmask 1041409
  %v5764 = vsel %vm5763, %v5636, %v5627
  %vm5765 = vcmask 1042434
  %v5766 = vsel %vm5765, %v5645, %v5764
  %vm5767 = vcmask 1043459
  %v5768 = vsel %vm5767, %v5654, %v5766
  %vm5769 = vcmask 1044484
  %v5770 = vsel %vm5769, %v5663, %v5768
  %vm5771 = vcmask 1045509
  %v5772 = vsel %vm5771, %v5672, %v5770
  %vm5773 = vcmask 1046534
  %v5774 = vsel %vm5773, %v5681, %v5772
  %vm5775 = vcmask 1047559
  %v5776 = vsel %vm5775, %v5690, %v5774
  %v5777 = vsel %vm5763, %v5708, %v5699
  %v5778 = vsel %vm5765, %v5717, %v5777
  %v5779 = vsel %vm5767, %v5726, %v5778
  %v5780 = vsel %vm5769, %v5735, %v5779
  %v5781 = vsel %vm5771, %v5744, %v5780
  %v5782 = vsel %vm5773, %v5753, %v5781
  %v5783 = vsel %vm5775, %v5762, %v5782
  %5786 = vst.msk [vmem:[%s7] sm:$0xff] %vm5078, %v5776
  %5787 = vst.msk [vmem:[%s7 + $0x8] sm:$0xff] %vm5078, %v5783
  %v5789 = vlaneseq
  %v5790 = vshrl.u32 %v5789, 7
  %v5791 = vsub.s32 0, %v5790
  %v5792 = vrot.slane %v5448, %v5791
  %v5794 = vmul.f32 %v5384, %v5792
  %v5795 = vmul.f32 %v5386, %v5792
  %v5796 = vmul.f32 %v5388, %v5792
  %v5797 = vmul.f32 %v5390, %v5792
  %v5798 = vmul.f32 %v5392, %v5792
  %v5799 = vmul.f32 %v5394, %v5792
  %v5800 = vmul.f32 %v5396, %v5792
  %v5801 = vmul.f32 %v5398, %v5792
  %v5802 = vmul.f32 %v5400, %v5792
  %v5803 = vmul.f32 %v5402, %v5792
  %v5804 = vmul.f32 %v5404, %v5792
  %v5805 = vmul.f32 %v5406, %v5792
  %v5806 = vmul.f32 %v5408, %v5792
  %v5807 = vmul.f32 %v5410, %v5792
  %v5808 = vmul.f32 %v5412, %v5792
  %v5809 = vmul.f32 %v5414, %v5792
  %v5810 = vmul.f32 %v5416, %v5792
  %v5811 = vmul.f32 %v5418, %v5792
  %v5812 = vmul.f32 %v5420, %v5792
  %v5813 = vmul.f32 %v5422, %v5792
  %v5814 = vmul.f32 %v5424, %v5792
  %v5815 = vmul.f32 %v5426, %v5792
  %v5816 = vmul.f32 %v5428, %v5792
  %v5817 = vmul.f32 %v5430, %v5792
  %v5818 = vmul.f32 %v5432, %v5792
  %v5819 = vmul.f32 %v5434, %v5792
  %v5820 = vmul.f32 %v5436, %v5792
  %v5821 = vmul.f32 %v5438, %v5792
  %v5822 = vmul.f32 %v5440, %v5792
  %v5823 = vmul.f32 %v5442, %v5792
  %v5824 = vmul.f32 %v5444, %v5792
  %v5825 = vmul.f32 %v5446, %v5792
  %v5826 = vsel %vm2517, %v5794, 0.0
  %5827 = vadd.xlane.f32.xlu0 %v5826
  %v5828 = vpop.xlane.xlu0 %5827
  %v5829 = vsel %vm2517, %v5795, 0.0
  %5830 = vadd.xlane.f32.xlu0 %v5829
  %v5831 = vpop.xlane.xlu0 %5830
  %v5832 = vsel %vm2517, %v5796, 0.0
  %5833 = vadd.xlane.f32.xlu0 %v5832
  %v5834 = vpop.xlane.xlu0 %5833
  %v5835 = vsel %vm2517, %v5797, 0.0
  %5836 = vadd.xlane.f32.xlu0 %v5835
  %v5837 = vpop.xlane.xlu0 %5836
  %v5838 = vsel %vm2517, %v5798, 0.0
  %5839 = vadd.xlane.f32.xlu0 %v5838
  %v5840 = vpop.xlane.xlu0 %5839
  %v5841 = vsel %vm2517, %v5799, 0.0
  %5842 = vadd.xlane.f32.xlu0 %v5841
  %v5843 = vpop.xlane.xlu0 %5842
  %v5844 = vsel %vm2517, %v5800, 0.0
  %5845 = vadd.xlane.f32.xlu0 %v5844
  %v5846 = vpop.xlane.xlu0 %5845
  %v5847 = vsel %vm2517, %v5801, 0.0
  %5848 = vadd.xlane.f32.xlu0 %v5847
  %v5849 = vpop.xlane.xlu0 %5848
  %v5850 = vsel %vm2517, %v5802, 0.0
  %5851 = vadd.xlane.f32.xlu0 %v5850
  %v5852 = vpop.xlane.xlu0 %5851
  %v5853 = vsel %vm2517, %v5803, 0.0
  %5854 = vadd.xlane.f32.xlu0 %v5853
  %v5855 = vpop.xlane.xlu0 %5854
  %v5856 = vsel %vm2517, %v5804, 0.0
  %5857 = vadd.xlane.f32.xlu0 %v5856
  %v5858 = vpop.xlane.xlu0 %5857
  %v5859 = vsel %vm2517, %v5805, 0.0
  %5860 = vadd.xlane.f32.xlu0 %v5859
  %v5861 = vpop.xlane.xlu0 %5860
  %v5862 = vsel %vm2517, %v5806, 0.0
  %5863 = vadd.xlane.f32.xlu0 %v5862
  %v5864 = vpop.xlane.xlu0 %5863
  %v5865 = vsel %vm2517, %v5807, 0.0
  %5866 = vadd.xlane.f32.xlu0 %v5865
  %v5867 = vpop.xlane.xlu0 %5866
  %v5868 = vsel %vm2517, %v5808, 0.0
  %5869 = vadd.xlane.f32.xlu0 %v5868
  %v5870 = vpop.xlane.xlu0 %5869
  %v5871 = vsel %vm2517, %v5809, 0.0
  %5872 = vadd.xlane.f32.xlu0 %v5871
  %v5873 = vpop.xlane.xlu0 %5872
  %v5874 = vsel %vm2517, %v5810, 0.0
  %5875 = vadd.xlane.f32.xlu0 %v5874
  %v5876 = vpop.xlane.xlu0 %5875
  %v5877 = vsel %vm2517, %v5811, 0.0
  %5878 = vadd.xlane.f32.xlu0 %v5877
  %v5879 = vpop.xlane.xlu0 %5878
  %v5880 = vsel %vm2517, %v5812, 0.0
  %5881 = vadd.xlane.f32.xlu0 %v5880
  %v5882 = vpop.xlane.xlu0 %5881
  %v5883 = vsel %vm2517, %v5813, 0.0
  %5884 = vadd.xlane.f32.xlu0 %v5883
  %v5885 = vpop.xlane.xlu0 %5884
  %v5886 = vsel %vm2517, %v5814, 0.0
  %5887 = vadd.xlane.f32.xlu0 %v5886
  %v5888 = vpop.xlane.xlu0 %5887
  %v5889 = vsel %vm2517, %v5815, 0.0
  %5890 = vadd.xlane.f32.xlu0 %v5889
  %v5891 = vpop.xlane.xlu0 %5890
  %v5892 = vsel %vm2517, %v5816, 0.0
  %5893 = vadd.xlane.f32.xlu0 %v5892
  %v5894 = vpop.xlane.xlu0 %5893
  %v5895 = vsel %vm2517, %v5817, 0.0
  %5896 = vadd.xlane.f32.xlu0 %v5895
  %v5897 = vpop.xlane.xlu0 %5896
  %v5898 = vsel %vm2517, %v5818, 0.0
  %5899 = vadd.xlane.f32.xlu0 %v5898
  %v5900 = vpop.xlane.xlu0 %5899
  %v5901 = vsel %vm2517, %v5819, 0.0
  %5902 = vadd.xlane.f32.xlu0 %v5901
  %v5903 = vpop.xlane.xlu0 %5902
  %v5904 = vsel %vm2517, %v5820, 0.0
  %5905 = vadd.xlane.f32.xlu0 %v5904
  %v5906 = vpop.xlane.xlu0 %5905
  %v5907 = vsel %vm2517, %v5821, 0.0
  %5908 = vadd.xlane.f32.xlu0 %v5907
  %v5909 = vpop.xlane.xlu0 %5908
  %v5910 = vsel %vm2517, %v5822, 0.0
  %5911 = vadd.xlane.f32.xlu0 %v5910
  %v5912 = vpop.xlane.xlu0 %5911
  %v5913 = vsel %vm2517, %v5823, 0.0
  %5914 = vadd.xlane.f32.xlu0 %v5913
  %v5915 = vpop.xlane.xlu0 %5914
  %v5916 = vsel %vm2517, %v5824, 0.0
  %5917 = vadd.xlane.f32.xlu0 %v5916
  %v5918 = vpop.xlane.xlu0 %5917
  %v5919 = vsel %vm2517, %v5825, 0.0
  %5920 = vadd.xlane.f32.xlu0 %v5919
  %v5921 = vpop.xlane.xlu0 %5920
  %v5954 = vlaneseq
  %v5955 = vshrl.u32 %v5954, 7
  %v5956 = vsub.s32 %v5616, %v5955
  %v5957 = vrot.slane %v5828, %v5956
  %v5958 = vlaneseq
  %v5959 = vshrl.u32 %v5958, 7
  %v5960 = vsub.s32 %v5621, %v5959
  %v5961 = vrot.slane %v5831, %v5960
  %v5962 = vsel %vm5626, %v5961, %v5957
  %v5963 = vlaneseq
  %v5964 = vshrl.u32 %v5963, 7
  %v5965 = vsub.s32 %v5616, %v5964
  %v5966 = vrot.slane %v5834, %v5965
  %v5967 = vlaneseq
  %v5968 = vshrl.u32 %v5967, 7
  %v5969 = vsub.s32 %v5621, %v5968
  %v5970 = vrot.slane %v5837, %v5969
  %v5971 = vsel %vm5626, %v5970, %v5966
  %v5972 = vlaneseq
  %v5973 = vshrl.u32 %v5972, 7
  %v5974 = vsub.s32 %v5616, %v5973
  %v5975 = vrot.slane %v5840, %v5974
  %v5976 = vlaneseq
  %v5977 = vshrl.u32 %v5976, 7
  %v5978 = vsub.s32 %v5621, %v5977
  %v5979 = vrot.slane %v5843, %v5978
  %v5980 = vsel %vm5626, %v5979, %v5975
  %v5981 = vlaneseq
  %v5982 = vshrl.u32 %v5981, 7
  %v5983 = vsub.s32 %v5616, %v5982
  %v5984 = vrot.slane %v5846, %v5983
  %v5985 = vlaneseq
  %v5986 = vshrl.u32 %v5985, 7
  %v5987 = vsub.s32 %v5621, %v5986
  %v5988 = vrot.slane %v5849, %v5987
  %v5989 = vsel %vm5626, %v5988, %v5984
  %v5990 = vlaneseq
  %v5991 = vshrl.u32 %v5990, 7
  %v5992 = vsub.s32 %v5616, %v5991
  %v5993 = vrot.slane %v5852, %v5992
  %v5994 = vlaneseq
  %v5995 = vshrl.u32 %v5994, 7
  %v5996 = vsub.s32 %v5621, %v5995
  %v5997 = vrot.slane %v5855, %v5996
  %v5998 = vsel %vm5626, %v5997, %v5993
  %v5999 = vlaneseq
  %v6000 = vshrl.u32 %v5999, 7
  %v6001 = vsub.s32 %v5616, %v6000
  %v6002 = vrot.slane %v5858, %v6001
  %v6003 = vlaneseq
  %v6004 = vshrl.u32 %v6003, 7
  %v6005 = vsub.s32 %v5621, %v6004
  %v6006 = vrot.slane %v5861, %v6005
  %v6007 = vsel %vm5626, %v6006, %v6002
  %v6008 = vlaneseq
  %v6009 = vshrl.u32 %v6008, 7
  %v6010 = vsub.s32 %v5616, %v6009
  %v6011 = vrot.slane %v5864, %v6010
  %v6012 = vlaneseq
  %v6013 = vshrl.u32 %v6012, 7
  %v6014 = vsub.s32 %v5621, %v6013
  %v6015 = vrot.slane %v5867, %v6014
  %v6016 = vsel %vm5626, %v6015, %v6011
  %v6017 = vlaneseq
  %v6018 = vshrl.u32 %v6017, 7
  %v6019 = vsub.s32 %v5616, %v6018
  %v6020 = vrot.slane %v5870, %v6019
  %v6021 = vlaneseq
  %v6022 = vshrl.u32 %v6021, 7
  %v6023 = vsub.s32 %v5621, %v6022
  %v6024 = vrot.slane %v5873, %v6023
  %v6025 = vsel %vm5626, %v6024, %v6020
  %v6026 = vlaneseq
  %v6027 = vshrl.u32 %v6026, 7
  %v6028 = vsub.s32 %v5616, %v6027
  %v6029 = vrot.slane %v5876, %v6028
  %v6030 = vlaneseq
  %v6031 = vshrl.u32 %v6030, 7
  %v6032 = vsub.s32 %v5621, %v6031
  %v6033 = vrot.slane %v5879, %v6032
  %v6034 = vsel %vm5626, %v6033, %v6029
  %v6035 = vlaneseq
  %v6036 = vshrl.u32 %v6035, 7
  %v6037 = vsub.s32 %v5616, %v6036
  %v6038 = vrot.slane %v5882, %v6037
  %v6039 = vlaneseq
  %v6040 = vshrl.u32 %v6039, 7
  %v6041 = vsub.s32 %v5621, %v6040
  %v6042 = vrot.slane %v5885, %v6041
  %v6043 = vsel %vm5626, %v6042, %v6038
  %v6044 = vlaneseq
  %v6045 = vshrl.u32 %v6044, 7
  %v6046 = vsub.s32 %v5616, %v6045
  %v6047 = vrot.slane %v5888, %v6046
  %v6048 = vlaneseq
  %v6049 = vshrl.u32 %v6048, 7
  %v6050 = vsub.s32 %v5621, %v6049
  %v6051 = vrot.slane %v5891, %v6050
  %v6052 = vsel %vm5626, %v6051, %v6047
  %v6053 = vlaneseq
  %v6054 = vshrl.u32 %v6053, 7
  %v6055 = vsub.s32 %v5616, %v6054
  %v6056 = vrot.slane %v5894, %v6055
  %v6057 = vlaneseq
  %v6058 = vshrl.u32 %v6057, 7
  %v6059 = vsub.s32 %v5621, %v6058
  %v6060 = vrot.slane %v5897, %v6059
  %v6061 = vsel %vm5626, %v6060, %v6056
  %v6062 = vlaneseq
  %v6063 = vshrl.u32 %v6062, 7
  %v6064 = vsub.s32 %v5616, %v6063
  %v6065 = vrot.slane %v5900, %v6064
  %v6066 = vlaneseq
  %v6067 = vshrl.u32 %v6066, 7
  %v6068 = vsub.s32 %v5621, %v6067
  %v6069 = vrot.slane %v5903, %v6068
  %v6070 = vsel %vm5626, %v6069, %v6065
  %v6071 = vlaneseq
  %v6072 = vshrl.u32 %v6071, 7
  %v6073 = vsub.s32 %v5616, %v6072
  %v6074 = vrot.slane %v5906, %v6073
  %v6075 = vlaneseq
  %v6076 = vshrl.u32 %v6075, 7
  %v6077 = vsub.s32 %v5621, %v6076
  %v6078 = vrot.slane %v5909, %v6077
  %v6079 = vsel %vm5626, %v6078, %v6074
  %v6080 = vlaneseq
  %v6081 = vshrl.u32 %v6080, 7
  %v6082 = vsub.s32 %v5616, %v6081
  %v6083 = vrot.slane %v5912, %v6082
  %v6084 = vlaneseq
  %v6085 = vshrl.u32 %v6084, 7
  %v6086 = vsub.s32 %v5621, %v6085
  %v6087 = vrot.slane %v5915, %v6086
  %v6088 = vsel %vm5626, %v6087, %v6083
  %v6089 = vlaneseq
  %v6090 = vshrl.u32 %v6089, 7
  %v6091 = vsub.s32 %v5616, %v6090
  %v6092 = vrot.slane %v5918, %v6091
  %v6093 = vlaneseq
  %v6094 = vshrl.u32 %v6093, 7
  %v6095 = vsub.s32 %v5621, %v6094
  %v6096 = vrot.slane %v5921, %v6095
  %v6097 = vsel %vm5626, %v6096, %v6092
  %v6098 = vsel %vm5763, %v5971, %v5962
  %v6099 = vsel %vm5765, %v5980, %v6098
  %v6100 = vsel %vm5767, %v5989, %v6099
  %v6101 = vsel %vm5769, %v5998, %v6100
  %v6102 = vsel %vm5771, %v6007, %v6101
  %v6103 = vsel %vm5773, %v6016, %v6102
  %v6104 = vsel %vm5775, %v6025, %v6103
  %v6105 = vsel %vm5763, %v6043, %v6034
  %v6106 = vsel %vm5765, %v6052, %v6105
  %v6107 = vsel %vm5767, %v6061, %v6106
  %v6108 = vsel %vm5769, %v6070, %v6107
  %v6109 = vsel %vm5771, %v6079, %v6108
  %v6110 = vsel %vm5773, %v6088, %v6109
  %v6111 = vsel %vm5775, %v6097, %v6110
  %s6114 = scalar_lea.vmem %s7, 16
  %6115 = vst.msk [vmem:[%s6114] sm:$0xff] %vm5078, %v6104
  %6116 = vst.msk [vmem:[%s6114 + $0x8] sm:$0xff] %vm5078, %v6111
  %v6117 = vxor.u32 %v5097, 2147483648
  %v6118 = vxor.u32 %v5100, 2147483648
  %v6119 = vxor.u32 %v5103, 2147483648
  %v6120 = vxor.u32 %v5106, 2147483648
  %v6121 = vxor.u32 %v5109, 2147483648
  %v6122 = vxor.u32 %v5112, 2147483648
  %v6123 = vxor.u32 %v5115, 2147483648
  %v6124 = vxor.u32 %v5118, 2147483648
  %v6125 = vxor.u32 %v5121, 2147483648
  %v6126 = vxor.u32 %v5124, 2147483648
  %v6127 = vxor.u32 %v5127, 2147483648
  %v6128 = vxor.u32 %v5130, 2147483648
  %v6129 = vxor.u32 %v5133, 2147483648
  %v6130 = vxor.u32 %v5136, 2147483648
  %v6131 = vxor.u32 %v5139, 2147483648
  %v6132 = vxor.u32 %v5142, 2147483648
  %v6133 = vxor.u32 %v5145, 2147483648
  %v6134 = vxor.u32 %v5148, 2147483648
  %v6135 = vxor.u32 %v5151, 2147483648
  %v6136 = vxor.u32 %v5154, 2147483648
  %v6137 = vxor.u32 %v5157, 2147483648
  %v6138 = vxor.u32 %v5160, 2147483648
  %v6139 = vxor.u32 %v5163, 2147483648
  %v6140 = vxor.u32 %v5166, 2147483648
  %v6141 = vxor.u32 %v5169, 2147483648
  %v6142 = vxor.u32 %v5172, 2147483648
  %v6143 = vxor.u32 %v5175, 2147483648
  %v6144 = vxor.u32 %v5178, 2147483648
  %v6145 = vxor.u32 %v5181, 2147483648
  %v6146 = vxor.u32 %v5184, 2147483648
  %v6147 = vxor.u32 %v5187, 2147483648
  %v6148 = vxor.u32 %v5190, 2147483648
  %v6149 = vmul.f32 %v6117, 1.442695
  %v6150 = vpow.pop %v6149
  %v6151 = vmul.f32 %v6118, 1.442695
  %v6152 = vpow.pop %v6151
  %v6153 = vmul.f32 %v6119, 1.442695
  %v6154 = vpow.pop %v6153
  %v6155 = vmul.f32 %v6120, 1.442695
  %v6156 = vpow.pop %v6155
  %v6157 = vmul.f32 %v6121, 1.442695
  %v6158 = vpow.pop %v6157
  %v6159 = vmul.f32 %v6122, 1.442695
  %v6160 = vpow.pop %v6159
  %v6161 = vmul.f32 %v6123, 1.442695
  %v6162 = vpow.pop %v6161
  %v6163 = vmul.f32 %v6124, 1.442695
  %v6164 = vpow.pop %v6163
  %v6165 = vmul.f32 %v6125, 1.442695
  %v6166 = vpow.pop %v6165
  %v6167 = vmul.f32 %v6126, 1.442695
  %v6168 = vpow.pop %v6167
  %v6169 = vmul.f32 %v6127, 1.442695
  %v6170 = vpow.pop %v6169
  %v6171 = vmul.f32 %v6128, 1.442695
  %v6172 = vpow.pop %v6171
  %v6173 = vmul.f32 %v6129, 1.442695
  %v6174 = vpow.pop %v6173
  %v6175 = vmul.f32 %v6130, 1.442695
  %v6176 = vpow.pop %v6175
  %v6177 = vmul.f32 %v6131, 1.442695
  %v6178 = vpow.pop %v6177
  %v6179 = vmul.f32 %v6132, 1.442695
  %v6180 = vpow.pop %v6179
  %v6181 = vmul.f32 %v6133, 1.442695
  %v6182 = vpow.pop %v6181
  %v6183 = vmul.f32 %v6134, 1.442695
  %v6184 = vpow.pop %v6183
  %v6185 = vmul.f32 %v6135, 1.442695
  %v6186 = vpow.pop %v6185
  %v6187 = vmul.f32 %v6136, 1.442695
  %v6188 = vpow.pop %v6187
  %v6189 = vmul.f32 %v6137, 1.442695
  %v6190 = vpow.pop %v6189
  %v6191 = vmul.f32 %v6138, 1.442695
  %v6192 = vpow.pop %v6191
  %v6193 = vmul.f32 %v6139, 1.442695
  %v6194 = vpow.pop %v6193
  %v6195 = vmul.f32 %v6140, 1.442695
  %v6196 = vpow.pop %v6195
  %v6197 = vmul.f32 %v6141, 1.442695
  %v6198 = vpow.pop %v6197
  %v6199 = vmul.f32 %v6142, 1.442695
  %v6200 = vpow.pop %v6199
  %v6201 = vmul.f32 %v6143, 1.442695
  %v6202 = vpow.pop %v6201
  %v6203 = vmul.f32 %v6144, 1.442695
  %v6204 = vpow.pop %v6203
  %v6205 = vmul.f32 %v6145, 1.442695
  %v6206 = vpow.pop %v6205
  %v6207 = vmul.f32 %v6146, 1.442695
  %v6208 = vpow.pop %v6207
  %v6209 = vmul.f32 %v6147, 1.442695
  %v6210 = vpow.pop %v6209
  %v6211 = vmul.f32 %v6148, 1.442695
  %v6212 = vpow.pop %v6211
  %v6213 = vadd.f32 %v6150, 1.0
  %v6214 = vadd.f32 %v6152, 1.0
  %v6215 = vadd.f32 %v6154, 1.0
  %v6216 = vadd.f32 %v6156, 1.0
  %v6217 = vadd.f32 %v6158, 1.0
  %v6218 = vadd.f32 %v6160, 1.0
  %v6219 = vadd.f32 %v6162, 1.0
  %v6220 = vadd.f32 %v6164, 1.0
  %v6221 = vadd.f32 %v6166, 1.0
  %v6222 = vadd.f32 %v6168, 1.0
  %v6223 = vadd.f32 %v6170, 1.0
  %v6224 = vadd.f32 %v6172, 1.0
  %v6225 = vadd.f32 %v6174, 1.0
  %v6226 = vadd.f32 %v6176, 1.0
  %v6227 = vadd.f32 %v6178, 1.0
  %v6228 = vadd.f32 %v6180, 1.0
  %v6229 = vadd.f32 %v6182, 1.0
  %v6230 = vadd.f32 %v6184, 1.0
  %v6231 = vadd.f32 %v6186, 1.0
  %v6232 = vadd.f32 %v6188, 1.0
  %v6233 = vadd.f32 %v6190, 1.0
  %v6234 = vadd.f32 %v6192, 1.0
  %v6235 = vadd.f32 %v6194, 1.0
  %v6236 = vadd.f32 %v6196, 1.0
  %v6237 = vadd.f32 %v6198, 1.0
  %v6238 = vadd.f32 %v6200, 1.0
  %v6239 = vadd.f32 %v6202, 1.0
  %v6240 = vadd.f32 %v6204, 1.0
  %v6241 = vadd.f32 %v6206, 1.0
  %v6242 = vadd.f32 %v6208, 1.0
  %v6243 = vadd.f32 %v6210, 1.0
  %v6244 = vadd.f32 %v6212, 1.0
  %v6245 = vrcp.pop %v6213
  %v6246 = vmul.f32 1.0, %v6245
  %v6247 = vrcp.pop %v6214
  %v6248 = vmul.f32 1.0, %v6247
  %v6249 = vrcp.pop %v6215
  %v6250 = vmul.f32 1.0, %v6249
  %v6251 = vrcp.pop %v6216
  %v6252 = vmul.f32 1.0, %v6251
  %v6253 = vrcp.pop %v6217
  %v6254 = vmul.f32 1.0, %v6253
  %v6255 = vrcp.pop %v6218
  %v6256 = vmul.f32 1.0, %v6255
  %v6257 = vrcp.pop %v6219
  %v6258 = vmul.f32 1.0, %v6257
  %v6259 = vrcp.pop %v6220
  %v6260 = vmul.f32 1.0, %v6259
  %v6261 = vrcp.pop %v6221
  %v6262 = vmul.f32 1.0, %v6261
  %v6263 = vrcp.pop %v6222
  %v6264 = vmul.f32 1.0, %v6263
  %v6265 = vrcp.pop %v6223
  %v6266 = vmul.f32 1.0, %v6265
  %v6267 = vrcp.pop %v6224
  %v6268 = vmul.f32 1.0, %v6267
  %v6269 = vrcp.pop %v6225
  %v6270 = vmul.f32 1.0, %v6269
  %v6271 = vrcp.pop %v6226
  %v6272 = vmul.f32 1.0, %v6271
  %v6273 = vrcp.pop %v6227
  %v6274 = vmul.f32 1.0, %v6273
  %v6275 = vrcp.pop %v6228
  %v6276 = vmul.f32 1.0, %v6275
  %v6277 = vrcp.pop %v6229
  %v6278 = vmul.f32 1.0, %v6277
  %v6279 = vrcp.pop %v6230
  %v6280 = vmul.f32 1.0, %v6279
  %v6281 = vrcp.pop %v6231
  %v6282 = vmul.f32 1.0, %v6281
  %v6283 = vrcp.pop %v6232
  %v6284 = vmul.f32 1.0, %v6283
  %v6285 = vrcp.pop %v6233
  %v6286 = vmul.f32 1.0, %v6285
  %v6287 = vrcp.pop %v6234
  %v6288 = vmul.f32 1.0, %v6287
  %v6289 = vrcp.pop %v6235
  %v6290 = vmul.f32 1.0, %v6289
  %v6291 = vrcp.pop %v6236
  %v6292 = vmul.f32 1.0, %v6291
  %v6293 = vrcp.pop %v6237
  %v6294 = vmul.f32 1.0, %v6293
  %v6295 = vrcp.pop %v6238
  %v6296 = vmul.f32 1.0, %v6295
  %v6297 = vrcp.pop %v6239
  %v6298 = vmul.f32 1.0, %v6297
  %v6299 = vrcp.pop %v6240
  %v6300 = vmul.f32 1.0, %v6299
  %v6301 = vrcp.pop %v6241
  %v6302 = vmul.f32 1.0, %v6301
  %v6303 = vrcp.pop %v6242
  %v6304 = vmul.f32 1.0, %v6303
  %v6305 = vrcp.pop %v6243
  %v6306 = vmul.f32 1.0, %v6305
  %v6307 = vrcp.pop %v6244
  %v6308 = vmul.f32 1.0, %v6307
  %v6341 = vlaneseq
  %v6342 = vshrl.u32 %v6341, 7
  %v6343 = vsub.s32 %v5616, %v6342
  %v6344 = vrot.slane %v6246, %v6343
  %v6345 = vlaneseq
  %v6346 = vshrl.u32 %v6345, 7
  %v6347 = vsub.s32 %v5621, %v6346
  %v6348 = vrot.slane %v6248, %v6347
  %v6349 = vsel %vm5626, %v6348, %v6344
  %v6350 = vlaneseq
  %v6351 = vshrl.u32 %v6350, 7
  %v6352 = vsub.s32 %v5616, %v6351
  %v6353 = vrot.slane %v6250, %v6352
  %v6354 = vlaneseq
  %v6355 = vshrl.u32 %v6354, 7
  %v6356 = vsub.s32 %v5621, %v6355
  %v6357 = vrot.slane %v6252, %v6356
  %v6358 = vsel %vm5626, %v6357, %v6353
  %v6359 = vlaneseq
  %v6360 = vshrl.u32 %v6359, 7
  %v6361 = vsub.s32 %v5616, %v6360
  %v6362 = vrot.slane %v6254, %v6361
  %v6363 = vlaneseq
  %v6364 = vshrl.u32 %v6363, 7
  %v6365 = vsub.s32 %v5621, %v6364
  %v6366 = vrot.slane %v6256, %v6365
  %v6367 = vsel %vm5626, %v6366, %v6362
  %v6368 = vlaneseq
  %v6369 = vshrl.u32 %v6368, 7
  %v6370 = vsub.s32 %v5616, %v6369
  %v6371 = vrot.slane %v6258, %v6370
  %v6372 = vlaneseq
  %v6373 = vshrl.u32 %v6372, 7
  %v6374 = vsub.s32 %v5621, %v6373
  %v6375 = vrot.slane %v6260, %v6374
  %v6376 = vsel %vm5626, %v6375, %v6371
  %v6377 = vlaneseq
  %v6378 = vshrl.u32 %v6377, 7
  %v6379 = vsub.s32 %v5616, %v6378
  %v6380 = vrot.slane %v6262, %v6379
  %v6381 = vlaneseq
  %v6382 = vshrl.u32 %v6381, 7
  %v6383 = vsub.s32 %v5621, %v6382
  %v6384 = vrot.slane %v6264, %v6383
  %v6385 = vsel %vm5626, %v6384, %v6380
  %v6386 = vlaneseq
  %v6387 = vshrl.u32 %v6386, 7
  %v6388 = vsub.s32 %v5616, %v6387
  %v6389 = vrot.slane %v6266, %v6388
  %v6390 = vlaneseq
  %v6391 = vshrl.u32 %v6390, 7
  %v6392 = vsub.s32 %v5621, %v6391
  %v6393 = vrot.slane %v6268, %v6392
  %v6394 = vsel %vm5626, %v6393, %v6389
  %v6395 = vlaneseq
  %v6396 = vshrl.u32 %v6395, 7
  %v6397 = vsub.s32 %v5616, %v6396
  %v6398 = vrot.slane %v6270, %v6397
  %v6399 = vlaneseq
  %v6400 = vshrl.u32 %v6399, 7
  %v6401 = vsub.s32 %v5621, %v6400
  %v6402 = vrot.slane %v6272, %v6401
  %v6403 = vsel %vm5626, %v6402, %v6398
  %v6404 = vlaneseq
  %v6405 = vshrl.u32 %v6404, 7
  %v6406 = vsub.s32 %v5616, %v6405
  %v6407 = vrot.slane %v6274, %v6406
  %v6408 = vlaneseq
  %v6409 = vshrl.u32 %v6408, 7
  %v6410 = vsub.s32 %v5621, %v6409
  %v6411 = vrot.slane %v6276, %v6410
  %v6412 = vsel %vm5626, %v6411, %v6407
  %v6413 = vlaneseq
  %v6414 = vshrl.u32 %v6413, 7
  %v6415 = vsub.s32 %v5616, %v6414
  %v6416 = vrot.slane %v6278, %v6415
  %v6417 = vlaneseq
  %v6418 = vshrl.u32 %v6417, 7
  %v6419 = vsub.s32 %v5621, %v6418
  %v6420 = vrot.slane %v6280, %v6419
  %v6421 = vsel %vm5626, %v6420, %v6416
  %v6422 = vlaneseq
  %v6423 = vshrl.u32 %v6422, 7
  %v6424 = vsub.s32 %v5616, %v6423
  %v6425 = vrot.slane %v6282, %v6424
  %v6426 = vlaneseq
  %v6427 = vshrl.u32 %v6426, 7
  %v6428 = vsub.s32 %v5621, %v6427
  %v6429 = vrot.slane %v6284, %v6428
  %v6430 = vsel %vm5626, %v6429, %v6425
  %v6431 = vlaneseq
  %v6432 = vshrl.u32 %v6431, 7
  %v6433 = vsub.s32 %v5616, %v6432
  %v6434 = vrot.slane %v6286, %v6433
  %v6435 = vlaneseq
  %v6436 = vshrl.u32 %v6435, 7
  %v6437 = vsub.s32 %v5621, %v6436
  %v6438 = vrot.slane %v6288, %v6437
  %v6439 = vsel %vm5626, %v6438, %v6434
  %v6440 = vlaneseq
  %v6441 = vshrl.u32 %v6440, 7
  %v6442 = vsub.s32 %v5616, %v6441
  %v6443 = vrot.slane %v6290, %v6442
  %v6444 = vlaneseq
  %v6445 = vshrl.u32 %v6444, 7
  %v6446 = vsub.s32 %v5621, %v6445
  %v6447 = vrot.slane %v6292, %v6446
  %v6448 = vsel %vm5626, %v6447, %v6443
  %v6449 = vlaneseq
  %v6450 = vshrl.u32 %v6449, 7
  %v6451 = vsub.s32 %v5616, %v6450
  %v6452 = vrot.slane %v6294, %v6451
  %v6453 = vlaneseq
  %v6454 = vshrl.u32 %v6453, 7
  %v6455 = vsub.s32 %v5621, %v6454
  %v6456 = vrot.slane %v6296, %v6455
  %v6457 = vsel %vm5626, %v6456, %v6452
  %v6458 = vlaneseq
  %v6459 = vshrl.u32 %v6458, 7
  %v6460 = vsub.s32 %v5616, %v6459
  %v6461 = vrot.slane %v6298, %v6460
  %v6462 = vlaneseq
  %v6463 = vshrl.u32 %v6462, 7
  %v6464 = vsub.s32 %v5621, %v6463
  %v6465 = vrot.slane %v6300, %v6464
  %v6466 = vsel %vm5626, %v6465, %v6461
  %v6467 = vlaneseq
  %v6468 = vshrl.u32 %v6467, 7
  %v6469 = vsub.s32 %v5616, %v6468
  %v6470 = vrot.slane %v6302, %v6469
  %v6471 = vlaneseq
  %v6472 = vshrl.u32 %v6471, 7
  %v6473 = vsub.s32 %v5621, %v6472
  %v6474 = vrot.slane %v6304, %v6473
  %v6475 = vsel %vm5626, %v6474, %v6470
  %v6476 = vlaneseq
  %v6477 = vshrl.u32 %v6476, 7
  %v6478 = vsub.s32 %v5616, %v6477
  %v6479 = vrot.slane %v6306, %v6478
  %v6480 = vlaneseq
  %v6481 = vshrl.u32 %v6480, 7
  %v6482 = vsub.s32 %v5621, %v6481
  %v6483 = vrot.slane %v6308, %v6482
  %v6484 = vsel %vm5626, %v6483, %v6479
  %v6485 = vsel %vm5763, %v6358, %v6349
  %v6486 = vsel %vm5765, %v6367, %v6485
  %v6487 = vsel %vm5767, %v6376, %v6486
  %v6488 = vsel %vm5769, %v6385, %v6487
  %v6489 = vsel %vm5771, %v6394, %v6488
  %v6490 = vsel %vm5773, %v6403, %v6489
  %v6491 = vsel %vm5775, %v6412, %v6490
  %v6492 = vsel %vm5763, %v6430, %v6421
  %v6493 = vsel %vm5765, %v6439, %v6492
  %v6494 = vsel %vm5767, %v6448, %v6493
  %v6495 = vsel %vm5769, %v6457, %v6494
  %v6496 = vsel %vm5771, %v6466, %v6495
  %v6497 = vsel %vm5773, %v6475, %v6496
  %v6498 = vsel %vm5775, %v6484, %v6497
  %s6501 = scalar_lea.vmem %s7, 32
  %6502 = vst.msk [vmem:[%s6501] sm:$0xff] %vm5078, %v6491
  %6503 = vst.msk [vmem:[%s6501 + $0x8] sm:$0xff] %vm5078, %v6498
  // Predicated region
  $region30: #{deephar_forward.3} parent=0 // pred_check
    _
  $region31: #{deephar_forward.3} parent=0 // pred_check_branch
    %6505 = sbr.rel (0) target = $region33
  $region32: #{deephar_forward.3} parent=0 // pred_region
    _
  $region33: #{deephar_forward.3} parent=0 // pred_fallthru
    _
  // Predicated region
  $region34: #{deephar_forward.3} parent=0 // pred_check
    _
  $region35: #{deephar_forward.3} parent=0 // pred_check_branch
    %6507 = sbr.rel (0) target = $region37
  $region36: #{deephar_forward.3} parent=0 // pred_region
    _
  $region37: #{deephar_forward.3} parent=0 // pred_fallthru
    _
  // Predicated region
  $region38: #{deephar_forward.3} parent=0 // pred_check
    _
  $region39: #{deephar_forward.3} parent=0 // pred_check_branch
    %6509 = sbr.rel (0) target = $region41
  $region40: #{deephar_forward.3} parent=0 // pred_region
    _
  $region41: #{deephar_forward.3} parent=0 // pred_fallthru
    _
  // Predicated region
  $region42: #{deephar_forward.3} parent=0 // pred_check
    _
  $region43: #{deephar_forward.3} parent=0 // pred_check_branch
    %6511 = sbr.rel (0) target = $region45
  $region44: #{deephar_forward.3} parent=0 // pred_region
    _
  $region45: #{deephar_forward.3} parent=0 // pred_fallthru
    _

// kernel: deephar_forward.5
$region0: #{deephar_forward.5}
  #allocation0 [shape = 'u32[]', space=smem, size = 0x4, offset = 0x4, fixed_abs, tag = 'smem constant byte address 0x4 - core index']
  #allocation1 [shape = 'u32[144,128]{1,0:T(1,128)}', space=vmem, size = 0x12000, scoped, tag = 'internal scratch']
  %s0 = inlined_call_operand.vmem [shape: f32[2,4,16,10], index: 0, kind: input, shape index: {}]
  %s1 = inlined_call_operand.vmem [shape: f32[10,10], index: 1, kind: input, shape index: {}]
  %s2 = inlined_call_operand.vmem [shape: f32[1,10], index: 2, kind: input, shape index: {}]
  %s3 = inlined_call_operand.vmem [shape: f32[9,10], index: 3, kind: output, shape index: {}]
  %s4 = sld [smem:[#allocation0]]
  $region22: #{deephar_forward.5} parent=0
    _
  %s6 = ssub.s32 1, %s4
  %s7 = scalar_select 0, %s6, %s4
  // Predicated region
  $region2: #{deephar_forward.5} parent=0 // pred_check
    _
  $region3: #{deephar_forward.5} parent=0 // pred_check_branch
    %9 = sbr.rel (0) target = $region5
  $region4: #{deephar_forward.5} parent=0 // pred_region
    _
  $region5: #{deephar_forward.5} parent=0 // pred_fallthru
    _
  // Predicated region
  $region6: #{deephar_forward.5} parent=0 // pred_check
    _
  $region7: #{deephar_forward.5} parent=0 // pred_check_branch
    %11 = sbr.rel (0) target = $region9
  $region8: #{deephar_forward.5} parent=0 // pred_region
    _
  $region9: #{deephar_forward.5} parent=0 // pred_fallthru
    _
  // Predicated region
  $region10: #{deephar_forward.5} parent=0 // pred_check
    _
  $region11: #{deephar_forward.5} parent=0 // pred_check_branch
    %13 = sbr.rel (0) target = $region13
  $region12: #{deephar_forward.5} parent=0 // pred_region
    _
  $region13: #{deephar_forward.5} parent=0 // pred_fallthru
    _
  %v14 = vld [vmem:[%s0] sm:$0xff]
  %v15 = vld [vmem:[%s0 + $0x8] sm:$0xff]
  %v16 = vld [vmem:[%s0 + $0x10] sm:$0xff]
  %v17 = vld [vmem:[%s0 + $0x18] sm:$0xff]
  %v18 = vld [vmem:[%s0 + $0x20] sm:$0xff]
  %v19 = vld [vmem:[%s0 + $0x28] sm:$0xff]
  %v20 = vld [vmem:[%s0 + $0x30] sm:$0xff]
  %v21 = vld [vmem:[%s0 + $0x38] sm:$0xff]
  %v22 = vld [vmem:[%s0 + $0x40] sm:$0xff]
  %v23 = vld [vmem:[%s0 + $0x48] sm:$0xff]
  %v24 = vld [vmem:[%s0 + $0x50] sm:$0xff]
  %v25 = vld [vmem:[%s0 + $0x58] sm:$0xff]
  %v26 = vld [vmem:[%s0 + $0x60] sm:$0xff]
  %v27 = vld [vmem:[%s0 + $0x68] sm:$0xff]
  %v28 = vld [vmem:[%s0 + $0x70] sm:$0xff]
  %v29 = vld [vmem:[%s0 + $0x78] sm:$0xff]
  %vm30 = vcmask 80896
  %v31 = vsel %vm30, %v14, -inf
  %v32 = vsel %vm30, %v15, -inf
  %v33 = vmax.f32 %v31, %v32
  %v34 = vrot.slane %v33, 4
  %v35 = vmax.f32 %v33, %v34
  %v36 = vrot.slane %v35, 2
  %v37 = vmax.f32 %v35, %v36
  %v38 = vrot.slane %v37, 1
  %v39 = vmax.f32 %v37, %v38
  %v40 = vsel %vm30, %v16, -inf
  %v41 = vsel %vm30, %v17, -inf
  %v42 = vmax.f32 %v40, %v41
  %v43 = vrot.slane %v42, 4
  %v44 = vmax.f32 %v42, %v43
  %v45 = vrot.slane %v44, 2
  %v46 = vmax.f32 %v44, %v45
  %v47 = vrot.slane %v46, 1
  %v48 = vmax.f32 %v46, %v47
  %v49 = vsel %vm30, %v18, -inf
  %v50 = vsel %vm30, %v19, -inf
  %v51 = vmax.f32 %v49, %v50
  %v52 = vrot.slane %v51, 4
  %v53 = vmax.f32 %v51, %v52
  %v54 = vrot.slane %v53, 2
  %v55 = vmax.f32 %v53, %v54
  %v56 = vrot.slane %v55, 1
  %v57 = vmax.f32 %v55, %v56
  %v58 = vsel %vm30, %v20, -inf
  %v59 = vsel %vm30, %v21, -inf
  %v60 = vmax.f32 %v58, %v59
  %v61 = vrot.slane %v60, 4
  %v62 = vmax.f32 %v60, %v61
  %v63 = vrot.slane %v62, 2
  %v64 = vmax.f32 %v62, %v63
  %v65 = vrot.slane %v64, 1
  %v66 = vmax.f32 %v64, %v65
  %v67 = vsel %vm30, %v22, -inf
  %v68 = vsel %vm30, %v23, -inf
  %v69 = vmax.f32 %v67, %v68
  %v70 = vrot.slane %v69, 4
  %v71 = vmax.f32 %v69, %v70
  %v72 = vrot.slane %v71, 2
  %v73 = vmax.f32 %v71, %v72
  %v74 = vrot.slane %v73, 1
  %v75 = vmax.f32 %v73, %v74
  %v76 = vsel %vm30, %v24, -inf
  %v77 = vsel %vm30, %v25, -inf
  %v78 = vmax.f32 %v76, %v77
  %v79 = vrot.slane %v78, 4
  %v80 = vmax.f32 %v78, %v79
  %v81 = vrot.slane %v80, 2
  %v82 = vmax.f32 %v80, %v81
  %v83 = vrot.slane %v82, 1
  %v84 = vmax.f32 %v82, %v83
  %v85 = vsel %vm30, %v26, -inf
  %v86 = vsel %vm30, %v27, -inf
  %v87 = vmax.f32 %v85, %v86
  %v88 = vrot.slane %v87, 4
  %v89 = vmax.f32 %v87, %v88
  %v90 = vrot.slane %v89, 2
  %v91 = vmax.f32 %v89, %v90
  %v92 = vrot.slane %v91, 1
  %v93 = vmax.f32 %v91, %v92
  %v94 = vsel %vm30, %v28, -inf
  %v95 = vsel %vm30, %v29, -inf
  %v96 = vmax.f32 %v94, %v95
  %v97 = vrot.slane %v96, 4
  %v98 = vmax.f32 %v96, %v97
  %v99 = vrot.slane %v98, 2
  %v100 = vmax.f32 %v98, %v99
  %v101 = vrot.slane %v100, 1
  %v102 = vmax.f32 %v100, %v101
  %v103 = vsel %vm30, %v14, inf
  %v104 = vsel %vm30, %v15, inf
  %v105 = vmin.f32 %v103, %v104
  %v106 = vrot.slane %v105, 4
  %v107 = vmin.f32 %v105, %v106
  %v108 = vrot.slane %v107, 2
  %v109 = vmin.f32 %v107, %v108
  %v110 = vrot.slane %v109, 1
  %v111 = vmin.f32 %v109, %v110
  %v112 = vsel %vm30, %v16, inf
  %v113 = vsel %vm30, %v17, inf
  %v114 = vmin.f32 %v112, %v113
  %v115 = vrot.slane %v114, 4
  %v116 = vmin.f32 %v114, %v115
  %v117 = vrot.slane %v116, 2
  %v118 = vmin.f32 %v116, %v117
  %v119 = vrot.slane %v118, 1
  %v120 = vmin.f32 %v118, %v119
  %v121 = vsel %vm30, %v18, inf
  %v122 = vsel %vm30, %v19, inf
  %v123 = vmin.f32 %v121, %v122
  %v124 = vrot.slane %v123, 4
  %v125 = vmin.f32 %v123, %v124
  %v126 = vrot.slane %v125, 2
  %v127 = vmin.f32 %v125, %v126
  %v128 = vrot.slane %v127, 1
  %v129 = vmin.f32 %v127, %v128
  %v130 = vsel %vm30, %v20, inf
  %v131 = vsel %vm30, %v21, inf
  %v132 = vmin.f32 %v130, %v131
  %v133 = vrot.slane %v132, 4
  %v134 = vmin.f32 %v132, %v133
  %v135 = vrot.slane %v134, 2
  %v136 = vmin.f32 %v134, %v135
  %v137 = vrot.slane %v136, 1
  %v138 = vmin.f32 %v136, %v137
  %v139 = vsel %vm30, %v22, inf
  %v140 = vsel %vm30, %v23, inf
  %v141 = vmin.f32 %v139, %v140
  %v142 = vrot.slane %v141, 4
  %v143 = vmin.f32 %v141, %v142
  %v144 = vrot.slane %v143, 2
  %v145 = vmin.f32 %v143, %v144
  %v146 = vrot.slane %v145, 1
  %v147 = vmin.f32 %v145, %v146
  %v148 = vsel %vm30, %v24, inf
  %v149 = vsel %vm30, %v25, inf
  %v150 = vmin.f32 %v148, %v149
  %v151 = vrot.slane %v150, 4
  %v152 = vmin.f32 %v150, %v151
  %v153 = vrot.slane %v152, 2
  %v154 = vmin.f32 %v152, %v153
  %v155 = vrot.slane %v154, 1
  %v156 = vmin.f32 %v154, %v155
  %v157 = vsel %vm30, %v26, inf
  %v158 = vsel %vm30, %v27, inf
  %v159 = vmin.f32 %v157, %v158
  %v160 = vrot.slane %v159, 4
  %v161 = vmin.f32 %v159, %v160
  %v162 = vrot.slane %v161, 2
  %v163 = vmin.f32 %v161, %v162
  %v164 = vrot.slane %v163, 1
  %v165 = vmin.f32 %v163, %v164
  %v166 = vsel %vm30, %v28, inf
  %v167 = vsel %vm30, %v29, inf
  %v168 = vmin.f32 %v166, %v167
  %v169 = vrot.slane %v168, 4
  %v170 = vmin.f32 %v168, %v169
  %v171 = vrot.slane %v170, 2
  %v172 = vmin.f32 %v170, %v171
  %v173 = vrot.slane %v172, 1
  %v174 = vmin.f32 %v172, %v173
  %v175 = vadd.f32 %v39, %v111
  %v176 = vadd.f32 %v48, %v120
  %v177 = vadd.f32 %v57, %v129
  %v178 = vadd.f32 %v66, %v138
  %v179 = vadd.f32 %v75, %v147
  %v180 = vadd.f32 %v84, %v156
  %v181 = vadd.f32 %v93, %v165
  %v182 = vadd.f32 %v102, %v174
  %vm191 = vcmask 1041409
  %v192 = vsel %vm191, %v176, %v175
  %vm193 = vcmask 1042434
  %v194 = vsel %vm193, %v177, %v192
  %vm195 = vcmask 1043459
  %v196 = vsel %vm195, %v178, %v194
  %v197 = vsel %vm191, %v180, %v179
  %v198 = vsel %vm193, %v181, %v197
  %v199 = vsel %vm195, %v182, %v198
  %vm202 = vcmask 76800
  %v203 = vsel %vm202, %v196, -inf
  %204 = vmax.xlane.f32.xlu0 %v203
  %v205 = vpop.xlane.xlu0 %204
  %v206 = vsel %vm202, %v199, -inf
  %207 = vmax.xlane.f32.xlu0 %v206
  %v208 = vpop.xlane.xlu0 %207
  %v211 = vrot.slane %v205, 1
  %v212 = vrot.slane %v205, 2
  %v213 = vrot.slane %v205, 3
  %v214 = vrot.slane %v208, 1
  %v215 = vrot.slane %v208, 2
  %v216 = vrot.slane %v208, 3
  %v225 = vsub.f32 %v175, %v205
  %v226 = vsub.f32 %v176, %v211
  %v227 = vsub.f32 %v177, %v212
  %v228 = vsub.f32 %v178, %v213
  %v229 = vsub.f32 %v179, %v208
  %v230 = vsub.f32 %v180, %v214
  %v231 = vsub.f32 %v181, %v215
  %v232 = vsub.f32 %v182, %v216
  %v233 = vmul.f32 %v225, 1.442695
  %v234 = vpow.pop %v233
  %v235 = vmul.f32 %v226, 1.442695
  %v236 = vpow.pop %v235
  %v237 = vmul.f32 %v227, 1.442695
  %v238 = vpow.pop %v237
  %v239 = vmul.f32 %v228, 1.442695
  %v240 = vpow.pop %v239
  %v241 = vmul.f32 %v229, 1.442695
  %v242 = vpow.pop %v241
  %v243 = vmul.f32 %v230, 1.442695
  %v244 = vpow.pop %v243
  %v245 = vmul.f32 %v231, 1.442695
  %v246 = vpow.pop %v245
  %v247 = vmul.f32 %v232, 1.442695
  %v248 = vpow.pop %v247
  %v257 = vrot.slane %v236, 7
  %v258 = vsel %vm191, %v257, %v234
  %v259 = vrot.slane %v238, 6
  %v260 = vsel %vm193, %v259, %v258
  %v261 = vrot.slane %v240, 5
  %v262 = vsel %vm195, %v261, %v260
  %v263 = vrot.slane %v244, 7
  %v264 = vsel %vm191, %v263, %v242
  %v265 = vrot.slane %v246, 6
  %v266 = vsel %vm193, %v265, %v264
  %v267 = vrot.slane %v248, 5
  %v268 = vsel %vm195, %v267, %v266
  %v271 = vsel %vm202, %v262, 0.0
  %272 = vadd.xlane.f32.xlu0 %v271
  %v273 = vpop.xlane.xlu0 %272
  %v274 = vsel %vm202, %v268, 0.0
  %275 = vadd.xlane.f32.xlu0 %v274
  %v276 = vpop.xlane.xlu0 %275
  %v279 = vrot.slane %v273, 1
  %v280 = vrot.slane %v273, 2
  %v281 = vrot.slane %v273, 3
  %v282 = vrot.slane %v276, 1
  %v283 = vrot.slane %v276, 2
  %v284 = vrot.slane %v276, 3
  %v293 = vrcp.pop %v273
  %v294 = vmul.f32 %v234, %v293
  %v295 = vrcp.pop %v279
  %v296 = vmul.f32 %v236, %v295
  %v297 = vrcp.pop %v280
  %v298 = vmul.f32 %v238, %v297
  %v299 = vrcp.pop %v281
  %v300 = vmul.f32 %v240, %v299
  %v301 = vrcp.pop %v276
  %v302 = vmul.f32 %v242, %v301
  %v303 = vrcp.pop %v282
  %v304 = vmul.f32 %v244, %v303
  %v305 = vrcp.pop %v283
  %v306 = vmul.f32 %v246, %v305
  %v307 = vrcp.pop %v284
  %v308 = vmul.f32 %v248, %v307
  %v313 = vrot.slane %v296, 7
  %v314 = vsel %vm191, %v313, %v294
  %v315 = vrot.slane %v298, 6
  %v316 = vsel %vm193, %v315, %v314
  %v317 = vrot.slane %v300, 5
  %v318 = vsel %vm195, %v317, %v316
  %320 = vst.msk [vmem:[%s3] sm:$0xf] %vm202, %v318
  %v325 = vrot.slane %v304, 7
  %v326 = vsel %vm191, %v325, %v302
  %v327 = vrot.slane %v306, 6
  %v328 = vsel %vm193, %v327, %v326
  %v329 = vrot.slane %v308, 5
  %v330 = vsel %vm195, %v329, %v328
  %332 = vst.msk [vmem:[%s3 + $0x4] sm:$0xf] %vm202, %v330
  %v333 = vld [vmem:[%s1] sm:$0xff]
  %v334 = vld [vmem:[%s1 + $0x8] sm:$0x3]
  %v335 = vld [vmem:[%s2] sm:$0x1]
  %v337 = vlaneseq
  %v338 = vshrl.u32 %v337, 7
  %v339 = vsub.s32 0, %v338
  %v340 = vrot.slane %v335, %v339
  %v343 = vsel %vm30, %v20, 0
  %v346 = vsel %vm30, %v21, 0
  %vm348 = vcmask 1041408
  %v350 = vsel %vm348, %v334, 0
  %352 = vmatprep.subr.mxu0 0.0
  %353 = vmatpush1.msra.mxu0 %v333
  %354 = vmatprep.subr.mxu0 0.0
  %355 = vmatpush1.msra.mxu0 %v350
  %356 = vmatprep.subr.mxu0 0.0
  %357 = vmatpush1.msra.mxu0 0.0
  %358 = vmatprep.subr.mxu0 0.0
  %359 = vmatpush1.msra.mxu0 0.0
  %360 = vmatprep.subr.mxu0 0.0
  %361 = vmatpush1.msra.mxu0 0.0
  %362 = vmatprep.subr.mxu0 0.0
  %363 = vmatpush1.msra.mxu0 0.0
  %364 = vmatprep.subr.mxu0 0.0
  %365 = vmatpush1.msra.mxu0 0.0
  %366 = vmatprep.subr.mxu0 0.0
  %367 = vmatpush1.msra.mxu0 0.0
  %368 = vmatprep.subr.mxu0 0.0
  %369 = vmatpush1.msra.mxu0 0.0
  %370 = vmatprep.subr.mxu0 0.0
  %371 = vmatpush1.msra.mxu0 0.0
  %372 = vmatprep.subr.mxu0 0.0
  %373 = vmatpush1.msra.mxu0 0.0
  %374 = vmatprep.subr.mxu0 0.0
  %375 = vmatpush1.msra.mxu0 0.0
  %376 = vmatprep.subr.mxu0 0.0
  %377 = vmatpush1.msra.mxu0 0.0
  %378 = vmatprep.subr.mxu0 0.0
  %379 = vmatpush1.msra.mxu0 0.0
  %380 = vmatprep.subr.mxu0 0.0
  %381 = vmatpush1.msra.mxu0 0.0
  %382 = vmatprep.subr.mxu0 0.0
  %383 = vmatpush1.msra.mxu0 0.0
  %384 = vmatprep.subr.mxu0 0.0
  %385 = vmatpush1.msra.mxu0 0.0
  %386 = vmatprep.subr.mxu0 0.0
  %387 = vmatpush1.msra.mxu0 0.0
  %388 = vmatprep.subr.mxu0 0.0
  %389 = vmatpush1.msra.mxu0 0.0
  %390 = vmatprep.subr.mxu0 0.0
  %391 = vmatpush1.msra.mxu0 0.0
  %392 = vmatprep.subr.mxu0 0.0
  %393 = vmatpush1.msra.mxu0 0.0
  %394 = vmatprep.subr.mxu0 0.0
  %395 = vmatpush1.msra.mxu0 0.0
  %396 = vmatprep.subr.mxu0 0.0
  %397 = vmatpush1.msra.mxu0 0.0
  %398 = vmatprep.subr.mxu0 0.0
  %399 = vmatpush1.msra.mxu0 0.0
  %400 = vmatprep.subr.mxu0 0.0
  %401 = vmatpush1.msra.mxu0 0.0
  %402 = vmatprep.subr.mxu0 0.0
  %403 = vmatpush1.msra.mxu0 0.0
  %404 = vmatprep.subr.mxu0 0.0
  %405 = vmatpush1.msra.mxu0 0.0
  %406 = vmatprep.subr.mxu0 0.0
  %407 = vmatpush1.msra.mxu0 0.0
  %408 = vmatprep.subr.mxu0 0.0
  %409 = vmatpush1.msra.mxu0 0.0
  %410 = vmatprep.subr.mxu0 0.0
  %411 = vmatpush1.msra.mxu0 0.0
  %412 = vmatprep.subr.mxu0 0.0
  %413 = vmatpush1.msra.mxu0 0.0
  %414 = vmatprep.subr.mxu0 0.0
  %415 = vmatpush1.msra.mxu0 0.0
  %416 = vmatprep.mubr.f32.mxu0 0.0
  %417 = vmatmul.mubr.f32.gmra.mrb[0].mxu0 %v343
  %v418 = vpop.f32.mrb[0].mxu0
  %v419 = vadd.f32 %v340, %v418
  %v420 = vpop.f32.mrb[0].mxu0
  %421 = vmatprep.mubr.f32.mxu0 0.0
  %422 = vmatmul.mubr.f32.gmra.mrb[0].mxu0 %v346
  %v423 = vpop.f32.mrb[0].mxu0
  %v424 = vadd.f32 %v340, %v423
  %v425 = vpop.f32.mrb[0].mxu0
  %426 = vdwg.mxu0
  %v428 = vsel %vm30, %v28, 0
  %v431 = vsel %vm30, %v29, 0
  %433 = vmatprep.subr.mxu0 0.0
  %434 = vmatpush1.msra.mxu0 %v333
  %435 = vmatprep.subr.mxu0 0.0
  %436 = vmatpush1.msra.mxu0 %v350
  %437 = vmatprep.subr.mxu0 0.0
  %438 = vmatpush1.msra.mxu0 0.0
  %439 = vmatprep.subr.mxu0 0.0
  %440 = vmatpush1.msra.mxu0 0.0
  %441 = vmatprep.subr.mxu0 0.0
  %442 = vmatpush1.msra.mxu0 0.0
  %443 = vmatprep.subr.mxu0 0.0
  %444 = vmatpush1.msra.mxu0 0.0
  %445 = vmatprep.subr.mxu0 0.0
  %446 = vmatpush1.msra.mxu0 0.0
  %447 = vmatprep.subr.mxu0 0.0
  %448 = vmatpush1.msra.mxu0 0.0
  %449 = vmatprep.subr.mxu0 0.0
  %450 = vmatpush1.msra.mxu0 0.0
  %451 = vmatprep.subr.mxu0 0.0
  %452 = vmatpush1.msra.mxu0 0.0
  %453 = vmatprep.subr.mxu0 0.0
  %454 = vmatpush1.msra.mxu0 0.0
  %455 = vmatprep.subr.mxu0 0.0
  %456 = vmatpush1.msra.mxu0 0.0
  %457 = vmatprep.subr.mxu0 0.0
  %458 = vmatpush1.msra.mxu0 0.0
  %459 = vmatprep.subr.mxu0 0.0
  %460 = vmatpush1.msra.mxu0 0.0
  %461 = vmatprep.subr.mxu0 0.0
  %462 = vmatpush1.msra.mxu0 0.0
  %463 = vmatprep.subr.mxu0 0.0
  %464 = vmatpush1.msra.mxu0 0.0
  %465 = vmatprep.subr.mxu0 0.0
  %466 = vmatpush1.msra.mxu0 0.0
  %467 = vmatprep.subr.mxu0 0.0
  %468 = vmatpush1.msra.mxu0 0.0
  %469 = vmatprep.subr.mxu0 0.0
  %470 = vmatpush1.msra.mxu0 0.0
  %471 = vmatprep.subr.mxu0 0.0
  %472 = vmatpush1.msra.mxu0 0.0
  %473 = vmatprep.subr.mxu0 0.0
  %474 = vmatpush1.msra.mxu0 0.0
  %475 = vmatprep.subr.mxu0 0.0
  %476 = vmatpush1.msra.mxu0 0.0
  %477 = vmatprep.subr.mxu0 0.0
  %478 = vmatpush1.msra.mxu0 0.0
  %479 = vmatprep.subr.mxu0 0.0
  %480 = vmatpush1.msra.mxu0 0.0
  %481 = vmatprep.subr.mxu0 0.0
  %482 = vmatpush1.msra.mxu0 0.0
  %483 = vmatprep.subr.mxu0 0.0
  %484 = vmatpush1.msra.mxu0 0.0
  %485 = vmatprep.subr.mxu0 0.0
  %486 = vmatpush1.msra.mxu0 0.0
  %487 = vmatprep.subr.mxu0 0.0
  %488 = vmatpush1.msra.mxu0 0.0
  %489 = vmatprep.subr.mxu0 0.0
  %490 = vmatpush1.msra.mxu0 0.0
  %491 = vmatprep.subr.mxu0 0.0
  %492 = vmatpush1.msra.mxu0 0.0
  %493 = vmatprep.subr.mxu0 0.0
  %494 = vmatpush1.msra.mxu0 0.0
  %495 = vmatprep.subr.mxu0 0.0
  %496 = vmatpush1.msra.mxu0 0.0
  %497 = vmatprep.mubr.f32.mxu0 0.0
  %498 = vmatmul.mubr.f32.gmra.mrb[0].mxu0 %v428
  %v499 = vpop.f32.mrb[0].mxu0
  %v500 = vadd.f32 %v340, %v499
  %v501 = vpop.f32.mrb[0].mxu0
  %502 = vmatprep.mubr.f32.mxu0 0.0
  %503 = vmatmul.mubr.f32.gmra.mrb[0].mxu0 %v431
  %v504 = vpop.f32.mrb[0].mxu0
  %v505 = vadd.f32 %v340, %v504
  %v506 = vpop.f32.mrb[0].mxu0
  %507 = vdwg.mxu0
  %v508 = vadd.f32 %v419, %v500
  %v509 = vadd.f32 %v424, %v505
  %v510 = vsel %vm30, %v508, -inf
  %v511 = vsel %vm30, %v509, -inf
  %v512 = vmax.f32 %v510, %v511
  %v513 = vrot.slane %v512, 4
  %v514 = vmax.f32 %v512, %v513
  %v515 = vrot.slane %v514, 2
  %v516 = vmax.f32 %v514, %v515
  %v517 = vrot.slane %v516, 1
  %v518 = vmax.f32 %v516, %v517
  %v519 = vsel %vm30, %v508, inf
  %v520 = vsel %vm30, %v509, inf
  %v521 = vmin.f32 %v519, %v520
  %v522 = vrot.slane %v521, 4
  %v523 = vmin.f32 %v521, %v522
  %v524 = vrot.slane %v523, 2
  %v525 = vmin.f32 %v523, %v524
  %v526 = vrot.slane %v525, 1
  %v527 = vmin.f32 %v525, %v526
  %v528 = vadd.f32 %v518, %v527
  %v529 = vsel %vm30, %v528, -inf
  %530 = vmax.xlane.f32.xlu0 %v529
  %v531 = vpop.xlane.xlu0 %530
  %v532 = vsub.f32 %v528, %v531
  %v533 = vmul.f32 %v532, 1.442695
  %v534 = vpow.pop %v533
  %v535 = vsel %vm30, %v534, 0.0
  %536 = vadd.xlane.f32.xlu0 %v535
  %v537 = vpop.xlane.xlu0 %536
  %v538 = vrcp.pop %v537
  %v539 = vmul.f32 %v534, %v538
  %vm540 = vcmask 73728
  %541 = vst.msk [vmem:[%s3 + $0x8] sm:$0x1] %vm540, %v539
  // Predicated region
  $region14: #{deephar_forward.5} parent=0 // pred_check
    _
  $region15: #{deephar_forward.5} parent=0 // pred_check_branch
    %543 = sbr.rel (0) target = $region17
  $region16: #{deephar_forward.5} parent=0 // pred_region
    _
  $region17: #{deephar_forward.5} parent=0 // pred_fallthru
    _
  // Predicated region
  $region18: #{deephar_forward.5} parent=0 // pred_check
    _
  $region19: #{deephar_forward.5} parent=0 // pred_check_branch
    %545 = sbr.rel (0) target = $region21
  $region20: #{deephar_forward.5} parent=0 // pred_region
    _
  $region21: #{deephar_forward.5} parent=0 // pred_fallthru
    _

// kernel: deephar_forward.4
$region0: #{deephar_forward.4}
  #allocation0 [shape = 'u32[]', space=smem, size = 0x4, offset = 0x4, fixed_abs, tag = 'smem constant byte address 0x4 - core index']
  #allocation1 [shape = 'u32[144,128]{1,0:T(1,128)}', space=vmem, size = 0x12000, scoped, tag = 'internal scratch']
  %s0 = inlined_call_operand.vmem [shape: f32[2,16,128], index: 0, kind: input, shape index: {}]
  %s1 = inlined_call_operand.vmem [shape: f32[2,128,32], index: 1, kind: input, shape index: {}]
  %s2 = inlined_call_operand.vmem [shape: f32[2,1,32], index: 2, kind: input, shape index: {}]
  %s3 = inlined_call_operand.vmem [shape: f32[2,4,32,32], index: 3, kind: input, shape index: {}]
  %s4 = inlined_call_operand.vmem [shape: f32[2,4,1,32], index: 4, kind: input, shape index: {}, may-alias: {4,8}]
  %s5 = inlined_call_operand.vmem [shape: f32[2,4,32,10], index: 5, kind: input, shape index: {}]
  %s6 = inlined_call_operand.vmem [shape: f32[2,4,1,10], index: 6, kind: input, shape index: {}]
  %s7 = inlined_call_operand.vmem [shape: f32[2,4,10,32], index: 7, kind: input, shape index: {}]
  %s8 = inlined_call_operand.vmem [shape: f32[2,4,1,32], index: 8, kind: input, shape index: {}, may-alias: {4,8}]
  %s9 = inlined_call_operand.vmem [shape: f32[2,4,16,10], index: 9, kind: output, shape index: {}]
  %s10 = sld [smem:[#allocation0]]
  $region69: #{deephar_forward.4} parent=0
    _
  %s12 = ssub.s32 1, %s10
  %s13 = scalar_select 0, %s12, %s10
  loop: start=0, step=1, limit=4
  $region2: #{deephar_forward.4} parent=0 // loop_pre_header
    _
  $region3: #{deephar_forward.4} parent=0 // loop_header
    %s15 = sphi 0, %s19
    %p16 = scmp.ge.s32.totalorder %s15, 4
    %s25 = sphi 0, %s27
    %s28 = sphi 0, %s25
    %s29 = sphi 0, %s28
    %s45 = sphi 0, %s29
    %s51 = sphi 0, %s53
    %s54 = sphi 0, %s51
    %s55 = sphi 0, %s54
    %s71 = sphi 0, %s55
    %s77 = sphi 0, %s79
    %s80 = sphi 0, %s77
    %s81 = sphi 0, %s80
    %s97 = sphi 0, %s81
    %s103 = sphi 0, %s105
    %s106 = sphi 0, %s103
    %s107 = sphi 0, %s106
    %s123 = sphi 0, %s107
    %s129 = sphi 0, %s131
    %s132 = sphi 0, %s129
    %s133 = sphi 0, %s132
    %s149 = sphi 0, %s133
    %s155 = sphi 0, %s157
    %s158 = sphi 0, %s155
    %s159 = sphi 0, %s158
    %s175 = sphi 0, %s159
    %s181 = sphi 0, %s183
    %s184 = sphi 0, %s181
    %s185 = sphi 0, %s184
    %s201 = sphi 0, %s185
    %s207 = sphi 0, %s209
    %s210 = sphi 0, %s207
    %s211 = sphi 0, %s210
    %s227 = sphi 0, %s211
    %s233 = sphi 0, %s235
    %s236 = sphi 0, %s233
    %s237 = sphi 0, %s236
    %s253 = sphi 0, %s237
    %s259 = sphi 0, %s261
    %s262 = sphi 0, %s259
    %s263 = sphi 0, %s262
    %s279 = sphi 0, %s263
  $region4: #{deephar_forward.4} parent=0 // loop_header_branch
    %18 = sbr.rel (%p16) target = $region8
  $region5: #{deephar_forward.4} parent=0 // loop_body
    %s20 = ssub.s32 %s15, 1
    %s21 = ssub.s32 %s15, 2
    %s22 = sadd.s32 %s15, 1
    %s23 = ssub.s32 %s15, %s22
    %p24 = scmp.eq.s32.totalorder %s23, 0
    %s26 = sadd.s32 %s25, 1
    %s27 = scalar_select %p24, %s25, %s26
    %p30 = pneg %p24
    %p31 = scmp.eq.s32.totalorder %s15, 1
    %p32 = por %p30, %p31
    %p33 = scmp.ne.s32.totalorder %s25, %s28
    %p34 = scmp.eq.s32.totalorder %s15, 0
    %p35 = por %p33, %p34
    %p36 = scmp.ne.s32.totalorder %s25, %s28
    %p37 = scmp.eq.s32.totalorder %s20, 1
    %p38 = por %p36, %p37
    %p39 = scmp.ne.s32.totalorder %s28, %s29
    %p40 = scmp.eq.s32.totalorder %s20, 0
    %p41 = por %p39, %p40
    %p42 = scmp.ne.s32.totalorder %s28, %s29
    %p43 = scmp.eq.s32.totalorder %s21, 1
    %p44 = por %p42, %p43
    %p46 = scmp.ne.s32.totalorder %s29, %s45
    %p47 = scmp.eq.s32.totalorder %s21, 0
    %p48 = por %p46, %p47
    %s49 = ssub.s32 %s15, %s22
    %p50 = scmp.eq.s32.totalorder %s49, 0
    %s52 = sadd.s32 %s51, 1
    %s53 = scalar_select %p50, %s51, %s52
    %p56 = pneg %p50
    %p57 = scmp.eq.s32.totalorder %s15, 1
    %p58 = por %p56, %p57
    %p59 = scmp.ne.s32.totalorder %s51, %s54
    %p60 = scmp.eq.s32.totalorder %s15, 0
    %p61 = por %p59, %p60
    %p62 = scmp.ne.s32.totalorder %s51, %s54
    %p63 = scmp.eq.s32.totalorder %s20, 1
    %p64 = por %p62, %p63
    %p65 = scmp.ne.s32.totalorder %s54, %s55
    %p66 = scmp.eq.s32.totalorder %s20, 0
    %p67 = por %p65, %p66
    %p68 = scmp.ne.s32.totalorder %s54, %s55
    %p69 = scmp.eq.s32.totalorder %s21, 1
    %p70 = por %p68, %p69
    %p72 = scmp.ne.s32.totalorder %s55, %s71
    %p73 = scmp.eq.s32.totalorder %s21, 0
    %p74 = por %p72, %p73
    %s75 = ssub.s32 %s15, %s22
    %p76 = scmp.eq.s32.totalorder %s75, 0
    %s78 = sadd.s32 %s77, 1
    %s79 = scalar_select %p76, %s77, %s78
    %p82 = pneg %p76
    %p83 = scmp.eq.s32.totalorder %s15, 1
    %p84 = por %p82, %p83
    %p85 = scmp.ne.s32.totalorder %s77, %s80
    %p86 = scmp.eq.s32.totalorder %s15, 0
    %p87 = por %p85, %p86
    %p88 = scmp.ne.s32.totalorder %s77, %s80
    %p89 = scmp.eq.s32.totalorder %s20, 1
    %p90 = por %p88, %p89
    %p91 = scmp.ne.s32.totalorder %s80, %s81
    %p92 = scmp.eq.s32.totalorder %s20, 0
    %p93 = por %p91, %p92
    %p94 = scmp.ne.s32.totalorder %s80, %s81
    %p95 = scmp.eq.s32.totalorder %s21, 1
    %p96 = por %p94, %p95
    %p98 = scmp.ne.s32.totalorder %s81, %s97
    %p99 = scmp.eq.s32.totalorder %s21, 0
    %p100 = por %p98, %p99
    %s101 = ssub.s32 %s15, %s22
    %p102 = scmp.eq.s32.totalorder %s101, 0
    %s104 = sadd.s32 %s103, 1
    %s105 = scalar_select %p102, %s103, %s104
    %p108 = pneg %p102
    %p109 = scmp.eq.s32.totalorder %s15, 1
    %p110 = por %p108, %p109
    %p111 = scmp.ne.s32.totalorder %s103, %s106
    %p112 = scmp.eq.s32.totalorder %s15, 0
    %p113 = por %p111, %p112
    %p114 = scmp.ne.s32.totalorder %s103, %s106
    %p115 = scmp.eq.s32.totalorder %s20, 1
    %p116 = por %p114, %p115
    %p117 = scmp.ne.s32.totalorder %s106, %s107
    %p118 = scmp.eq.s32.totalorder %s20, 0
    %p119 = por %p117, %p118
    %p120 = scmp.ne.s32.totalorder %s106, %s107
    %p121 = scmp.eq.s32.totalorder %s21, 1
    %p122 = por %p120, %p121
    %p124 = scmp.ne.s32.totalorder %s107, %s123
    %p125 = scmp.eq.s32.totalorder %s21, 0
    %p126 = por %p124, %p125
    %s127 = ssub.s32 %s15, %s22
    %p128 = scmp.eq.s32.totalorder %s127, 0
    %s130 = sadd.s32 %s129, 1
    %s131 = scalar_select %p128, %s129, %s130
    %p134 = pneg %p128
    %p135 = scmp.eq.s32.totalorder %s15, 1
    %p136 = por %p134, %p135
    %p137 = scmp.ne.s32.totalorder %s129, %s132
    %p138 = scmp.eq.s32.totalorder %s15, 0
    %p139 = por %p137, %p138
    %p140 = scmp.ne.s32.totalorder %s129, %s132
    %p141 = scmp.eq.s32.totalorder %s20, 1
    %p142 = por %p140, %p141
    %p143 = scmp.ne.s32.totalorder %s132, %s133
    %p144 = scmp.eq.s32.totalorder %s20, 0
    %p145 = por %p143, %p144
    %p146 = scmp.ne.s32.totalorder %s132, %s133
    %p147 = scmp.eq.s32.totalorder %s21, 1
    %p148 = por %p146, %p147
    %p150 = scmp.ne.s32.totalorder %s133, %s149
    %p151 = scmp.eq.s32.totalorder %s21, 0
    %p152 = por %p150, %p151
    %s153 = ssub.s32 %s15, %s22
    %p154 = scmp.eq.s32.totalorder %s153, 0
    %s156 = sadd.s32 %s155, 1
    %s157 = scalar_select %p154, %s155, %s156
    %p160 = pneg %p154
    %p161 = scmp.eq.s32.totalorder %s15, 1
    %p162 = por %p160, %p161
    %p163 = scmp.ne.s32.totalorder %s155, %s158
    %p164 = scmp.eq.s32.totalorder %s15, 0
    %p165 = por %p163, %p164
    %p166 = scmp.ne.s32.totalorder %s155, %s158
    %p167 = scmp.eq.s32.totalorder %s20, 1
    %p168 = por %p166, %p167
    %p169 = scmp.ne.s32.totalorder %s158, %s159
    %p170 = scmp.eq.s32.totalorder %s20, 0
    %p171 = por %p169, %p170
    %p172 = scmp.ne.s32.totalorder %s158, %s159
    %p173 = scmp.eq.s32.totalorder %s21, 1
    %p174 = por %p172, %p173
    %p176 = scmp.ne.s32.totalorder %s159, %s175
    %p177 = scmp.eq.s32.totalorder %s21, 0
    %p178 = por %p176, %p177
    %s179 = ssub.s32 %s15, %s22
    %p180 = scmp.eq.s32.totalorder %s179, 0
    %s182 = sadd.s32 %s181, 1
    %s183 = scalar_select %p180, %s181, %s182
    %p186 = pneg %p180
    %p187 = scmp.eq.s32.totalorder %s15, 1
    %p188 = por %p186, %p187
    %p189 = scmp.ne.s32.totalorder %s181, %s184
    %p190 = scmp.eq.s32.totalorder %s15, 0
    %p191 = por %p189, %p190
    %p192 = scmp.ne.s32.totalorder %s181, %s184
    %p193 = scmp.eq.s32.totalorder %s20, 1
    %p194 = por %p192, %p193
    %p195 = scmp.ne.s32.totalorder %s184, %s185
    %p196 = scmp.eq.s32.totalorder %s20, 0
    %p197 = por %p195, %p196
    %p198 = scmp.ne.s32.totalorder %s184, %s185
    %p199 = scmp.eq.s32.totalorder %s21, 1
    %p200 = por %p198, %p199
    %p202 = scmp.ne.s32.totalorder %s185, %s201
    %p203 = scmp.eq.s32.totalorder %s21, 0
    %p204 = por %p202, %p203
    %s205 = ssub.s32 %s15, %s22
    %p206 = scmp.eq.s32.totalorder %s205, 0
    %s208 = sadd.s32 %s207, 1
    %s209 = scalar_select %p206, %s207, %s208
    %p212 = pneg %p206
    %p213 = scmp.eq.s32.totalorder %s15, 1
    %p214 = por %p212, %p213
    %p215 = scmp.ne.s32.totalorder %s207, %s210
    %p216 = scmp.eq.s32.totalorder %s15, 0
    %p217 = por %p215, %p216
    %p218 = scmp.ne.s32.totalorder %s207, %s210
    %p219 = scmp.eq.s32.totalorder %s20, 1
    %p220 = por %p218, %p219
    %p221 = scmp.ne.s32.totalorder %s210, %s211
    %p222 = scmp.eq.s32.totalorder %s20, 0
    %p223 = por %p221, %p222
    %p224 = scmp.ne.s32.totalorder %s210, %s211
    %p225 = scmp.eq.s32.totalorder %s21, 1
    %p226 = por %p224, %p225
    %p228 = scmp.ne.s32.totalorder %s211, %s227
    %p229 = scmp.eq.s32.totalorder %s21, 0
    %p230 = por %p228, %p229
    %s231 = ssub.s32 %s15, %s22
    %p232 = scmp.eq.s32.totalorder %s231, 0
    %s234 = sadd.s32 %s233, 1
    %s235 = scalar_select %p232, %s233, %s234
    %p238 = pneg %p232
    %p239 = scmp.eq.s32.totalorder %s15, 1
    %p240 = por %p238, %p239
    %p241 = scmp.ne.s32.totalorder %s233, %s236
    %p242 = scmp.eq.s32.totalorder %s15, 0
    %p243 = por %p241, %p242
    %p244 = scmp.ne.s32.totalorder %s233, %s236
    %p245 = scmp.eq.s32.totalorder %s20, 1
    %p246 = por %p244, %p245
    %p247 = scmp.ne.s32.totalorder %s236, %s237
    %p248 = scmp.eq.s32.totalorder %s20, 0
    %p249 = por %p247, %p248
    %p250 = scmp.ne.s32.totalorder %s236, %s237
    %p251 = scmp.eq.s32.totalorder %s21, 1
    %p252 = por %p250, %p251
    %p254 = scmp.ne.s32.totalorder %s237, %s253
    %p255 = scmp.eq.s32.totalorder %s21, 0
    %p256 = por %p254, %p255
    %s257 = ssub.s32 %s15, %s22
    %p258 = scmp.eq.s32.totalorder %s257, 0
    %s260 = sadd.s32 %s259, 1
    %s261 = scalar_select %p258, %s259, %s260
    %p264 = pneg %p258
    %p265 = scmp.eq.s32.totalorder %s15, 1
    %p266 = por %p264, %p265
    %p267 = scmp.ne.s32.totalorder %s259, %s262
    %p268 = scmp.eq.s32.totalorder %s15, 0
    %p269 = por %p267, %p268
    %p270 = scmp.ne.s32.totalorder %s259, %s262
    %p271 = scmp.eq.s32.totalorder %s20, 1
    %p272 = por %p270, %p271
    %p273 = scmp.ne.s32.totalorder %s262, %s263
    %p274 = scmp.eq.s32.totalorder %s20, 0
    %p275 = por %p273, %p274
    %p276 = scmp.ne.s32.totalorder %s262, %s263
    %p277 = scmp.eq.s32.totalorder %s21, 1
    %p278 = por %p276, %p277
    %p280 = scmp.ne.s32.totalorder %s263, %s279
    %p281 = scmp.eq.s32.totalorder %s21, 0
    %p282 = por %p280, %p281
    %p283 = scmp.le.s32.totalorder 1, %s15
    %p284 = scmp.lt.s32.totalorder %s15, 3
    %p285 = pnand %p283, %p284
    %p286 = pneg %p285
    // Predicated region
    $region9: #{deephar_forward.4} parent=5 // pred_check
      _
    $region10: #{deephar_forward.4} parent=5 // pred_check_branch
      %288 = sbr.rel (%p285) target = $region12
    $region11: #{deephar_forward.4} parent=5 // pred_region
      %s289 = ssub.s32 %s15, 1
    $region12: #{deephar_forward.4} parent=5 // pred_fallthru
      _
    %p290 = scmp.lt.s32.totalorder %s15, 2
    // Predicated region
    $region13: #{deephar_forward.4} parent=5 // pred_check
      %p291 = pneg %p290
    $region14: #{deephar_forward.4} parent=5 // pred_check_branch
      %293 = sbr.rel (%p291) target = $region16
    $region15: #{deephar_forward.4} parent=5 // pred_region
      // Predicated region
      $region17: #{deephar_forward.4} parent=15 // pred_check
        %p294 = pneg %p35
      $region18: #{deephar_forward.4} parent=15 // pred_check_branch
        %296 = sbr.rel (%p294) target = $region20
      $region19: #{deephar_forward.4} parent=15 // pred_region
        %p297 = scmp.lt.s32.totalorder %s15, 1
        %s298 = scalar_select %p297, %s15, 1
        %s299 = smul.addr %s298, 2
        %s300 = smul.addr %s299, 8
        %s301 = scalar_lea.vmem %s0, %s300
      $region20: #{deephar_forward.4} parent=15 // pred_fallthru
        _
      // Predicated region
      $region21: #{deephar_forward.4} parent=15 // pred_check
        %p302 = pneg %p61
      $region22: #{deephar_forward.4} parent=15 // pred_check_branch
        %304 = sbr.rel (%p302) target = $region24
      $region23: #{deephar_forward.4} parent=15 // pred_region
        %p305 = scmp.lt.s32.totalorder %s15, 1
        %s306 = scalar_select %p305, %s15, 1
        %s307 = smul.addr %s306, 16
        %s308 = smul.addr %s307, 8
        %s309 = scalar_lea.vmem %s1, %s308
      $region24: #{deephar_forward.4} parent=15 // pred_fallthru
        _
      // Predicated region
      $region25: #{deephar_forward.4} parent=15 // pred_check
        %p310 = pneg %p87
      $region26: #{deephar_forward.4} parent=15 // pred_check_branch
        %312 = sbr.rel (%p310) target = $region28
      $region27: #{deephar_forward.4} parent=15 // pred_region
        %p313 = scmp.lt.s32.totalorder %s15, 1
        %s314 = scalar_select %p313, %s15, 1
        %s315 = scalar_lea.vmem %s2, %s314
      $region28: #{deephar_forward.4} parent=15 // pred_fallthru
        _
      // Predicated region
      $region29: #{deephar_forward.4} parent=15 // pred_check
        %p316 = pneg %p113
      $region30: #{deephar_forward.4} parent=15 // pred_check_branch
        %318 = sbr.rel (%p316) target = $region32
      $region31: #{deephar_forward.4} parent=15 // pred_region
        %p319 = scmp.lt.s32.totalorder %s15, 1
        %s320 = scalar_select %p319, %s15, 1
        %s321 = smul.addr %s320, 16
        %s322 = smul.addr %s321, 8
        %s323 = scalar_lea.vmem %s3, %s322
      $region32: #{deephar_forward.4} parent=15 // pred_fallthru
        _
      // Predicated region
      $region33: #{deephar_forward.4} parent=15 // pred_check
        %p324 = pneg %p139
      $region34: #{deephar_forward.4} parent=15 // pred_check_branch
        %326 = sbr.rel (%p324) target = $region36
      $region35: #{deephar_forward.4} parent=15 // pred_region
        %p327 = scmp.lt.s32.totalorder %s15, 1
        %s328 = scalar_select %p327, %s15, 1
        %s329 = smul.addr %s328, 4
        %s330 = scalar_lea.vmem %s4, %s329
      $region36: #{deephar_forward.4} parent=15 // pred_fallthru
        _
      // Predicated region
      $region37: #{deephar_forward.4} parent=15 // pred_check
        %p331 = pneg %p165
      $region38: #{deephar_forward.4} parent=15 // pred_check_branch
        %333 = sbr.rel (%p331) target = $region40
      $region39: #{deephar_forward.4} parent=15 // pred_region
        %p334 = scmp.lt.s32.totalorder %s15, 1
        %s335 = scalar_select %p334, %s15, 1
        %s336 = smul.addr %s335, 16
        %s337 = smul.addr %s336, 8
        %s338 = scalar_lea.vmem %s5, %s337
      $region40: #{deephar_forward.4} parent=15 // pred_fallthru
        _
      // Predicated region
      $region41: #{deephar_forward.4} parent=15 // pred_check
        %p339 = pneg %p191
      $region42: #{deephar_forward.4} parent=15 // pred_check_branch
        %341 = sbr.rel (%p339) target = $region44
      $region43: #{deephar_forward.4} parent=15 // pred_region
        %p342 = scmp.lt.s32.totalorder %s15, 1
        %s343 = scalar_select %p342, %s15, 1
        %s344 = smul.addr %s343, 4
        %s345 = scalar_lea.vmem %s6, %s344
      $region44: #{deephar_forward.4} parent=15 // pred_fallthru
        _
      // Predicated region
      $region45: #{deephar_forward.4} parent=15 // pred_check
        %p346 = pneg %p217
      $region46: #{deephar_forward.4} parent=15 // pred_check_branch
        %348 = sbr.rel (%p346) target = $region48
      $region47: #{deephar_forward.4} parent=15 // pred_region
        %p349 = scmp.lt.s32.totalorder %s15, 1
        %s350 = scalar_select %p349, %s15, 1
        %s351 = smul.addr %s350, 8
        %s352 = smul.addr %s351, 8
        %s353 = scalar_lea.vmem %s7, %s352
      $region48: #{deephar_forward.4} parent=15 // pred_fallthru
        _
      // Predicated region
      $region49: #{deephar_forward.4} parent=15 // pred_check
        %p354 = pneg %p243
      $region50: #{deephar_forward.4} parent=15 // pred_check_branch
        %356 = sbr.rel (%p354) target = $region52
      $region51: #{deephar_forward.4} parent=15 // pred_region
        %p357 = scmp.lt.s32.totalorder %s15, 1
        %s358 = scalar_select %p357, %s15, 1
        %s359 = smul.addr %s358, 4
        %s360 = scalar_lea.vmem %s8, %s359
      $region52: #{deephar_forward.4} parent=15 // pred_fallthru
        _
    $region16: #{deephar_forward.4} parent=5 // pred_fallthru
      _
    %p361 = scmp.le.s32.totalorder 1, %s15
    %p362 = scmp.lt.s32.totalorder %s15, 3
    %p363 = pnand %p361, %p362
    %p364 = pneg %p363
    // Predicated region
    $region53: #{deephar_forward.4} parent=5 // pred_check
      _
    $region54: #{deephar_forward.4} parent=5 // pred_check_branch
      %366 = sbr.rel (%p363) target = $region56
    $region55: #{deephar_forward.4} parent=5 // pred_region
      %s367 = ssub.s32 %s15, 1
      %p368 = scmp.lt.s32.totalorder %s20, 1
      %s369 = scalar_select %p368, %s20, 1
      %s370 = smul.addr %s369, 2
      %s371 = smul.addr %s370, 8
      %s372 = scalar_lea.vmem %s0, %s371
      %p373 = pneg %p41
      %p374 = pneg %p38
      %p375 = scmp.lt.s32.totalorder %s20, 1
      %s376 = scalar_select %p375, %s20, 1
      %s377 = smul.addr %s376, 16
      %s378 = smul.addr %s377, 8
      %s379 = scalar_lea.vmem %s1, %s378
      %p380 = pneg %p67
      %p381 = pneg %p64
      %p382 = scmp.lt.s32.totalorder %s20, 1
      %s383 = scalar_select %p382, %s20, 1
      %s384 = scalar_lea.vmem %s2, %s383
      %p385 = pneg %p93
      %p386 = pneg %p90
      %p387 = scmp.lt.s32.totalorder %s20, 1
      %s388 = scalar_select %p387, %s20, 1
      %s389 = smul.addr %s388, 16
      %s390 = smul.addr %s389, 8
      %s391 = scalar_lea.vmem %s3, %s390
      %p392 = pneg %p119
      %p393 = pneg %p116
      %p394 = scmp.lt.s32.totalorder %s20, 1
      %s395 = scalar_select %p394, %s20, 1
      %s396 = smul.addr %s395, 4
      %s397 = scalar_lea.vmem %s4, %s396
      %p398 = pneg %p145
      %p399 = pneg %p142
      %p400 = scmp.lt.s32.totalorder %s20, 1
      %s401 = scalar_select %p400, %s20, 1
      %s402 = smul.addr %s401, 16
      %s403 = smul.addr %s402, 8
      %s404 = scalar_lea.vmem %s5, %s403
      %p405 = pneg %p171
      %p406 = pneg %p168
      %p407 = scmp.lt.s32.totalorder %s20, 1
      %s408 = scalar_select %p407, %s20, 1
      %s409 = smul.addr %s408, 4
      %s410 = scalar_lea.vmem %s6, %s409
      %p411 = pneg %p197
      %p412 = pneg %p194
      %p413 = scmp.lt.s32.totalorder %s20, 1
      %s414 = scalar_select %p413, %s20, 1
      %s415 = smul.addr %s414, 8
      %s416 = smul.addr %s415, 8
      %s417 = scalar_lea.vmem %s7, %s416
      %p418 = pneg %p223
      %p419 = pneg %p220
      %p420 = scmp.lt.s32.totalorder %s20, 1
      %s421 = scalar_select %p420, %s20, 1
      %s422 = smul.addr %s421, 4
      %s423 = scalar_lea.vmem %s8, %s422
      %p424 = pneg %p249
      %p425 = pneg %p246
      %p426 = pneg %p275
      %p427 = pneg %p272
      %p428 = scmp.lt.s32.totalorder %s20, 1
      %s429 = scalar_select %p428, %s20, 1
      %s430 = smul.addr %s429, 8
      %s431 = smul.addr %s430, 8
      %s432 = scalar_lea.vmem %s9, %s431
      %p433 = scmp.lt.s32.totalorder %s20, 1
      %s434 = scalar_select %p433, %s20, 1
      %s435 = smul.addr %s434, 2
      %s436 = smul.addr %s435, 8
      %s437 = scalar_lea.vmem %s0, %s436
      %p438 = scmp.lt.s32.totalorder %s20, 1
      %s439 = scalar_select %p438, %s20, 1
      %s440 = smul.addr %s439, 16
      %s441 = smul.addr %s440, 8
      %s442 = scalar_lea.vmem %s1, %s441
      %p443 = scmp.lt.s32.totalorder %s20, 1
      %s444 = scalar_select %p443, %s20, 1
      %s445 = scalar_lea.vmem %s2, %s444
      %p446 = scmp.lt.s32.totalorder %s20, 1
      %s447 = scalar_select %p446, %s20, 1
      %s448 = smul.addr %s447, 16
      %s449 = smul.addr %s448, 8
      %s450 = scalar_lea.vmem %s3, %s449
      %p451 = scmp.lt.s32.totalorder %s20, 1
      %s452 = scalar_select %p451, %s20, 1
      %s453 = smul.addr %s452, 4
      %s454 = scalar_lea.vmem %s4, %s453
      %p455 = scmp.lt.s32.totalorder %s20, 1
      %s456 = scalar_select %p455, %s20, 1
      %s457 = smul.addr %s456, 16
      %s458 = smul.addr %s457, 8
      %s459 = scalar_lea.vmem %s5, %s458
      %p460 = scmp.lt.s32.totalorder %s20, 1
      %s461 = scalar_select %p460, %s20, 1
      %s462 = smul.addr %s461, 4
      %s463 = scalar_lea.vmem %s6, %s462
      %p464 = scmp.lt.s32.totalorder %s20, 1
      %s465 = scalar_select %p464, %s20, 1
      %s466 = smul.addr %s465, 8
      %s467 = smul.addr %s466, 8
      %s468 = scalar_lea.vmem %s7, %s467
      %p469 = scmp.lt.s32.totalorder %s20, 1
      %s470 = scalar_select %p469, %s20, 1
      %s471 = smul.addr %s470, 4
      %s472 = scalar_lea.vmem %s8, %s471
      %p473 = scmp.lt.s32.totalorder %s20, 1
      %s474 = scalar_select %p473, %s20, 1
      %s475 = smul.addr %s474, 8
      %s476 = smul.addr %s475, 8
      %s477 = scalar_lea.vmem %s9, %s476
      %v478 = vld [vmem:[%s437] sm:$0xff]
      %v479 = vld [vmem:[%s437 + $0x8] sm:$0xff]
      %v480 = vld [vmem:[%s442] sm:$0xff]
      %v481 = vld [vmem:[%s442 + $0x8] sm:$0xff]
      %v482 = vld [vmem:[%s442 + $0x10] sm:$0xff]
      %v483 = vld [vmem:[%s442 + $0x18] sm:$0xff]
      %v484 = vld [vmem:[%s442 + $0x20] sm:$0xff]
      %v485 = vld [vmem:[%s442 + $0x28] sm:$0xff]
      %v486 = vld [vmem:[%s442 + $0x30] sm:$0xff]
      %v487 = vld [vmem:[%s442 + $0x38] sm:$0xff]
      %v488 = vld [vmem:[%s442 + $0x40] sm:$0xff]
      %v489 = vld [vmem:[%s442 + $0x48] sm:$0xff]
      %v490 = vld [vmem:[%s442 + $0x50] sm:$0xff]
      %v491 = vld [vmem:[%s442 + $0x58] sm:$0xff]
      %v492 = vld [vmem:[%s442 + $0x60] sm:$0xff]
      %v493 = vld [vmem:[%s442 + $0x68] sm:$0xff]
      %v494 = vld [vmem:[%s442 + $0x70] sm:$0xff]
      %v495 = vld [vmem:[%s442 + $0x78] sm:$0xff]
      %v496 = vld [vmem:[%s445] sm:$0x1]
      %v498 = vlaneseq
      %v499 = vshrl.u32 %v498, 7
      %v500 = vsub.s32 0, %v499
      %v501 = vrot.slane %v496, %v500
      %503 = vmatprep.subr.mxu0 0.0
      %504 = vmatpush1.msra.mxu0 %v480
      %505 = vmatprep.subr.mxu0 0.0
      %506 = vmatpush1.msra.mxu0 %v481
      %507 = vmatprep.subr.mxu0 0.0
      %508 = vmatpush1.msra.mxu0 %v482
      %509 = vmatprep.subr.mxu0 0.0
      %510 = vmatpush1.msra.mxu0 %v483
      %511 = vmatprep.subr.mxu0 0.0
      %512 = vmatpush1.msra.mxu0 %v484
      %513 = vmatprep.subr.mxu0 0.0
      %514 = vmatpush1.msra.mxu0 %v485
      %515 = vmatprep.subr.mxu0 0.0
      %516 = vmatpush1.msra.mxu0 %v486
      %517 = vmatprep.subr.mxu0 0.0
      %518 = vmatpush1.msra.mxu0 %v487
      %519 = vmatprep.subr.mxu0 0.0
      %520 = vmatpush1.msra.mxu0 %v488
      %521 = vmatprep.subr.mxu0 0.0
      %522 = vmatpush1.msra.mxu0 %v489
      %523 = vmatprep.subr.mxu0 0.0
      %524 = vmatpush1.msra.mxu0 %v490
      %525 = vmatprep.subr.mxu0 0.0
      %526 = vmatpush1.msra.mxu0 %v491
      %527 = vmatprep.subr.mxu0 0.0
      %528 = vmatpush1.msra.mxu0 %v492
      %529 = vmatprep.subr.mxu0 0.0
      %530 = vmatpush1.msra.mxu0 %v493
      %531 = vmatprep.subr.mxu0 0.0
      %532 = vmatpush1.msra.mxu0 %v494
      %533 = vmatprep.subr.mxu0 0.0
      %534 = vmatpush1.msra.mxu0 %v495
      %535 = vmatprep.subr.mxu0 0.0
      %536 = vmatpush1.msra.mxu0 0.0
      %537 = vmatprep.subr.mxu0 0.0
      %538 = vmatpush1.msra.mxu0 0.0
      %539 = vmatprep.subr.mxu0 0.0
      %540 = vmatpush1.msra.mxu0 0.0
      %541 = vmatprep.subr.mxu0 0.0
      %542 = vmatpush1.msra.mxu0 0.0
      %543 = vmatprep.subr.mxu0 0.0
      %544 = vmatpush1.msra.mxu0 0.0
      %545 = vmatprep.subr.mxu0 0.0
      %546 = vmatpush1.msra.mxu0 0.0
      %547 = vmatprep.subr.mxu0 0.0
      %548 = vmatpush1.msra.mxu0 0.0
      %549 = vmatprep.subr.mxu0 0.0
      %550 = vmatpush1.msra.mxu0 0.0
      %551 = vmatprep.subr.mxu0 0.0
      %552 = vmatpush1.msra.mxu0 0.0
      %553 = vmatprep.subr.mxu0 0.0
      %554 = vmatpush1.msra.mxu0 0.0
      %555 = vmatprep.subr.mxu0 0.0
      %556 = vmatpush1.msra.mxu0 0.0
      %557 = vmatprep.subr.mxu0 0.0
      %558 = vmatpush1.msra.mxu0 0.0
      %559 = vmatprep.subr.mxu0 0.0
      %560 = vmatpush1.msra.mxu0 0.0
      %561 = vmatprep.subr.mxu0 0.0
      %562 = vmatpush1.msra.mxu0 0.0
      %563 = vmatprep.subr.mxu0 0.0
      %564 = vmatpush1.msra.mxu0 0.0
      %565 = vmatprep.subr.mxu0 0.0
      %566 = vmatpush1.msra.mxu0 0.0
      %567 = vmatprep.mubr.f32.mxu0 0.0
      %568 = vmatmul.mubr.f32.gmra.mrb[0].mxu0 %v478
      %v569 = vpop.f32.mrb[0].mxu0
      %v570 = vadd.f32 %v501, %v569
      %v571 = vpop.f32.mrb[0].mxu0
      %572 = vmatprep.mubr.f32.mxu0 0.0
      %573 = vmatmul.mubr.f32.gmra.mrb[0].mxu0 %v479
      %v574 = vpop.f32.mrb[0].mxu0
      %v575 = vadd.f32 %v501, %v574
      %v576 = vpop.f32.mrb[0].mxu0
      %577 = vdwg.mxu0
      %v578 = vmax.f32 %v570, 0.0
      %v579 = vmax.f32 %v575, 0.0
      %v580 = vld [vmem:[%s450] sm:$0xff]
      %v581 = vld [vmem:[%s450 + $0x8] sm:$0xff]
      %v582 = vld [vmem:[%s450 + $0x10] sm:$0xff]
      %v583 = vld [vmem:[%s450 + $0x18] sm:$0xff]
      %v584 = vld [vmem:[%s454] sm:$0x1]
      %v586 = vlaneseq
      %v587 = vshrl.u32 %v586, 7
      %v588 = vsub.s32 0, %v587
      %v589 = vrot.slane %v584, %v588
      %vm591 = vcmask 261120
      %v593 = vsel %vm591, %v578, 0
      %v596 = vsel %vm591, %v579, 0
      %598 = vmatprep.subr.mxu0 0.0
      %599 = vmatpush1.msra.mxu0 %v580
      %600 = vmatprep.subr.mxu0 0.0
      %601 = vmatpush1.msra.mxu0 %v581
      %602 = vmatprep.subr.mxu0 0.0
      %603 = vmatpush1.msra.mxu0 %v582
      %604 = vmatprep.subr.mxu0 0.0
      %605 = vmatpush1.msra.mxu0 %v583
      %606 = vmatprep.subr.mxu0 0.0
      %607 = vmatpush1.msra.mxu0 0.0
      %608 = vmatprep.subr.mxu0 0.0
      %609 = vmatpush1.msra.mxu0 0.0
      %610 = vmatprep.subr.mxu0 0.0
      %611 = vmatpush1.msra.mxu0 0.0
      %612 = vmatprep.subr.mxu0 0.0
      %613 = vmatpush1.msra.mxu0 0.0
      %614 = vmatprep.subr.mxu0 0.0
      %615 = vmatpush1.msra.mxu0 0.0
      %616 = vmatprep.subr.mxu0 0.0
      %617 = vmatpush1.msra.mxu0 0.0
      %618 = vmatprep.subr.mxu0 0.0
      %619 = vmatpush1.msra.mxu0 0.0
      %620 = vmatprep.subr.mxu0 0.0
      %621 = vmatpush1.msra.mxu0 0.0
      %622 = vmatprep.subr.mxu0 0.0
      %623 = vmatpush1.msra.mxu0 0.0
      %624 = vmatprep.subr.mxu0 0.0
      %625 = vmatpush1.msra.mxu0 0.0
      %626 = vmatprep.subr.mxu0 0.0
      %627 = vmatpush1.msra.mxu0 0.0
      %628 = vmatprep.subr.mxu0 0.0
      %629 = vmatpush1.msra.mxu0 0.0
      %630 = vmatprep.subr.mxu0 0.0
      %631 = vmatpush1.msra.mxu0 0.0
      %632 = vmatprep.subr.mxu0 0.0
      %633 = vmatpush1.msra.mxu0 0.0
      %634 = vmatprep.subr.mxu0 0.0
      %635 = vmatpush1.msra.mxu0 0.0
      %636 = vmatprep.subr.mxu0 0.0
      %637 = vmatpush1.msra.mxu0 0.0
      %638 = vmatprep.subr.mxu0 0.0
      %639 = vmatpush1.msra.mxu0 0.0
      %640 = vmatprep.subr.mxu0 0.0
      %641 = vmatpush1.msra.mxu0 0.0
      %642 = vmatprep.subr.mxu0 0.0
      %643 = vmatpush1.msra.mxu0 0.0
      %644 = vmatprep.subr.mxu0 0.0
      %645 = vmatpush1.msra.mxu0 0.0
      %646 = vmatprep.subr.mxu0 0.0
      %647 = vmatpush1.msra.mxu0 0.0
      %648 = vmatprep.subr.mxu0 0.0
      %649 = vmatpush1.msra.mxu0 0.0
      %650 = vmatprep.subr.mxu0 0.0
      %651 = vmatpush1.msra.mxu0 0.0
      %652 = vmatprep.subr.mxu0 0.0
      %653 = vmatpush1.msra.mxu0 0.0
      %654 = vmatprep.subr.mxu0 0.0
      %655 = vmatpush1.msra.mxu0 0.0
      %656 = vmatprep.subr.mxu0 0.0
      %657 = vmatpush1.msra.mxu0 0.0
      %658 = vmatprep.subr.mxu0 0.0
      %659 = vmatpush1.msra.mxu0 0.0
      %660 = vmatprep.subr.mxu0 0.0
      %661 = vmatpush1.msra.mxu0 0.0
      %662 = vmatprep.mubr.f32.mxu0 0.0
      %663 = vmatmul.mubr.f32.gmra.mrb[0].mxu0 %v593
      %v664 = vpop.f32.mrb[0].mxu0
      %v665 = vadd.f32 %v589, %v664
      %v666 = vpop.f32.mrb[0].mxu0
      %667 = vmatprep.mubr.f32.mxu0 0.0
      %668 = vmatmul.mubr.f32.gmra.mrb[0].mxu0 %v596
      %v669 = vpop.f32.mrb[0].mxu0
      %v670 = vadd.f32 %v589, %v669
      %v671 = vpop.f32.mrb[0].mxu0
      %672 = vdwg.mxu0
      %v673 = vmax.f32 %v665, 0.0
      %v674 = vmax.f32 %v670, 0.0
      %v675 = vld [vmem:[%s459] sm:$0xff]
      %v676 = vld [vmem:[%s459 + $0x8] sm:$0xff]
      %v677 = vld [vmem:[%s459 + $0x10] sm:$0xff]
      %v678 = vld [vmem:[%s459 + $0x18] sm:$0xff]
      %v679 = vld [vmem:[%s463] sm:$0x1]
      %v681 = vlaneseq
      %v682 = vshrl.u32 %v681, 7
      %v683 = vsub.s32 0, %v682
      %v684 = vrot.slane %v679, %v683
      %v687 = vsel %vm591, %v673, 0
      %v690 = vsel %vm591, %v674, 0
      %692 = vmatprep.subr.mxu0 0.0
      %693 = vmatpush1.msra.mxu0 %v675
      %694 = vmatprep.subr.mxu0 0.0
      %695 = vmatpush1.msra.mxu0 %v676
      %696 = vmatprep.subr.mxu0 0.0
      %697 = vmatpush1.msra.mxu0 %v677
      %698 = vmatprep.subr.mxu0 0.0
      %699 = vmatpush1.msra.mxu0 %v678
      %700 = vmatprep.subr.mxu0 0.0
      %701 = vmatpush1.msra.mxu0 0.0
      %702 = vmatprep.subr.mxu0 0.0
      %703 = vmatpush1.msra.mxu0 0.0
      %704 = vmatprep.subr.mxu0 0.0
      %705 = vmatpush1.msra.mxu0 0.0
      %706 = vmatprep.subr.mxu0 0.0
      %707 = vmatpush1.msra.mxu0 0.0
      %708 = vmatprep.subr.mxu0 0.0
      %709 = vmatpush1.msra.mxu0 0.0
      %710 = vmatprep.subr.mxu0 0.0
      %711 = vmatpush1.msra.mxu0 0.0
      %712 = vmatprep.subr.mxu0 0.0
      %713 = vmatpush1.msra.mxu0 0.0
      %714 = vmatprep.subr.mxu0 0.0
      %715 = vmatpush1.msra.mxu0 0.0
      %716 = vmatprep.subr.mxu0 0.0
      %717 = vmatpush1.msra.mxu0 0.0
      %718 = vmatprep.subr.mxu0 0.0
      %719 = vmatpush1.msra.mxu0 0.0
      %720 = vmatprep.subr.mxu0 0.0
      %721 = vmatpush1.msra.mxu0 0.0
      %722 = vmatprep.subr.mxu0 0.0
      %723 = vmatpush1.msra.mxu0 0.0
      %724 = vmatprep.subr.mxu0 0.0
      %725 = vmatpush1.msra.mxu0 0.0
      %726 = vmatprep.subr.mxu0 0.0
      %727 = vmatpush1.msra.mxu0 0.0
      %728 = vmatprep.subr.mxu0 0.0
      %729 = vmatpush1.msra.mxu0 0.0
      %730 = vmatprep.subr.mxu0 0.0
      %731 = vmatpush1.msra.mxu0 0.0
      %732 = vmatprep.subr.mxu0 0.0
      %733 = vmatpush1.msra.mxu0 0.0
      %734 = vmatprep.subr.mxu0 0.0
      %735 = vmatpush1.msra.mxu0 0.0
      %736 = vmatprep.subr.mxu0 0.0
      %737 = vmatpush1.msra.mxu0 0.0
      %738 = vmatprep.subr.mxu0 0.0
      %739 = vmatpush1.msra.mxu0 0.0
      %740 = vmatprep.subr.mxu0 0.0
      %741 = vmatpush1.msra.mxu0 0.0
      %742 = vmatprep.subr.mxu0 0.0
      %743 = vmatpush1.msra.mxu0 0.0
      %744 = vmatprep.subr.mxu0 0.0
      %745 = vmatpush1.msra.mxu0 0.0
      %746 = vmatprep.subr.mxu0 0.0
      %747 = vmatpush1.msra.mxu0 0.0
      %748 = vmatprep.subr.mxu0 0.0
      %749 = vmatpush1.msra.mxu0 0.0
      %750 = vmatprep.subr.mxu0 0.0
      %751 = vmatpush1.msra.mxu0 0.0
      %752 = vmatprep.subr.mxu0 0.0
      %753 = vmatpush1.msra.mxu0 0.0
      %754 = vmatprep.subr.mxu0 0.0
      %755 = vmatpush1.msra.mxu0 0.0
      %756 = vmatprep.mubr.f32.mxu0 0.0
      %757 = vmatmul.mubr.f32.gmra.mrb[0].mxu0 %v687
      %v758 = vpop.f32.mrb[0].mxu0
      %v759 = vadd.f32 %v684, %v758
      %v760 = vpop.f32.mrb[0].mxu0
      %761 = vmatprep.mubr.f32.mxu0 0.0
      %762 = vmatmul.mubr.f32.gmra.mrb[0].mxu0 %v690
      %v763 = vpop.f32.mrb[0].mxu0
      %v764 = vadd.f32 %v684, %v763
      %v765 = vpop.f32.mrb[0].mxu0
      %766 = vdwg.mxu0
      %v767 = vld [vmem:[%s468] sm:$0xff]
      %v768 = vld [vmem:[%s468 + $0x8] sm:$0x3]
      %vm769 = vcmask 80896
      %v771 = vsel %vm769, %v759, 0
      %v774 = vsel %vm769, %v764, 0
      %vm776 = vcmask 1041408
      %v778 = vsel %vm776, %v768, 0
      %780 = vmatprep.subr.mxu0 0.0
      %781 = vmatpush1.msra.mxu0 %v767
      %782 = vmatprep.subr.mxu0 0.0
      %783 = vmatpush1.msra.mxu0 %v778
      %784 = vmatprep.subr.mxu0 0.0
      %785 = vmatpush1.msra.mxu0 0.0
      %786 = vmatprep.subr.mxu0 0.0
      %787 = vmatpush1.msra.mxu0 0.0
      %788 = vmatprep.subr.mxu0 0.0
      %789 = vmatpush1.msra.mxu0 0.0
      %790 = vmatprep.subr.mxu0 0.0
      %791 = vmatpush1.msra.mxu0 0.0
      %792 = vmatprep.subr.mxu0 0.0
      %793 = vmatpush1.msra.mxu0 0.0
      %794 = vmatprep.subr.mxu0 0.0
      %795 = vmatpush1.msra.mxu0 0.0
      %796 = vmatprep.subr.mxu0 0.0
      %797 = vmatpush1.msra.mxu0 0.0
      %798 = vmatprep.subr.mxu0 0.0
      %799 = vmatpush1.msra.mxu0 0.0
      %800 = vmatprep.subr.mxu0 0.0
      %801 = vmatpush1.msra.mxu0 0.0
      %802 = vmatprep.subr.mxu0 0.0
      %803 = vmatpush1.msra.mxu0 0.0
      %804 = vmatprep.subr.mxu0 0.0
      %805 = vmatpush1.msra.mxu0 0.0
      %806 = vmatprep.subr.mxu0 0.0
      %807 = vmatpush1.msra.mxu0 0.0
      %808 = vmatprep.subr.mxu0 0.0
      %809 = vmatpush1.msra.mxu0 0.0
      %810 = vmatprep.subr.mxu0 0.0
      %811 = vmatpush1.msra.mxu0 0.0
      %812 = vmatprep.subr.mxu0 0.0
      %813 = vmatpush1.msra.mxu0 0.0
      %814 = vmatprep.subr.mxu0 0.0
      %815 = vmatpush1.msra.mxu0 0.0
      %816 = vmatprep.subr.mxu0 0.0
      %817 = vmatpush1.msra.mxu0 0.0
      %818 = vmatprep.subr.mxu0 0.0
      %819 = vmatpush1.msra.mxu0 0.0
      %820 = vmatprep.subr.mxu0 0.0
      %821 = vmatpush1.msra.mxu0 0.0
      %822 = vmatprep.subr.mxu0 0.0
      %823 = vmatpush1.msra.mxu0 0.0
      %824 = vmatprep.subr.mxu0 0.0
      %825 = vmatpush1.msra.mxu0 0.0
      %826 = vmatprep.subr.mxu0 0.0
      %827 = vmatpush1.msra.mxu0 0.0
      %828 = vmatprep.subr.mxu0 0.0
      %829 = vmatpush1.msra.mxu0 0.0
      %830 = vmatprep.subr.mxu0 0.0
      %831 = vmatpush1.msra.mxu0 0.0
      %832 = vmatprep.subr.mxu0 0.0
      %833 = vmatpush1.msra.mxu0 0.0
      %834 = vmatprep.subr.mxu0 0.0
      %835 = vmatpush1.msra.mxu0 0.0
      %836 = vmatprep.subr.mxu0 0.0
      %837 = vmatpush1.msra.mxu0 0.0
      %838 = vmatprep.subr.mxu0 0.0
      %839 = vmatpush1.msra.mxu0 0.0
      %840 = vmatprep.subr.mxu0 0.0
      %841 = vmatpush1.msra.mxu0 0.0
      %842 = vmatprep.subr.mxu0 0.0
      %843 = vmatpush1.msra.mxu0 0.0
      %844 = vmatprep.mubr.f32.mxu0 0.0
      %845 = vmatmul.mubr.f32.gmra.mrb[0].mxu0 %v771
      %v846 = vpop.f32.mrb[0].mxu0
      %v847 = vadd.f32 0.0, %v846
      %v848 = vpop.f32.mrb[0].mxu0
      %849 = vmatprep.mubr.f32.mxu0 0.0
      %850 = vmatmul.mubr.f32.gmra.mrb[0].mxu0 %v774
      %v851 = vpop.f32.mrb[0].mxu0
      %v852 = vadd.f32 0.0, %v851
      %v853 = vpop.f32.mrb[0].mxu0
      %854 = vdwg.mxu0
      %v855 = vadd.f32 %v673, %v847
      %v856 = vadd.f32 %v674, %v852
      %v857 = vld [vmem:[%s472] sm:$0x1]
      %v859 = vlaneseq
      %v860 = vshrl.u32 %v859, 7
      %v861 = vsub.s32 0, %v860
      %v862 = vrot.slane %v857, %v861
      %v864 = vadd.f32 %v855, %v862
      %v865 = vadd.f32 %v856, %v862
      %866 = vst.msk [vmem:[%s477] sm:$0xff] %vm769, %v759
      %867 = vst.msk [vmem:[%s477 + $0x8] sm:$0xff] %vm769, %v764
      %s868 = scalar_lea.vmem %s450, 32
      %v869 = vld [vmem:[%s868] sm:$0xff]
      %v870 = vld [vmem:[%s868 + $0x8] sm:$0xff]
      %v871 = vld [vmem:[%s868 + $0x10] sm:$0xff]
      %v872 = vld [vmem:[%s868 + $0x18] sm:$0xff]
      %s873 = scalar_lea.vmem %s454, 1
      %v874 = vld [vmem:[%s873] sm:$0x1]
      %v876 = vlaneseq
      %v877 = vshrl.u32 %v876, 7
      %v878 = vsub.s32 0, %v877
      %v879 = vrot.slane %v874, %v878
      %v882 = vsel %vm591, %v864, 0
      %v885 = vsel %vm591, %v865, 0
      %887 = vmatprep.subr.mxu0 0.0
      %888 = vmatpush1.msra.mxu0 %v869
      %889 = vmatprep.subr.mxu0 0.0
      %890 = vmatpush1.msra.mxu0 %v870
      %891 = vmatprep.subr.mxu0 0.0
      %892 = vmatpush1.msra.mxu0 %v871
      %893 = vmatprep.subr.mxu0 0.0
      %894 = vmatpush1.msra.mxu0 %v872
      %895 = vmatprep.subr.mxu0 0.0
      %896 = vmatpush1.msra.mxu0 0.0
      %897 = vmatprep.subr.mxu0 0.0
      %898 = vmatpush1.msra.mxu0 0.0
      %899 = vmatprep.subr.mxu0 0.0
      %900 = vmatpush1.msra.mxu0 0.0
      %901 = vmatprep.subr.mxu0 0.0
      %902 = vmatpush1.msra.mxu0 0.0
      %903 = vmatprep.subr.mxu0 0.0
      %904 = vmatpush1.msra.mxu0 0.0
      %905 = vmatprep.subr.mxu0 0.0
      %906 = vmatpush1.msra.mxu0 0.0
      %907 = vmatprep.subr.mxu0 0.0
      %908 = vmatpush1.msra.mxu0 0.0
      %909 = vmatprep.subr.mxu0 0.0
      %910 = vmatpush1.msra.mxu0 0.0
      %911 = vmatprep.subr.mxu0 0.0
      %912 = vmatpush1.msra.mxu0 0.0
      %913 = vmatprep.subr.mxu0 0.0
      %914 = vmatpush1.msra.mxu0 0.0
      %915 = vmatprep.subr.mxu0 0.0
      %916 = vmatpush1.msra.mxu0 0.0
      %917 = vmatprep.subr.mxu0 0.0
      %918 = vmatpush1.msra.mxu0 0.0
      %919 = vmatprep.subr.mxu0 0.0
      %920 = vmatpush1.msra.mxu0 0.0
      %921 = vmatprep.subr.mxu0 0.0
      %922 = vmatpush1.msra.mxu0 0.0
      %923 = vmatprep.subr.mxu0 0.0
      %924 = vmatpush1.msra.mxu0 0.0
      %925 = vmatprep.subr.mxu0 0.0
      %926 = vmatpush1.msra.mxu0 0.0
      %927 = vmatprep.subr.mxu0 0.0
      %928 = vmatpush1.msra.mxu0 0.0
      %929 = vmatprep.subr.mxu0 0.0
      %930 = vmatpush1.msra.mxu0 0.0
      %931 = vmatprep.subr.mxu0 0.0
      %932 = vmatpush1.msra.mxu0 0.0
      %933 = vmatprep.subr.mxu0 0.0
      %934 = vmatpush1.msra.mxu0 0.0
      %935 = vmatprep.subr.mxu0 0.0
      %936 = vmatpush1.msra.mxu0 0.0
      %937 = vmatprep.subr.mxu0 0.0
      %938 = vmatpush1.msra.mxu0 0.0
      %939 = vmatprep.subr.mxu0 0.0
      %940 = vmatpush1.msra.mxu0 0.0
      %941 = vmatprep.subr.mxu0 0.0
      %942 = vmatpush1.msra.mxu0 0.0
      %943 = vmatprep.subr.mxu0 0.0
      %944 = vmatpush1.msra.mxu0 0.0
      %945 = vmatprep.subr.mxu0 0.0
      %946 = vmatpush1.msra.mxu0 0.0
      %947 = vmatprep.subr.mxu0 0.0
      %948 = vmatpush1.msra.mxu0 0.0
      %949 = vmatprep.subr.mxu0 0.0
      %950 = vmatpush1.msra.mxu0 0.0
      %951 = vmatprep.mubr.f32.mxu0 0.0
      %952 = vmatmul.mubr.f32.gmra.mrb[0].mxu0 %v882
      %v953 = vpop.f32.mrb[0].mxu0
      %v954 = vadd.f32 %v879, %v953
      %v955 = vpop.f32.mrb[0].mxu0
      %956 = vmatprep.mubr.f32.mxu0 0.0
      %957 = vmatmul.mubr.f32.gmra.mrb[0].mxu0 %v885
      %v958 = vpop.f32.mrb[0].mxu0
      %v959 = vadd.f32 %v879, %v958
      %v960 = vpop.f32.mrb[0].mxu0
      %961 = vdwg.mxu0
      %v962 = vmax.f32 %v954, 0.0
      %v963 = vmax.f32 %v959, 0.0
      %s964 = scalar_lea.vmem %s459, 32
      %v965 = vld [vmem:[%s964] sm:$0xff]
      %v966 = vld [vmem:[%s964 + $0x8] sm:$0xff]
      %v967 = vld [vmem:[%s964 + $0x10] sm:$0xff]
      %v968 = vld [vmem:[%s964 + $0x18] sm:$0xff]
      %s969 = scalar_lea.vmem %s463, 1
      %v970 = vld [vmem:[%s969] sm:$0x1]
      %v972 = vlaneseq
      %v973 = vshrl.u32 %v972, 7
      %v974 = vsub.s32 0, %v973
      %v975 = vrot.slane %v970, %v974
      %v978 = vsel %vm591, %v962, 0
      %v981 = vsel %vm591, %v963, 0
      %983 = vmatprep.subr.mxu0 0.0
      %984 = vmatpush1.msra.mxu0 %v965
      %985 = vmatprep.subr.mxu0 0.0
      %986 = vmatpush1.msra.mxu0 %v966
      %987 = vmatprep.subr.mxu0 0.0
      %988 = vmatpush1.msra.mxu0 %v967
      %989 = vmatprep.subr.mxu0 0.0
      %990 = vmatpush1.msra.mxu0 %v968
      %991 = vmatprep.subr.mxu0 0.0
      %992 = vmatpush1.msra.mxu0 0.0
      %993 = vmatprep.subr.mxu0 0.0
      %994 = vmatpush1.msra.mxu0 0.0
      %995 = vmatprep.subr.mxu0 0.0
      %996 = vmatpush1.msra.mxu0 0.0
      %997 = vmatprep.subr.mxu0 0.0
      %998 = vmatpush1.msra.mxu0 0.0
      %999 = vmatprep.subr.mxu0 0.0
      %1000 = vmatpush1.msra.mxu0 0.0
      %1001 = vmatprep.subr.mxu0 0.0
      %1002 = vmatpush1.msra.mxu0 0.0
      %1003 = vmatprep.subr.mxu0 0.0
      %1004 = vmatpush1.msra.mxu0 0.0
      %1005 = vmatprep.subr.mxu0 0.0
      %1006 = vmatpush1.msra.mxu0 0.0
      %1007 = vmatprep.subr.mxu0 0.0
      %1008 = vmatpush1.msra.mxu0 0.0
      %1009 = vmatprep.subr.mxu0 0.0
      %1010 = vmatpush1.msra.mxu0 0.0
      %1011 = vmatprep.subr.mxu0 0.0
      %1012 = vmatpush1.msra.mxu0 0.0
      %1013 = vmatprep.subr.mxu0 0.0
      %1014 = vmatpush1.msra.mxu0 0.0
      %1015 = vmatprep.subr.mxu0 0.0
      %1016 = vmatpush1.msra.mxu0 0.0
      %1017 = vmatprep.subr.mxu0 0.0
      %1018 = vmatpush1.msra.mxu0 0.0
      %1019 = vmatprep.subr.mxu0 0.0
      %1020 = vmatpush1.msra.mxu0 0.0
      %1021 = vmatprep.subr.mxu0 0.0
      %1022 = vmatpush1.msra.mxu0 0.0
      %1023 = vmatprep.subr.mxu0 0.0
      %1024 = vmatpush1.msra.mxu0 0.0
      %1025 = vmatprep.subr.mxu0 0.0
      %1026 = vmatpush1.msra.mxu0 0.0
      %1027 = vmatprep.subr.mxu0 0.0
      %1028 = vmatpush1.msra.mxu0 0.0
      %1029 = vmatprep.subr.mxu0 0.0
      %1030 = vmatpush1.msra.mxu0 0.0
      %1031 = vmatprep.subr.mxu0 0.0
      %1032 = vmatpush1.msra.mxu0 0.0
      %1033 = vmatprep.subr.mxu0 0.0
      %1034 = vmatpush1.msra.mxu0 0.0
      %1035 = vmatprep.subr.mxu0 0.0
      %1036 = vmatpush1.msra.mxu0 0.0
      %1037 = vmatprep.subr.mxu0 0.0
      %1038 = vmatpush1.msra.mxu0 0.0
      %1039 = vmatprep.subr.mxu0 0.0
      %1040 = vmatpush1.msra.mxu0 0.0
      %1041 = vmatprep.subr.mxu0 0.0
      %1042 = vmatpush1.msra.mxu0 0.0
      %1043 = vmatprep.subr.mxu0 0.0
      %1044 = vmatpush1.msra.mxu0 0.0
      %1045 = vmatprep.subr.mxu0 0.0
      %1046 = vmatpush1.msra.mxu0 0.0
      %1047 = vmatprep.mubr.f32.mxu0 0.0
      %1048 = vmatmul.mubr.f32.gmra.mrb[0].mxu0 %v978
      %v1049 = vpop.f32.mrb[0].mxu0
      %v1050 = vadd.f32 %v975, %v1049
      %v1051 = vpop.f32.mrb[0].mxu0
      %1052 = vmatprep.mubr.f32.mxu0 0.0
      %1053 = vmatmul.mubr.f32.gmra.mrb[0].mxu0 %v981
      %v1054 = vpop.f32.mrb[0].mxu0
      %v1055 = vadd.f32 %v975, %v1054
      %v1056 = vpop.f32.mrb[0].mxu0
      %1057 = vdwg.mxu0
      %s1058 = scalar_lea.vmem %s468, 16
      %v1059 = vld [vmem:[%s1058] sm:$0xff]
      %v1060 = vld [vmem:[%s1058 + $0x8] sm:$0x3]
      %v1062 = vsel %vm769, %v1050, 0
      %v1065 = vsel %vm769, %v1055, 0
      %v1068 = vsel %vm776, %v1060, 0
      %1070 = vmatprep.subr.mxu0 0.0
      %1071 = vmatpush1.msra.mxu0 %v1059
      %1072 = vmatprep.subr.mxu0 0.0
      %1073 = vmatpush1.msra.mxu0 %v1068
      %1074 = vmatprep.subr.mxu0 0.0
      %1075 = vmatpush1.msra.mxu0 0.0
      %1076 = vmatprep.subr.mxu0 0.0
      %1077 = vmatpush1.msra.mxu0 0.0
      %1078 = vmatprep.subr.mxu0 0.0
      %1079 = vmatpush1.msra.mxu0 0.0
      %1080 = vmatprep.subr.mxu0 0.0
      %1081 = vmatpush1.msra.mxu0 0.0
      %1082 = vmatprep.subr.mxu0 0.0
      %1083 = vmatpush1.msra.mxu0 0.0
      %1084 = vmatprep.subr.mxu0 0.0
      %1085 = vmatpush1.msra.mxu0 0.0
      %1086 = vmatprep.subr.mxu0 0.0
      %1087 = vmatpush1.msra.mxu0 0.0
      %1088 = vmatprep.subr.mxu0 0.0
      %1089 = vmatpush1.msra.mxu0 0.0
      %1090 = vmatprep.subr.mxu0 0.0
      %1091 = vmatpush1.msra.mxu0 0.0
      %1092 = vmatprep.subr.mxu0 0.0
      %1093 = vmatpush1.msra.mxu0 0.0
      %1094 = vmatprep.subr.mxu0 0.0
      %1095 = vmatpush1.msra.mxu0 0.0
      %1096 = vmatprep.subr.mxu0 0.0
      %1097 = vmatpush1.msra.mxu0 0.0
      %1098 = vmatprep.subr.mxu0 0.0
      %1099 = vmatpush1.msra.mxu0 0.0
      %1100 = vmatprep.subr.mxu0 0.0
      %1101 = vmatpush1.msra.mxu0 0.0
      %1102 = vmatprep.subr.mxu0 0.0
      %1103 = vmatpush1.msra.mxu0 0.0
      %1104 = vmatprep.subr.mxu0 0.0
      %1105 = vmatpush1.msra.mxu0 0.0
      %1106 = vmatprep.subr.mxu0 0.0
      %1107 = vmatpush1.msra.mxu0 0.0
      %1108 = vmatprep.subr.mxu0 0.0
      %1109 = vmatpush1.msra.mxu0 0.0
      %1110 = vmatprep.subr.mxu0 0.0
      %1111 = vmatpush1.msra.mxu0 0.0
      %1112 = vmatprep.subr.mxu0 0.0
      %1113 = vmatpush1.msra.mxu0 0.0
      %1114 = vmatprep.subr.mxu0 0.0
      %1115 = vmatpush1.msra.mxu0 0.0
      %1116 = vmatprep.subr.mxu0 0.0
      %1117 = vmatpush1.msra.mxu0 0.0
      %1118 = vmatprep.subr.mxu0 0.0
      %1119 = vmatpush1.msra.mxu0 0.0
      %1120 = vmatprep.subr.mxu0 0.0
      %1121 = vmatpush1.msra.mxu0 0.0
      %1122 = vmatprep.subr.mxu0 0.0
      %1123 = vmatpush1.msra.mxu0 0.0
      %1124 = vmatprep.subr.mxu0 0.0
      %1125 = vmatpush1.msra.mxu0 0.0
      %1126 = vmatprep.subr.mxu0 0.0
      %1127 = vmatpush1.msra.mxu0 0.0
      %1128 = vmatprep.subr.mxu0 0.0
      %1129 = vmatpush1.msra.mxu0 0.0
      %1130 = vmatprep.subr.mxu0 0.0
      %1131 = vmatpush1.msra.mxu0 0.0
      %1132 = vmatprep.subr.mxu0 0.0
      %1133 = vmatpush1.msra.mxu0 0.0
      %1134 = vmatprep.mubr.f32.mxu0 0.0
      %1135 = vmatmul.mubr.f32.gmra.mrb[0].mxu0 %v1062
      %v1136 = vpop.f32.mrb[0].mxu0
      %v1137 = vadd.f32 0.0, %v1136
      %v1138 = vpop.f32.mrb[0].mxu0
      %1139 = vmatprep.mubr.f32.mxu0 0.0
      %1140 = vmatmul.mubr.f32.gmra.mrb[0].mxu0 %v1065
      %v1141 = vpop.f32.mrb[0].mxu0
      %v1142 = vadd.f32 0.0, %v1141
      %v1143 = vpop.f32.mrb[0].mxu0
      %1144 = vdwg.mxu0
      %v1145 = vadd.f32 %v962, %v1137
      %v1146 = vadd.f32 %v963, %v1142
      %s1147 = scalar_lea.vmem %s472, 1
      %v1148 = vld [vmem:[%s1147] sm:$0x1]
      %v1150 = vlaneseq
      %v1151 = vshrl.u32 %v1150, 7
      %v1152 = vsub.s32 0, %v1151
      %v1153 = vrot.slane %v1148, %v1152
      %v1155 = vadd.f32 %v1145, %v1153
      %v1156 = vadd.f32 %v1146, %v1153
      %s1157 = scalar_lea.vmem %s477, 16
      %1158 = vst.msk [vmem:[%s1157] sm:$0xff] %vm769, %v1050
      %1159 = vst.msk [vmem:[%s1157 + $0x8] sm:$0xff] %vm769, %v1055
      %s1160 = scalar_lea.vmem %s450, 64
      %v1161 = vld [vmem:[%s1160] sm:$0xff]
      %v1162 = vld [vmem:[%s1160 + $0x8] sm:$0xff]
      %v1163 = vld [vmem:[%s1160 + $0x10] sm:$0xff]
      %v1164 = vld [vmem:[%s1160 + $0x18] sm:$0xff]
      %s1165 = scalar_lea.vmem %s454, 2
      %v1166 = vld [vmem:[%s1165] sm:$0x1]
      %v1168 = vlaneseq
      %v1169 = vshrl.u32 %v1168, 7
      %v1170 = vsub.s32 0, %v1169
      %v1171 = vrot.slane %v1166, %v1170
      %v1174 = vsel %vm591, %v1155, 0
      %v1177 = vsel %vm591, %v1156, 0
      %1179 = vmatprep.subr.mxu0 0.0
      %1180 = vmatpush1.msra.mxu0 %v1161
      %1181 = vmatprep.subr.mxu0 0.0
      %1182 = vmatpush1.msra.mxu0 %v1162
      %1183 = vmatprep.subr.mxu0 0.0
      %1184 = vmatpush1.msra.mxu0 %v1163
      %1185 = vmatprep.subr.mxu0 0.0
      %1186 = vmatpush1.msra.mxu0 %v1164
      %1187 = vmatprep.subr.mxu0 0.0
      %1188 = vmatpush1.msra.mxu0 0.0
      %1189 = vmatprep.subr.mxu0 0.0
      %1190 = vmatpush1.msra.mxu0 0.0
      %1191 = vmatprep.subr.mxu0 0.0
      %1192 = vmatpush1.msra.mxu0 0.0
      %1193 = vmatprep.subr.mxu0 0.0
      %1194 = vmatpush1.msra.mxu0 0.0
      %1195 = vmatprep.subr.mxu0 0.0
      %1196 = vmatpush1.msra.mxu0 0.0
      %1197 = vmatprep.subr.mxu0 0.0
      %1198 = vmatpush1.msra.mxu0 0.0
      %1199 = vmatprep.subr.mxu0 0.0
      %1200 = vmatpush1.msra.mxu0 0.0
      %1201 = vmatprep.subr.mxu0 0.0
      %1202 = vmatpush1.msra.mxu0 0.0
      %1203 = vmatprep.subr.mxu0 0.0
      %1204 = vmatpush1.msra.mxu0 0.0
      %1205 = vmatprep.subr.mxu0 0.0
      %1206 = vmatpush1.msra.mxu0 0.0
      %1207 = vmatprep.subr.mxu0 0.0
      %1208 = vmatpush1.msra.mxu0 0.0
      %1209 = vmatprep.subr.mxu0 0.0
      %1210 = vmatpush1.msra.mxu0 0.0
      %1211 = vmatprep.subr.mxu0 0.0
      %1212 = vmatpush1.msra.mxu0 0.0
      %1213 = vmatprep.subr.mxu0 0.0
      %1214 = vmatpush1.msra.mxu0 0.0
      %1215 = vmatprep.subr.mxu0 0.0
      %1216 = vmatpush1.msra.mxu0 0.0
      %1217 = vmatprep.subr.mxu0 0.0
      %1218 = vmatpush1.msra.mxu0 0.0
      %1219 = vmatprep.subr.mxu0 0.0
      %1220 = vmatpush1.msra.mxu0 0.0
      %1221 = vmatprep.subr.mxu0 0.0
      %1222 = vmatpush1.msra.mxu0 0.0
      %1223 = vmatprep.subr.mxu0 0.0
      %1224 = vmatpush1.msra.mxu0 0.0
      %1225 = vmatprep.subr.mxu0 0.0
      %1226 = vmatpush1.msra.mxu0 0.0
      %1227 = vmatprep.subr.mxu0 0.0
      %1228 = vmatpush1.msra.mxu0 0.0
      %1229 = vmatprep.subr.mxu0 0.0
      %1230 = vmatpush1.msra.mxu0 0.0
      %1231 = vmatprep.subr.mxu0 0.0
      %1232 = vmatpush1.msra.mxu0 0.0
      %1233 = vmatprep.subr.mxu0 0.0
      %1234 = vmatpush1.msra.mxu0 0.0
      %1235 = vmatprep.subr.mxu0 0.0
      %1236 = vmatpush1.msra.mxu0 0.0
      %1237 = vmatprep.subr.mxu0 0.0
      %1238 = vmatpush1.msra.mxu0 0.0
      %1239 = vmatprep.subr.mxu0 0.0
      %1240 = vmatpush1.msra.mxu0 0.0
      %1241 = vmatprep.subr.mxu0 0.0
      %1242 = vmatpush1.msra.mxu0 0.0
      %1243 = vmatprep.mubr.f32.mxu0 0.0
      %1244 = vmatmul.mubr.f32.gmra.mrb[0].mxu0 %v1174
      %v1245 = vpop.f32.mrb[0].mxu0
      %v1246 = vadd.f32 %v1171, %v1245
      %v1247 = vpop.f32.mrb[0].mxu0
      %1248 = vmatprep.mubr.f32.mxu0 0.0
      %1249 = vmatmul.mubr.f32.gmra.mrb[0].mxu0 %v1177
      %v1250 = vpop.f32.mrb[0].mxu0
      %v1251 = vadd.f32 %v1171, %v1250
      %v1252 = vpop.f32.mrb[0].mxu0
      %1253 = vdwg.mxu0
      %v1254 = vmax.f32 %v1246, 0.0
      %v1255 = vmax.f32 %v1251, 0.0
      %s1256 = scalar_lea.vmem %s459, 64
      %v1257 = vld [vmem:[%s1256] sm:$0xff]
      %v1258 = vld [vmem:[%s1256 + $0x8] sm:$0xff]
      %v1259 = vld [vmem:[%s1256 + $0x10] sm:$0xff]
      %v1260 = vld [vmem:[%s1256 + $0x18] sm:$0xff]
      %s1261 = scalar_lea.vmem %s463, 2
      %v1262 = vld [vmem:[%s1261] sm:$0x1]
      %v1264 = vlaneseq
      %v1265 = vshrl.u32 %v1264, 7
      %v1266 = vsub.s32 0, %v1265
      %v1267 = vrot.slane %v1262, %v1266
      %v1270 = vsel %vm591, %v1254, 0
      %v1273 = vsel %vm591, %v1255, 0
      %1275 = vmatprep.subr.mxu0 0.0
      %1276 = vmatpush1.msra.mxu0 %v1257
      %1277 = vmatprep.subr.mxu0 0.0
      %1278 = vmatpush1.msra.mxu0 %v1258
      %1279 = vmatprep.subr.mxu0 0.0
      %1280 = vmatpush1.msra.mxu0 %v1259
      %1281 = vmatprep.subr.mxu0 0.0
      %1282 = vmatpush1.msra.mxu0 %v1260
      %1283 = vmatprep.subr.mxu0 0.0
      %1284 = vmatpush1.msra.mxu0 0.0
      %1285 = vmatprep.subr.mxu0 0.0
      %1286 = vmatpush1.msra.mxu0 0.0
      %1287 = vmatprep.subr.mxu0 0.0
      %1288 = vmatpush1.msra.mxu0 0.0
      %1289 = vmatprep.subr.mxu0 0.0
      %1290 = vmatpush1.msra.mxu0 0.0
      %1291 = vmatprep.subr.mxu0 0.0
      %1292 = vmatpush1.msra.mxu0 0.0
      %1293 = vmatprep.subr.mxu0 0.0
      %1294 = vmatpush1.msra.mxu0 0.0
      %1295 = vmatprep.subr.mxu0 0.0
      %1296 = vmatpush1.msra.mxu0 0.0
      %1297 = vmatprep.subr.mxu0 0.0
      %1298 = vmatpush1.msra.mxu0 0.0
      %1299 = vmatprep.subr.mxu0 0.0
      %1300 = vmatpush1.msra.mxu0 0.0
      %1301 = vmatprep.subr.mxu0 0.0
      %1302 = vmatpush1.msra.mxu0 0.0
      %1303 = vmatprep.subr.mxu0 0.0
      %1304 = vmatpush1.msra.mxu0 0.0
      %1305 = vmatprep.subr.mxu0 0.0
      %1306 = vmatpush1.msra.mxu0 0.0
      %1307 = vmatprep.subr.mxu0 0.0
      %1308 = vmatpush1.msra.mxu0 0.0
      %1309 = vmatprep.subr.mxu0 0.0
      %1310 = vmatpush1.msra.mxu0 0.0
      %1311 = vmatprep.subr.mxu0 0.0
      %1312 = vmatpush1.msra.mxu0 0.0
      %1313 = vmatprep.subr.mxu0 0.0
      %1314 = vmatpush1.msra.mxu0 0.0
      %1315 = vmatprep.subr.mxu0 0.0
      %1316 = vmatpush1.msra.mxu0 0.0
      %1317 = vmatprep.subr.mxu0 0.0
      %1318 = vmatpush1.msra.mxu0 0.0
      %1319 = vmatprep.subr.mxu0 0.0
      %1320 = vmatpush1.msra.mxu0 0.0
      %1321 = vmatprep.subr.mxu0 0.0
      %1322 = vmatpush1.msra.mxu0 0.0
      %1323 = vmatprep.subr.mxu0 0.0
      %1324 = vmatpush1.msra.mxu0 0.0
      %1325 = vmatprep.subr.mxu0 0.0
      %1326 = vmatpush1.msra.mxu0 0.0
      %1327 = vmatprep.subr.mxu0 0.0
      %1328 = vmatpush1.msra.mxu0 0.0
      %1329 = vmatprep.subr.mxu0 0.0
      %1330 = vmatpush1.msra.mxu0 0.0
      %1331 = vmatprep.subr.mxu0 0.0
      %1332 = vmatpush1.msra.mxu0 0.0
      %1333 = vmatprep.subr.mxu0 0.0
      %1334 = vmatpush1.msra.mxu0 0.0
      %1335 = vmatprep.subr.mxu0 0.0
      %1336 = vmatpush1.msra.mxu0 0.0
      %1337 = vmatprep.subr.mxu0 0.0
      %1338 = vmatpush1.msra.mxu0 0.0
      %1339 = vmatprep.mubr.f32.mxu0 0.0
      %1340 = vmatmul.mubr.f32.gmra.mrb[0].mxu0 %v1270
      %v1341 = vpop.f32.mrb[0].mxu0
      %v1342 = vadd.f32 %v1267, %v1341
      %v1343 = vpop.f32.mrb[0].mxu0
      %1344 = vmatprep.mubr.f32.mxu0 0.0
      %1345 = vmatmul.mubr.f32.gmra.mrb[0].mxu0 %v1273
      %v1346 = vpop.f32.mrb[0].mxu0
      %v1347 = vadd.f32 %v1267, %v1346
      %v1348 = vpop.f32.mrb[0].mxu0
      %1349 = vdwg.mxu0
      %s1350 = scalar_lea.vmem %s468, 32
      %v1351 = vld [vmem:[%s1350] sm:$0xff]
      %v1352 = vld [vmem:[%s1350 + $0x8] sm:$0x3]
      %v1354 = vsel %vm769, %v1342, 0
      %v1357 = vsel %vm769, %v1347, 0
      %v1360 = vsel %vm776, %v1352, 0
      %1362 = vmatprep.subr.mxu0 0.0
      %1363 = vmatpush1.msra.mxu0 %v1351
      %1364 = vmatprep.subr.mxu0 0.0
      %1365 = vmatpush1.msra.mxu0 %v1360
      %1366 = vmatprep.subr.mxu0 0.0
      %1367 = vmatpush1.msra.mxu0 0.0
      %1368 = vmatprep.subr.mxu0 0.0
      %1369 = vmatpush1.msra.mxu0 0.0
      %1370 = vmatprep.subr.mxu0 0.0
      %1371 = vmatpush1.msra.mxu0 0.0
      %1372 = vmatprep.subr.mxu0 0.0
      %1373 = vmatpush1.msra.mxu0 0.0
      %1374 = vmatprep.subr.mxu0 0.0
      %1375 = vmatpush1.msra.mxu0 0.0
      %1376 = vmatprep.subr.mxu0 0.0
      %1377 = vmatpush1.msra.mxu0 0.0
      %1378 = vmatprep.subr.mxu0 0.0
      %1379 = vmatpush1.msra.mxu0 0.0
      %1380 = vmatprep.subr.mxu0 0.0
      %1381 = vmatpush1.msra.mxu0 0.0
      %1382 = vmatprep.subr.mxu0 0.0
      %1383 = vmatpush1.msra.mxu0 0.0
      %1384 = vmatprep.subr.mxu0 0.0
      %1385 = vmatpush1.msra.mxu0 0.0
      %1386 = vmatprep.subr.mxu0 0.0
      %1387 = vmatpush1.msra.mxu0 0.0
      %1388 = vmatprep.subr.mxu0 0.0
      %1389 = vmatpush1.msra.mxu0 0.0
      %1390 = vmatprep.subr.mxu0 0.0
      %1391 = vmatpush1.msra.mxu0 0.0
      %1392 = vmatprep.subr.mxu0 0.0
      %1393 = vmatpush1.msra.mxu0 0.0
      %1394 = vmatprep.subr.mxu0 0.0
      %1395 = vmatpush1.msra.mxu0 0.0
      %1396 = vmatprep.subr.mxu0 0.0
      %1397 = vmatpush1.msra.mxu0 0.0
      %1398 = vmatprep.subr.mxu0 0.0
      %1399 = vmatpush1.msra.mxu0 0.0
      %1400 = vmatprep.subr.mxu0 0.0
      %1401 = vmatpush1.msra.mxu0 0.0
      %1402 = vmatprep.subr.mxu0 0.0
      %1403 = vmatpush1.msra.mxu0 0.0
      %1404 = vmatprep.subr.mxu0 0.0
      %1405 = vmatpush1.msra.mxu0 0.0
      %1406 = vmatprep.subr.mxu0 0.0
      %1407 = vmatpush1.msra.mxu0 0.0
      %1408 = vmatprep.subr.mxu0 0.0
      %1409 = vmatpush1.msra.mxu0 0.0
      %1410 = vmatprep.subr.mxu0 0.0
      %1411 = vmatpush1.msra.mxu0 0.0
      %1412 = vmatprep.subr.mxu0 0.0
      %1413 = vmatpush1.msra.mxu0 0.0
      %1414 = vmatprep.subr.mxu0 0.0
      %1415 = vmatpush1.msra.mxu0 0.0
      %1416 = vmatprep.subr.mxu0 0.0
      %1417 = vmatpush1.msra.mxu0 0.0
      %1418 = vmatprep.subr.mxu0 0.0
      %1419 = vmatpush1.msra.mxu0 0.0
      %1420 = vmatprep.subr.mxu0 0.0
      %1421 = vmatpush1.msra.mxu0 0.0
      %1422 = vmatprep.subr.mxu0 0.0
      %1423 = vmatpush1.msra.mxu0 0.0
      %1424 = vmatprep.subr.mxu0 0.0
      %1425 = vmatpush1.msra.mxu0 0.0
      %1426 = vmatprep.mubr.f32.mxu0 0.0
      %1427 = vmatmul.mubr.f32.gmra.mrb[0].mxu0 %v1354
      %v1428 = vpop.f32.mrb[0].mxu0
      %v1429 = vadd.f32 0.0, %v1428
      %v1430 = vpop.f32.mrb[0].mxu0
      %1431 = vmatprep.mubr.f32.mxu0 0.0
      %1432 = vmatmul.mubr.f32.gmra.mrb[0].mxu0 %v1357
      %v1433 = vpop.f32.mrb[0].mxu0
      %v1434 = vadd.f32 0.0, %v1433
      %v1435 = vpop.f32.mrb[0].mxu0
      %1436 = vdwg.mxu0
      %v1437 = vadd.f32 %v1254, %v1429
      %v1438 = vadd.f32 %v1255, %v1434
      %s1439 = scalar_lea.vmem %s472, 2
      %v1440 = vld [vmem:[%s1439] sm:$0x1]
      %v1442 = vlaneseq
      %v1443 = vshrl.u32 %v1442, 7
      %v1444 = vsub.s32 0, %v1443
      %v1445 = vrot.slane %v1440, %v1444
      %v1447 = vadd.f32 %v1437, %v1445
      %v1448 = vadd.f32 %v1438, %v1445
      %s1449 = scalar_lea.vmem %s477, 32
      %1450 = vst.msk [vmem:[%s1449] sm:$0xff] %vm769, %v1342
      %1451 = vst.msk [vmem:[%s1449 + $0x8] sm:$0xff] %vm769, %v1347
      %s1452 = scalar_lea.vmem %s450, 96
      %v1453 = vld [vmem:[%s1452] sm:$0xff]
      %v1454 = vld [vmem:[%s1452 + $0x8] sm:$0xff]
      %v1455 = vld [vmem:[%s1452 + $0x10] sm:$0xff]
      %v1456 = vld [vmem:[%s1452 + $0x18] sm:$0xff]
      %s1457 = scalar_lea.vmem %s454, 3
      %v1458 = vld [vmem:[%s1457] sm:$0x1]
      %v1460 = vlaneseq
      %v1461 = vshrl.u32 %v1460, 7
      %v1462 = vsub.s32 0, %v1461
      %v1463 = vrot.slane %v1458, %v1462
      %v1466 = vsel %vm591, %v1447, 0
      %v1469 = vsel %vm591, %v1448, 0
      %1471 = vmatprep.subr.mxu0 0.0
      %1472 = vmatpush1.msra.mxu0 %v1453
      %1473 = vmatprep.subr.mxu0 0.0
      %1474 = vmatpush1.msra.mxu0 %v1454
      %1475 = vmatprep.subr.mxu0 0.0
      %1476 = vmatpush1.msra.mxu0 %v1455
      %1477 = vmatprep.subr.mxu0 0.0
      %1478 = vmatpush1.msra.mxu0 %v1456
      %1479 = vmatprep.subr.mxu0 0.0
      %1480 = vmatpush1.msra.mxu0 0.0
      %1481 = vmatprep.subr.mxu0 0.0
      %1482 = vmatpush1.msra.mxu0 0.0
      %1483 = vmatprep.subr.mxu0 0.0
      %1484 = vmatpush1.msra.mxu0 0.0
      %1485 = vmatprep.subr.mxu0 0.0
      %1486 = vmatpush1.msra.mxu0 0.0
      %1487 = vmatprep.subr.mxu0 0.0
      %1488 = vmatpush1.msra.mxu0 0.0
      %1489 = vmatprep.subr.mxu0 0.0
      %1490 = vmatpush1.msra.mxu0 0.0
      %1491 = vmatprep.subr.mxu0 0.0
      %1492 = vmatpush1.msra.mxu0 0.0
      %1493 = vmatprep.subr.mxu0 0.0
      %1494 = vmatpush1.msra.mxu0 0.0
      %1495 = vmatprep.subr.mxu0 0.0
      %1496 = vmatpush1.msra.mxu0 0.0
      %1497 = vmatprep.subr.mxu0 0.0
      %1498 = vmatpush1.msra.mxu0 0.0
      %1499 = vmatprep.subr.mxu0 0.0
      %1500 = vmatpush1.msra.mxu0 0.0
      %1501 = vmatprep.subr.mxu0 0.0
      %1502 = vmatpush1.msra.mxu0 0.0
      %1503 = vmatprep.subr.mxu0 0.0
      %1504 = vmatpush1.msra.mxu0 0.0
      %1505 = vmatprep.subr.mxu0 0.0
      %1506 = vmatpush1.msra.mxu0 0.0
      %1507 = vmatprep.subr.mxu0 0.0
      %1508 = vmatpush1.msra.mxu0 0.0
      %1509 = vmatprep.subr.mxu0 0.0
      %1510 = vmatpush1.msra.mxu0 0.0
      %1511 = vmatprep.subr.mxu0 0.0
      %1512 = vmatpush1.msra.mxu0 0.0
      %1513 = vmatprep.subr.mxu0 0.0
      %1514 = vmatpush1.msra.mxu0 0.0
      %1515 = vmatprep.subr.mxu0 0.0
      %1516 = vmatpush1.msra.mxu0 0.0
      %1517 = vmatprep.subr.mxu0 0.0
      %1518 = vmatpush1.msra.mxu0 0.0
      %1519 = vmatprep.subr.mxu0 0.0
      %1520 = vmatpush1.msra.mxu0 0.0
      %1521 = vmatprep.subr.mxu0 0.0
      %1522 = vmatpush1.msra.mxu0 0.0
      %1523 = vmatprep.subr.mxu0 0.0
      %1524 = vmatpush1.msra.mxu0 0.0
      %1525 = vmatprep.subr.mxu0 0.0
      %1526 = vmatpush1.msra.mxu0 0.0
      %1527 = vmatprep.subr.mxu0 0.0
      %1528 = vmatpush1.msra.mxu0 0.0
      %1529 = vmatprep.subr.mxu0 0.0
      %1530 = vmatpush1.msra.mxu0 0.0
      %1531 = vmatprep.subr.mxu0 0.0
      %1532 = vmatpush1.msra.mxu0 0.0
      %1533 = vmatprep.subr.mxu0 0.0
      %1534 = vmatpush1.msra.mxu0 0.0
      %1535 = vmatprep.mubr.f32.mxu0 0.0
      %1536 = vmatmul.mubr.f32.gmra.mrb[0].mxu0 %v1466
      %v1537 = vpop.f32.mrb[0].mxu0
      %v1538 = vadd.f32 %v1463, %v1537
      %v1539 = vpop.f32.mrb[0].mxu0
      %1540 = vmatprep.mubr.f32.mxu0 0.0
      %1541 = vmatmul.mubr.f32.gmra.mrb[0].mxu0 %v1469
      %v1542 = vpop.f32.mrb[0].mxu0
      %v1543 = vadd.f32 %v1463, %v1542
      %v1544 = vpop.f32.mrb[0].mxu0
      %1545 = vdwg.mxu0
      %v1546 = vmax.f32 %v1538, 0.0
      %v1547 = vmax.f32 %v1543, 0.0
      %s1548 = scalar_lea.vmem %s459, 96
      %v1549 = vld [vmem:[%s1548] sm:$0xff]
      %v1550 = vld [vmem:[%s1548 + $0x8] sm:$0xff]
      %v1551 = vld [vmem:[%s1548 + $0x10] sm:$0xff]
      %v1552 = vld [vmem:[%s1548 + $0x18] sm:$0xff]
      %s1553 = scalar_lea.vmem %s463, 3
      %v1554 = vld [vmem:[%s1553] sm:$0x1]
      %v1556 = vlaneseq
      %v1557 = vshrl.u32 %v1556, 7
      %v1558 = vsub.s32 0, %v1557
      %v1559 = vrot.slane %v1554, %v1558
      %v1562 = vsel %vm591, %v1546, 0
      %v1565 = vsel %vm591, %v1547, 0
      %1567 = vmatprep.subr.mxu0 0.0
      %1568 = vmatpush1.msra.mxu0 %v1549
      %1569 = vmatprep.subr.mxu0 0.0
      %1570 = vmatpush1.msra.mxu0 %v1550
      %1571 = vmatprep.subr.mxu0 0.0
      %1572 = vmatpush1.msra.mxu0 %v1551
      %1573 = vmatprep.subr.mxu0 0.0
      %1574 = vmatpush1.msra.mxu0 %v1552
      %1575 = vmatprep.subr.mxu0 0.0
      %1576 = vmatpush1.msra.mxu0 0.0
      %1577 = vmatprep.subr.mxu0 0.0
      %1578 = vmatpush1.msra.mxu0 0.0
      %1579 = vmatprep.subr.mxu0 0.0
      %1580 = vmatpush1.msra.mxu0 0.0
      %1581 = vmatprep.subr.mxu0 0.0
      %1582 = vmatpush1.msra.mxu0 0.0
      %1583 = vmatprep.subr.mxu0 0.0
      %1584 = vmatpush1.msra.mxu0 0.0
      %1585 = vmatprep.subr.mxu0 0.0
      %1586 = vmatpush1.msra.mxu0 0.0
      %1587 = vmatprep.subr.mxu0 0.0
      %1588 = vmatpush1.msra.mxu0 0.0
      %1589 = vmatprep.subr.mxu0 0.0
      %1590 = vmatpush1.msra.mxu0 0.0
      %1591 = vmatprep.subr.mxu0 0.0
      %1592 = vmatpush1.msra.mxu0 0.0
      %1593 = vmatprep.subr.mxu0 0.0
      %1594 = vmatpush1.msra.mxu0 0.0
      %1595 = vmatprep.subr.mxu0 0.0
      %1596 = vmatpush1.msra.mxu0 0.0
      %1597 = vmatprep.subr.mxu0 0.0
      %1598 = vmatpush1.msra.mxu0 0.0
      %1599 = vmatprep.subr.mxu0 0.0
      %1600 = vmatpush1.msra.mxu0 0.0
      %1601 = vmatprep.subr.mxu0 0.0
      %1602 = vmatpush1.msra.mxu0 0.0
      %1603 = vmatprep.subr.mxu0 0.0
      %1604 = vmatpush1.msra.mxu0 0.0
      %1605 = vmatprep.subr.mxu0 0.0
      %1606 = vmatpush1.msra.mxu0 0.0
      %1607 = vmatprep.subr.mxu0 0.0
      %1608 = vmatpush1.msra.mxu0 0.0
      %1609 = vmatprep.subr.mxu0 0.0
      %1610 = vmatpush1.msra.mxu0 0.0
      %1611 = vmatprep.subr.mxu0 0.0
      %1612 = vmatpush1.msra.mxu0 0.0
      %1613 = vmatprep.subr.mxu0 0.0
      %1614 = vmatpush1.msra.mxu0 0.0
      %1615 = vmatprep.subr.mxu0 0.0
      %1616 = vmatpush1.msra.mxu0 0.0
      %1617 = vmatprep.subr.mxu0 0.0
      %1618 = vmatpush1.msra.mxu0 0.0
      %1619 = vmatprep.subr.mxu0 0.0
      %1620 = vmatpush1.msra.mxu0 0.0
      %1621 = vmatprep.subr.mxu0 0.0
      %1622 = vmatpush1.msra.mxu0 0.0
      %1623 = vmatprep.subr.mxu0 0.0
      %1624 = vmatpush1.msra.mxu0 0.0
      %1625 = vmatprep.subr.mxu0 0.0
      %1626 = vmatpush1.msra.mxu0 0.0
      %1627 = vmatprep.subr.mxu0 0.0
      %1628 = vmatpush1.msra.mxu0 0.0
      %1629 = vmatprep.subr.mxu0 0.0
      %1630 = vmatpush1.msra.mxu0 0.0
      %1631 = vmatprep.mubr.f32.mxu0 0.0
      %1632 = vmatmul.mubr.f32.gmra.mrb[0].mxu0 %v1562
      %v1633 = vpop.f32.mrb[0].mxu0
      %v1634 = vadd.f32 %v1559, %v1633
      %v1635 = vpop.f32.mrb[0].mxu0
      %1636 = vmatprep.mubr.f32.mxu0 0.0
      %1637 = vmatmul.mubr.f32.gmra.mrb[0].mxu0 %v1565
      %v1638 = vpop.f32.mrb[0].mxu0
      %v1639 = vadd.f32 %v1559, %v1638
      %v1640 = vpop.f32.mrb[0].mxu0
      %1641 = vdwg.mxu0
      %s1642 = scalar_lea.vmem %s477, 48
      %1643 = vst.msk [vmem:[%s1642] sm:$0xff] %vm769, %v1634
      %1644 = vst.msk [vmem:[%s1642 + $0x8] sm:$0xff] %vm769, %v1639
      %p1645 = scmp.lt.s32.totalorder %s20, 1
      %s1646 = scalar_select %p1645, %s20, 1
      %s1647 = smul.addr %s1646, 8
      %s1648 = smul.addr %s1647, 8
      %s1649 = scalar_lea.vmem %s9, %s1648
      // Predicated region
      $region57: #{deephar_forward.4} parent=55 // pred_check
        %p1650 = pneg %p272
      $region58: #{deephar_forward.4} parent=55 // pred_check_branch
        %1652 = sbr.rel (%p1650) target = $region60
      $region59: #{deephar_forward.4} parent=55 // pred_region
        _
      $region60: #{deephar_forward.4} parent=55 // pred_fallthru
        _
    $region56: #{deephar_forward.4} parent=5 // pred_fallthru
      _
    %p1653 = scmp.le.s32.totalorder 2, %s15
    // Predicated region
    $region61: #{deephar_forward.4} parent=5 // pred_check
      %p1654 = pneg %p1653
    $region62: #{deephar_forward.4} parent=5 // pred_check_branch
      %1656 = sbr.rel (%p1654) target = $region64
    $region63: #{deephar_forward.4} parent=5 // pred_region
      %s1657 = ssub.s32 %s15, 2
      // Predicated region
      $region65: #{deephar_forward.4} parent=63 // pred_check
        %p1658 = pneg %p278
      $region66: #{deephar_forward.4} parent=63 // pred_check_branch
        %1660 = sbr.rel (%p1658) target = $region68
      $region67: #{deephar_forward.4} parent=63 // pred_region
        %p1661 = scmp.lt.s32.totalorder %s21, 1
        %s1662 = scalar_select %p1661, %s21, 1
        %s1663 = smul.addr %s1662, 8
        %s1664 = smul.addr %s1663, 8
        %s1665 = scalar_lea.vmem %s9, %s1664
      $region68: #{deephar_forward.4} parent=63 // pred_fallthru
        _
    $region64: #{deephar_forward.4} parent=5 // pred_fallthru
      _
  $region6: #{deephar_forward.4} parent=0 // loop_footer
    %s19 = sadd.s32 1, %s15
  $region7: #{deephar_forward.4} parent=0 // loop_footer_branch
    %14 = sbr.rel target = $region3
  $region8: #{deephar_forward.4} parent=0 // loop_exit
    _

</llo_original>
